<compile_context>
chip_gen: v6e
topology: v6e:2x2x1
jax: 0.10.0
libtpu: 0.0.40
codegen_flags: <defaults>
</compile_context>

<pallas_src>
import jax
import jax.numpy as jnp
from jax.experimental import pallas as pl
from jax.experimental.pallas import tpu as pltpu

# Fixed geometry implied by the module's hard-coded 21*21*64 flatten.
H_IN = 84                     # input spatial size (84x84)
C1, C2 = 32, 64               # conv1 / conv2 output channels
W1C = 96                      # conv1 computed width (84 real + 12 scrap, % 16 == 0)
W2C = 48                      # conv2 computed width (42 real + 6 scrap, % 16 == 0)
R1 = 2                        # conv1 output rows per strip (one pooled row)
R2 = 2                        # conv2 output rows per strip (one pooled row)
P1_ROWS = 46                  # padded pooled-conv1 rows: 2 + 42 + 2
P1_COLS = 52                  # padded pooled-conv1 cols: >= 48 + 4
K_FC1 = 21 * 21 * 64          # 28224
TK = 3584                     # fc1 reduction tile (multiple of 128)
KPAD = 8 * TK                 # 28672 >= K_FC1, padded reduction length
N_FC1 = 256
TN = 128                      # fc1 output-column block (2 blocks -> 2 TCs on v7x)


# ----------------------------------------------------------------------------
# Kernel 1: fused conv1+relu+pool+conv2+relu+pool, one batch element per step.
# ----------------------------------------------------------------------------
def conv_stack_kernel(xq1_ref, w1f_ref, b1_ref, w2f_ref, b2_ref, o_ref,
                      p1p_ref, xq2_ref):
    # xq1_ref: (84, 96, 25*c0) bf16  host-built 5x5 im2col of the padded input
    # w1f_ref: (25*c0, 32)     bf16  conv1 weights, (dy,dx,ch)-major rows
    # b1_ref:  (1, 32)         f32
    # w2f_ref: (5, 160, 64)    bf16  conv2 weights, dy-indexed, (dx,ch)-major rows
    # b2_ref:  (1, 64)         f32
    # o_ref:   (21, 21, 64)    bf16  pooled conv2 output (HWC)
    # p1p_ref: (46, 52, 32)    bf16  scratch: zero-padded pooled conv1 output
    # xq2_ref: (46, 48, 160)   bf16  scratch: dx-folded conv2 input (fully rewritten)
    k1 = w1f_ref.shape[0]

    # Small bf16 scratch (~180 vregs): zero it every element so the halo/scrap
    # region is correct even when the parallel batch axis is split across
    # TensorCores (per-core scratches never execute program_id == 0).
    p1p_ref[...] = jnp.zeros(p1p_ref.shape, p1p_ref.dtype)

    w1f = w1f_ref[...]                                    # loop-invariant, 7 vregs
    b1 = b1_ref[...]

    # ---- conv1: one K=25*c0 matmul per 2-row strip, bias+relu, 2x2/2 maxpool ----
    def c1_strip(s, carry):
        r0 = s * R1
        piece = xq1_ref[pl.ds(r0, R1), :, :].reshape(R1 * W1C, k1)     # (192, k1)
        y = jnp.dot(piece, w1f, preferred_element_type=jnp.float32)    # (192, 32)
        y = jnp.maximum(y + b1, 0.0).reshape(R1, W1C, C1)
        y = jnp.maximum(y[0], y[1])                       # row pool    (96, 32)
        y = y[0:84, :].reshape(42, 2, C1)
        y = jnp.maximum(y[:, 0], y[:, 1])                 # column pool (42, 32)
        p1p_ref[pl.ds(2 + s, 1), pl.ds(2, 42), :] = (
            y.reshape(1, 42, C1).astype(p1p_ref.dtype))
        return carry

    jax.lax.fori_loop(0, 84 // R1, c1_strip, 0)

    # ---- in-VMEM dx-fold of the pooled conv1 output: conv2 contracts K=5*32 ----
    xq2_ref[...] = jnp.concatenate(
        [p1p_ref[:, dx:dx + W2C, :] for dx in range(5)], axis=-1)

    b2 = b2_ref[...]

    # ---- conv2: 5 dy-matmuls of K=160 per 2-row strip, bias+relu, 2x2 maxpool ----
    def c2_strip(s, carry):
        r0 = s * R2

        def dy_step(dy, acc):
            piece = xq2_ref[pl.ds(r0 + dy, R2), :, :].reshape(R2 * W2C, 5 * C1)
            return acc + jnp.dot(piece, w2f_ref[dy],
                                 preferred_element_type=jnp.float32)

        acc = jax.lax.fori_loop(0, 5, dy_step,
                                jnp.zeros((R2 * W2C, C2), jnp.float32))  # (96, 64)
        y = jnp.maximum(acc + b2, 0.0).reshape(R2, W2C, C2)
        y = jnp.maximum(y[0], y[1])                       # row pool    (48, 64)
        y = y[0:42, :].reshape(21, 2, C2)
        y = jnp.maximum(y[:, 0], y[:, 1])                 # column pool (21, 64)
        o_ref[pl.ds(s, 1), :, :] = y.reshape(1, 21, C2).astype(o_ref.dtype)
        return carry

    jax.lax.fori_loop(0, 42 // R2, c2_strip, 0)


def conv_features(x_nchw, params):
    # Returns pooled conv2 features (B, 21, 21, 64) in bf16, HWC-major.
    B, c0, H, W = x_nchw.shape
    assert (H, W) == (H_IN, H_IN), "module hard-codes an 84x84 input"
    k1 = 25 * c0

    # Host-side prep (tiny, fused by XLA): NCHW->NHWC, bf16 cast, zero-pad to
    # (88, 100), and a full 5x5 im2col fold so the kernel never touches the
    # lane-sparse c0-channel layout and conv1 is one fat matmul per strip.
    x = jnp.transpose(x_nchw, (0, 2, 3, 1)).astype(jnp.bfloat16)
    xpad = jnp.pad(x, ((0, 0), (2, 2), (2, W1C + 4 - H_IN - 2), (0, 0)))
    xq1 = jnp.concatenate(
        [xpad[:, dy:dy + H_IN, dx:dx + W1C, :]
         for dy in range(5) for dx in range(5)], axis=-1)       # (B, 84, 96, 25*c0)

    w1f = params["w_conv1"].reshape(k1, C1).astype(jnp.bfloat16)
    w2f = params["w_conv2"].reshape(5, 5 * C1, C2).astype(jnp.bfloat16)
    b1 = params["b_conv1"].reshape(1, C1).astype(jnp.float32)
    b2 = params["b_conv2"].reshape(1, C2).astype(jnp.float32)

    return pl.pallas_call(
        conv_stack_kernel,
        out_shape=jax.ShapeDtypeStruct((B, 21, 21, C2), jnp.bfloat16),
        grid_spec=pltpu.PrefetchScalarGridSpec(
            num_scalar_prefetch=0,
            grid=(B,),
            in_specs=[
                pl.BlockSpec((None, H_IN, W1C, k1), lambda i: (i, 0, 0, 0)),
                pl.BlockSpec((k1, C1), lambda i: (0, 0)),
                pl.BlockSpec((1, C1), lambda i: (0, 0)),
                pl.BlockSpec((5, 5 * C1, C2), lambda i: (0, 0, 0)),
                pl.BlockSpec((1, C2), lambda i: (0, 0)),
            ],
            out_specs=pl.BlockSpec((None, 21, 21, C2), lambda i: (i, 0, 0, 0)),
            scratch_shapes=[
                pltpu.VMEM((P1_ROWS, P1_COLS, C1), jnp.bfloat16),   # padded pooled conv1
                pltpu.VMEM((P1_ROWS, W2C, 5 * C1), jnp.bfloat16),   # dx-folded conv2 input
            ],
        ),
        compiler_params=pltpu.CompilerParams(
            dimension_semantics=("parallel",)),            # batch across cores on v7x
    )(xq1, w1f, b1, w2f, b2)


# ----------------------------------------------------------------------------
# Kernel 2: fc1 (HBM-bound 28672x256 bf16 weight stream), K-tiled with a
# parallel 2x128 column split so both TensorCores stream weights on v7x.
# ----------------------------------------------------------------------------
def fc1_kernel(a_ref, w1_ref, b1_ref, h_ref, acc_ref):
    k = pl.program_id(1)

    @pl.when(k == 0)
    def _():
        acc_ref[...] = jnp.zeros_like(acc_ref)

    acc_ref[...] += jnp.dot(a_ref[...], w1_ref[...],
                            preferred_element_type=jnp.float32)

    @pl.when(k == pl.num_programs(1) - 1)
    def _():
        h_ref[...] = acc_ref[...] + b1_ref[...]


def fc1_matmul(a_bf16, w1_bf16, b1):
    # a_bf16: (B, KPAD) bf16;  w1_bf16: (KPAD, 256) bf16;  b1: (256,)
    B, kp = a_bf16.shape
    assert kp == KPAD and w1_bf16.shape == (KPAD, N_FC1)
    return pl.pallas_call(
        fc1_kernel,
        out_shape=jax.ShapeDtypeStruct((B, N_FC1), jnp.float32),
        grid_spec=pltpu.PrefetchScalarGridSpec(
            num_scalar_prefetch=0,
            grid=(N_FC1 // TN, KPAD // TK),
            in_specs=[
                pl.BlockSpec((B, TK), lambda n, k: (0, k)),
                pl.BlockSpec((TK, TN), lambda n, k: (k, n)),
                pl.BlockSpec((1, TN), lambda n, k: (0, n)),
            ],
            out_specs=pl.BlockSpec((B, TN), lambda n, k: (0, n)),
            scratch_shapes=[pltpu.VMEM((B, TN), jnp.float32)],
        ),
        compiler_params=pltpu.CompilerParams(
            dimension_semantics=("parallel", "arbitrary")),
    )(a_bf16, w1_bf16, b1.reshape(1, N_FC1).astype(jnp.float32))


# ----------------------------------------------------------------------------
# Kernel 3: tiny epilogue  (dropout: eval identity) -> fc2 -> softmax.
# ----------------------------------------------------------------------------
def fc2_softmax_kernel(h_ref, w2_ref, b2_ref, o_ref):
    # TODO(synk): F.dropout(p=0.4) is identity in eval mode; training-mode
    # random masking + 1/(1-p) scaling is not implemented here.
    logits = jnp.dot(h_ref[...], w2_ref[...],
                     preferred_element_type=jnp.float32) + b2_ref[...]
    m = jnp.max(logits, axis=-1, keepdims=True)
    e = jnp.exp(logits - m)
    o_ref[...] = e / jnp.sum(e, axis=-1, keepdims=True)


def fc2_softmax(h, w2, b2):
    B = h.shape[0]
    A = w2.shape[1]
    return pl.pallas_call(
        fc2_softmax_kernel,
        out_shape=jax.ShapeDtypeStruct((B, A), jnp.float32),
    )(h, w2.astype(jnp.float32), b2.reshape(1, A).astype(jnp.float32))


# ----------------------------------------------------------------------------
# Full forward pass.
# ----------------------------------------------------------------------------
def net_forward(x_nchw, params):
    feats = conv_features(x_nchw, params)                  # (B, 21, 21, 64) bf16
    B = feats.shape[0]
    a = feats.reshape(B, K_FC1)                            # HWC-major flatten
    a = jnp.pad(a, ((0, 0), (0, KPAD - K_FC1)))            # zero-pad reduction dim
    h = fc1_matmul(a, params["w_fc1"], params["b_fc1"])    # (B, 256) f32
    return fc2_softmax(h, params["w_fc2"], params["b_fc2"])


def init_params(key, num_states, num_actions):
    ks = jax.random.split(key, 8)
    s = 0.05
    w_fc1 = s * jax.random.normal(ks[4], (K_FC1, N_FC1), jnp.float32)
    # fc1 weight rows are in (H, W, C)-major order of the pooled NHWC feature
    # map (PyTorch's x.view on NCHW is (C, H, W)-major: permute rows when
    # importing a torch state_dict).  Stored pre-padded to KPAD, bf16.
    w_fc1 = jnp.pad(w_fc1, ((0, KPAD - K_FC1), (0, 0))).astype(jnp.bfloat16)
    return {
        # conv weights as (KH, KW, Cin, Cout); PyTorch keeps (Cout, Cin, KH, KW)
        "w_conv1": s * jax.random.normal(ks[0], (5, 5, num_states, C1), jnp.float32),
        "b_conv1": s * jax.random.normal(ks[1], (C1,), jnp.float32),
        "w_conv2": s * jax.random.normal(ks[2], (5, 5, C1, C2), jnp.float32),
        "b_conv2": s * jax.random.normal(ks[3], (C2,), jnp.float32),
        "w_fc1": w_fc1,
        "b_fc1": s * jax.random.normal(ks[5], (N_FC1,), jnp.float32),
        "w_fc2": s * jax.random.normal(ks[6], (N_FC1, num_actions), jnp.float32),
        "b_fc2": s * jax.random.normal(ks[7], (num_actions,), jnp.float32),
    }


# Pure-JAX reference (f32) used only for the self-check in __main__.
def net_forward_reference(x_nchw, params):
    x = jnp.transpose(x_nchw, (0, 2, 3, 1)).astype(jnp.float32)
    y = jax.lax.conv_general_dilated(
        x, params["w_conv1"], (1, 1), "SAME",
        dimension_numbers=("NHWC", "HWIO", "NHWC"))
    y = jnp.maximum(y + params["b_conv1"], 0.0)
    y = jax.lax.reduce_window(y, -jnp.inf, jax.lax.max,
                              (1, 2, 2, 1), (1, 2, 2, 1), "VALID")
    y = jax.lax.conv_general_dilated(
        y, params["w_conv2"], (1, 1), "SAME",
        dimension_numbers=("NHWC", "HWIO", "NHWC"))
    y = jnp.maximum(y + params["b_conv2"], 0.0)
    feats = jax.lax.reduce_window(y, -jnp.inf, jax.lax.max,
                                  (1, 2, 2, 1), (1, 2, 2, 1), "VALID")
    a = feats.reshape(feats.shape[0], K_FC1)
    w1 = params["w_fc1"].astype(jnp.float32)[:K_FC1]
    h = a @ w1 + params["b_fc1"]
    logits = h @ params["w_fc2"] + params["b_fc2"]
    return feats, jax.nn.softmax(logits, axis=-1)


if __name__ == "__main__":
    num_states = 4      # small channel count (e.g. stacked frames)
    num_actions = 8
    batch = 2
    key = jax.random.PRNGKey(0)
    kx, kp = jax.random.split(key)

    # spatial size is forced to 84x84 by the hard-coded 21*21*64 flatten
    x = jax.random.uniform(kx, (batch, num_states, H_IN, H_IN), jnp.float32)
    params = init_params(kp, num_states, num_actions)

    out = jax.block_until_ready(jax.jit(net_forward)(x, params))
    feats = jax.block_until_ready(jax.jit(conv_features)(x, params))
    ref_feats, ref_out = jax.jit(net_forward_reference)(x, params)
    ref_feats = jax.block_until_ready(ref_feats)

    assert out.shape == (batch, num_actions)
    assert bool(jnp.all(jnp.isfinite(out)))
    # softmax rows sum to 1
    assert bool(jnp.allclose(jnp.sum(out, axis=-1), 1.0, atol=1e-5))
    # kernel vs pure-JAX reference (bf16 streams -> loose tolerance)
    assert bool(jnp.allclose(feats.astype(jnp.float32), ref_feats, atol=5e-2))
    assert bool(jnp.allclose(out, ref_out, atol=2e-2))
    print("KERNEL_OK")
</pallas_src>

<mosaic_0001>
module attributes {stable_mosaic.version = 11 : i64} {
  func.func @conv_stack_kernel(%arg0: i32, %arg1: memref<1x84x96x100xbf16, #tpu.memory_space<vmem>>, %arg2: memref<100x32xbf16, #tpu.memory_space<vmem>>, %arg3: memref<1x32xf32, #tpu.memory_space<vmem>>, %arg4: memref<5x160x64xbf16, #tpu.memory_space<vmem>>, %arg5: memref<1x64xf32, #tpu.memory_space<vmem>>, %arg6: memref<1x21x21x64xbf16, #tpu.memory_space<vmem>>, %arg7: memref<46x52x32xbf16, #tpu.memory_space<vmem>>, %arg8: memref<46x48x160xbf16, #tpu.memory_space<vmem>>) attributes {dimension_semantics = [#tpu.dimension_semantics<parallel>], iteration_bounds = array<i64: 2>, scalar_prefetch = 0 : i64, scratch_operands = 2 : i64, tpu.core_type = #tpu.core_type<tc>, window_params = [{transform_indices = @transform_0, window_bounds = array<i64: 1, 84, 96, 100>}, {pipeline_mode = #tpu.pipeline_mode<synchronous>, transform_indices = @transform_1, window_bounds = array<i64: 100, 32>}, {pipeline_mode = #tpu.pipeline_mode<synchronous>, transform_indices = @transform_2, window_bounds = array<i64: 1, 32>}, {pipeline_mode = #tpu.pipeline_mode<synchronous>, transform_indices = @transform_3, window_bounds = array<i64: 5, 160, 64>}, {pipeline_mode = #tpu.pipeline_mode<synchronous>, transform_indices = @transform_4, window_bounds = array<i64: 1, 64>}, {transform_indices = @transform_5, window_bounds = array<i64: 1, 21, 21, 64>}]} {
    %cst = arith.constant 0.000000e+00 : bf16
    %0 = vector.broadcast %cst : bf16 to vector<46x52x32xbf16>
    %c0 = arith.constant 0 : index
    %c0_0 = arith.constant 0 : index
    %c0_1 = arith.constant 0 : index
    %1 = vector.load %arg7[%c0, %c0_0, %c0_1] : memref<46x52x32xbf16, #tpu.memory_space<vmem>>, vector<46x52x32xbf16>
    tpu.vector_store %arg7[%c0, %c0_0, %c0_1], %0 {strides = array<i32>} : memref<46x52x32xbf16, #tpu.memory_space<vmem>>, vector<46x52x32xbf16>,
    %c0_2 = arith.constant 0 : index
    %c0_3 = arith.constant 0 : index
    %2 = vector.load %arg2[%c0_2, %c0_3] : memref<100x32xbf16, #tpu.memory_space<vmem>>, vector<100x32xbf16>
    %c0_4 = arith.constant 0 : index
    %c0_5 = arith.constant 0 : index
    %3 = vector.load %arg3[%c0_4, %c0_5] : memref<1x32xf32, #tpu.memory_space<vmem>>, vector<1x32xf32>
    %c0_i32 = arith.constant 0 : i32
    %c42_i32 = arith.constant 42 : i32
    %4 = arith.addi %c0_i32, %c42_i32 : i32
    %c1_i32 = arith.constant 1 : i32
    scf.for %arg9 = %c0_i32 to %4 step %c1_i32  : i32 {
      %c2_i32 = arith.constant 2 : i32
      %14 = arith.muli %arg9, %c2_i32 : i32
      %c0_26 = arith.constant 0 : index
      %15 = arith.index_cast %14 : i32 to index
      %c0_27 = arith.constant 0 : index
      %c0_28 = arith.constant 0 : index
      %16 = vector.load %arg1[%c0_26, %15, %c0_27, %c0_28] : memref<1x84x96x100xbf16, #tpu.memory_space<vmem>>, vector<1x2x96x100xbf16>
      %17 = vector.shape_cast %16 : vector<1x2x96x100xbf16> to vector<2x96x100xbf16>
      %18 = vector.shape_cast %17 : vector<2x96x100xbf16> to vector<192x100xbf16>
      %cst_29 = arith.constant dense<0.000000e+00> : vector<192x32xf32>
      %19 = tpu.matmul %18, %2, %cst_29 {dimension_numbers = #tpu.dot_dimension_numbers<[1], [0], [0], [1], [0, 0, 1, 1], [], []>} : vector<192x100xbf16>, vector<100x32xbf16>, vector<192x32xf32> -> vector<192x32xf32>
      %20 = vector.broadcast %3 : vector<1x32xf32> to vector<192x32xf32>
      %21 = arith.addf %19, %20 : vector<192x32xf32>
      %cst_30 = arith.constant 0.000000e+00 : f32
      %22 = vector.broadcast %cst_30 : f32 to vector<192x32xf32>
      %23 = arith.maximumf %21, %22 : vector<192x32xf32>
      %24 = vector.shape_cast %23 : vector<192x32xf32> to vector<2x96x32xf32>
      %25 = vector.extract_strided_slice %24 {offsets = [0, 0, 0], sizes = [1, 96, 32], strides = [1, 1, 1]} : vector<2x96x32xf32> to vector<1x96x32xf32>
      %26 = vector.shape_cast %25 : vector<1x96x32xf32> to vector<96x32xf32>
      %27 = vector.extract_strided_slice %24 {offsets = [1, 0, 0], sizes = [1, 96, 32], strides = [1, 1, 1]} : vector<2x96x32xf32> to vector<1x96x32xf32>
      %28 = vector.shape_cast %27 : vector<1x96x32xf32> to vector<96x32xf32>
      %29 = arith.maximumf %26, %28 : vector<96x32xf32>
      %30 = vector.extract_strided_slice %29 {offsets = [0, 0], sizes = [84, 32], strides = [1, 1]} : vector<96x32xf32> to vector<84x32xf32>
      %31 = vector.shape_cast %30 : vector<84x32xf32> to vector<42x2x32xf32>
      %32 = vector.extract_strided_slice %31 {offsets = [0, 0, 0], sizes = [42, 1, 32], strides = [1, 1, 1]} : vector<42x2x32xf32> to vector<42x1x32xf32>
      %33 = vector.shape_cast %32 : vector<42x1x32xf32> to vector<42x32xf32>
      %34 = vector.extract_strided_slice %31 {offsets = [0, 1, 0], sizes = [42, 1, 32], strides = [1, 1, 1]} : vector<42x2x32xf32> to vector<42x1x32xf32>
      %35 = vector.shape_cast %34 : vector<42x1x32xf32> to vector<42x32xf32>
      %36 = arith.maximumf %33, %35 : vector<42x32xf32>
      %37 = vector.shape_cast %36 : vector<42x32xf32> to vector<1x42x32xf32>
      %38 = arith.truncf %37 : vector<1x42x32xf32> to vector<1x42x32xbf16>
      %c2_i32_31 = arith.constant 2 : i32
      %39 = arith.addi %c2_i32_31, %arg9 : i32
      %40 = arith.index_cast %39 : i32 to index
      %c2_32 = arith.constant 2 : index
      %c0_33 = arith.constant 0 : index
      %41 = vector.load %arg7[%40, %c2_32, %c0_33] : memref<46x52x32xbf16, #tpu.memory_space<vmem>>, vector<1x42x32xbf16>
      tpu.vector_store %arg7[%40, %c2_32, %c0_33], %38 {strides = array<i32>} : memref<46x52x32xbf16, #tpu.memory_space<vmem>>, vector<1x42x32xbf16>,
    }
    %c42_i32_6 = arith.constant 42 : i32
    %c0_7 = arith.constant 0 : index
    %c0_8 = arith.constant 0 : index
    %c0_9 = arith.constant 0 : index
    %5 = vector.load %arg7[%c0_7, %c0_8, %c0_9] : memref<46x52x32xbf16, #tpu.memory_space<vmem>>, vector<46x48x32xbf16>
    %c0_10 = arith.constant 0 : index
    %c1 = arith.constant 1 : index
    %c0_11 = arith.constant 0 : index
    %6 = vector.load %arg7[%c0_10, %c1, %c0_11] : memref<46x52x32xbf16, #tpu.memory_space<vmem>>, vector<46x48x32xbf16>
    %c0_12 = arith.constant 0 : index
    %c2 = arith.constant 2 : index
    %c0_13 = arith.constant 0 : index
    %7 = vector.load %arg7[%c0_12, %c2, %c0_13] : memref<46x52x32xbf16, #tpu.memory_space<vmem>>, vector<46x48x32xbf16>
    %c0_14 = arith.constant 0 : index
    %c3 = arith.constant 3 : index
    %c0_15 = arith.constant 0 : index
    %8 = vector.load %arg7[%c0_14, %c3, %c0_15] : memref<46x52x32xbf16, #tpu.memory_space<vmem>>, vector<46x48x32xbf16>
    %c0_16 = arith.constant 0 : index
    %c4 = arith.constant 4 : index
    %c0_17 = arith.constant 0 : index
    %9 = vector.load %arg7[%c0_16, %c4, %c0_17] : memref<46x52x32xbf16, #tpu.memory_space<vmem>>, vector<46x48x32xbf16>
    %10 = tpu.concatenate %5, %6, %7, %8, %9 in 2 : vector<46x48x32xbf16>, vector<46x48x32xbf16>, vector<46x48x32xbf16>, vector<46x48x32xbf16>, vector<46x48x32xbf16> -> vector<46x48x160xbf16>
    %c0_18 = arith.constant 0 : index
    %c0_19 = arith.constant 0 : index
    %c0_20 = arith.constant 0 : index
    %11 = vector.load %arg8[%c0_18, %c0_19, %c0_20] : memref<46x48x160xbf16, #tpu.memory_space<vmem>>, vector<46x48x160xbf16>
    tpu.vector_store %arg8[%c0_18, %c0_19, %c0_20], %10 {strides = array<i32>} : memref<46x48x160xbf16, #tpu.memory_space<vmem>>, vector<46x48x160xbf16>,
    %c0_21 = arith.constant 0 : index
    %c0_22 = arith.constant 0 : index
    %12 = vector.load %arg5[%c0_21, %c0_22] : memref<1x64xf32, #tpu.memory_space<vmem>>, vector<1x64xf32>
    %c0_i32_23 = arith.constant 0 : i32
    %c21_i32 = arith.constant 21 : i32
    %13 = arith.addi %c0_i32_23, %c21_i32 : i32
    %c1_i32_24 = arith.constant 1 : i32
    scf.for %arg9 = %c0_i32_23 to %13 step %c1_i32_24  : i32 {
      %c2_i32 = arith.constant 2 : i32
      %14 = arith.muli %arg9, %c2_i32 : i32
      %cst_26 = arith.constant 0.000000e+00 : f32
      %15 = vector.broadcast %cst_26 : f32 to vector<96x64xf32>
      %c0_i32_27 = arith.constant 0 : i32
      %c5_i32 = arith.constant 5 : i32
      %16 = arith.addi %c0_i32_27, %c5_i32 : i32
      %c1_i32_28 = arith.constant 1 : i32
      %17 = scf.for %arg10 = %c0_i32_27 to %16 step %c1_i32_28 iter_args(%arg11 = %15) -> (vector<96x64xf32>)  : i32 {
        %41 = arith.addi %14, %arg10 : i32
        %42 = arith.index_cast %41 : i32 to index
        %c0_34 = arith.constant 0 : index
        %c0_35 = arith.constant 0 : index
        %43 = vector.load %arg8[%42, %c0_34, %c0_35] : memref<46x48x160xbf16, #tpu.memory_space<vmem>>, vector<2x48x160xbf16>
        %44 = vector.shape_cast %43 : vector<2x48x160xbf16> to vector<96x160xbf16>
        %45 = arith.index_cast %arg10 : i32 to index
        %c0_36 = arith.constant 0 : index
        %c0_37 = arith.constant 0 : index
        %46 = vector.load %arg4[%45, %c0_36, %c0_37] : memref<5x160x64xbf16, #tpu.memory_space<vmem>>, vector<1x160x64xbf16>
        %47 = vector.shape_cast %46 : vector<1x160x64xbf16> to vector<160x64xbf16>
        %cst_38 = arith.constant dense<0.000000e+00> : vector<96x64xf32>
        %48 = tpu.matmul %44, %47, %cst_38 {dimension_numbers = #tpu.dot_dimension_numbers<[1], [0], [0], [1], [0, 0, 1, 1], [], []>} : vector<96x160xbf16>, vector<160x64xbf16>, vector<96x64xf32> -> vector<96x64xf32>
        %49 = arith.addf %arg11, %48 : vector<96x64xf32>
        scf.yield %49 : vector<96x64xf32>
      }
      %c5_i32_29 = arith.constant 5 : i32
      %18 = vector.broadcast %12 : vector<1x64xf32> to vector<96x64xf32>
      %19 = arith.addf %17, %18 : vector<96x64xf32>
      %cst_30 = arith.constant 0.000000e+00 : f32
      %20 = vector.broadcast %cst_30 : f32 to vector<96x64xf32>
      %21 = arith.maximumf %19, %20 : vector<96x64xf32>
      %22 = vector.shape_cast %21 : vector<96x64xf32> to vector<2x48x64xf32>
      %23 = vector.extract_strided_slice %22 {offsets = [0, 0, 0], sizes = [1, 48, 64], strides = [1, 1, 1]} : vector<2x48x64xf32> to vector<1x48x64xf32>
      %24 = vector.shape_cast %23 : vector<1x48x64xf32> to vector<48x64xf32>
      %25 = vector.extract_strided_slice %22 {offsets = [1, 0, 0], sizes = [1, 48, 64], strides = [1, 1, 1]} : vector<2x48x64xf32> to vector<1x48x64xf32>
      %26 = vector.shape_cast %25 : vector<1x48x64xf32> to vector<48x64xf32>
      %27 = arith.maximumf %24, %26 : vector<48x64xf32>
      %28 = vector.extract_strided_slice %27 {offsets = [0, 0], sizes = [42, 64], strides = [1, 1]} : vector<48x64xf32> to vector<42x64xf32>
      %29 = vector.shape_cast %28 : vector<42x64xf32> to vector<21x2x64xf32>
      %30 = vector.extract_strided_slice %29 {offsets = [0, 0, 0], sizes = [21, 1, 64], strides = [1, 1, 1]} : vector<21x2x64xf32> to vector<21x1x64xf32>
      %31 = vector.shape_cast %30 : vector<21x1x64xf32> to vector<21x64xf32>
      %32 = vector.extract_strided_slice %29 {offsets = [0, 1, 0], sizes = [21, 1, 64], strides = [1, 1, 1]} : vector<21x2x64xf32> to vector<21x1x64xf32>
      %33 = vector.shape_cast %32 : vector<21x1x64xf32> to vector<21x64xf32>
      %34 = arith.maximumf %31, %33 : vector<21x64xf32>
      %35 = vector.shape_cast %34 : vector<21x64xf32> to vector<1x21x64xf32>
      %36 = arith.truncf %35 : vector<1x21x64xf32> to vector<1x21x64xbf16>
      %c0_31 = arith.constant 0 : index
      %37 = arith.index_cast %arg9 : i32 to index
      %c0_32 = arith.constant 0 : index
      %c0_33 = arith.constant 0 : index
      %38 = vector.load %arg6[%c0_31, %37, %c0_32, %c0_33] : memref<1x21x21x64xbf16, #tpu.memory_space<vmem>>, vector<1x1x21x64xbf16>
      %39 = vector.shape_cast %38 : vector<1x1x21x64xbf16> to vector<1x21x64xbf16>
      %40 = vector.shape_cast %36 : vector<1x21x64xbf16> to vector<1x1x21x64xbf16>
      tpu.vector_store %arg6[%c0_31, %37, %c0_32, %c0_33], %40 {strides = array<i32>} : memref<1x21x21x64xbf16, #tpu.memory_space<vmem>>, vector<1x1x21x64xbf16>,
    }
    %c21_i32_25 = arith.constant 21 : i32
    return
  }
  func.func @transform_0(%arg0: i32) -> (i32, i32, i32, i32) {
    %c0_i32 = arith.constant 0 : i32
    %c0_i32_0 = arith.constant 0 : i32
    %c0_i32_1 = arith.constant 0 : i32
    %c0_i32_2 = arith.constant 0 : i32
    return %arg0, %c0_i32, %c0_i32_0, %c0_i32_1 : i32, i32, i32, i32
  }
  func.func @transform_1(%arg0: i32) -> (i32, i32) {
    %c0_i32 = arith.constant 0 : i32
    %c0_i32_0 = arith.constant 0 : i32
    %c0_i32_1 = arith.constant 0 : i32
    return %c0_i32, %c0_i32_0 : i32, i32
  }
  func.func @transform_2(%arg0: i32) -> (i32, i32) {
    %c0_i32 = arith.constant 0 : i32
    %c0_i32_0 = arith.constant 0 : i32
    %c0_i32_1 = arith.constant 0 : i32
    return %c0_i32, %c0_i32_0 : i32, i32
  }
  func.func @transform_3(%arg0: i32) -> (i32, i32, i32) {
    %c0_i32 = arith.constant 0 : i32
    %c0_i32_0 = arith.constant 0 : i32
    %c0_i32_1 = arith.constant 0 : i32
    %c0_i32_2 = arith.constant 0 : i32
    return %c0_i32, %c0_i32_0, %c0_i32_1 : i32, i32, i32
  }
  func.func @transform_4(%arg0: i32) -> (i32, i32) {
    %c0_i32 = arith.constant 0 : i32
    %c0_i32_0 = arith.constant 0 : i32
    %c0_i32_1 = arith.constant 0 : i32
    return %c0_i32, %c0_i32_0 : i32, i32
  }
  func.func @transform_5(%arg0: i32) -> (i32, i32, i32, i32) {
    %c0_i32 = arith.constant 0 : i32
    %c0_i32_0 = arith.constant 0 : i32
    %c0_i32_1 = arith.constant 0 : i32
    %c0_i32_2 = arith.constant 0 : i32
    return %arg0, %c0_i32, %c0_i32_0, %c0_i32_1 : i32, i32, i32, i32
  }
}

module attributes {stable_mosaic.version = 11 : i64} {
  func.func @fc1_kernel(%arg0: i32, %arg1: i32, %arg2: memref<2x3584xbf16, #tpu.memory_space<vmem>>, %arg3: memref<3584x128xbf16, #tpu.memory_space<vmem>>, %arg4: memref<1x128xf32, #tpu.memory_space<vmem>>, %arg5: memref<2x128xf32, #tpu.memory_space<vmem>>, %arg6: memref<2x128xf32, #tpu.memory_space<vmem>>) attributes {dimension_semantics = [#tpu.dimension_semantics<parallel>, #tpu.dimension_semantics<arbitrary>], iteration_bounds = array<i64: 2, 8>, scalar_prefetch = 0 : i64, scratch_operands = 1 : i64, tpu.core_type = #tpu.core_type<tc>, window_params = [{transform_indices = @transform_0, window_bounds = array<i64: 2, 3584>}, {transform_indices = @transform_1, window_bounds = array<i64: 3584, 128>}, {transform_indices = @transform_2, window_bounds = array<i64: 1, 128>}, {transform_indices = @transform_3, window_bounds = array<i64: 2, 128>}]} {
    %c0_i32 = arith.constant 0 : i32
    %0 = arith.cmpi eq, %arg1, %c0_i32 : i32
    %1 = arith.extui %0 : i1 to i32
    %c0_i32_0 = arith.constant 0 : i32
    %2 = arith.cmpi ne, %1, %c0_i32_0 : i32
    scf.if %2 {
      %cst_9 = arith.constant 0.000000e+00 : f32
      %12 = vector.broadcast %cst_9 : f32 to vector<2x128xf32>
      %c0_10 = arith.constant 0 : index
      %c0_11 = arith.constant 0 : index
      %13 = vector.load %arg6[%c0_10, %c0_11] : memref<2x128xf32, #tpu.memory_space<vmem>>, vector<2x128xf32>
      tpu.vector_store %arg6[%c0_10, %c0_11], %12 {strides = array<i32>} : memref<2x128xf32, #tpu.memory_space<vmem>>, vector<2x128xf32>,
    } else {
    }
    %c0 = arith.constant 0 : index
    %c0_1 = arith.constant 0 : index
    %3 = vector.load %arg6[%c0, %c0_1] : memref<2x128xf32, #tpu.memory_space<vmem>>, vector<2x128xf32>
    %c0_2 = arith.constant 0 : index
    %c0_3 = arith.constant 0 : index
    %4 = vector.load %arg2[%c0_2, %c0_3] : memref<2x3584xbf16, #tpu.memory_space<vmem>>, vector<2x3584xbf16>
    %c0_4 = arith.constant 0 : index
    %c0_5 = arith.constant 0 : index
    %5 = vector.load %arg3[%c0_4, %c0_5] : memref<3584x128xbf16, #tpu.memory_space<vmem>>, vector<3584x128xbf16>
    %cst = arith.constant dense<0.000000e+00> : vector<2x128xf32>
    %6 = tpu.matmul %4, %5, %cst {dimension_numbers = #tpu.dot_dimension_numbers<[1], [0], [0], [1], [0, 0, 1, 1], [], []>} : vector<2x3584xbf16>, vector<3584x128xbf16>, vector<2x128xf32> -> vector<2x128xf32>
    %7 = arith.addf %3, %6 : vector<2x128xf32>
    %c0_6 = arith.constant 0 : index
    %c0_7 = arith.constant 0 : index
    %8 = vector.load %arg6[%c0_6, %c0_7] : memref<2x128xf32, #tpu.memory_space<vmem>>, vector<2x128xf32>
    tpu.vector_store %arg6[%c0_6, %c0_7], %7 {strides = array<i32>} : memref<2x128xf32, #tpu.memory_space<vmem>>, vector<2x128xf32>,
    %c7_i32 = arith.constant 7 : i32
    %9 = arith.cmpi eq, %arg1, %c7_i32 : i32
    %10 = arith.extui %9 : i1 to i32
    %c0_i32_8 = arith.constant 0 : i32
    %11 = arith.cmpi ne, %10, %c0_i32_8 : i32
    scf.if %11 {
      %c0_9 = arith.constant 0 : index
      %c0_10 = arith.constant 0 : index
      %12 = vector.load %arg6[%c0_9, %c0_10] : memref<2x128xf32, #tpu.memory_space<vmem>>, vector<2x128xf32>
      %c0_11 = arith.constant 0 : index
      %c0_12 = arith.constant 0 : index
      %13 = vector.load %arg4[%c0_11, %c0_12] : memref<1x128xf32, #tpu.memory_space<vmem>>, vector<1x128xf32>
      %14 = vector.broadcast %13 : vector<1x128xf32> to vector<2x128xf32>
      %15 = arith.addf %12, %14 : vector<2x128xf32>
      %c0_13 = arith.constant 0 : index
      %c0_14 = arith.constant 0 : index
      %16 = vector.load %arg5[%c0_13, %c0_14] : memref<2x128xf32, #tpu.memory_space<vmem>>, vector<2x128xf32>
      tpu.vector_store %arg5[%c0_13, %c0_14], %15 {strides = array<i32>} : memref<2x128xf32, #tpu.memory_space<vmem>>, vector<2x128xf32>,
    } else {
    }
    return
  }
  func.func @transform_0(%arg0: i32, %arg1: i32) -> (i32, i32) {
    %c0_i32 = arith.constant 0 : i32
    %c0_i32_0 = arith.constant 0 : i32
    return %c0_i32, %arg1 : i32, i32
  }
  func.func @transform_1(%arg0: i32, %arg1: i32) -> (i32, i32) {
    %c0_i32 = arith.constant 0 : i32
    return %arg1, %arg0 : i32, i32
  }
  func.func @transform_2(%arg0: i32, %arg1: i32) -> (i32, i32) {
    %c0_i32 = arith.constant 0 : i32
    %c0_i32_0 = arith.constant 0 : i32
    return %c0_i32, %arg0 : i32, i32
  }
  func.func @transform_3(%arg0: i32, %arg1: i32) -> (i32, i32) {
    %c0_i32 = arith.constant 0 : i32
    %c0_i32_0 = arith.constant 0 : i32
    return %c0_i32, %arg0 : i32, i32
  }
}

module attributes {stable_mosaic.version = 11 : i64} {
  func.func @fc2_softmax_kernel(%arg0: memref<2x256xf32, #tpu.memory_space<vmem>>, %arg1: memref<256x8xf32, #tpu.memory_space<vmem>>, %arg2: memref<1x8xf32, #tpu.memory_space<vmem>>, %arg3: memref<2x8xf32, #tpu.memory_space<vmem>>) attributes {dimension_semantics = [], scalar_prefetch = 0 : i64, scratch_operands = 0 : i64, tpu.core_type = #tpu.core_type<tc>} {
    %c0 = arith.constant 0 : index
    %c0_0 = arith.constant 0 : index
    %0 = vector.load %arg0[%c0, %c0_0] : memref<2x256xf32, #tpu.memory_space<vmem>>, vector<2x256xf32>
    %c0_1 = arith.constant 0 : index
    %c0_2 = arith.constant 0 : index
    %1 = vector.load %arg1[%c0_1, %c0_2] : memref<256x8xf32, #tpu.memory_space<vmem>>, vector<256x8xf32>
    %cst = arith.constant dense<0.000000e+00> : vector<2x8xf32>
    %2 = tpu.matmul %0, %1, %cst {dimension_numbers = #tpu.dot_dimension_numbers<[1], [0], [0], [1], [0, 0, 1, 1], [], []>} : vector<2x256xf32>, vector<256x8xf32>, vector<2x8xf32> -> vector<2x8xf32>
    %c0_3 = arith.constant 0 : index
    %c0_4 = arith.constant 0 : index
    %3 = vector.load %arg2[%c0_3, %c0_4] : memref<1x8xf32, #tpu.memory_space<vmem>>, vector<1x8xf32>
    %4 = vector.broadcast %3 : vector<1x8xf32> to vector<2x8xf32>
    %5 = arith.addf %2, %4 : vector<2x8xf32>
    %cst_5 = arith.constant dense<0xFF800000> : vector<2xf32>
    %6 = vector.multi_reduction <maximumf>, %5, %cst_5 [1] : vector<2x8xf32> to vector<2xf32>
    %7 = vector.shape_cast %6 : vector<2xf32> to vector<2x1xf32>
    %8 = vector.broadcast %7 : vector<2x1xf32> to vector<2x8xf32>
    %9 = arith.subf %5, %8 : vector<2x8xf32>
    %10 = math.exp %9 : vector<2x8xf32>
    %cst_6 = arith.constant dense<0.000000e+00> : vector<2xf32>
    %11 = vector.multi_reduction <add>, %10, %cst_6 [1] : vector<2x8xf32> to vector<2xf32>
    %12 = vector.shape_cast %11 : vector<2xf32> to vector<2x1xf32>
    %13 = vector.broadcast %12 : vector<2x1xf32> to vector<2x8xf32>
    %14 = arith.divf %10, %13 : vector<2x8xf32>
    %c0_7 = arith.constant 0 : index
    %c0_8 = arith.constant 0 : index
    %15 = vector.load %arg3[%c0_7, %c0_8] : memref<2x8xf32, #tpu.memory_space<vmem>>, vector<2x8xf32>
    tpu.vector_store %arg3[%c0_7, %c0_8], %14 {strides = array<i32>} : memref<2x8xf32, #tpu.memory_space<vmem>>, vector<2x8xf32>,
    return
  }
}

</mosaic_0001>

<llo_original>
// kernel: net_forward.4
$region0: #{net_forward.4}
  #allocation0 [shape = 'u32[]', space=smem, size = 0x4, offset = 0x4, fixed_abs, tag = 'smem constant byte address 0x4 - core index']
  #allocation1 [shape = 'u32[144,128]{1,0:T(1,128)}', space=vmem, size = 0x12000, scoped, tag = 'internal scratch']
  #allocation2 [shape = 'f32[2,128]{1,0:T(2,128)}', space=vmem, size = 0x400, scoped, tag = 'scratch operand']
  %s0 = inlined_call_operand.vmem [shape: bf16[2,28672], index: 0, kind: input, shape index: {}]
  %s1 = inlined_call_operand.hbm [shape: bf16[28672,256], index: 1, kind: input, shape index: {}]
  %s2 = inlined_call_operand.vmem [shape: f32[1,256], index: 2, kind: input, shape index: {}]
  %s3 = inlined_call_operand.vmem [shape: f32[2,256], index: 3, kind: output, shape index: {}]
  %s4 = sld [smem:[#allocation0]]
  $region57: #{net_forward.4} parent=0
    _
  %s6 = ssub.s32 1, %s4
  %s7 = scalar_select 0, %s6, %s4
  $region1: #{net_forward.4} parent=0
    #allocation3 [shape = 'u8[1835008]{0}', space=vmem, size = 0x1c0000, scoped, tag = 'input window, operand 1']
    #allocation4 [shape = 's32[2]{0}', space=sflag, size = 0x8, scoped, tag = 'scoped memory for net_forward.4']
    %8 = vsyncpa [#allocation4], 0
    %s9 = scalar_lea.sflag [#allocation4], 1
    %10 = vsyncpa %s9, 0
    loop: start=0, step=1, limit=18
    $region2: #{net_forward.4} parent=1 // loop_pre_header
      _
    $region3: #{net_forward.4} parent=1 // loop_header
      %s12 = sphi 0, %s16
      %p13 = scmp.ge.s32.totalorder %s12, 18
      %s19 = sphi 0, %s31
      %s20 = sphi 0, %s27
      %s21 = sphi 0, %s19
      %s22 = sphi 0, %s20
      %s23 = sphi 0, %s21
      %s24 = sphi 0, %s22
      %s34 = sphi 0, %s36
      %s37 = sphi 0, %s34
      %s38 = sphi 0, %s37
      %s54 = sphi 0, %s38
      %s62 = sphi 0, %s64
      %s65 = sphi 0, %s62
      %s66 = sphi 0, %s65
      %s82 = sphi 0, %s66
      %s88 = sphi 0, %s90
      %s91 = sphi 0, %s88
      %s92 = sphi 0, %s91
      %s108 = sphi 0, %s92
      %s114 = sphi 0, %s116
      %s117 = sphi 0, %s114
      %s118 = sphi 0, %s117
      %s134 = sphi 0, %s118
    $region4: #{net_forward.4} parent=1 // loop_header_branch
      %15 = sbr.rel (%p13) target = $region8
    $region5: #{net_forward.4} parent=1 // loop_body
      %s17 = ssub.s32 %s12, 1
      %s18 = ssub.s32 %s12, 2
      %s25 = sadd.s32 1, %s20
      %p26 = scmp.ge.s32.totalorder %s25, 8
      %s27 = scalar_select %p26, 0, %s25
      %s28 = sadd.s32 1, %s19
      %s29 = scalar_select %p26, %s28, %s19
      %p30 = scmp.ge.s32.totalorder %s29, 2
      %s31 = scalar_select %p30, 0, %s29
      %s32 = ssub.s32 %s20, %s27
      %p33 = scmp.eq.s32.totalorder %s32, 0
      %s35 = sadd.s32 %s34, 1
      %s36 = scalar_select %p33, %s34, %s35
      %p39 = pneg %p33
      %p40 = scmp.eq.s32.totalorder %s12, 15
      %p41 = por %p39, %p40
      %p42 = scmp.ne.s32.totalorder %s34, %s37
      %p43 = scmp.eq.s32.totalorder %s12, 0
      %p44 = por %p42, %p43
      %p45 = scmp.ne.s32.totalorder %s34, %s37
      %p46 = scmp.eq.s32.totalorder %s17, 15
      %p47 = por %p45, %p46
      %p48 = scmp.ne.s32.totalorder %s37, %s38
      %p49 = scmp.eq.s32.totalorder %s17, 0
      %p50 = por %p48, %p49
      %p51 = scmp.ne.s32.totalorder %s37, %s38
      %p52 = scmp.eq.s32.totalorder %s18, 15
      %p53 = por %p51, %p52
      %p55 = scmp.ne.s32.totalorder %s38, %s54
      %p56 = scmp.eq.s32.totalorder %s18, 0
      %p57 = por %p55, %p56
      %s58 = ssub.s32 %s20, %s27
      %s59 = ssub.s32 %s19, %s31
      %s60 = sor.u32 %s58, %s59
      %p61 = scmp.eq.s32.totalorder %s60, 0
      %s63 = sadd.s32 %s62, 1
      %s64 = scalar_select %p61, %s62, %s63
      %p67 = pneg %p61
      %p68 = scmp.eq.s32.totalorder %s12, 15
      %p69 = por %p67, %p68
      %p70 = scmp.ne.s32.totalorder %s62, %s65
      %p71 = scmp.eq.s32.totalorder %s12, 0
      %p72 = por %p70, %p71
      %p73 = scmp.ne.s32.totalorder %s62, %s65
      %p74 = scmp.eq.s32.totalorder %s17, 15
      %p75 = por %p73, %p74
      %p76 = scmp.ne.s32.totalorder %s65, %s66
      %p77 = scmp.eq.s32.totalorder %s17, 0
      %p78 = por %p76, %p77
      %p79 = scmp.ne.s32.totalorder %s65, %s66
      %p80 = scmp.eq.s32.totalorder %s18, 15
      %p81 = por %p79, %p80
      %p83 = scmp.ne.s32.totalorder %s66, %s82
      %p84 = scmp.eq.s32.totalorder %s18, 0
      %p85 = por %p83, %p84
      %s86 = ssub.s32 %s19, %s31
      %p87 = scmp.eq.s32.totalorder %s86, 0
      %s89 = sadd.s32 %s88, 1
      %s90 = scalar_select %p87, %s88, %s89
      %p93 = pneg %p87
      %p94 = scmp.eq.s32.totalorder %s12, 15
      %p95 = por %p93, %p94
      %p96 = scmp.ne.s32.totalorder %s88, %s91
      %p97 = scmp.eq.s32.totalorder %s12, 0
      %p98 = por %p96, %p97
      %p99 = scmp.ne.s32.totalorder %s88, %s91
      %p100 = scmp.eq.s32.totalorder %s17, 15
      %p101 = por %p99, %p100
      %p102 = scmp.ne.s32.totalorder %s91, %s92
      %p103 = scmp.eq.s32.totalorder %s17, 0
      %p104 = por %p102, %p103
      %p105 = scmp.ne.s32.totalorder %s91, %s92
      %p106 = scmp.eq.s32.totalorder %s18, 15
      %p107 = por %p105, %p106
      %p109 = scmp.ne.s32.totalorder %s92, %s108
      %p110 = scmp.eq.s32.totalorder %s18, 0
      %p111 = por %p109, %p110
      %s112 = ssub.s32 %s19, %s31
      %p113 = scmp.eq.s32.totalorder %s112, 0
      %s115 = sadd.s32 %s114, 1
      %s116 = scalar_select %p113, %s114, %s115
      %p119 = pneg %p113
      %p120 = scmp.eq.s32.totalorder %s12, 15
      %p121 = por %p119, %p120
      %p122 = scmp.ne.s32.totalorder %s114, %s117
      %p123 = scmp.eq.s32.totalorder %s12, 0
      %p124 = por %p122, %p123
      %p125 = scmp.ne.s32.totalorder %s114, %s117
      %p126 = scmp.eq.s32.totalorder %s17, 15
      %p127 = por %p125, %p126
      %p128 = scmp.ne.s32.totalorder %s117, %s118
      %p129 = scmp.eq.s32.totalorder %s17, 0
      %p130 = por %p128, %p129
      %p131 = scmp.ne.s32.totalorder %s117, %s118
      %p132 = scmp.eq.s32.totalorder %s18, 15
      %p133 = por %p131, %p132
      %p135 = scmp.ne.s32.totalorder %s118, %s134
      %p136 = scmp.eq.s32.totalorder %s18, 0
      %p137 = por %p135, %p136
      %p138 = scmp.le.s32.totalorder 1, %s12
      %p139 = scmp.lt.s32.totalorder %s12, 17
      %p140 = pnand %p138, %p139
      %p141 = pneg %p140
      // Predicated region
      $region9: #{net_forward.4} parent=5 // pred_check
        _
      $region10: #{net_forward.4} parent=5 // pred_check_branch
        %143 = sbr.rel (%p140) target = $region12
      $region11: #{net_forward.4} parent=5 // pred_region
        %s144 = ssub.s32 %s12, 1
      $region12: #{net_forward.4} parent=5 // pred_fallthru
        _
      %p145 = scmp.lt.s32.totalorder %s12, 16
      // Predicated region
      $region13: #{net_forward.4} parent=5 // pred_check
        %p146 = pneg %p145
      $region14: #{net_forward.4} parent=5 // pred_check_branch
        %148 = sbr.rel (%p146) target = $region16
      $region15: #{net_forward.4} parent=5 // pred_region
        // Predicated region
        $region17: #{net_forward.4} parent=15 // pred_check
          %p149 = pneg %p44
        $region18: #{net_forward.4} parent=15 // pred_check_branch
          %151 = sbr.rel (%p149) target = $region20
        $region19: #{net_forward.4} parent=15 // pred_region
          %s152 = smul.u32 28, %s20
          %p153 = scmp.lt.s32.totalorder %s152, 223
          %s154 = scalar_select %p153, %s152, 223
          %s155 = scalar_lea.vmem %s0, %s154
          %s156 = smul.u32 28, %s20
        $region20: #{net_forward.4} parent=15 // pred_fallthru
          _
        // Predicated region
        $region21: #{net_forward.4} parent=15 // pred_check
          %p157 = pneg %p72
        $region22: #{net_forward.4} parent=15 // pred_check_branch
          %159 = sbr.rel (%p157) target = $region24
        $region23: #{net_forward.4} parent=15 // pred_region
          %s160 = sand.u32 %s62, 1
          %s161 = scalar_lea.sflag [#allocation4], %s160
          %s162 = sand.u32 %s62, 1
          %s163 = smul.addr %s162, 1792
          %s164 = scalar_lea.vmem [#allocation3], %s163
          %s165 = smul.u32 448, %s20
          %s167 = ssub.s32 28672, 28672
          %168 = vsyncadd %s161, %s167
          %s169 = smul.addr %s165, 2
          %s170 = sadd.s32 %s19, %s169
          %s171 = smul.addr %s170, 64
          %s172 = scalar_lea.hbm %s1, %s171
          %s173 = sshll.u32 %s164, 4
          %s174 = int_to_ptr.vmem [resolvable:$true] %s173
          %179 = dma.hbm_to_vmem [thread:$0]  %s172, 28672, %s174, %s161, 128, 64, 4
        $region24: #{net_forward.4} parent=15 // pred_fallthru
          _
        // Predicated region
        $region25: #{net_forward.4} parent=15 // pred_check
          %p180 = pneg %p98
        $region26: #{net_forward.4} parent=15 // pred_check_branch
          %182 = sbr.rel (%p180) target = $region28
        $region27: #{net_forward.4} parent=15 // pred_region
          %p183 = scmp.lt.s32.totalorder %s19, 1
          %s184 = scalar_select %p183, %s19, 1
          %s185 = scalar_lea.vmem %s2, %s184
        $region28: #{net_forward.4} parent=15 // pred_fallthru
          _
      $region16: #{net_forward.4} parent=5 // pred_fallthru
        _
      %p186 = scmp.le.s32.totalorder 1, %s12
      %p187 = scmp.lt.s32.totalorder %s12, 17
      %p188 = pnand %p186, %p187
      %p189 = pneg %p188
      // Predicated region
      $region29: #{net_forward.4} parent=5 // pred_check
        _
      $region30: #{net_forward.4} parent=5 // pred_check_branch
        %191 = sbr.rel (%p188) target = $region32
      $region31: #{net_forward.4} parent=5 // pred_region
        %s192 = ssub.s32 %s12, 1
        %s193 = sand.u32 %s65, 1
        %s194 = scalar_lea.sflag [#allocation4], %s193
        %s195 = sand.u32 %s65, 1
        %s196 = smul.addr %s195, 1792
        %s197 = scalar_lea.vmem [#allocation3], %s196
        // Predicated region
        $region33: #{net_forward.4} parent=31 // pred_check
          %p198 = pneg %p78
        $region34: #{net_forward.4} parent=31 // pred_check_branch
          %200 = sbr.rel (%p198) target = $region36
        $region35: #{net_forward.4} parent=31 // pred_region
          %201 = dma.done %s194, 28672
        $region36: #{net_forward.4} parent=31 // pred_fallthru
          _
        %s202 = smul.u32 28, %s22
        %p203 = scmp.lt.s32.totalorder %s202, 223
        %s204 = scalar_select %p203, %s202, 223
        %s205 = scalar_lea.vmem %s0, %s204
        %p206 = pneg %p50
        %p207 = pneg %p47
        %s208 = sand.u32 %s65, 1
        %s209 = scalar_lea.sflag [#allocation4], %s208
        %s210 = sand.u32 %s65, 1
        %s211 = smul.addr %s210, 1792
        %s212 = scalar_lea.vmem [#allocation3], %s211
        %p213 = pneg %p78
        %p214 = pneg %p75
        %p215 = scmp.lt.s32.totalorder %s21, 1
        %s216 = scalar_select %p215, %s21, 1
        %s217 = scalar_lea.vmem %s2, %s216
        %p218 = pneg %p104
        %p219 = pneg %p101
        %p220 = pneg %p130
        %p221 = pneg %p127
        %p222 = scmp.lt.s32.totalorder %s21, 1
        %s223 = scalar_select %p222, %s21, 1
        %s224 = smul.addr %s223, 2
        %s225 = scalar_lea.vmem %s3, %s224
        %s226 = smul.u32 28, %s22
        %p227 = scmp.lt.s32.totalorder %s226, 223
        %s228 = scalar_select %p227, %s226, 223
        %s229 = scalar_lea.vmem %s0, %s228
        %s230 = smul.u32 28, %s22
        %s231 = smul.u32 448, %s22
        %p232 = scmp.lt.s32.totalorder %s21, 1
        %s233 = scalar_select %p232, %s21, 1
        %s234 = scalar_lea.vmem %s2, %s233
        %p235 = scmp.lt.s32.totalorder %s21, 1
        %s236 = scalar_select %p235, %s21, 1
        %s237 = smul.addr %s236, 2
        %s238 = scalar_lea.vmem %s3, %s237
        %p240 = scmp.eq.s32.totalorder %s22, 0
        // Predicated region
        $region37: #{net_forward.4} parent=31 // pred_check
          %p241 = pneg %p240
        $region38: #{net_forward.4} parent=31 // pred_check_branch
          %243 = sbr.rel (%p241) target = $region40
        $region39: #{net_forward.4} parent=31 // pred_region
          %244 = vst [vmem:[#allocation2] sm:$0x3] 0.0
        $region40: #{net_forward.4} parent=31 // pred_fallthru
          _
        %v245 = vld [vmem:[#allocation2] sm:$0x3]
        %v246 = vld [vmem:[%s229] sm:$0xff]
        %v247 = vld [vmem:[%s229 + $0x8] sm:$0xff]
        %v248 = vld [vmem:[%s229 + $0x10] sm:$0xff]
        %v249 = vld [vmem:[%s229 + $0x18] sm:$0xf]
        %v250 = vld [vmem:[%s197] sm:$0xf]
        %v251 = vld [vmem:[%s197 + $0x4] sm:$0xf]
        %v252 = vld [vmem:[%s197 + $0x8] sm:$0xf]
        %v253 = vld [vmem:[%s197 + $0xc] sm:$0xf]
        %v254 = vld [vmem:[%s197 + $0x10] sm:$0xf]
        %v255 = vld [vmem:[%s197 + $0x14] sm:$0xf]
        %v256 = vld [vmem:[%s197 + $0x18] sm:$0xf]
        %v257 = vld [vmem:[%s197 + $0x1c] sm:$0xf]
        %v258 = vld [vmem:[%s197 + $0x20] sm:$0xf]
        %v259 = vld [vmem:[%s197 + $0x24] sm:$0xf]
        %v260 = vld [vmem:[%s197 + $0x28] sm:$0xf]
        %v261 = vld [vmem:[%s197 + $0x2c] sm:$0xf]
        %v262 = vld [vmem:[%s197 + $0x30] sm:$0xf]
        %v263 = vld [vmem:[%s197 + $0x34] sm:$0xf]
        %v264 = vld [vmem:[%s197 + $0x38] sm:$0xf]
        %v265 = vld [vmem:[%s197 + $0x3c] sm:$0xf]
        %v266 = vld [vmem:[%s197 + $0x40] sm:$0xf]
        %v267 = vld [vmem:[%s197 + $0x44] sm:$0xf]
        %v268 = vld [vmem:[%s197 + $0x48] sm:$0xf]
        %v269 = vld [vmem:[%s197 + $0x4c] sm:$0xf]
        %v270 = vld [vmem:[%s197 + $0x50] sm:$0xf]
        %v271 = vld [vmem:[%s197 + $0x54] sm:$0xf]
        %v272 = vld [vmem:[%s197 + $0x58] sm:$0xf]
        %v273 = vld [vmem:[%s197 + $0x5c] sm:$0xf]
        %v274 = vld [vmem:[%s197 + $0x60] sm:$0xf]
        %v275 = vld [vmem:[%s197 + $0x64] sm:$0xf]
        %v276 = vld [vmem:[%s197 + $0x68] sm:$0xf]
        %v277 = vld [vmem:[%s197 + $0x6c] sm:$0xf]
        %v278 = vld [vmem:[%s197 + $0x70] sm:$0xf]
        %v279 = vld [vmem:[%s197 + $0x74] sm:$0xf]
        %v280 = vld [vmem:[%s197 + $0x78] sm:$0xf]
        %v281 = vld [vmem:[%s197 + $0x7c] sm:$0xf]
        %v282 = vld [vmem:[%s197 + $0x80] sm:$0xf]
        %v283 = vld [vmem:[%s197 + $0x84] sm:$0xf]
        %v284 = vld [vmem:[%s197 + $0x88] sm:$0xf]
        %v285 = vld [vmem:[%s197 + $0x8c] sm:$0xf]
        %v286 = vld [vmem:[%s197 + $0x90] sm:$0xf]
        %v287 = vld [vmem:[%s197 + $0x94] sm:$0xf]
        %v288 = vld [vmem:[%s197 + $0x98] sm:$0xf]
        %v289 = vld [vmem:[%s197 + $0x9c] sm:$0xf]
        %v290 = vld [vmem:[%s197 + $0xa0] sm:$0xf]
        %v291 = vld [vmem:[%s197 + $0xa4] sm:$0xf]
        %v292 = vld [vmem:[%s197 + $0xa8] sm:$0xf]
        %v293 = vld [vmem:[%s197 + $0xac] sm:$0xf]
        %v294 = vld [vmem:[%s197 + $0xb0] sm:$0xf]
        %v295 = vld [vmem:[%s197 + $0xb4] sm:$0xf]
        %v296 = vld [vmem:[%s197 + $0xb8] sm:$0xf]
        %v297 = vld [vmem:[%s197 + $0xbc] sm:$0xf]
        %v298 = vld [vmem:[%s197 + $0xc0] sm:$0xf]
        %v299 = vld [vmem:[%s197 + $0xc4] sm:$0xf]
        %v300 = vld [vmem:[%s197 + $0xc8] sm:$0xf]
        %v301 = vld [vmem:[%s197 + $0xcc] sm:$0xf]
        %v302 = vld [vmem:[%s197 + $0xd0] sm:$0xf]
        %v303 = vld [vmem:[%s197 + $0xd4] sm:$0xf]
        %v304 = vld [vmem:[%s197 + $0xd8] sm:$0xf]
        %v305 = vld [vmem:[%s197 + $0xdc] sm:$0xf]
        %v306 = vld [vmem:[%s197 + $0xe0] sm:$0xf]
        %v307 = vld [vmem:[%s197 + $0xe4] sm:$0xf]
        %v308 = vld [vmem:[%s197 + $0xe8] sm:$0xf]
        %v309 = vld [vmem:[%s197 + $0xec] sm:$0xf]
        %v310 = vld [vmem:[%s197 + $0xf0] sm:$0xf]
        %v311 = vld [vmem:[%s197 + $0xf4] sm:$0xf]
        %v312 = vld [vmem:[%s197 + $0xf8] sm:$0xf]
        %v313 = vld [vmem:[%s197 + $0xfc] sm:$0xf]
        %v314 = vld [vmem:[%s197 + $0x100] sm:$0xf]
        %v315 = vld [vmem:[%s197 + $0x104] sm:$0xf]
        %v316 = vld [vmem:[%s197 + $0x108] sm:$0xf]
        %v317 = vld [vmem:[%s197 + $0x10c] sm:$0xf]
        %v318 = vld [vmem:[%s197 + $0x110] sm:$0xf]
        %v319 = vld [vmem:[%s197 + $0x114] sm:$0xf]
        %v320 = vld [vmem:[%s197 + $0x118] sm:$0xf]
        %v321 = vld [vmem:[%s197 + $0x11c] sm:$0xf]
        %v322 = vld [vmem:[%s197 + $0x120] sm:$0xf]
        %v323 = vld [vmem:[%s197 + $0x124] sm:$0xf]
        %v324 = vld [vmem:[%s197 + $0x128] sm:$0xf]
        %v325 = vld [vmem:[%s197 + $0x12c] sm:$0xf]
        %v326 = vld [vmem:[%s197 + $0x130] sm:$0xf]
        %v327 = vld [vmem:[%s197 + $0x134] sm:$0xf]
        %v328 = vld [vmem:[%s197 + $0x138] sm:$0xf]
        %v329 = vld [vmem:[%s197 + $0x13c] sm:$0xf]
        %v330 = vld [vmem:[%s197 + $0x140] sm:$0xf]
        %v331 = vld [vmem:[%s197 + $0x144] sm:$0xf]
        %v332 = vld [vmem:[%s197 + $0x148] sm:$0xf]
        %v333 = vld [vmem:[%s197 + $0x14c] sm:$0xf]
        %v334 = vld [vmem:[%s197 + $0x150] sm:$0xf]
        %v335 = vld [vmem:[%s197 + $0x154] sm:$0xf]
        %v336 = vld [vmem:[%s197 + $0x158] sm:$0xf]
        %v337 = vld [vmem:[%s197 + $0x15c] sm:$0xf]
        %v338 = vld [vmem:[%s197 + $0x160] sm:$0xf]
        %v339 = vld [vmem:[%s197 + $0x164] sm:$0xf]
        %v340 = vld [vmem:[%s197 + $0x168] sm:$0xf]
        %v341 = vld [vmem:[%s197 + $0x16c] sm:$0xf]
        %v342 = vld [vmem:[%s197 + $0x170] sm:$0xf]
        %v343 = vld [vmem:[%s197 + $0x174] sm:$0xf]
        %v344 = vld [vmem:[%s197 + $0x178] sm:$0xf]
        %v345 = vld [vmem:[%s197 + $0x17c] sm:$0xf]
        %v346 = vld [vmem:[%s197 + $0x180] sm:$0xf]
        %v347 = vld [vmem:[%s197 + $0x184] sm:$0xf]
        %v348 = vld [vmem:[%s197 + $0x188] sm:$0xf]
        %v349 = vld [vmem:[%s197 + $0x18c] sm:$0xf]
        %v350 = vld [vmem:[%s197 + $0x190] sm:$0xf]
        %v351 = vld [vmem:[%s197 + $0x194] sm:$0xf]
        %v352 = vld [vmem:[%s197 + $0x198] sm:$0xf]
        %v353 = vld [vmem:[%s197 + $0x19c] sm:$0xf]
        %v354 = vld [vmem:[%s197 + $0x1a0] sm:$0xf]
        %v355 = vld [vmem:[%s197 + $0x1a4] sm:$0xf]
        %v356 = vld [vmem:[%s197 + $0x1a8] sm:$0xf]
        %v357 = vld [vmem:[%s197 + $0x1ac] sm:$0xf]
        %v358 = vld [vmem:[%s197 + $0x1b0] sm:$0xf]
        %v359 = vld [vmem:[%s197 + $0x1b4] sm:$0xf]
        %v360 = vld [vmem:[%s197 + $0x1b8] sm:$0xf]
        %v361 = vld [vmem:[%s197 + $0x1bc] sm:$0xf]
        %v362 = vld [vmem:[%s197 + $0x1c0] sm:$0xf]
        %v363 = vld [vmem:[%s197 + $0x1c4] sm:$0xf]
        %v364 = vld [vmem:[%s197 + $0x1c8] sm:$0xf]
        %v365 = vld [vmem:[%s197 + $0x1cc] sm:$0xf]
        %v366 = vld [vmem:[%s197 + $0x1d0] sm:$0xf]
        %v367 = vld [vmem:[%s197 + $0x1d4] sm:$0xf]
        %v368 = vld [vmem:[%s197 + $0x1d8] sm:$0xf]
        %v369 = vld [vmem:[%s197 + $0x1dc] sm:$0xf]
        %v370 = vld [vmem:[%s197 + $0x1e0] sm:$0xf]
        %v371 = vld [vmem:[%s197 + $0x1e4] sm:$0xf]
        %v372 = vld [vmem:[%s197 + $0x1e8] sm:$0xf]
        %v373 = vld [vmem:[%s197 + $0x1ec] sm:$0xf]
        %v374 = vld [vmem:[%s197 + $0x1f0] sm:$0xf]
        %v375 = vld [vmem:[%s197 + $0x1f4] sm:$0xf]
        %v376 = vld [vmem:[%s197 + $0x1f8] sm:$0xf]
        %v377 = vld [vmem:[%s197 + $0x1fc] sm:$0xf]
        %v378 = vld [vmem:[%s197 + $0x200] sm:$0xf]
        %v379 = vld [vmem:[%s197 + $0x204] sm:$0xf]
        %v380 = vld [vmem:[%s197 + $0x208] sm:$0xf]
        %v381 = vld [vmem:[%s197 + $0x20c] sm:$0xf]
        %v382 = vld [vmem:[%s197 + $0x210] sm:$0xf]
        %v383 = vld [vmem:[%s197 + $0x214] sm:$0xf]
        %v384 = vld [vmem:[%s197 + $0x218] sm:$0xf]
        %v385 = vld [vmem:[%s197 + $0x21c] sm:$0xf]
        %v386 = vld [vmem:[%s197 + $0x220] sm:$0xf]
        %v387 = vld [vmem:[%s197 + $0x224] sm:$0xf]
        %v388 = vld [vmem:[%s197 + $0x228] sm:$0xf]
        %v389 = vld [vmem:[%s197 + $0x22c] sm:$0xf]
        %v390 = vld [vmem:[%s197 + $0x230] sm:$0xf]
        %v391 = vld [vmem:[%s197 + $0x234] sm:$0xf]
        %v392 = vld [vmem:[%s197 + $0x238] sm:$0xf]
        %v393 = vld [vmem:[%s197 + $0x23c] sm:$0xf]
        %v394 = vld [vmem:[%s197 + $0x240] sm:$0xf]
        %v395 = vld [vmem:[%s197 + $0x244] sm:$0xf]
        %v396 = vld [vmem:[%s197 + $0x248] sm:$0xf]
        %v397 = vld [vmem:[%s197 + $0x24c] sm:$0xf]
        %v398 = vld [vmem:[%s197 + $0x250] sm:$0xf]
        %v399 = vld [vmem:[%s197 + $0x254] sm:$0xf]
        %v400 = vld [vmem:[%s197 + $0x258] sm:$0xf]
        %v401 = vld [vmem:[%s197 + $0x25c] sm:$0xf]
        %v402 = vld [vmem:[%s197 + $0x260] sm:$0xf]
        %v403 = vld [vmem:[%s197 + $0x264] sm:$0xf]
        %v404 = vld [vmem:[%s197 + $0x268] sm:$0xf]
        %v405 = vld [vmem:[%s197 + $0x26c] sm:$0xf]
        %v406 = vld [vmem:[%s197 + $0x270] sm:$0xf]
        %v407 = vld [vmem:[%s197 + $0x274] sm:$0xf]
        %v408 = vld [vmem:[%s197 + $0x278] sm:$0xf]
        %v409 = vld [vmem:[%s197 + $0x27c] sm:$0xf]
        %v410 = vld [vmem:[%s197 + $0x280] sm:$0xf]
        %v411 = vld [vmem:[%s197 + $0x284] sm:$0xf]
        %v412 = vld [vmem:[%s197 + $0x288] sm:$0xf]
        %v413 = vld [vmem:[%s197 + $0x28c] sm:$0xf]
        %v414 = vld [vmem:[%s197 + $0x290] sm:$0xf]
        %v415 = vld [vmem:[%s197 + $0x294] sm:$0xf]
        %v416 = vld [vmem:[%s197 + $0x298] sm:$0xf]
        %v417 = vld [vmem:[%s197 + $0x29c] sm:$0xf]
        %v418 = vld [vmem:[%s197 + $0x2a0] sm:$0xf]
        %v419 = vld [vmem:[%s197 + $0x2a4] sm:$0xf]
        %v420 = vld [vmem:[%s197 + $0x2a8] sm:$0xf]
        %v421 = vld [vmem:[%s197 + $0x2ac] sm:$0xf]
        %v422 = vld [vmem:[%s197 + $0x2b0] sm:$0xf]
        %v423 = vld [vmem:[%s197 + $0x2b4] sm:$0xf]
        %v424 = vld [vmem:[%s197 + $0x2b8] sm:$0xf]
        %v425 = vld [vmem:[%s197 + $0x2bc] sm:$0xf]
        %v426 = vld [vmem:[%s197 + $0x2c0] sm:$0xf]
        %v427 = vld [vmem:[%s197 + $0x2c4] sm:$0xf]
        %v428 = vld [vmem:[%s197 + $0x2c8] sm:$0xf]
        %v429 = vld [vmem:[%s197 + $0x2cc] sm:$0xf]
        %v430 = vld [vmem:[%s197 + $0x2d0] sm:$0xf]
        %v431 = vld [vmem:[%s197 + $0x2d4] sm:$0xf]
        %v432 = vld [vmem:[%s197 + $0x2d8] sm:$0xf]
        %v433 = vld [vmem:[%s197 + $0x2dc] sm:$0xf]
        %v434 = vld [vmem:[%s197 + $0x2e0] sm:$0xf]
        %v435 = vld [vmem:[%s197 + $0x2e4] sm:$0xf]
        %v436 = vld [vmem:[%s197 + $0x2e8] sm:$0xf]
        %v437 = vld [vmem:[%s197 + $0x2ec] sm:$0xf]
        %v438 = vld [vmem:[%s197 + $0x2f0] sm:$0xf]
        %v439 = vld [vmem:[%s197 + $0x2f4] sm:$0xf]
        %v440 = vld [vmem:[%s197 + $0x2f8] sm:$0xf]
        %v441 = vld [vmem:[%s197 + $0x2fc] sm:$0xf]
        %v442 = vld [vmem:[%s197 + $0x300] sm:$0xf]
        %v443 = vld [vmem:[%s197 + $0x304] sm:$0xf]
        %v444 = vld [vmem:[%s197 + $0x308] sm:$0xf]
        %v445 = vld [vmem:[%s197 + $0x30c] sm:$0xf]
        %v446 = vld [vmem:[%s197 + $0x310] sm:$0xf]
        %v447 = vld [vmem:[%s197 + $0x314] sm:$0xf]
        %v448 = vld [vmem:[%s197 + $0x318] sm:$0xf]
        %v449 = vld [vmem:[%s197 + $0x31c] sm:$0xf]
        %v450 = vld [vmem:[%s197 + $0x320] sm:$0xf]
        %v451 = vld [vmem:[%s197 + $0x324] sm:$0xf]
        %v452 = vld [vmem:[%s197 + $0x328] sm:$0xf]
        %v453 = vld [vmem:[%s197 + $0x32c] sm:$0xf]
        %v454 = vld [vmem:[%s197 + $0x330] sm:$0xf]
        %v455 = vld [vmem:[%s197 + $0x334] sm:$0xf]
        %v456 = vld [vmem:[%s197 + $0x338] sm:$0xf]
        %v457 = vld [vmem:[%s197 + $0x33c] sm:$0xf]
        %v458 = vld [vmem:[%s197 + $0x340] sm:$0xf]
        %v459 = vld [vmem:[%s197 + $0x344] sm:$0xf]
        %v460 = vld [vmem:[%s197 + $0x348] sm:$0xf]
        %v461 = vld [vmem:[%s197 + $0x34c] sm:$0xf]
        %v462 = vld [vmem:[%s197 + $0x350] sm:$0xf]
        %v463 = vld [vmem:[%s197 + $0x354] sm:$0xf]
        %v464 = vld [vmem:[%s197 + $0x358] sm:$0xf]
        %v465 = vld [vmem:[%s197 + $0x35c] sm:$0xf]
        %v466 = vld [vmem:[%s197 + $0x360] sm:$0xf]
        %v467 = vld [vmem:[%s197 + $0x364] sm:$0xf]
        %v468 = vld [vmem:[%s197 + $0x368] sm:$0xf]
        %v469 = vld [vmem:[%s197 + $0x36c] sm:$0xf]
        %v470 = vld [vmem:[%s197 + $0x370] sm:$0xf]
        %v471 = vld [vmem:[%s197 + $0x374] sm:$0xf]
        %v472 = vld [vmem:[%s197 + $0x378] sm:$0xf]
        %v473 = vld [vmem:[%s197 + $0x37c] sm:$0xf]
        %v474 = vld [vmem:[%s197 + $0x380] sm:$0xf]
        %v475 = vld [vmem:[%s197 + $0x384] sm:$0xf]
        %v476 = vld [vmem:[%s197 + $0x388] sm:$0xf]
        %v477 = vld [vmem:[%s197 + $0x38c] sm:$0xf]
        %v478 = vld [vmem:[%s197 + $0x390] sm:$0xf]
        %v479 = vld [vmem:[%s197 + $0x394] sm:$0xf]
        %v480 = vld [vmem:[%s197 + $0x398] sm:$0xf]
        %v481 = vld [vmem:[%s197 + $0x39c] sm:$0xf]
        %v482 = vld [vmem:[%s197 + $0x3a0] sm:$0xf]
        %v483 = vld [vmem:[%s197 + $0x3a4] sm:$0xf]
        %v484 = vld [vmem:[%s197 + $0x3a8] sm:$0xf]
        %v485 = vld [vmem:[%s197 + $0x3ac] sm:$0xf]
        %v486 = vld [vmem:[%s197 + $0x3b0] sm:$0xf]
        %v487 = vld [vmem:[%s197 + $0x3b4] sm:$0xf]
        %v488 = vld [vmem:[%s197 + $0x3b8] sm:$0xf]
        %v489 = vld [vmem:[%s197 + $0x3bc] sm:$0xf]
        %v490 = vld [vmem:[%s197 + $0x3c0] sm:$0xf]
        %v491 = vld [vmem:[%s197 + $0x3c4] sm:$0xf]
        %v492 = vld [vmem:[%s197 + $0x3c8] sm:$0xf]
        %v493 = vld [vmem:[%s197 + $0x3cc] sm:$0xf]
        %v494 = vld [vmem:[%s197 + $0x3d0] sm:$0xf]
        %v495 = vld [vmem:[%s197 + $0x3d4] sm:$0xf]
        %v496 = vld [vmem:[%s197 + $0x3d8] sm:$0xf]
        %v497 = vld [vmem:[%s197 + $0x3dc] sm:$0xf]
        %v498 = vld [vmem:[%s197 + $0x3e0] sm:$0xf]
        %v499 = vld [vmem:[%s197 + $0x3e4] sm:$0xf]
        %v500 = vld [vmem:[%s197 + $0x3e8] sm:$0xf]
        %v501 = vld [vmem:[%s197 + $0x3ec] sm:$0xf]
        %v502 = vld [vmem:[%s197 + $0x3f0] sm:$0xf]
        %v503 = vld [vmem:[%s197 + $0x3f4] sm:$0xf]
        %v504 = vld [vmem:[%s197 + $0x3f8] sm:$0xf]
        %v505 = vld [vmem:[%s197 + $0x3fc] sm:$0xf]
        %v506 = vld [vmem:[%s197 + $0x400] sm:$0xf]
        %v507 = vld [vmem:[%s197 + $0x404] sm:$0xf]
        %v508 = vld [vmem:[%s197 + $0x408] sm:$0xf]
        %v509 = vld [vmem:[%s197 + $0x40c] sm:$0xf]
        %v510 = vld [vmem:[%s197 + $0x410] sm:$0xf]
        %v511 = vld [vmem:[%s197 + $0x414] sm:$0xf]
        %v512 = vld [vmem:[%s197 + $0x418] sm:$0xf]
        %v513 = vld [vmem:[%s197 + $0x41c] sm:$0xf]
        %v514 = vld [vmem:[%s197 + $0x420] sm:$0xf]
        %v515 = vld [vmem:[%s197 + $0x424] sm:$0xf]
        %v516 = vld [vmem:[%s197 + $0x428] sm:$0xf]
        %v517 = vld [vmem:[%s197 + $0x42c] sm:$0xf]
        %v518 = vld [vmem:[%s197 + $0x430] sm:$0xf]
        %v519 = vld [vmem:[%s197 + $0x434] sm:$0xf]
        %v520 = vld [vmem:[%s197 + $0x438] sm:$0xf]
        %v521 = vld [vmem:[%s197 + $0x43c] sm:$0xf]
        %v522 = vld [vmem:[%s197 + $0x440] sm:$0xf]
        %v523 = vld [vmem:[%s197 + $0x444] sm:$0xf]
        %v524 = vld [vmem:[%s197 + $0x448] sm:$0xf]
        %v525 = vld [vmem:[%s197 + $0x44c] sm:$0xf]
        %v526 = vld [vmem:[%s197 + $0x450] sm:$0xf]
        %v527 = vld [vmem:[%s197 + $0x454] sm:$0xf]
        %v528 = vld [vmem:[%s197 + $0x458] sm:$0xf]
        %v529 = vld [vmem:[%s197 + $0x45c] sm:$0xf]
        %v530 = vld [vmem:[%s197 + $0x460] sm:$0xf]
        %v531 = vld [vmem:[%s197 + $0x464] sm:$0xf]
        %v532 = vld [vmem:[%s197 + $0x468] sm:$0xf]
        %v533 = vld [vmem:[%s197 + $0x46c] sm:$0xf]
        %v534 = vld [vmem:[%s197 + $0x470] sm:$0xf]
        %v535 = vld [vmem:[%s197 + $0x474] sm:$0xf]
        %v536 = vld [vmem:[%s197 + $0x478] sm:$0xf]
        %v537 = vld [vmem:[%s197 + $0x47c] sm:$0xf]
        %v538 = vld [vmem:[%s197 + $0x480] sm:$0xf]
        %v539 = vld [vmem:[%s197 + $0x484] sm:$0xf]
        %v540 = vld [vmem:[%s197 + $0x488] sm:$0xf]
        %v541 = vld [vmem:[%s197 + $0x48c] sm:$0xf]
        %v542 = vld [vmem:[%s197 + $0x490] sm:$0xf]
        %v543 = vld [vmem:[%s197 + $0x494] sm:$0xf]
        %v544 = vld [vmem:[%s197 + $0x498] sm:$0xf]
        %v545 = vld [vmem:[%s197 + $0x49c] sm:$0xf]
        %v546 = vld [vmem:[%s197 + $0x4a0] sm:$0xf]
        %v547 = vld [vmem:[%s197 + $0x4a4] sm:$0xf]
        %v548 = vld [vmem:[%s197 + $0x4a8] sm:$0xf]
        %v549 = vld [vmem:[%s197 + $0x4ac] sm:$0xf]
        %v550 = vld [vmem:[%s197 + $0x4b0] sm:$0xf]
        %v551 = vld [vmem:[%s197 + $0x4b4] sm:$0xf]
        %v552 = vld [vmem:[%s197 + $0x4b8] sm:$0xf]
        %v553 = vld [vmem:[%s197 + $0x4bc] sm:$0xf]
        %v554 = vld [vmem:[%s197 + $0x4c0] sm:$0xf]
        %v555 = vld [vmem:[%s197 + $0x4c4] sm:$0xf]
        %v556 = vld [vmem:[%s197 + $0x4c8] sm:$0xf]
        %v557 = vld [vmem:[%s197 + $0x4cc] sm:$0xf]
        %v558 = vld [vmem:[%s197 + $0x4d0] sm:$0xf]
        %v559 = vld [vmem:[%s197 + $0x4d4] sm:$0xf]
        %v560 = vld [vmem:[%s197 + $0x4d8] sm:$0xf]
        %v561 = vld [vmem:[%s197 + $0x4dc] sm:$0xf]
        %v562 = vld [vmem:[%s197 + $0x4e0] sm:$0xf]
        %v563 = vld [vmem:[%s197 + $0x4e4] sm:$0xf]
        %v564 = vld [vmem:[%s197 + $0x4e8] sm:$0xf]
        %v565 = vld [vmem:[%s197 + $0x4ec] sm:$0xf]
        %v566 = vld [vmem:[%s197 + $0x4f0] sm:$0xf]
        %v567 = vld [vmem:[%s197 + $0x4f4] sm:$0xf]
        %v568 = vld [vmem:[%s197 + $0x4f8] sm:$0xf]
        %v569 = vld [vmem:[%s197 + $0x4fc] sm:$0xf]
        %v570 = vld [vmem:[%s197 + $0x500] sm:$0xf]
        %v571 = vld [vmem:[%s197 + $0x504] sm:$0xf]
        %v572 = vld [vmem:[%s197 + $0x508] sm:$0xf]
        %v573 = vld [vmem:[%s197 + $0x50c] sm:$0xf]
        %v574 = vld [vmem:[%s197 + $0x510] sm:$0xf]
        %v575 = vld [vmem:[%s197 + $0x514] sm:$0xf]
        %v576 = vld [vmem:[%s197 + $0x518] sm:$0xf]
        %v577 = vld [vmem:[%s197 + $0x51c] sm:$0xf]
        %v578 = vld [vmem:[%s197 + $0x520] sm:$0xf]
        %v579 = vld [vmem:[%s197 + $0x524] sm:$0xf]
        %v580 = vld [vmem:[%s197 + $0x528] sm:$0xf]
        %v581 = vld [vmem:[%s197 + $0x52c] sm:$0xf]
        %v582 = vld [vmem:[%s197 + $0x530] sm:$0xf]
        %v583 = vld [vmem:[%s197 + $0x534] sm:$0xf]
        %v584 = vld [vmem:[%s197 + $0x538] sm:$0xf]
        %v585 = vld [vmem:[%s197 + $0x53c] sm:$0xf]
        %v586 = vld [vmem:[%s197 + $0x540] sm:$0xf]
        %v587 = vld [vmem:[%s197 + $0x544] sm:$0xf]
        %v588 = vld [vmem:[%s197 + $0x548] sm:$0xf]
        %v589 = vld [vmem:[%s197 + $0x54c] sm:$0xf]
        %v590 = vld [vmem:[%s197 + $0x550] sm:$0xf]
        %v591 = vld [vmem:[%s197 + $0x554] sm:$0xf]
        %v592 = vld [vmem:[%s197 + $0x558] sm:$0xf]
        %v593 = vld [vmem:[%s197 + $0x55c] sm:$0xf]
        %v594 = vld [vmem:[%s197 + $0x560] sm:$0xf]
        %v595 = vld [vmem:[%s197 + $0x564] sm:$0xf]
        %v596 = vld [vmem:[%s197 + $0x568] sm:$0xf]
        %v597 = vld [vmem:[%s197 + $0x56c] sm:$0xf]
        %v598 = vld [vmem:[%s197 + $0x570] sm:$0xf]
        %v599 = vld [vmem:[%s197 + $0x574] sm:$0xf]
        %v600 = vld [vmem:[%s197 + $0x578] sm:$0xf]
        %v601 = vld [vmem:[%s197 + $0x57c] sm:$0xf]
        %v602 = vld [vmem:[%s197 + $0x580] sm:$0xf]
        %v603 = vld [vmem:[%s197 + $0x584] sm:$0xf]
        %v604 = vld [vmem:[%s197 + $0x588] sm:$0xf]
        %v605 = vld [vmem:[%s197 + $0x58c] sm:$0xf]
        %v606 = vld [vmem:[%s197 + $0x590] sm:$0xf]
        %v607 = vld [vmem:[%s197 + $0x594] sm:$0xf]
        %v608 = vld [vmem:[%s197 + $0x598] sm:$0xf]
        %v609 = vld [vmem:[%s197 + $0x59c] sm:$0xf]
        %v610 = vld [vmem:[%s197 + $0x5a0] sm:$0xf]
        %v611 = vld [vmem:[%s197 + $0x5a4] sm:$0xf]
        %v612 = vld [vmem:[%s197 + $0x5a8] sm:$0xf]
        %v613 = vld [vmem:[%s197 + $0x5ac] sm:$0xf]
        %v614 = vld [vmem:[%s197 + $0x5b0] sm:$0xf]
        %v615 = vld [vmem:[%s197 + $0x5b4] sm:$0xf]
        %v616 = vld [vmem:[%s197 + $0x5b8] sm:$0xf]
        %v617 = vld [vmem:[%s197 + $0x5bc] sm:$0xf]
        %v618 = vld [vmem:[%s197 + $0x5c0] sm:$0xf]
        %v619 = vld [vmem:[%s197 + $0x5c4] sm:$0xf]
        %v620 = vld [vmem:[%s197 + $0x5c8] sm:$0xf]
        %v621 = vld [vmem:[%s197 + $0x5cc] sm:$0xf]
        %v622 = vld [vmem:[%s197 + $0x5d0] sm:$0xf]
        %v623 = vld [vmem:[%s197 + $0x5d4] sm:$0xf]
        %v624 = vld [vmem:[%s197 + $0x5d8] sm:$0xf]
        %v625 = vld [vmem:[%s197 + $0x5dc] sm:$0xf]
        %v626 = vld [vmem:[%s197 + $0x5e0] sm:$0xf]
        %v627 = vld [vmem:[%s197 + $0x5e4] sm:$0xf]
        %v628 = vld [vmem:[%s197 + $0x5e8] sm:$0xf]
        %v629 = vld [vmem:[%s197 + $0x5ec] sm:$0xf]
        %v630 = vld [vmem:[%s197 + $0x5f0] sm:$0xf]
        %v631 = vld [vmem:[%s197 + $0x5f4] sm:$0xf]
        %v632 = vld [vmem:[%s197 + $0x5f8] sm:$0xf]
        %v633 = vld [vmem:[%s197 + $0x5fc] sm:$0xf]
        %v634 = vld [vmem:[%s197 + $0x600] sm:$0xf]
        %v635 = vld [vmem:[%s197 + $0x604] sm:$0xf]
        %v636 = vld [vmem:[%s197 + $0x608] sm:$0xf]
        %v637 = vld [vmem:[%s197 + $0x60c] sm:$0xf]
        %v638 = vld [vmem:[%s197 + $0x610] sm:$0xf]
        %v639 = vld [vmem:[%s197 + $0x614] sm:$0xf]
        %v640 = vld [vmem:[%s197 + $0x618] sm:$0xf]
        %v641 = vld [vmem:[%s197 + $0x61c] sm:$0xf]
        %v642 = vld [vmem:[%s197 + $0x620] sm:$0xf]
        %v643 = vld [vmem:[%s197 + $0x624] sm:$0xf]
        %v644 = vld [vmem:[%s197 + $0x628] sm:$0xf]
        %v645 = vld [vmem:[%s197 + $0x62c] sm:$0xf]
        %v646 = vld [vmem:[%s197 + $0x630] sm:$0xf]
        %v647 = vld [vmem:[%s197 + $0x634] sm:$0xf]
        %v648 = vld [vmem:[%s197 + $0x638] sm:$0xf]
        %v649 = vld [vmem:[%s197 + $0x63c] sm:$0xf]
        %v650 = vld [vmem:[%s197 + $0x640] sm:$0xf]
        %v651 = vld [vmem:[%s197 + $0x644] sm:$0xf]
        %v652 = vld [vmem:[%s197 + $0x648] sm:$0xf]
        %v653 = vld [vmem:[%s197 + $0x64c] sm:$0xf]
        %v654 = vld [vmem:[%s197 + $0x650] sm:$0xf]
        %v655 = vld [vmem:[%s197 + $0x654] sm:$0xf]
        %v656 = vld [vmem:[%s197 + $0x658] sm:$0xf]
        %v657 = vld [vmem:[%s197 + $0x65c] sm:$0xf]
        %v658 = vld [vmem:[%s197 + $0x660] sm:$0xf]
        %v659 = vld [vmem:[%s197 + $0x664] sm:$0xf]
        %v660 = vld [vmem:[%s197 + $0x668] sm:$0xf]
        %v661 = vld [vmem:[%s197 + $0x66c] sm:$0xf]
        %v662 = vld [vmem:[%s197 + $0x670] sm:$0xf]
        %v663 = vld [vmem:[%s197 + $0x674] sm:$0xf]
        %v664 = vld [vmem:[%s197 + $0x678] sm:$0xf]
        %v665 = vld [vmem:[%s197 + $0x67c] sm:$0xf]
        %v666 = vld [vmem:[%s197 + $0x680] sm:$0xf]
        %v667 = vld [vmem:[%s197 + $0x684] sm:$0xf]
        %v668 = vld [vmem:[%s197 + $0x688] sm:$0xf]
        %v669 = vld [vmem:[%s197 + $0x68c] sm:$0xf]
        %v670 = vld [vmem:[%s197 + $0x690] sm:$0xf]
        %v671 = vld [vmem:[%s197 + $0x694] sm:$0xf]
        %v672 = vld [vmem:[%s197 + $0x698] sm:$0xf]
        %v673 = vld [vmem:[%s197 + $0x69c] sm:$0xf]
        %v674 = vld [vmem:[%s197 + $0x6a0] sm:$0xf]
        %v675 = vld [vmem:[%s197 + $0x6a4] sm:$0xf]
        %v676 = vld [vmem:[%s197 + $0x6a8] sm:$0xf]
        %v677 = vld [vmem:[%s197 + $0x6ac] sm:$0xf]
        %v678 = vld [vmem:[%s197 + $0x6b0] sm:$0xf]
        %v679 = vld [vmem:[%s197 + $0x6b4] sm:$0xf]
        %v680 = vld [vmem:[%s197 + $0x6b8] sm:$0xf]
        %v681 = vld [vmem:[%s197 + $0x6bc] sm:$0xf]
        %v682 = vld [vmem:[%s197 + $0x6c0] sm:$0xf]
        %v683 = vld [vmem:[%s197 + $0x6c4] sm:$0xf]
        %v684 = vld [vmem:[%s197 + $0x6c8] sm:$0xf]
        %v685 = vld [vmem:[%s197 + $0x6cc] sm:$0xf]
        %v686 = vld [vmem:[%s197 + $0x6d0] sm:$0xf]
        %v687 = vld [vmem:[%s197 + $0x6d4] sm:$0xf]
        %v688 = vld [vmem:[%s197 + $0x6d8] sm:$0xf]
        %v689 = vld [vmem:[%s197 + $0x6dc] sm:$0xf]
        %v690 = vld [vmem:[%s197 + $0x6e0] sm:$0xf]
        %v691 = vld [vmem:[%s197 + $0x6e4] sm:$0xf]
        %v692 = vld [vmem:[%s197 + $0x6e8] sm:$0xf]
        %v693 = vld [vmem:[%s197 + $0x6ec] sm:$0xf]
        %v694 = vld [vmem:[%s197 + $0x6f0] sm:$0xf]
        %v695 = vld [vmem:[%s197 + $0x6f4] sm:$0xf]
        %v696 = vld [vmem:[%s197 + $0x6f8] sm:$0xf]
        %v697 = vld [vmem:[%s197 + $0x6fc] sm:$0xf]
        %v702 = vcombine.high %v246, %v246
        %v704 = vunpack.c.l.s4 1966171168
        %v705 = vunpack.c.0.s8 %v704
        %v706 = vlaneseq
        %v707 = vshrl.u32 %v706, 7
        %v708 = vsub.s32 %v705, %v707
        %v709 = vrot.slane %v246, %v708
        %v711 = vunpack.c.l.s4 1966171168
        %v712 = vunpack.c.0.s8 %v711
        %v713 = vlaneseq
        %v714 = vshrl.u32 %v713, 7
        %v715 = vsub.s32 %v712, %v714
        %v716 = vrot.slane %v702, %v715
        %v717 = vcombine.high %v709, %v709
        %v718 = vcombine.high %v716, %v716
        %v720 = vunpack.c.l.s4 1966171168
        %v721 = vunpack.c.0.s8 %v720
        %v722 = vlaneseq
        %v723 = vshrl.u32 %v722, 7
        %v724 = vsub.s32 %v721, %v723
        %v725 = vrot.slane %v709, %v724
        %v727 = vunpack.c.l.s4 1966171168
        %v728 = vunpack.c.0.s8 %v727
        %v729 = vlaneseq
        %v730 = vshrl.u32 %v729, 7
        %v731 = vsub.s32 %v728, %v730
        %v732 = vrot.slane %v716, %v731
        %v734 = vunpack.c.l.s4 1966171168
        %v735 = vunpack.c.0.s8 %v734
        %v736 = vlaneseq
        %v737 = vshrl.u32 %v736, 7
        %v738 = vsub.s32 %v735, %v737
        %v739 = vrot.slane %v717, %v738
        %v741 = vunpack.c.l.s4 1966171168
        %v742 = vunpack.c.0.s8 %v741
        %v743 = vlaneseq
        %v744 = vshrl.u32 %v743, 7
        %v745 = vsub.s32 %v742, %v744
        %v746 = vrot.slane %v718, %v745
        %v747 = vcombine.high %v725, %v725
        %v748 = vcombine.high %v732, %v732
        %v749 = vcombine.high %v739, %v739
        %v750 = vcombine.high %v746, %v746
        %v751 = vcombine.high %v247, %v247
        %v753 = vunpack.c.l.s4 1966171168
        %v754 = vunpack.c.0.s8 %v753
        %v755 = vlaneseq
        %v756 = vshrl.u32 %v755, 7
        %v757 = vsub.s32 %v754, %v756
        %v758 = vrot.slane %v247, %v757
        %v760 = vunpack.c.l.s4 1966171168
        %v761 = vunpack.c.0.s8 %v760
        %v762 = vlaneseq
        %v763 = vshrl.u32 %v762, 7
        %v764 = vsub.s32 %v761, %v763
        %v765 = vrot.slane %v751, %v764
        %v766 = vcombine.high %v758, %v758
        %v767 = vcombine.high %v765, %v765
        %v769 = vunpack.c.l.s4 1966171168
        %v770 = vunpack.c.0.s8 %v769
        %v771 = vlaneseq
        %v772 = vshrl.u32 %v771, 7
        %v773 = vsub.s32 %v770, %v772
        %v774 = vrot.slane %v758, %v773
        %v776 = vunpack.c.l.s4 1966171168
        %v777 = vunpack.c.0.s8 %v776
        %v778 = vlaneseq
        %v779 = vshrl.u32 %v778, 7
        %v780 = vsub.s32 %v777, %v779
        %v781 = vrot.slane %v765, %v780
        %v783 = vunpack.c.l.s4 1966171168
        %v784 = vunpack.c.0.s8 %v783
        %v785 = vlaneseq
        %v786 = vshrl.u32 %v785, 7
        %v787 = vsub.s32 %v784, %v786
        %v788 = vrot.slane %v766, %v787
        %v790 = vunpack.c.l.s4 1966171168
        %v791 = vunpack.c.0.s8 %v790
        %v792 = vlaneseq
        %v793 = vshrl.u32 %v792, 7
        %v794 = vsub.s32 %v791, %v793
        %v795 = vrot.slane %v767, %v794
        %v796 = vcombine.high %v774, %v774
        %v797 = vcombine.high %v781, %v781
        %v798 = vcombine.high %v788, %v788
        %v799 = vcombine.high %v795, %v795
        %v800 = vcombine.high %v248, %v248
        %v802 = vunpack.c.l.s4 1966171168
        %v803 = vunpack.c.0.s8 %v802
        %v804 = vlaneseq
        %v805 = vshrl.u32 %v804, 7
        %v806 = vsub.s32 %v803, %v805
        %v807 = vrot.slane %v248, %v806
        %v809 = vunpack.c.l.s4 1966171168
        %v810 = vunpack.c.0.s8 %v809
        %v811 = vlaneseq
        %v812 = vshrl.u32 %v811, 7
        %v813 = vsub.s32 %v810, %v812
        %v814 = vrot.slane %v800, %v813
        %v815 = vcombine.high %v807, %v807
        %v816 = vcombine.high %v814, %v814
        %v818 = vunpack.c.l.s4 1966171168
        %v819 = vunpack.c.0.s8 %v818
        %v820 = vlaneseq
        %v821 = vshrl.u32 %v820, 7
        %v822 = vsub.s32 %v819, %v821
        %v823 = vrot.slane %v807, %v822
        %v825 = vunpack.c.l.s4 1966171168
        %v826 = vunpack.c.0.s8 %v825
        %v827 = vlaneseq
        %v828 = vshrl.u32 %v827, 7
        %v829 = vsub.s32 %v826, %v828
        %v830 = vrot.slane %v814, %v829
        %v832 = vunpack.c.l.s4 1966171168
        %v833 = vunpack.c.0.s8 %v832
        %v834 = vlaneseq
        %v835 = vshrl.u32 %v834, 7
        %v836 = vsub.s32 %v833, %v835
        %v837 = vrot.slane %v815, %v836
        %v839 = vunpack.c.l.s4 1966171168
        %v840 = vunpack.c.0.s8 %v839
        %v841 = vlaneseq
        %v842 = vshrl.u32 %v841, 7
        %v843 = vsub.s32 %v840, %v842
        %v844 = vrot.slane %v816, %v843
        %v845 = vcombine.high %v823, %v823
        %v846 = vcombine.high %v830, %v830
        %v847 = vcombine.high %v837, %v837
        %v848 = vcombine.high %v844, %v844
        %v850 = vunpack.c.l.s4 1966171168
        %v851 = vunpack.c.0.s8 %v850
        %v852 = vlaneseq
        %v853 = vshrl.u32 %v852, 7
        %v854 = vsub.s32 %v851, %v853
        %v855 = vrot.slane %v249, %v854
        %v856 = vcombine.high %v855, %v855
        %v858 = vunpack.c.l.s4 1966171168
        %v859 = vunpack.c.0.s8 %v858
        %v860 = vlaneseq
        %v861 = vshrl.u32 %v860, 7
        %v862 = vsub.s32 %v859, %v861
        %v863 = vrot.slane %v855, %v862
        %v865 = vunpack.c.l.s4 1966171168
        %v866 = vunpack.c.0.s8 %v865
        %v867 = vlaneseq
        %v868 = vshrl.u32 %v867, 7
        %v869 = vsub.s32 %v866, %v868
        %v870 = vrot.slane %v856, %v869
        %v871 = vcombine.high %v863, %v863
        %v872 = vcombine.high %v870, %v870
        %v1349 = vunpack.c.l.b16 %v250
        %v1350 = vunpack.c.l.b16 %v251
        %v1351 = vunpack.c.l.b16 %v252
        %v1352 = vunpack.c.l.b16 %v253
        %v1353 = vunpack.c.l.b16 %v254
        %v1354 = vunpack.c.l.b16 %v255
        %v1355 = vunpack.c.l.b16 %v256
        %v1356 = vunpack.c.l.b16 %v257
        %v1357 = vunpack.c.l.b16 %v258
        %v1358 = vunpack.c.l.b16 %v259
        %v1359 = vunpack.c.l.b16 %v260
        %v1360 = vunpack.c.l.b16 %v261
        %v1361 = vunpack.c.l.b16 %v262
        %v1362 = vunpack.c.l.b16 %v263
        %v1363 = vunpack.c.l.b16 %v264
        %v1364 = vunpack.c.l.b16 %v265
        %v1365 = vunpack.c.l.b16 %v266
        %v1366 = vunpack.c.l.b16 %v267
        %v1367 = vunpack.c.l.b16 %v268
        %v1368 = vunpack.c.l.b16 %v269
        %v1369 = vunpack.c.l.b16 %v270
        %v1370 = vunpack.c.l.b16 %v271
        %v1371 = vunpack.c.l.b16 %v272
        %v1372 = vunpack.c.l.b16 %v273
        %v1373 = vunpack.c.l.b16 %v274
        %v1374 = vunpack.c.l.b16 %v275
        %v1375 = vunpack.c.l.b16 %v276
        %v1376 = vunpack.c.l.b16 %v277
        %v1377 = vunpack.c.l.b16 %v278
        %v1378 = vunpack.c.l.b16 %v279
        %v1379 = vunpack.c.l.b16 %v280
        %v1380 = vunpack.c.l.b16 %v281
        %v1381 = vunpack.c.l.b16 %v282
        %v1382 = vunpack.c.l.b16 %v283
        %v1383 = vunpack.c.l.b16 %v284
        %v1384 = vunpack.c.l.b16 %v285
        %v1385 = vunpack.c.l.b16 %v286
        %v1386 = vunpack.c.l.b16 %v287
        %v1387 = vunpack.c.l.b16 %v288
        %v1388 = vunpack.c.l.b16 %v289
        %v1389 = vunpack.c.l.b16 %v290
        %v1390 = vunpack.c.l.b16 %v291
        %v1391 = vunpack.c.l.b16 %v292
        %v1392 = vunpack.c.l.b16 %v293
        %v1393 = vunpack.c.l.b16 %v294
        %v1394 = vunpack.c.l.b16 %v295
        %v1395 = vunpack.c.l.b16 %v296
        %v1396 = vunpack.c.l.b16 %v297
        %v1397 = vunpack.c.l.b16 %v298
        %v1398 = vunpack.c.l.b16 %v299
        %v1399 = vunpack.c.l.b16 %v300
        %v1400 = vunpack.c.l.b16 %v301
        %v1401 = vunpack.c.l.b16 %v302
        %v1402 = vunpack.c.l.b16 %v303
        %v1403 = vunpack.c.l.b16 %v304
        %v1404 = vunpack.c.l.b16 %v305
        %v1405 = vunpack.c.l.b16 %v306
        %v1406 = vunpack.c.l.b16 %v307
        %v1407 = vunpack.c.l.b16 %v308
        %v1408 = vunpack.c.l.b16 %v309
        %v1409 = vunpack.c.l.b16 %v310
        %v1410 = vunpack.c.l.b16 %v311
        %v1411 = vunpack.c.l.b16 %v312
        %v1412 = vunpack.c.l.b16 %v313
        %v1413 = vunpack.c.l.b16 %v314
        %v1414 = vunpack.c.l.b16 %v315
        %v1415 = vunpack.c.l.b16 %v316
        %v1416 = vunpack.c.l.b16 %v317
        %v1417 = vunpack.c.l.b16 %v318
        %v1418 = vunpack.c.l.b16 %v319
        %v1419 = vunpack.c.l.b16 %v320
        %v1420 = vunpack.c.l.b16 %v321
        %v1421 = vunpack.c.l.b16 %v322
        %v1422 = vunpack.c.l.b16 %v323
        %v1423 = vunpack.c.l.b16 %v324
        %v1424 = vunpack.c.l.b16 %v325
        %v1425 = vunpack.c.l.b16 %v326
        %v1426 = vunpack.c.l.b16 %v327
        %v1427 = vunpack.c.l.b16 %v328
        %v1428 = vunpack.c.l.b16 %v329
        %v1429 = vunpack.c.l.b16 %v330
        %v1430 = vunpack.c.l.b16 %v331
        %v1431 = vunpack.c.l.b16 %v332
        %v1432 = vunpack.c.l.b16 %v333
        %v1433 = vunpack.c.l.b16 %v334
        %v1434 = vunpack.c.l.b16 %v335
        %v1435 = vunpack.c.l.b16 %v336
        %v1436 = vunpack.c.l.b16 %v337
        %v1437 = vunpack.c.l.b16 %v338
        %v1438 = vunpack.c.l.b16 %v339
        %v1439 = vunpack.c.l.b16 %v340
        %v1440 = vunpack.c.l.b16 %v341
        %v1441 = vunpack.c.l.b16 %v342
        %v1442 = vunpack.c.l.b16 %v343
        %v1443 = vunpack.c.l.b16 %v344
        %v1444 = vunpack.c.l.b16 %v345
        %v1445 = vunpack.c.l.b16 %v346
        %v1446 = vunpack.c.l.b16 %v347
        %v1447 = vunpack.c.l.b16 %v348
        %v1448 = vunpack.c.l.b16 %v349
        %v1449 = vunpack.c.l.b16 %v350
        %v1450 = vunpack.c.l.b16 %v351
        %v1451 = vunpack.c.l.b16 %v352
        %v1452 = vunpack.c.l.b16 %v353
        %v1453 = vunpack.c.l.b16 %v354
        %v1454 = vunpack.c.l.b16 %v355
        %v1455 = vunpack.c.l.b16 %v356
        %v1456 = vunpack.c.l.b16 %v357
        %v1457 = vunpack.c.l.b16 %v358
        %v1458 = vunpack.c.l.b16 %v359
        %v1459 = vunpack.c.l.b16 %v360
        %v1460 = vunpack.c.l.b16 %v361
        %v1461 = vunpack.c.l.b16 %v362
        %v1462 = vunpack.c.l.b16 %v363
        %v1463 = vunpack.c.l.b16 %v364
        %v1464 = vunpack.c.l.b16 %v365
        %v1465 = vunpack.c.l.b16 %v366
        %v1466 = vunpack.c.l.b16 %v367
        %v1467 = vunpack.c.l.b16 %v368
        %v1468 = vunpack.c.l.b16 %v369
        %v1469 = vunpack.c.l.b16 %v370
        %v1470 = vunpack.c.l.b16 %v371
        %v1471 = vunpack.c.l.b16 %v372
        %v1472 = vunpack.c.l.b16 %v373
        %v1473 = vunpack.c.l.b16 %v374
        %v1474 = vunpack.c.l.b16 %v375
        %v1475 = vunpack.c.l.b16 %v376
        %v1476 = vunpack.c.l.b16 %v377
        %v1477 = vunpack.c.l.b16 %v378
        %v1478 = vunpack.c.l.b16 %v379
        %v1479 = vunpack.c.l.b16 %v380
        %v1480 = vunpack.c.l.b16 %v381
        %v1481 = vunpack.c.l.b16 %v382
        %v1482 = vunpack.c.l.b16 %v383
        %v1483 = vunpack.c.l.b16 %v384
        %v1484 = vunpack.c.l.b16 %v385
        %v1485 = vunpack.c.l.b16 %v386
        %v1486 = vunpack.c.l.b16 %v387
        %v1487 = vunpack.c.l.b16 %v388
        %v1488 = vunpack.c.l.b16 %v389
        %v1489 = vunpack.c.l.b16 %v390
        %v1490 = vunpack.c.l.b16 %v391
        %v1491 = vunpack.c.l.b16 %v392
        %v1492 = vunpack.c.l.b16 %v393
        %v1493 = vunpack.c.l.b16 %v394
        %v1494 = vunpack.c.l.b16 %v395
        %v1495 = vunpack.c.l.b16 %v396
        %v1496 = vunpack.c.l.b16 %v397
        %v1497 = vunpack.c.l.b16 %v398
        %v1498 = vunpack.c.l.b16 %v399
        %v1499 = vunpack.c.l.b16 %v400
        %v1500 = vunpack.c.l.b16 %v401
        %v1501 = vunpack.c.l.b16 %v402
        %v1502 = vunpack.c.l.b16 %v403
        %v1503 = vunpack.c.l.b16 %v404
        %v1504 = vunpack.c.l.b16 %v405
        %v1505 = vunpack.c.l.b16 %v406
        %v1506 = vunpack.c.l.b16 %v407
        %v1507 = vunpack.c.l.b16 %v408
        %v1508 = vunpack.c.l.b16 %v409
        %v1509 = vunpack.c.l.b16 %v410
        %v1510 = vunpack.c.l.b16 %v411
        %v1511 = vunpack.c.l.b16 %v412
        %v1512 = vunpack.c.l.b16 %v413
        %v1513 = vunpack.c.l.b16 %v414
        %v1514 = vunpack.c.l.b16 %v415
        %v1515 = vunpack.c.l.b16 %v416
        %v1516 = vunpack.c.l.b16 %v417
        %v1517 = vunpack.c.l.b16 %v418
        %v1518 = vunpack.c.l.b16 %v419
        %v1519 = vunpack.c.l.b16 %v420
        %v1520 = vunpack.c.l.b16 %v421
        %v1521 = vunpack.c.l.b16 %v422
        %v1522 = vunpack.c.l.b16 %v423
        %v1523 = vunpack.c.l.b16 %v424
        %v1524 = vunpack.c.l.b16 %v425
        %v1525 = vunpack.c.l.b16 %v426
        %v1526 = vunpack.c.l.b16 %v427
        %v1527 = vunpack.c.l.b16 %v428
        %v1528 = vunpack.c.l.b16 %v429
        %v1529 = vunpack.c.l.b16 %v430
        %v1530 = vunpack.c.l.b16 %v431
        %v1531 = vunpack.c.l.b16 %v432
        %v1532 = vunpack.c.l.b16 %v433
        %v1533 = vunpack.c.l.b16 %v434
        %v1534 = vunpack.c.l.b16 %v435
        %v1535 = vunpack.c.l.b16 %v436
        %v1536 = vunpack.c.l.b16 %v437
        %v1537 = vunpack.c.l.b16 %v438
        %v1538 = vunpack.c.l.b16 %v439
        %v1539 = vunpack.c.l.b16 %v440
        %v1540 = vunpack.c.l.b16 %v441
        %v1541 = vunpack.c.l.b16 %v442
        %v1542 = vunpack.c.l.b16 %v443
        %v1543 = vunpack.c.l.b16 %v444
        %v1544 = vunpack.c.l.b16 %v445
        %v1545 = vunpack.c.l.b16 %v446
        %v1546 = vunpack.c.l.b16 %v447
        %v1547 = vunpack.c.l.b16 %v448
        %v1548 = vunpack.c.l.b16 %v449
        %v1549 = vunpack.c.l.b16 %v450
        %v1550 = vunpack.c.l.b16 %v451
        %v1551 = vunpack.c.l.b16 %v452
        %v1552 = vunpack.c.l.b16 %v453
        %v1553 = vunpack.c.l.b16 %v454
        %v1554 = vunpack.c.l.b16 %v455
        %v1555 = vunpack.c.l.b16 %v456
        %v1556 = vunpack.c.l.b16 %v457
        %v1557 = vunpack.c.l.b16 %v458
        %v1558 = vunpack.c.l.b16 %v459
        %v1559 = vunpack.c.l.b16 %v460
        %v1560 = vunpack.c.l.b16 %v461
        %v1561 = vunpack.c.l.b16 %v462
        %v1562 = vunpack.c.l.b16 %v463
        %v1563 = vunpack.c.l.b16 %v464
        %v1564 = vunpack.c.l.b16 %v465
        %v1565 = vunpack.c.l.b16 %v466
        %v1566 = vunpack.c.l.b16 %v467
        %v1567 = vunpack.c.l.b16 %v468
        %v1568 = vunpack.c.l.b16 %v469
        %v1569 = vunpack.c.l.b16 %v470
        %v1570 = vunpack.c.l.b16 %v471
        %v1571 = vunpack.c.l.b16 %v472
        %v1572 = vunpack.c.l.b16 %v473
        %v1573 = vunpack.c.l.b16 %v474
        %v1574 = vunpack.c.l.b16 %v475
        %v1575 = vunpack.c.l.b16 %v476
        %v1576 = vunpack.c.l.b16 %v477
        %v1577 = vunpack.c.l.b16 %v478
        %v1578 = vunpack.c.l.b16 %v479
        %v1579 = vunpack.c.l.b16 %v480
        %v1580 = vunpack.c.l.b16 %v481
        %v1581 = vunpack.c.l.b16 %v482
        %v1582 = vunpack.c.l.b16 %v483
        %v1583 = vunpack.c.l.b16 %v484
        %v1584 = vunpack.c.l.b16 %v485
        %v1585 = vunpack.c.l.b16 %v486
        %v1586 = vunpack.c.l.b16 %v487
        %v1587 = vunpack.c.l.b16 %v488
        %v1588 = vunpack.c.l.b16 %v489
        %v1589 = vunpack.c.l.b16 %v490
        %v1590 = vunpack.c.l.b16 %v491
        %v1591 = vunpack.c.l.b16 %v492
        %v1592 = vunpack.c.l.b16 %v493
        %v1593 = vunpack.c.l.b16 %v494
        %v1594 = vunpack.c.l.b16 %v495
        %v1595 = vunpack.c.l.b16 %v496
        %v1596 = vunpack.c.l.b16 %v497
        %v1597 = vunpack.c.l.b16 %v498
        %v1598 = vunpack.c.l.b16 %v499
        %v1599 = vunpack.c.l.b16 %v500
        %v1600 = vunpack.c.l.b16 %v501
        %v1601 = vunpack.c.l.b16 %v502
        %v1602 = vunpack.c.l.b16 %v503
        %v1603 = vunpack.c.l.b16 %v504
        %v1604 = vunpack.c.l.b16 %v505
        %v1605 = vunpack.c.l.b16 %v506
        %v1606 = vunpack.c.l.b16 %v507
        %v1607 = vunpack.c.l.b16 %v508
        %v1608 = vunpack.c.l.b16 %v509
        %v1609 = vunpack.c.l.b16 %v510
        %v1610 = vunpack.c.l.b16 %v511
        %v1611 = vunpack.c.l.b16 %v512
        %v1612 = vunpack.c.l.b16 %v513
        %v1613 = vunpack.c.l.b16 %v514
        %v1614 = vunpack.c.l.b16 %v515
        %v1615 = vunpack.c.l.b16 %v516
        %v1616 = vunpack.c.l.b16 %v517
        %v1617 = vunpack.c.l.b16 %v518
        %v1618 = vunpack.c.l.b16 %v519
        %v1619 = vunpack.c.l.b16 %v520
        %v1620 = vunpack.c.l.b16 %v521
        %v1621 = vunpack.c.l.b16 %v522
        %v1622 = vunpack.c.l.b16 %v523
        %v1623 = vunpack.c.l.b16 %v524
        %v1624 = vunpack.c.l.b16 %v525
        %v1625 = vunpack.c.l.b16 %v526
        %v1626 = vunpack.c.l.b16 %v527
        %v1627 = vunpack.c.l.b16 %v528
        %v1628 = vunpack.c.l.b16 %v529
        %v1629 = vunpack.c.l.b16 %v530
        %v1630 = vunpack.c.l.b16 %v531
        %v1631 = vunpack.c.l.b16 %v532
        %v1632 = vunpack.c.l.b16 %v533
        %v1633 = vunpack.c.l.b16 %v534
        %v1634 = vunpack.c.l.b16 %v535
        %v1635 = vunpack.c.l.b16 %v536
        %v1636 = vunpack.c.l.b16 %v537
        %v1637 = vunpack.c.l.b16 %v538
        %v1638 = vunpack.c.l.b16 %v539
        %v1639 = vunpack.c.l.b16 %v540
        %v1640 = vunpack.c.l.b16 %v541
        %v1641 = vunpack.c.l.b16 %v542
        %v1642 = vunpack.c.l.b16 %v543
        %v1643 = vunpack.c.l.b16 %v544
        %v1644 = vunpack.c.l.b16 %v545
        %v1645 = vunpack.c.l.b16 %v546
        %v1646 = vunpack.c.l.b16 %v547
        %v1647 = vunpack.c.l.b16 %v548
        %v1648 = vunpack.c.l.b16 %v549
        %v1649 = vunpack.c.l.b16 %v550
        %v1650 = vunpack.c.l.b16 %v551
        %v1651 = vunpack.c.l.b16 %v552
        %v1652 = vunpack.c.l.b16 %v553
        %v1653 = vunpack.c.l.b16 %v554
        %v1654 = vunpack.c.l.b16 %v555
        %v1655 = vunpack.c.l.b16 %v556
        %v1656 = vunpack.c.l.b16 %v557
        %v1657 = vunpack.c.l.b16 %v558
        %v1658 = vunpack.c.l.b16 %v559
        %v1659 = vunpack.c.l.b16 %v560
        %v1660 = vunpack.c.l.b16 %v561
        %v1661 = vunpack.c.l.b16 %v562
        %v1662 = vunpack.c.l.b16 %v563
        %v1663 = vunpack.c.l.b16 %v564
        %v1664 = vunpack.c.l.b16 %v565
        %v1665 = vunpack.c.l.b16 %v566
        %v1666 = vunpack.c.l.b16 %v567
        %v1667 = vunpack.c.l.b16 %v568
        %v1668 = vunpack.c.l.b16 %v569
        %v1669 = vunpack.c.l.b16 %v570
        %v1670 = vunpack.c.l.b16 %v571
        %v1671 = vunpack.c.l.b16 %v572
        %v1672 = vunpack.c.l.b16 %v573
        %v1673 = vunpack.c.l.b16 %v574
        %v1674 = vunpack.c.l.b16 %v575
        %v1675 = vunpack.c.l.b16 %v576
        %v1676 = vunpack.c.l.b16 %v577
        %v1677 = vunpack.c.l.b16 %v578
        %v1678 = vunpack.c.l.b16 %v579
        %v1679 = vunpack.c.l.b16 %v580
        %v1680 = vunpack.c.l.b16 %v581
        %v1681 = vunpack.c.l.b16 %v582
        %v1682 = vunpack.c.l.b16 %v583
        %v1683 = vunpack.c.l.b16 %v584
        %v1684 = vunpack.c.l.b16 %v585
        %v1685 = vunpack.c.l.b16 %v586
        %v1686 = vunpack.c.l.b16 %v587
        %v1687 = vunpack.c.l.b16 %v588
        %v1688 = vunpack.c.l.b16 %v589
        %v1689 = vunpack.c.l.b16 %v590
        %v1690 = vunpack.c.l.b16 %v591
        %v1691 = vunpack.c.l.b16 %v592
        %v1692 = vunpack.c.l.b16 %v593
        %v1693 = vunpack.c.l.b16 %v594
        %v1694 = vunpack.c.l.b16 %v595
        %v1695 = vunpack.c.l.b16 %v596
        %v1696 = vunpack.c.l.b16 %v597
        %v1697 = vunpack.c.l.b16 %v598
        %v1698 = vunpack.c.l.b16 %v599
        %v1699 = vunpack.c.l.b16 %v600
        %v1700 = vunpack.c.l.b16 %v601
        %v1701 = vunpack.c.l.b16 %v602
        %v1702 = vunpack.c.l.b16 %v603
        %v1703 = vunpack.c.l.b16 %v604
        %v1704 = vunpack.c.l.b16 %v605
        %v1705 = vunpack.c.l.b16 %v606
        %v1706 = vunpack.c.l.b16 %v607
        %v1707 = vunpack.c.l.b16 %v608
        %v1708 = vunpack.c.l.b16 %v609
        %v1709 = vunpack.c.l.b16 %v610
        %v1710 = vunpack.c.l.b16 %v611
        %v1711 = vunpack.c.l.b16 %v612
        %v1712 = vunpack.c.l.b16 %v613
        %v1713 = vunpack.c.l.b16 %v614
        %v1714 = vunpack.c.l.b16 %v615
        %v1715 = vunpack.c.l.b16 %v616
        %v1716 = vunpack.c.l.b16 %v617
        %v1717 = vunpack.c.l.b16 %v618
        %v1718 = vunpack.c.l.b16 %v619
        %v1719 = vunpack.c.l.b16 %v620
        %v1720 = vunpack.c.l.b16 %v621
        %v1721 = vunpack.c.l.b16 %v622
        %v1722 = vunpack.c.l.b16 %v623
        %v1723 = vunpack.c.l.b16 %v624
        %v1724 = vunpack.c.l.b16 %v625
        %v1725 = vunpack.c.l.b16 %v626
        %v1726 = vunpack.c.l.b16 %v627
        %v1727 = vunpack.c.l.b16 %v628
        %v1728 = vunpack.c.l.b16 %v629
        %v1729 = vunpack.c.l.b16 %v630
        %v1730 = vunpack.c.l.b16 %v631
        %v1731 = vunpack.c.l.b16 %v632
        %v1732 = vunpack.c.l.b16 %v633
        %v1733 = vunpack.c.l.b16 %v634
        %v1734 = vunpack.c.l.b16 %v635
        %v1735 = vunpack.c.l.b16 %v636
        %v1736 = vunpack.c.l.b16 %v637
        %v1737 = vunpack.c.l.b16 %v638
        %v1738 = vunpack.c.l.b16 %v639
        %v1739 = vunpack.c.l.b16 %v640
        %v1740 = vunpack.c.l.b16 %v641
        %v1741 = vunpack.c.l.b16 %v642
        %v1742 = vunpack.c.l.b16 %v643
        %v1743 = vunpack.c.l.b16 %v644
        %v1744 = vunpack.c.l.b16 %v645
        %v1745 = vunpack.c.l.b16 %v646
        %v1746 = vunpack.c.l.b16 %v647
        %v1747 = vunpack.c.l.b16 %v648
        %v1748 = vunpack.c.l.b16 %v649
        %v1749 = vunpack.c.l.b16 %v650
        %v1750 = vunpack.c.l.b16 %v651
        %v1751 = vunpack.c.l.b16 %v652
        %v1752 = vunpack.c.l.b16 %v653
        %v1753 = vunpack.c.l.b16 %v654
        %v1754 = vunpack.c.l.b16 %v655
        %v1755 = vunpack.c.l.b16 %v656
        %v1756 = vunpack.c.l.b16 %v657
        %v1757 = vunpack.c.l.b16 %v658
        %v1758 = vunpack.c.l.b16 %v659
        %v1759 = vunpack.c.l.b16 %v660
        %v1760 = vunpack.c.l.b16 %v661
        %v1761 = vunpack.c.l.b16 %v662
        %v1762 = vunpack.c.l.b16 %v663
        %v1763 = vunpack.c.l.b16 %v664
        %v1764 = vunpack.c.l.b16 %v665
        %v1765 = vunpack.c.l.b16 %v666
        %v1766 = vunpack.c.l.b16 %v667
        %v1767 = vunpack.c.l.b16 %v668
        %v1768 = vunpack.c.l.b16 %v669
        %v1769 = vunpack.c.l.b16 %v670
        %v1770 = vunpack.c.l.b16 %v671
        %v1771 = vunpack.c.l.b16 %v672
        %v1772 = vunpack.c.l.b16 %v673
        %v1773 = vunpack.c.l.b16 %v674
        %v1774 = vunpack.c.l.b16 %v675
        %v1775 = vunpack.c.l.b16 %v676
        %v1776 = vunpack.c.l.b16 %v677
        %v1777 = vunpack.c.l.b16 %v678
        %v1778 = vunpack.c.l.b16 %v679
        %v1779 = vunpack.c.l.b16 %v680
        %v1780 = vunpack.c.l.b16 %v681
        %v1781 = vunpack.c.l.b16 %v682
        %v1782 = vunpack.c.l.b16 %v683
        %v1783 = vunpack.c.l.b16 %v684
        %v1784 = vunpack.c.l.b16 %v685
        %v1785 = vunpack.c.l.b16 %v686
        %v1786 = vunpack.c.l.b16 %v687
        %v1787 = vunpack.c.l.b16 %v688
        %v1788 = vunpack.c.l.b16 %v689
        %v1789 = vunpack.c.l.b16 %v690
        %v1790 = vunpack.c.l.b16 %v691
        %v1791 = vunpack.c.l.b16 %v692
        %v1792 = vunpack.c.l.b16 %v693
        %v1793 = vunpack.c.l.b16 %v694
        %v1794 = vunpack.c.l.b16 %v695
        %v1795 = vunpack.c.l.b16 %v696
        %v1796 = vunpack.c.l.b16 %v697
        %v1797 = vpack.c.b16 %v1350, %v1349
        %v1798 = vpack.c.b16 %v1352, %v1351
        %v1799 = vpack.c.b16 %v1354, %v1353
        %v1800 = vpack.c.b16 %v1356, %v1355
        %v1801 = vpack.c.b16 %v1358, %v1357
        %v1802 = vpack.c.b16 %v1360, %v1359
        %v1803 = vpack.c.b16 %v1362, %v1361
        %v1804 = vpack.c.b16 %v1364, %v1363
        %v1805 = vpack.c.b16 %v1366, %v1365
        %v1806 = vpack.c.b16 %v1368, %v1367
        %v1807 = vpack.c.b16 %v1370, %v1369
        %v1808 = vpack.c.b16 %v1372, %v1371
        %v1809 = vpack.c.b16 %v1374, %v1373
        %v1810 = vpack.c.b16 %v1376, %v1375
        %v1811 = vpack.c.b16 %v1378, %v1377
        %v1812 = vpack.c.b16 %v1380, %v1379
        %v1813 = vpack.c.b16 %v1382, %v1381
        %v1814 = vpack.c.b16 %v1384, %v1383
        %v1815 = vpack.c.b16 %v1386, %v1385
        %v1816 = vpack.c.b16 %v1388, %v1387
        %v1817 = vpack.c.b16 %v1390, %v1389
        %v1818 = vpack.c.b16 %v1392, %v1391
        %v1819 = vpack.c.b16 %v1394, %v1393
        %v1820 = vpack.c.b16 %v1396, %v1395
        %v1821 = vpack.c.b16 %v1398, %v1397
        %v1822 = vpack.c.b16 %v1400, %v1399
        %v1823 = vpack.c.b16 %v1402, %v1401
        %v1824 = vpack.c.b16 %v1404, %v1403
        %v1825 = vpack.c.b16 %v1406, %v1405
        %v1826 = vpack.c.b16 %v1408, %v1407
        %v1827 = vpack.c.b16 %v1410, %v1409
        %v1828 = vpack.c.b16 %v1412, %v1411
        %v1829 = vpack.c.b16 %v1414, %v1413
        %v1830 = vpack.c.b16 %v1416, %v1415
        %v1831 = vpack.c.b16 %v1418, %v1417
        %v1832 = vpack.c.b16 %v1420, %v1419
        %v1833 = vpack.c.b16 %v1422, %v1421
        %v1834 = vpack.c.b16 %v1424, %v1423
        %v1835 = vpack.c.b16 %v1426, %v1425
        %v1836 = vpack.c.b16 %v1428, %v1427
        %v1837 = vpack.c.b16 %v1430, %v1429
        %v1838 = vpack.c.b16 %v1432, %v1431
        %v1839 = vpack.c.b16 %v1434, %v1433
        %v1840 = vpack.c.b16 %v1436, %v1435
        %v1841 = vpack.c.b16 %v1438, %v1437
        %v1842 = vpack.c.b16 %v1440, %v1439
        %v1843 = vpack.c.b16 %v1442, %v1441
        %v1844 = vpack.c.b16 %v1444, %v1443
        %v1845 = vpack.c.b16 %v1446, %v1445
        %v1846 = vpack.c.b16 %v1448, %v1447
        %v1847 = vpack.c.b16 %v1450, %v1449
        %v1848 = vpack.c.b16 %v1452, %v1451
        %v1849 = vpack.c.b16 %v1454, %v1453
        %v1850 = vpack.c.b16 %v1456, %v1455
        %v1851 = vpack.c.b16 %v1458, %v1457
        %v1852 = vpack.c.b16 %v1460, %v1459
        %v1853 = vpack.c.b16 %v1462, %v1461
        %v1854 = vpack.c.b16 %v1464, %v1463
        %v1855 = vpack.c.b16 %v1466, %v1465
        %v1856 = vpack.c.b16 %v1468, %v1467
        %v1857 = vpack.c.b16 %v1470, %v1469
        %v1858 = vpack.c.b16 %v1472, %v1471
        %v1859 = vpack.c.b16 %v1474, %v1473
        %v1860 = vpack.c.b16 %v1476, %v1475
        %v1861 = vpack.c.b16 %v1478, %v1477
        %v1862 = vpack.c.b16 %v1480, %v1479
        %v1863 = vpack.c.b16 %v1482, %v1481
        %v1864 = vpack.c.b16 %v1484, %v1483
        %v1865 = vpack.c.b16 %v1486, %v1485
        %v1866 = vpack.c.b16 %v1488, %v1487
        %v1867 = vpack.c.b16 %v1490, %v1489
        %v1868 = vpack.c.b16 %v1492, %v1491
        %v1869 = vpack.c.b16 %v1494, %v1493
        %v1870 = vpack.c.b16 %v1496, %v1495
        %v1871 = vpack.c.b16 %v1498, %v1497
        %v1872 = vpack.c.b16 %v1500, %v1499
        %v1873 = vpack.c.b16 %v1502, %v1501
        %v1874 = vpack.c.b16 %v1504, %v1503
        %v1875 = vpack.c.b16 %v1506, %v1505
        %v1876 = vpack.c.b16 %v1508, %v1507
        %v1877 = vpack.c.b16 %v1510, %v1509
        %v1878 = vpack.c.b16 %v1512, %v1511
        %v1879 = vpack.c.b16 %v1514, %v1513
        %v1880 = vpack.c.b16 %v1516, %v1515
        %v1881 = vpack.c.b16 %v1518, %v1517
        %v1882 = vpack.c.b16 %v1520, %v1519
        %v1883 = vpack.c.b16 %v1522, %v1521
        %v1884 = vpack.c.b16 %v1524, %v1523
        %v1885 = vpack.c.b16 %v1526, %v1525
        %v1886 = vpack.c.b16 %v1528, %v1527
        %v1887 = vpack.c.b16 %v1530, %v1529
        %v1888 = vpack.c.b16 %v1532, %v1531
        %v1889 = vpack.c.b16 %v1534, %v1533
        %v1890 = vpack.c.b16 %v1536, %v1535
        %v1891 = vpack.c.b16 %v1538, %v1537
        %v1892 = vpack.c.b16 %v1540, %v1539
        %v1893 = vpack.c.b16 %v1542, %v1541
        %v1894 = vpack.c.b16 %v1544, %v1543
        %v1895 = vpack.c.b16 %v1546, %v1545
        %v1896 = vpack.c.b16 %v1548, %v1547
        %v1897 = vpack.c.b16 %v1550, %v1549
        %v1898 = vpack.c.b16 %v1552, %v1551
        %v1899 = vpack.c.b16 %v1554, %v1553
        %v1900 = vpack.c.b16 %v1556, %v1555
        %v1901 = vpack.c.b16 %v1558, %v1557
        %v1902 = vpack.c.b16 %v1560, %v1559
        %v1903 = vpack.c.b16 %v1562, %v1561
        %v1904 = vpack.c.b16 %v1564, %v1563
        %v1905 = vpack.c.b16 %v1566, %v1565
        %v1906 = vpack.c.b16 %v1568, %v1567
        %v1907 = vpack.c.b16 %v1570, %v1569
        %v1908 = vpack.c.b16 %v1572, %v1571
        %v1909 = vpack.c.b16 %v1574, %v1573
        %v1910 = vpack.c.b16 %v1576, %v1575
        %v1911 = vpack.c.b16 %v1578, %v1577
        %v1912 = vpack.c.b16 %v1580, %v1579
        %v1913 = vpack.c.b16 %v1582, %v1581
        %v1914 = vpack.c.b16 %v1584, %v1583
        %v1915 = vpack.c.b16 %v1586, %v1585
        %v1916 = vpack.c.b16 %v1588, %v1587
        %v1917 = vpack.c.b16 %v1590, %v1589
        %v1918 = vpack.c.b16 %v1592, %v1591
        %v1919 = vpack.c.b16 %v1594, %v1593
        %v1920 = vpack.c.b16 %v1596, %v1595
        %v1921 = vpack.c.b16 %v1598, %v1597
        %v1922 = vpack.c.b16 %v1600, %v1599
        %v1923 = vpack.c.b16 %v1602, %v1601
        %v1924 = vpack.c.b16 %v1604, %v1603
        %v1925 = vpack.c.b16 %v1606, %v1605
        %v1926 = vpack.c.b16 %v1608, %v1607
        %v1927 = vpack.c.b16 %v1610, %v1609
        %v1928 = vpack.c.b16 %v1612, %v1611
        %v1929 = vpack.c.b16 %v1614, %v1613
        %v1930 = vpack.c.b16 %v1616, %v1615
        %v1931 = vpack.c.b16 %v1618, %v1617
        %v1932 = vpack.c.b16 %v1620, %v1619
        %v1933 = vpack.c.b16 %v1622, %v1621
        %v1934 = vpack.c.b16 %v1624, %v1623
        %v1935 = vpack.c.b16 %v1626, %v1625
        %v1936 = vpack.c.b16 %v1628, %v1627
        %v1937 = vpack.c.b16 %v1630, %v1629
        %v1938 = vpack.c.b16 %v1632, %v1631
        %v1939 = vpack.c.b16 %v1634, %v1633
        %v1940 = vpack.c.b16 %v1636, %v1635
        %v1941 = vpack.c.b16 %v1638, %v1637
        %v1942 = vpack.c.b16 %v1640, %v1639
        %v1943 = vpack.c.b16 %v1642, %v1641
        %v1944 = vpack.c.b16 %v1644, %v1643
        %v1945 = vpack.c.b16 %v1646, %v1645
        %v1946 = vpack.c.b16 %v1648, %v1647
        %v1947 = vpack.c.b16 %v1650, %v1649
        %v1948 = vpack.c.b16 %v1652, %v1651
        %v1949 = vpack.c.b16 %v1654, %v1653
        %v1950 = vpack.c.b16 %v1656, %v1655
        %v1951 = vpack.c.b16 %v1658, %v1657
        %v1952 = vpack.c.b16 %v1660, %v1659
        %v1953 = vpack.c.b16 %v1662, %v1661
        %v1954 = vpack.c.b16 %v1664, %v1663
        %v1955 = vpack.c.b16 %v1666, %v1665
        %v1956 = vpack.c.b16 %v1668, %v1667
        %v1957 = vpack.c.b16 %v1670, %v1669
        %v1958 = vpack.c.b16 %v1672, %v1671
        %v1959 = vpack.c.b16 %v1674, %v1673
        %v1960 = vpack.c.b16 %v1676, %v1675
        %v1961 = vpack.c.b16 %v1678, %v1677
        %v1962 = vpack.c.b16 %v1680, %v1679
        %v1963 = vpack.c.b16 %v1682, %v1681
        %v1964 = vpack.c.b16 %v1684, %v1683
        %v1965 = vpack.c.b16 %v1686, %v1685
        %v1966 = vpack.c.b16 %v1688, %v1687
        %v1967 = vpack.c.b16 %v1690, %v1689
        %v1968 = vpack.c.b16 %v1692, %v1691
        %v1969 = vpack.c.b16 %v1694, %v1693
        %v1970 = vpack.c.b16 %v1696, %v1695
        %v1971 = vpack.c.b16 %v1698, %v1697
        %v1972 = vpack.c.b16 %v1700, %v1699
        %v1973 = vpack.c.b16 %v1702, %v1701
        %v1974 = vpack.c.b16 %v1704, %v1703
        %v1975 = vpack.c.b16 %v1706, %v1705
        %v1976 = vpack.c.b16 %v1708, %v1707
        %v1977 = vpack.c.b16 %v1710, %v1709
        %v1978 = vpack.c.b16 %v1712, %v1711
        %v1979 = vpack.c.b16 %v1714, %v1713
        %v1980 = vpack.c.b16 %v1716, %v1715
        %v1981 = vpack.c.b16 %v1718, %v1717
        %v1982 = vpack.c.b16 %v1720, %v1719
        %v1983 = vpack.c.b16 %v1722, %v1721
        %v1984 = vpack.c.b16 %v1724, %v1723
        %v1985 = vpack.c.b16 %v1726, %v1725
        %v1986 = vpack.c.b16 %v1728, %v1727
        %v1987 = vpack.c.b16 %v1730, %v1729
        %v1988 = vpack.c.b16 %v1732, %v1731
        %v1989 = vpack.c.b16 %v1734, %v1733
        %v1990 = vpack.c.b16 %v1736, %v1735
        %v1991 = vpack.c.b16 %v1738, %v1737
        %v1992 = vpack.c.b16 %v1740, %v1739
        %v1993 = vpack.c.b16 %v1742, %v1741
        %v1994 = vpack.c.b16 %v1744, %v1743
        %v1995 = vpack.c.b16 %v1746, %v1745
        %v1996 = vpack.c.b16 %v1748, %v1747
        %v1997 = vpack.c.b16 %v1750, %v1749
        %v1998 = vpack.c.b16 %v1752, %v1751
        %v1999 = vpack.c.b16 %v1754, %v1753
        %v2000 = vpack.c.b16 %v1756, %v1755
        %v2001 = vpack.c.b16 %v1758, %v1757
        %v2002 = vpack.c.b16 %v1760, %v1759
        %v2003 = vpack.c.b16 %v1762, %v1761
        %v2004 = vpack.c.b16 %v1764, %v1763
        %v2005 = vpack.c.b16 %v1766, %v1765
        %v2006 = vpack.c.b16 %v1768, %v1767
        %v2007 = vpack.c.b16 %v1770, %v1769
        %v2008 = vpack.c.b16 %v1772, %v1771
        %v2009 = vpack.c.b16 %v1774, %v1773
        %v2010 = vpack.c.b16 %v1776, %v1775
        %v2011 = vpack.c.b16 %v1778, %v1777
        %v2012 = vpack.c.b16 %v1780, %v1779
        %v2013 = vpack.c.b16 %v1782, %v1781
        %v2014 = vpack.c.b16 %v1784, %v1783
        %v2015 = vpack.c.b16 %v1786, %v1785
        %v2016 = vpack.c.b16 %v1788, %v1787
        %v2017 = vpack.c.b16 %v1790, %v1789
        %v2018 = vpack.c.b16 %v1792, %v1791
        %v2019 = vpack.c.b16 %v1794, %v1793
        %v2020 = vpack.c.b16 %v1796, %v1795
        %2245 = vmatprep.subr.bf16.mxu0 0
        %2246 = vmatpush1.bf16.msra.mxu0 %v1804
        %2247 = vmatprep.subr.bf16.mxu0 0
        %2248 = vmatpush1.bf16.msra.mxu0 %v1803
        %2249 = vmatprep.subr.bf16.mxu0 0
        %2250 = vmatpush1.bf16.msra.mxu0 %v1802
        %2251 = vmatprep.subr.bf16.mxu0 0
        %2252 = vmatpush1.bf16.msra.mxu0 %v1801
        %2253 = vmatprep.subr.bf16.mxu0 0
        %2254 = vmatpush1.bf16.msra.mxu0 %v1800
        %2255 = vmatprep.subr.bf16.mxu0 0
        %2256 = vmatpush1.bf16.msra.mxu0 %v1799
        %2257 = vmatprep.subr.bf16.mxu0 0
        %2258 = vmatpush1.bf16.msra.mxu0 %v1798
        %2259 = vmatprep.subr.bf16.mxu0 0
        %2260 = vmatpush1.bf16.msra.mxu0 %v1797
        %2261 = vmatprep.subr.bf16.mxu0 0
        %2262 = vmatpush2.bf16.msra.mxu0 %v1812
        %2263 = vmatprep.subr.bf16.mxu0 0
        %2264 = vmatpush2.bf16.msra.mxu0 %v1811
        %2265 = vmatprep.subr.bf16.mxu0 0
        %2266 = vmatpush2.bf16.msra.mxu0 %v1810
        %2267 = vmatprep.subr.bf16.mxu0 0
        %2268 = vmatpush2.bf16.msra.mxu0 %v1809
        %2269 = vmatprep.subr.bf16.mxu0 0
        %2270 = vmatpush2.bf16.msra.mxu0 %v1808
        %2271 = vmatprep.subr.bf16.mxu0 0
        %2272 = vmatpush2.bf16.msra.mxu0 %v1807
        %2273 = vmatprep.subr.bf16.mxu0 0
        %2274 = vmatpush2.bf16.msra.mxu0 %v1806
        %2275 = vmatprep.subr.bf16.mxu0 0
        %2276 = vmatpush2.bf16.msra.mxu0 %v1805
        %2277 = vmatprep.mubr.bf16.mxu0 %v739
        %2278 = vmatmul.mubr.bf16.gmra.mxu0 %v725
        %v2279 = vpop.f32.mrf.mxu0
        %v2280 = vadd.f32 0.0, %v2279
        %v2281 = vpop.f32.mrf.mxu0
        %v2282 = vpop.f32.mrf.mxu0
        %v2283 = vpop.f32.mrf.mxu0
        %2284 = vdwg.mxu0
        %2285 = vmatprep.subr.bf16.mxu0 0
        %2286 = vmatpush1.bf16.msra.mxu0 %v1820
        %2287 = vmatprep.subr.bf16.mxu0 0
        %2288 = vmatpush1.bf16.msra.mxu0 %v1819
        %2289 = vmatprep.subr.bf16.mxu0 0
        %2290 = vmatpush1.bf16.msra.mxu0 %v1818
        %2291 = vmatprep.subr.bf16.mxu0 0
        %2292 = vmatpush1.bf16.msra.mxu0 %v1817
        %2293 = vmatprep.subr.bf16.mxu0 0
        %2294 = vmatpush1.bf16.msra.mxu0 %v1816
        %2295 = vmatprep.subr.bf16.mxu0 0
        %2296 = vmatpush1.bf16.msra.mxu0 %v1815
        %2297 = vmatprep.subr.bf16.mxu0 0
        %2298 = vmatpush1.bf16.msra.mxu0 %v1814
        %2299 = vmatprep.subr.bf16.mxu0 0
        %2300 = vmatpush1.bf16.msra.mxu0 %v1813
        %2301 = vmatprep.subr.bf16.mxu0 0
        %2302 = vmatpush2.bf16.msra.mxu0 %v1828
        %2303 = vmatprep.subr.bf16.mxu0 0
        %2304 = vmatpush2.bf16.msra.mxu0 %v1827
        %2305 = vmatprep.subr.bf16.mxu0 0
        %2306 = vmatpush2.bf16.msra.mxu0 %v1826
        %2307 = vmatprep.subr.bf16.mxu0 0
        %2308 = vmatpush2.bf16.msra.mxu0 %v1825
        %2309 = vmatprep.subr.bf16.mxu0 0
        %2310 = vmatpush2.bf16.msra.mxu0 %v1824
        %2311 = vmatprep.subr.bf16.mxu0 0
        %2312 = vmatpush2.bf16.msra.mxu0 %v1823
        %2313 = vmatprep.subr.bf16.mxu0 0
        %2314 = vmatpush2.bf16.msra.mxu0 %v1822
        %2315 = vmatprep.subr.bf16.mxu0 0
        %2316 = vmatpush2.bf16.msra.mxu0 %v1821
        %2317 = vmatprep.mubr.bf16.mxu0 %v749
        %2318 = vmatmul.mubr.bf16.gmra.mxu0 %v747
        %v2319 = vpop.f32.mrf.mxu0
        %v2320 = vadd.f32 %v2280, %v2319
        %v2321 = vpop.f32.mrf.mxu0
        %v2322 = vpop.f32.mrf.mxu0
        %v2323 = vpop.f32.mrf.mxu0
        %2324 = vdwg.mxu0
        %2325 = vmatprep.subr.bf16.mxu0 0
        %2326 = vmatpush1.bf16.msra.mxu0 %v1836
        %2327 = vmatprep.subr.bf16.mxu0 0
        %2328 = vmatpush1.bf16.msra.mxu0 %v1835
        %2329 = vmatprep.subr.bf16.mxu0 0
        %2330 = vmatpush1.bf16.msra.mxu0 %v1834
        %2331 = vmatprep.subr.bf16.mxu0 0
        %2332 = vmatpush1.bf16.msra.mxu0 %v1833
        %2333 = vmatprep.subr.bf16.mxu0 0
        %2334 = vmatpush1.bf16.msra.mxu0 %v1832
        %2335 = vmatprep.subr.bf16.mxu0 0
        %2336 = vmatpush1.bf16.msra.mxu0 %v1831
        %2337 = vmatprep.subr.bf16.mxu0 0
        %2338 = vmatpush1.bf16.msra.mxu0 %v1830
        %2339 = vmatprep.subr.bf16.mxu0 0
        %2340 = vmatpush1.bf16.msra.mxu0 %v1829
        %2341 = vmatprep.subr.bf16.mxu0 0
        %2342 = vmatpush2.bf16.msra.mxu0 %v1844
        %2343 = vmatprep.subr.bf16.mxu0 0
        %2344 = vmatpush2.bf16.msra.mxu0 %v1843
        %2345 = vmatprep.subr.bf16.mxu0 0
        %2346 = vmatpush2.bf16.msra.mxu0 %v1842
        %2347 = vmatprep.subr.bf16.mxu0 0
        %2348 = vmatpush2.bf16.msra.mxu0 %v1841
        %2349 = vmatprep.subr.bf16.mxu0 0
        %2350 = vmatpush2.bf16.msra.mxu0 %v1840
        %2351 = vmatprep.subr.bf16.mxu0 0
        %2352 = vmatpush2.bf16.msra.mxu0 %v1839
        %2353 = vmatprep.subr.bf16.mxu0 0
        %2354 = vmatpush2.bf16.msra.mxu0 %v1838
        %2355 = vmatprep.subr.bf16.mxu0 0
        %2356 = vmatpush2.bf16.msra.mxu0 %v1837
        %2357 = vmatprep.mubr.bf16.mxu0 %v746
        %2358 = vmatmul.mubr.bf16.gmra.mxu0 %v732
        %v2359 = vpop.f32.mrf.mxu0
        %v2360 = vadd.f32 %v2320, %v2359
        %v2361 = vpop.f32.mrf.mxu0
        %v2362 = vpop.f32.mrf.mxu0
        %v2363 = vpop.f32.mrf.mxu0
        %2364 = vdwg.mxu0
        %2365 = vmatprep.subr.bf16.mxu0 0
        %2366 = vmatpush1.bf16.msra.mxu0 %v1852
        %2367 = vmatprep.subr.bf16.mxu0 0
        %2368 = vmatpush1.bf16.msra.mxu0 %v1851
        %2369 = vmatprep.subr.bf16.mxu0 0
        %2370 = vmatpush1.bf16.msra.mxu0 %v1850
        %2371 = vmatprep.subr.bf16.mxu0 0
        %2372 = vmatpush1.bf16.msra.mxu0 %v1849
        %2373 = vmatprep.subr.bf16.mxu0 0
        %2374 = vmatpush1.bf16.msra.mxu0 %v1848
        %2375 = vmatprep.subr.bf16.mxu0 0
        %2376 = vmatpush1.bf16.msra.mxu0 %v1847
        %2377 = vmatprep.subr.bf16.mxu0 0
        %2378 = vmatpush1.bf16.msra.mxu0 %v1846
        %2379 = vmatprep.subr.bf16.mxu0 0
        %2380 = vmatpush1.bf16.msra.mxu0 %v1845
        %2381 = vmatprep.subr.bf16.mxu0 0
        %2382 = vmatpush2.bf16.msra.mxu0 %v1860
        %2383 = vmatprep.subr.bf16.mxu0 0
        %2384 = vmatpush2.bf16.msra.mxu0 %v1859
        %2385 = vmatprep.subr.bf16.mxu0 0
        %2386 = vmatpush2.bf16.msra.mxu0 %v1858
        %2387 = vmatprep.subr.bf16.mxu0 0
        %2388 = vmatpush2.bf16.msra.mxu0 %v1857
        %2389 = vmatprep.subr.bf16.mxu0 0
        %2390 = vmatpush2.bf16.msra.mxu0 %v1856
        %2391 = vmatprep.subr.bf16.mxu0 0
        %2392 = vmatpush2.bf16.msra.mxu0 %v1855
        %2393 = vmatprep.subr.bf16.mxu0 0
        %2394 = vmatpush2.bf16.msra.mxu0 %v1854
        %2395 = vmatprep.subr.bf16.mxu0 0
        %2396 = vmatpush2.bf16.msra.mxu0 %v1853
        %2397 = vmatprep.mubr.bf16.mxu0 %v750
        %2398 = vmatmul.mubr.bf16.gmra.mxu0 %v748
        %v2399 = vpop.f32.mrf.mxu0
        %v2400 = vadd.f32 %v2360, %v2399
        %v2401 = vpop.f32.mrf.mxu0
        %v2402 = vpop.f32.mrf.mxu0
        %v2403 = vpop.f32.mrf.mxu0
        %2404 = vdwg.mxu0
        %2405 = vmatprep.subr.bf16.mxu0 0
        %2406 = vmatpush1.bf16.msra.mxu0 %v1868
        %2407 = vmatprep.subr.bf16.mxu0 0
        %2408 = vmatpush1.bf16.msra.mxu0 %v1867
        %2409 = vmatprep.subr.bf16.mxu0 0
        %2410 = vmatpush1.bf16.msra.mxu0 %v1866
        %2411 = vmatprep.subr.bf16.mxu0 0
        %2412 = vmatpush1.bf16.msra.mxu0 %v1865
        %2413 = vmatprep.subr.bf16.mxu0 0
        %2414 = vmatpush1.bf16.msra.mxu0 %v1864
        %2415 = vmatprep.subr.bf16.mxu0 0
        %2416 = vmatpush1.bf16.msra.mxu0 %v1863
        %2417 = vmatprep.subr.bf16.mxu0 0
        %2418 = vmatpush1.bf16.msra.mxu0 %v1862
        %2419 = vmatprep.subr.bf16.mxu0 0
        %2420 = vmatpush1.bf16.msra.mxu0 %v1861
        %2421 = vmatprep.subr.bf16.mxu0 0
        %2422 = vmatpush2.bf16.msra.mxu0 %v1876
        %2423 = vmatprep.subr.bf16.mxu0 0
        %2424 = vmatpush2.bf16.msra.mxu0 %v1875
        %2425 = vmatprep.subr.bf16.mxu0 0
        %2426 = vmatpush2.bf16.msra.mxu0 %v1874
        %2427 = vmatprep.subr.bf16.mxu0 0
        %2428 = vmatpush2.bf16.msra.mxu0 %v1873
        %2429 = vmatprep.subr.bf16.mxu0 0
        %2430 = vmatpush2.bf16.msra.mxu0 %v1872
        %2431 = vmatprep.subr.bf16.mxu0 0
        %2432 = vmatpush2.bf16.msra.mxu0 %v1871
        %2433 = vmatprep.subr.bf16.mxu0 0
        %2434 = vmatpush2.bf16.msra.mxu0 %v1870
        %2435 = vmatprep.subr.bf16.mxu0 0
        %2436 = vmatpush2.bf16.msra.mxu0 %v1869
        %2437 = vmatprep.mubr.bf16.mxu0 %v788
        %2438 = vmatmul.mubr.bf16.gmra.mxu0 %v774
        %v2439 = vpop.f32.mrf.mxu0
        %v2440 = vadd.f32 %v2400, %v2439
        %v2441 = vpop.f32.mrf.mxu0
        %v2442 = vpop.f32.mrf.mxu0
        %v2443 = vpop.f32.mrf.mxu0
        %2444 = vdwg.mxu0
        %2445 = vmatprep.subr.bf16.mxu0 0
        %2446 = vmatpush1.bf16.msra.mxu0 %v1884
        %2447 = vmatprep.subr.bf16.mxu0 0
        %2448 = vmatpush1.bf16.msra.mxu0 %v1883
        %2449 = vmatprep.subr.bf16.mxu0 0
        %2450 = vmatpush1.bf16.msra.mxu0 %v1882
        %2451 = vmatprep.subr.bf16.mxu0 0
        %2452 = vmatpush1.bf16.msra.mxu0 %v1881
        %2453 = vmatprep.subr.bf16.mxu0 0
        %2454 = vmatpush1.bf16.msra.mxu0 %v1880
        %2455 = vmatprep.subr.bf16.mxu0 0
        %2456 = vmatpush1.bf16.msra.mxu0 %v1879
        %2457 = vmatprep.subr.bf16.mxu0 0
        %2458 = vmatpush1.bf16.msra.mxu0 %v1878
        %2459 = vmatprep.subr.bf16.mxu0 0
        %2460 = vmatpush1.bf16.msra.mxu0 %v1877
        %2461 = vmatprep.subr.bf16.mxu0 0
        %2462 = vmatpush2.bf16.msra.mxu0 %v1892
        %2463 = vmatprep.subr.bf16.mxu0 0
        %2464 = vmatpush2.bf16.msra.mxu0 %v1891
        %2465 = vmatprep.subr.bf16.mxu0 0
        %2466 = vmatpush2.bf16.msra.mxu0 %v1890
        %2467 = vmatprep.subr.bf16.mxu0 0
        %2468 = vmatpush2.bf16.msra.mxu0 %v1889
        %2469 = vmatprep.subr.bf16.mxu0 0
        %2470 = vmatpush2.bf16.msra.mxu0 %v1888
        %2471 = vmatprep.subr.bf16.mxu0 0
        %2472 = vmatpush2.bf16.msra.mxu0 %v1887
        %2473 = vmatprep.subr.bf16.mxu0 0
        %2474 = vmatpush2.bf16.msra.mxu0 %v1886
        %2475 = vmatprep.subr.bf16.mxu0 0
        %2476 = vmatpush2.bf16.msra.mxu0 %v1885
        %2477 = vmatprep.mubr.bf16.mxu0 %v798
        %2478 = vmatmul.mubr.bf16.gmra.mxu0 %v796
        %v2479 = vpop.f32.mrf.mxu0
        %v2480 = vadd.f32 %v2440, %v2479
        %v2481 = vpop.f32.mrf.mxu0
        %v2482 = vpop.f32.mrf.mxu0
        %v2483 = vpop.f32.mrf.mxu0
        %2484 = vdwg.mxu0
        %2485 = vmatprep.subr.bf16.mxu0 0
        %2486 = vmatpush1.bf16.msra.mxu0 %v1900
        %2487 = vmatprep.subr.bf16.mxu0 0
        %2488 = vmatpush1.bf16.msra.mxu0 %v1899
        %2489 = vmatprep.subr.bf16.mxu0 0
        %2490 = vmatpush1.bf16.msra.mxu0 %v1898
        %2491 = vmatprep.subr.bf16.mxu0 0
        %2492 = vmatpush1.bf16.msra.mxu0 %v1897
        %2493 = vmatprep.subr.bf16.mxu0 0
        %2494 = vmatpush1.bf16.msra.mxu0 %v1896
        %2495 = vmatprep.subr.bf16.mxu0 0
        %2496 = vmatpush1.bf16.msra.mxu0 %v1895
        %2497 = vmatprep.subr.bf16.mxu0 0
        %2498 = vmatpush1.bf16.msra.mxu0 %v1894
        %2499 = vmatprep.subr.bf16.mxu0 0
        %2500 = vmatpush1.bf16.msra.mxu0 %v1893
        %2501 = vmatprep.subr.bf16.mxu0 0
        %2502 = vmatpush2.bf16.msra.mxu0 %v1908
        %2503 = vmatprep.subr.bf16.mxu0 0
        %2504 = vmatpush2.bf16.msra.mxu0 %v1907
        %2505 = vmatprep.subr.bf16.mxu0 0
        %2506 = vmatpush2.bf16.msra.mxu0 %v1906
        %2507 = vmatprep.subr.bf16.mxu0 0
        %2508 = vmatpush2.bf16.msra.mxu0 %v1905
        %2509 = vmatprep.subr.bf16.mxu0 0
        %2510 = vmatpush2.bf16.msra.mxu0 %v1904
        %2511 = vmatprep.subr.bf16.mxu0 0
        %2512 = vmatpush2.bf16.msra.mxu0 %v1903
        %2513 = vmatprep.subr.bf16.mxu0 0
        %2514 = vmatpush2.bf16.msra.mxu0 %v1902
        %2515 = vmatprep.subr.bf16.mxu0 0
        %2516 = vmatpush2.bf16.msra.mxu0 %v1901
        %2517 = vmatprep.mubr.bf16.mxu0 %v795
        %2518 = vmatmul.mubr.bf16.gmra.mxu0 %v781
        %v2519 = vpop.f32.mrf.mxu0
        %v2520 = vadd.f32 %v2480, %v2519
        %v2521 = vpop.f32.mrf.mxu0
        %v2522 = vpop.f32.mrf.mxu0
        %v2523 = vpop.f32.mrf.mxu0
        %2524 = vdwg.mxu0
        %2525 = vmatprep.subr.bf16.mxu0 0
        %2526 = vmatpush1.bf16.msra.mxu0 %v1916
        %2527 = vmatprep.subr.bf16.mxu0 0
        %2528 = vmatpush1.bf16.msra.mxu0 %v1915
        %2529 = vmatprep.subr.bf16.mxu0 0
        %2530 = vmatpush1.bf16.msra.mxu0 %v1914
        %2531 = vmatprep.subr.bf16.mxu0 0
        %2532 = vmatpush1.bf16.msra.mxu0 %v1913
        %2533 = vmatprep.subr.bf16.mxu0 0
        %2534 = vmatpush1.bf16.msra.mxu0 %v1912
        %2535 = vmatprep.subr.bf16.mxu0 0
        %2536 = vmatpush1.bf16.msra.mxu0 %v1911
        %2537 = vmatprep.subr.bf16.mxu0 0
        %2538 = vmatpush1.bf16.msra.mxu0 %v1910
        %2539 = vmatprep.subr.bf16.mxu0 0
        %2540 = vmatpush1.bf16.msra.mxu0 %v1909
        %2541 = vmatprep.subr.bf16.mxu0 0
        %2542 = vmatpush2.bf16.msra.mxu0 %v1924
        %2543 = vmatprep.subr.bf16.mxu0 0
        %2544 = vmatpush2.bf16.msra.mxu0 %v1923
        %2545 = vmatprep.subr.bf16.mxu0 0
        %2546 = vmatpush2.bf16.msra.mxu0 %v1922
        %2547 = vmatprep.subr.bf16.mxu0 0
        %2548 = vmatpush2.bf16.msra.mxu0 %v1921
        %2549 = vmatprep.subr.bf16.mxu0 0
        %2550 = vmatpush2.bf16.msra.mxu0 %v1920
        %2551 = vmatprep.subr.bf16.mxu0 0
        %2552 = vmatpush2.bf16.msra.mxu0 %v1919
        %2553 = vmatprep.subr.bf16.mxu0 0
        %2554 = vmatpush2.bf16.msra.mxu0 %v1918
        %2555 = vmatprep.subr.bf16.mxu0 0
        %2556 = vmatpush2.bf16.msra.mxu0 %v1917
        %2557 = vmatprep.mubr.bf16.mxu0 %v799
        %2558 = vmatmul.mubr.bf16.gmra.mxu0 %v797
        %v2559 = vpop.f32.mrf.mxu0
        %v2560 = vadd.f32 %v2520, %v2559
        %v2561 = vpop.f32.mrf.mxu0
        %v2562 = vpop.f32.mrf.mxu0
        %v2563 = vpop.f32.mrf.mxu0
        %2564 = vdwg.mxu0
        %2565 = vmatprep.subr.bf16.mxu0 0
        %2566 = vmatpush1.bf16.msra.mxu0 %v1932
        %2567 = vmatprep.subr.bf16.mxu0 0
        %2568 = vmatpush1.bf16.msra.mxu0 %v1931
        %2569 = vmatprep.subr.bf16.mxu0 0
        %2570 = vmatpush1.bf16.msra.mxu0 %v1930
        %2571 = vmatprep.subr.bf16.mxu0 0
        %2572 = vmatpush1.bf16.msra.mxu0 %v1929
        %2573 = vmatprep.subr.bf16.mxu0 0
        %2574 = vmatpush1.bf16.msra.mxu0 %v1928
        %2575 = vmatprep.subr.bf16.mxu0 0
        %2576 = vmatpush1.bf16.msra.mxu0 %v1927
        %2577 = vmatprep.subr.bf16.mxu0 0
        %2578 = vmatpush1.bf16.msra.mxu0 %v1926
        %2579 = vmatprep.subr.bf16.mxu0 0
        %2580 = vmatpush1.bf16.msra.mxu0 %v1925
        %2581 = vmatprep.subr.bf16.mxu0 0
        %2582 = vmatpush2.bf16.msra.mxu0 %v1940
        %2583 = vmatprep.subr.bf16.mxu0 0
        %2584 = vmatpush2.bf16.msra.mxu0 %v1939
        %2585 = vmatprep.subr.bf16.mxu0 0
        %2586 = vmatpush2.bf16.msra.mxu0 %v1938
        %2587 = vmatprep.subr.bf16.mxu0 0
        %2588 = vmatpush2.bf16.msra.mxu0 %v1937
        %2589 = vmatprep.subr.bf16.mxu0 0
        %2590 = vmatpush2.bf16.msra.mxu0 %v1936
        %2591 = vmatprep.subr.bf16.mxu0 0
        %2592 = vmatpush2.bf16.msra.mxu0 %v1935
        %2593 = vmatprep.subr.bf16.mxu0 0
        %2594 = vmatpush2.bf16.msra.mxu0 %v1934
        %2595 = vmatprep.subr.bf16.mxu0 0
        %2596 = vmatpush2.bf16.msra.mxu0 %v1933
        %2597 = vmatprep.mubr.bf16.mxu0 %v837
        %2598 = vmatmul.mubr.bf16.gmra.mxu0 %v823
        %v2599 = vpop.f32.mrf.mxu0
        %v2600 = vadd.f32 %v2560, %v2599
        %v2601 = vpop.f32.mrf.mxu0
        %v2602 = vpop.f32.mrf.mxu0
        %v2603 = vpop.f32.mrf.mxu0
        %2604 = vdwg.mxu0
        %2605 = vmatprep.subr.bf16.mxu0 0
        %2606 = vmatpush1.bf16.msra.mxu0 %v1948
        %2607 = vmatprep.subr.bf16.mxu0 0
        %2608 = vmatpush1.bf16.msra.mxu0 %v1947
        %2609 = vmatprep.subr.bf16.mxu0 0
        %2610 = vmatpush1.bf16.msra.mxu0 %v1946
        %2611 = vmatprep.subr.bf16.mxu0 0
        %2612 = vmatpush1.bf16.msra.mxu0 %v1945
        %2613 = vmatprep.subr.bf16.mxu0 0
        %2614 = vmatpush1.bf16.msra.mxu0 %v1944
        %2615 = vmatprep.subr.bf16.mxu0 0
        %2616 = vmatpush1.bf16.msra.mxu0 %v1943
        %2617 = vmatprep.subr.bf16.mxu0 0
        %2618 = vmatpush1.bf16.msra.mxu0 %v1942
        %2619 = vmatprep.subr.bf16.mxu0 0
        %2620 = vmatpush1.bf16.msra.mxu0 %v1941
        %2621 = vmatprep.subr.bf16.mxu0 0
        %2622 = vmatpush2.bf16.msra.mxu0 %v1956
        %2623 = vmatprep.subr.bf16.mxu0 0
        %2624 = vmatpush2.bf16.msra.mxu0 %v1955
        %2625 = vmatprep.subr.bf16.mxu0 0
        %2626 = vmatpush2.bf16.msra.mxu0 %v1954
        %2627 = vmatprep.subr.bf16.mxu0 0
        %2628 = vmatpush2.bf16.msra.mxu0 %v1953
        %2629 = vmatprep.subr.bf16.mxu0 0
        %2630 = vmatpush2.bf16.msra.mxu0 %v1952
        %2631 = vmatprep.subr.bf16.mxu0 0
        %2632 = vmatpush2.bf16.msra.mxu0 %v1951
        %2633 = vmatprep.subr.bf16.mxu0 0
        %2634 = vmatpush2.bf16.msra.mxu0 %v1950
        %2635 = vmatprep.subr.bf16.mxu0 0
        %2636 = vmatpush2.bf16.msra.mxu0 %v1949
        %2637 = vmatprep.mubr.bf16.mxu0 %v847
        %2638 = vmatmul.mubr.bf16.gmra.mxu0 %v845
        %v2639 = vpop.f32.mrf.mxu0
        %v2640 = vadd.f32 %v2600, %v2639
        %v2641 = vpop.f32.mrf.mxu0
        %v2642 = vpop.f32.mrf.mxu0
        %v2643 = vpop.f32.mrf.mxu0
        %2644 = vdwg.mxu0
        %2645 = vmatprep.subr.bf16.mxu0 0
        %2646 = vmatpush1.bf16.msra.mxu0 %v1964
        %2647 = vmatprep.subr.bf16.mxu0 0
        %2648 = vmatpush1.bf16.msra.mxu0 %v1963
        %2649 = vmatprep.subr.bf16.mxu0 0
        %2650 = vmatpush1.bf16.msra.mxu0 %v1962
        %2651 = vmatprep.subr.bf16.mxu0 0
        %2652 = vmatpush1.bf16.msra.mxu0 %v1961
        %2653 = vmatprep.subr.bf16.mxu0 0
        %2654 = vmatpush1.bf16.msra.mxu0 %v1960
        %2655 = vmatprep.subr.bf16.mxu0 0
        %2656 = vmatpush1.bf16.msra.mxu0 %v1959
        %2657 = vmatprep.subr.bf16.mxu0 0
        %2658 = vmatpush1.bf16.msra.mxu0 %v1958
        %2659 = vmatprep.subr.bf16.mxu0 0
        %2660 = vmatpush1.bf16.msra.mxu0 %v1957
        %2661 = vmatprep.subr.bf16.mxu0 0
        %2662 = vmatpush2.bf16.msra.mxu0 %v1972
        %2663 = vmatprep.subr.bf16.mxu0 0
        %2664 = vmatpush2.bf16.msra.mxu0 %v1971
        %2665 = vmatprep.subr.bf16.mxu0 0
        %2666 = vmatpush2.bf16.msra.mxu0 %v1970
        %2667 = vmatprep.subr.bf16.mxu0 0
        %2668 = vmatpush2.bf16.msra.mxu0 %v1969
        %2669 = vmatprep.subr.bf16.mxu0 0
        %2670 = vmatpush2.bf16.msra.mxu0 %v1968
        %2671 = vmatprep.subr.bf16.mxu0 0
        %2672 = vmatpush2.bf16.msra.mxu0 %v1967
        %2673 = vmatprep.subr.bf16.mxu0 0
        %2674 = vmatpush2.bf16.msra.mxu0 %v1966
        %2675 = vmatprep.subr.bf16.mxu0 0
        %2676 = vmatpush2.bf16.msra.mxu0 %v1965
        %2677 = vmatprep.mubr.bf16.mxu0 %v844
        %2678 = vmatmul.mubr.bf16.gmra.mxu0 %v830
        %v2679 = vpop.f32.mrf.mxu0
        %v2680 = vadd.f32 %v2640, %v2679
        %v2681 = vpop.f32.mrf.mxu0
        %v2682 = vpop.f32.mrf.mxu0
        %v2683 = vpop.f32.mrf.mxu0
        %2684 = vdwg.mxu0
        %2685 = vmatprep.subr.bf16.mxu0 0
        %2686 = vmatpush1.bf16.msra.mxu0 %v1980
        %2687 = vmatprep.subr.bf16.mxu0 0
        %2688 = vmatpush1.bf16.msra.mxu0 %v1979
        %2689 = vmatprep.subr.bf16.mxu0 0
        %2690 = vmatpush1.bf16.msra.mxu0 %v1978
        %2691 = vmatprep.subr.bf16.mxu0 0
        %2692 = vmatpush1.bf16.msra.mxu0 %v1977
        %2693 = vmatprep.subr.bf16.mxu0 0
        %2694 = vmatpush1.bf16.msra.mxu0 %v1976
        %2695 = vmatprep.subr.bf16.mxu0 0
        %2696 = vmatpush1.bf16.msra.mxu0 %v1975
        %2697 = vmatprep.subr.bf16.mxu0 0
        %2698 = vmatpush1.bf16.msra.mxu0 %v1974
        %2699 = vmatprep.subr.bf16.mxu0 0
        %2700 = vmatpush1.bf16.msra.mxu0 %v1973
        %2701 = vmatprep.subr.bf16.mxu0 0
        %2702 = vmatpush2.bf16.msra.mxu0 %v1988
        %2703 = vmatprep.subr.bf16.mxu0 0
        %2704 = vmatpush2.bf16.msra.mxu0 %v1987
        %2705 = vmatprep.subr.bf16.mxu0 0
        %2706 = vmatpush2.bf16.msra.mxu0 %v1986
        %2707 = vmatprep.subr.bf16.mxu0 0
        %2708 = vmatpush2.bf16.msra.mxu0 %v1985
        %2709 = vmatprep.subr.bf16.mxu0 0
        %2710 = vmatpush2.bf16.msra.mxu0 %v1984
        %2711 = vmatprep.subr.bf16.mxu0 0
        %2712 = vmatpush2.bf16.msra.mxu0 %v1983
        %2713 = vmatprep.subr.bf16.mxu0 0
        %2714 = vmatpush2.bf16.msra.mxu0 %v1982
        %2715 = vmatprep.subr.bf16.mxu0 0
        %2716 = vmatpush2.bf16.msra.mxu0 %v1981
        %2717 = vmatprep.mubr.bf16.mxu0 %v848
        %2718 = vmatmul.mubr.bf16.gmra.mxu0 %v846
        %v2719 = vpop.f32.mrf.mxu0
        %v2720 = vadd.f32 %v2680, %v2719
        %v2721 = vpop.f32.mrf.mxu0
        %v2722 = vpop.f32.mrf.mxu0
        %v2723 = vpop.f32.mrf.mxu0
        %2724 = vdwg.mxu0
        %2725 = vmatprep.subr.bf16.mxu0 0
        %2726 = vmatpush1.bf16.msra.mxu0 %v1996
        %2727 = vmatprep.subr.bf16.mxu0 0
        %2728 = vmatpush1.bf16.msra.mxu0 %v1995
        %2729 = vmatprep.subr.bf16.mxu0 0
        %2730 = vmatpush1.bf16.msra.mxu0 %v1994
        %2731 = vmatprep.subr.bf16.mxu0 0
        %2732 = vmatpush1.bf16.msra.mxu0 %v1993
        %2733 = vmatprep.subr.bf16.mxu0 0
        %2734 = vmatpush1.bf16.msra.mxu0 %v1992
        %2735 = vmatprep.subr.bf16.mxu0 0
        %2736 = vmatpush1.bf16.msra.mxu0 %v1991
        %2737 = vmatprep.subr.bf16.mxu0 0
        %2738 = vmatpush1.bf16.msra.mxu0 %v1990
        %2739 = vmatprep.subr.bf16.mxu0 0
        %2740 = vmatpush1.bf16.msra.mxu0 %v1989
        %2741 = vmatprep.subr.bf16.mxu0 0
        %2742 = vmatpush2.bf16.msra.mxu0 %v2004
        %2743 = vmatprep.subr.bf16.mxu0 0
        %2744 = vmatpush2.bf16.msra.mxu0 %v2003
        %2745 = vmatprep.subr.bf16.mxu0 0
        %2746 = vmatpush2.bf16.msra.mxu0 %v2002
        %2747 = vmatprep.subr.bf16.mxu0 0
        %2748 = vmatpush2.bf16.msra.mxu0 %v2001
        %2749 = vmatprep.subr.bf16.mxu0 0
        %2750 = vmatpush2.bf16.msra.mxu0 %v2000
        %2751 = vmatprep.subr.bf16.mxu0 0
        %2752 = vmatpush2.bf16.msra.mxu0 %v1999
        %2753 = vmatprep.subr.bf16.mxu0 0
        %2754 = vmatpush2.bf16.msra.mxu0 %v1998
        %2755 = vmatprep.subr.bf16.mxu0 0
        %2756 = vmatpush2.bf16.msra.mxu0 %v1997
        %2757 = vmatprep.mubr.bf16.mxu0 %v870
        %2758 = vmatmul.mubr.bf16.gmra.mxu0 %v863
        %v2759 = vpop.f32.mrf.mxu0
        %v2760 = vadd.f32 %v2720, %v2759
        %v2761 = vpop.f32.mrf.mxu0
        %v2762 = vpop.f32.mrf.mxu0
        %v2763 = vpop.f32.mrf.mxu0
        %2764 = vdwg.mxu0
        %2765 = vmatprep.subr.bf16.mxu0 0
        %2766 = vmatpush1.bf16.msra.mxu0 %v2012
        %2767 = vmatprep.subr.bf16.mxu0 0
        %2768 = vmatpush1.bf16.msra.mxu0 %v2011
        %2769 = vmatprep.subr.bf16.mxu0 0
        %2770 = vmatpush1.bf16.msra.mxu0 %v2010
        %2771 = vmatprep.subr.bf16.mxu0 0
        %2772 = vmatpush1.bf16.msra.mxu0 %v2009
        %2773 = vmatprep.subr.bf16.mxu0 0
        %2774 = vmatpush1.bf16.msra.mxu0 %v2008
        %2775 = vmatprep.subr.bf16.mxu0 0
        %2776 = vmatpush1.bf16.msra.mxu0 %v2007
        %2777 = vmatprep.subr.bf16.mxu0 0
        %2778 = vmatpush1.bf16.msra.mxu0 %v2006
        %2779 = vmatprep.subr.bf16.mxu0 0
        %2780 = vmatpush1.bf16.msra.mxu0 %v2005
        %2781 = vmatprep.subr.bf16.mxu0 0
        %2782 = vmatpush2.bf16.msra.mxu0 %v2020
        %2783 = vmatprep.subr.bf16.mxu0 0
        %2784 = vmatpush2.bf16.msra.mxu0 %v2019
        %2785 = vmatprep.subr.bf16.mxu0 0
        %2786 = vmatpush2.bf16.msra.mxu0 %v2018
        %2787 = vmatprep.subr.bf16.mxu0 0
        %2788 = vmatpush2.bf16.msra.mxu0 %v2017
        %2789 = vmatprep.subr.bf16.mxu0 0
        %2790 = vmatpush2.bf16.msra.mxu0 %v2016
        %2791 = vmatprep.subr.bf16.mxu0 0
        %2792 = vmatpush2.bf16.msra.mxu0 %v2015
        %2793 = vmatprep.subr.bf16.mxu0 0
        %2794 = vmatpush2.bf16.msra.mxu0 %v2014
        %2795 = vmatprep.subr.bf16.mxu0 0
        %2796 = vmatpush2.bf16.msra.mxu0 %v2013
        %2797 = vmatprep.mubr.bf16.mxu0 %v872
        %2798 = vmatmul.mubr.bf16.gmra.mxu0 %v871
        %v2799 = vpop.f32.mrf.mxu0
        %v2800 = vadd.f32 %v2760, %v2799
        %v2801 = vpop.f32.mrf.mxu0
        %v2802 = vpop.f32.mrf.mxu0
        %v2803 = vpop.f32.mrf.mxu0
        %2804 = vdwg.mxu0
        %v2805 = vadd.f32 %v245, %v2800
        %2806 = vst [vmem:[#allocation2] sm:$0x3] %v2805
        %p2807 = scmp.eq.s32.totalorder %s22, 7
        // Predicated region
        $region41: #{net_forward.4} parent=31 // pred_check
          %p2808 = pneg %p2807
        $region42: #{net_forward.4} parent=31 // pred_check_branch
          %2810 = sbr.rel (%p2808) target = $region44
        $region43: #{net_forward.4} parent=31 // pred_region
          %v2811 = vld [vmem:[#allocation2] sm:$0x3]
          %v2812 = vld [vmem:[%s234] sm:$0x1]
          %v2814 = vlaneseq
          %v2815 = vshrl.u32 %v2814, 7
          %v2816 = vsub.s32 0, %v2815
          %v2817 = vrot.slane %v2812, %v2816
          %v2819 = vadd.f32 %v2811, %v2817
          %2820 = vst [vmem:[%s238] sm:$0x3] %v2819
        $region44: #{net_forward.4} parent=31 // pred_fallthru
          _
        %p2821 = scmp.lt.s32.totalorder %s21, 1
        %s2822 = scalar_select %p2821, %s21, 1
        %s2823 = smul.addr %s2822, 2
        %s2824 = scalar_lea.vmem %s3, %s2823
        // Predicated region
        $region45: #{net_forward.4} parent=31 // pred_check
          %p2825 = pneg %p127
        $region46: #{net_forward.4} parent=31 // pred_check_branch
          %2827 = sbr.rel (%p2825) target = $region48
        $region47: #{net_forward.4} parent=31 // pred_region
          _
        $region48: #{net_forward.4} parent=31 // pred_fallthru
          _
      $region32: #{net_forward.4} parent=5 // pred_fallthru
        _
      %p2828 = scmp.le.s32.totalorder 2, %s12
      // Predicated region
      $region49: #{net_forward.4} parent=5 // pred_check
        %p2829 = pneg %p2828
      $region50: #{net_forward.4} parent=5 // pred_check_branch
        %2831 = sbr.rel (%p2829) target = $region52
      $region51: #{net_forward.4} parent=5 // pred_region
        %s2832 = ssub.s32 %s12, 2
        // Predicated region
        $region53: #{net_forward.4} parent=51 // pred_check
          %p2833 = pneg %p133
        $region54: #{net_forward.4} parent=51 // pred_check_branch
          %2835 = sbr.rel (%p2833) target = $region56
        $region55: #{net_forward.4} parent=51 // pred_region
          %p2836 = scmp.lt.s32.totalorder %s23, 1
          %s2837 = scalar_select %p2836, %s23, 1
          %s2838 = smul.addr %s2837, 2
          %s2839 = scalar_lea.vmem %s3, %s2838
        $region56: #{net_forward.4} parent=51 // pred_fallthru
          _
      $region52: #{net_forward.4} parent=5 // pred_fallthru
        _
    $region6: #{net_forward.4} parent=1 // loop_footer
      %s16 = sadd.s32 1, %s12
    $region7: #{net_forward.4} parent=1 // loop_footer_branch
      %11 = sbr.rel target = $region3
    $region8: #{net_forward.4} parent=1 // loop_exit
      _
    %2840 = vsyncpa [#allocation4], 1
    %s2841 = scalar_lea.sflag [#allocation4], 1
    %2842 = vsyncpa %s2841, 1

// kernel: net_forward.5
$region0: #{net_forward.5}
  #allocation0 [shape = 'u32[]', space=smem, size = 0x4, offset = 0x4, fixed_abs, tag = 'smem constant byte address 0x4 - core index']
  #allocation1 [shape = 'u32[144,128]{1,0:T(1,128)}', space=vmem, size = 0x12000, scoped, tag = 'internal scratch']
  %s0 = inlined_call_operand.vmem [shape: f32[2,256], index: 0, kind: input, shape index: {}]
  %s1 = inlined_call_operand.vmem [shape: f32[256,8], index: 1, kind: input, shape index: {}]
  %s2 = inlined_call_operand.vmem [shape: f32[1,8], index: 2, kind: input, shape index: {}]
  %s3 = inlined_call_operand.hbm [shape: f32[2,8], index: 3, kind: output, shape index: {}]
  %s4 = sld [smem:[#allocation0]]
  $region22: #{net_forward.5} parent=0
    _
  %s6 = ssub.s32 1, %s4
  %s7 = scalar_select 0, %s6, %s4
  $region1: #{net_forward.5} parent=0
    #allocation2 [shape = 'u8[1024]{0}', space=vmem, size = 0x400, scoped, tag = 'output window, operand 0, single buffered']
    #allocation3 [shape = 's32[1]{0}', space=sflag, size = 0x4, scoped, tag = 'scoped memory for net_forward.5']
    %8 = vsyncpa [#allocation3], 0
    // Predicated region
    $region2: #{net_forward.5} parent=1 // pred_check
      _
    $region3: #{net_forward.5} parent=1 // pred_check_branch
      %10 = sbr.rel (0) target = $region5
    $region4: #{net_forward.5} parent=1 // pred_region
      _
    $region5: #{net_forward.5} parent=1 // pred_fallthru
      _
    // Predicated region
    $region6: #{net_forward.5} parent=1 // pred_check
      _
    $region7: #{net_forward.5} parent=1 // pred_check_branch
      %12 = sbr.rel (0) target = $region9
    $region8: #{net_forward.5} parent=1 // pred_region
      _
    $region9: #{net_forward.5} parent=1 // pred_fallthru
      _
    // Predicated region
    $region10: #{net_forward.5} parent=1 // pred_check
      _
    $region11: #{net_forward.5} parent=1 // pred_check_branch
      %14 = sbr.rel (0) target = $region13
    $region12: #{net_forward.5} parent=1 // pred_region
      _
    $region13: #{net_forward.5} parent=1 // pred_fallthru
      _
    %v15 = vld [vmem:[%s0] sm:$0xf]
    %v16 = vld [vmem:[%s1] sm:$0xff]
    %v17 = vld [vmem:[%s1 + $0x8] sm:$0xff]
    %v18 = vld [vmem:[%s1 + $0x10] sm:$0xff]
    %v19 = vld [vmem:[%s1 + $0x18] sm:$0xff]
    %v20 = vld [vmem:[%s1 + $0x20] sm:$0xff]
    %v21 = vld [vmem:[%s1 + $0x28] sm:$0xff]
    %v22 = vld [vmem:[%s1 + $0x30] sm:$0xff]
    %v23 = vld [vmem:[%s1 + $0x38] sm:$0xff]
    %v24 = vld [vmem:[%s1 + $0x40] sm:$0xff]
    %v25 = vld [vmem:[%s1 + $0x48] sm:$0xff]
    %v26 = vld [vmem:[%s1 + $0x50] sm:$0xff]
    %v27 = vld [vmem:[%s1 + $0x58] sm:$0xff]
    %v28 = vld [vmem:[%s1 + $0x60] sm:$0xff]
    %v29 = vld [vmem:[%s1 + $0x68] sm:$0xff]
    %v30 = vld [vmem:[%s1 + $0x70] sm:$0xff]
    %v31 = vld [vmem:[%s1 + $0x78] sm:$0xff]
    %v32 = vld [vmem:[%s1 + $0x80] sm:$0xff]
    %v33 = vld [vmem:[%s1 + $0x88] sm:$0xff]
    %v34 = vld [vmem:[%s1 + $0x90] sm:$0xff]
    %v35 = vld [vmem:[%s1 + $0x98] sm:$0xff]
    %v36 = vld [vmem:[%s1 + $0xa0] sm:$0xff]
    %v37 = vld [vmem:[%s1 + $0xa8] sm:$0xff]
    %v38 = vld [vmem:[%s1 + $0xb0] sm:$0xff]
    %v39 = vld [vmem:[%s1 + $0xb8] sm:$0xff]
    %v40 = vld [vmem:[%s1 + $0xc0] sm:$0xff]
    %v41 = vld [vmem:[%s1 + $0xc8] sm:$0xff]
    %v42 = vld [vmem:[%s1 + $0xd0] sm:$0xff]
    %v43 = vld [vmem:[%s1 + $0xd8] sm:$0xff]
    %v44 = vld [vmem:[%s1 + $0xe0] sm:$0xff]
    %v45 = vld [vmem:[%s1 + $0xe8] sm:$0xff]
    %v46 = vld [vmem:[%s1 + $0xf0] sm:$0xff]
    %v47 = vld [vmem:[%s1 + $0xf8] sm:$0xff]
    %v48 = vld [vmem:[%s2] sm:$0x1]
    %v50 = vlaneseq
    %v51 = vshrl.u32 %v50, 7
    %v52 = vsub.s32 0, %v51
    %v53 = vrot.slane %v48, %v52
    %v57 = vunpack.c.l.s4 1983009808
    %v58 = vunpack.c.0.s8 %v57
    %v59 = vlaneseq
    %v60 = vshrl.u32 %v59, 7
    %v61 = vsub.s32 %v58, %v60
    %v62 = vrot.slane %v15, %v61
    %v63 = vcombine.high %v62, %v62
    %66 = vmatprep.subr.mxu0 0.0
    %67 = vmatpush1.msra.mxu0 %v31
    %68 = vmatprep.subr.mxu0 0.0
    %69 = vmatpush1.msra.mxu0 %v30
    %70 = vmatprep.subr.mxu0 0.0
    %71 = vmatpush1.msra.mxu0 %v29
    %72 = vmatprep.subr.mxu0 0.0
    %73 = vmatpush1.msra.mxu0 %v28
    %74 = vmatprep.subr.mxu0 0.0
    %75 = vmatpush1.msra.mxu0 %v27
    %76 = vmatprep.subr.mxu0 0.0
    %77 = vmatpush1.msra.mxu0 %v26
    %78 = vmatprep.subr.mxu0 0.0
    %79 = vmatpush1.msra.mxu0 %v25
    %80 = vmatprep.subr.mxu0 0.0
    %81 = vmatpush1.msra.mxu0 %v24
    %82 = vmatprep.subr.mxu0 0.0
    %83 = vmatpush1.msra.mxu0 %v23
    %84 = vmatprep.subr.mxu0 0.0
    %85 = vmatpush1.msra.mxu0 %v22
    %86 = vmatprep.subr.mxu0 0.0
    %87 = vmatpush1.msra.mxu0 %v21
    %88 = vmatprep.subr.mxu0 0.0
    %89 = vmatpush1.msra.mxu0 %v20
    %90 = vmatprep.subr.mxu0 0.0
    %91 = vmatpush1.msra.mxu0 %v19
    %92 = vmatprep.subr.mxu0 0.0
    %93 = vmatpush1.msra.mxu0 %v18
    %94 = vmatprep.subr.mxu0 0.0
    %95 = vmatpush1.msra.mxu0 %v17
    %96 = vmatprep.subr.mxu0 0.0
    %97 = vmatpush1.msra.mxu0 %v16
    %98 = vmatprep.subr.mxu0 0.0
    %99 = vmatpush2.msra.mxu0 %v47
    %100 = vmatprep.subr.mxu0 0.0
    %101 = vmatpush2.msra.mxu0 %v46
    %102 = vmatprep.subr.mxu0 0.0
    %103 = vmatpush2.msra.mxu0 %v45
    %104 = vmatprep.subr.mxu0 0.0
    %105 = vmatpush2.msra.mxu0 %v44
    %106 = vmatprep.subr.mxu0 0.0
    %107 = vmatpush2.msra.mxu0 %v43
    %108 = vmatprep.subr.mxu0 0.0
    %109 = vmatpush2.msra.mxu0 %v42
    %110 = vmatprep.subr.mxu0 0.0
    %111 = vmatpush2.msra.mxu0 %v41
    %112 = vmatprep.subr.mxu0 0.0
    %113 = vmatpush2.msra.mxu0 %v40
    %114 = vmatprep.subr.mxu0 0.0
    %115 = vmatpush2.msra.mxu0 %v39
    %116 = vmatprep.subr.mxu0 0.0
    %117 = vmatpush2.msra.mxu0 %v38
    %118 = vmatprep.subr.mxu0 0.0
    %119 = vmatpush2.msra.mxu0 %v37
    %120 = vmatprep.subr.mxu0 0.0
    %121 = vmatpush2.msra.mxu0 %v36
    %122 = vmatprep.subr.mxu0 0.0
    %123 = vmatpush2.msra.mxu0 %v35
    %124 = vmatprep.subr.mxu0 0.0
    %125 = vmatpush2.msra.mxu0 %v34
    %126 = vmatprep.subr.mxu0 0.0
    %127 = vmatpush2.msra.mxu0 %v33
    %128 = vmatprep.subr.mxu0 0.0
    %129 = vmatpush2.msra.mxu0 %v32
    %130 = vmatprep.mubr.f32.mxu0 %v63
    %131 = vmatmul.mubr.f32.gmra.mxu0 %v62
    %v132 = vpop.f32.mrf.mxu0
    %v133 = vadd.f32 %v53, %v132
    %v134 = vpop.f32.mrf.mxu0
    %135 = vdwg.mxu0
    %vm136 = vcmask 58368
    %v137 = vsel %vm136, %v133, -inf
    %138 = vmax.xlane.f32.xlu0 %v137
    %v139 = vpop.xlane.xlu0 %138
    %v140 = vsub.f32 %v133, %v139
    %v141 = vmul.f32 %v140, 1.442695
    %v142 = vpow.pop %v141
    %v143 = vsel %vm136, %v142, 0.0
    %144 = vadd.xlane.f32.xlu0 %v143
    %v145 = vpop.xlane.xlu0 %144
    %v146 = vrcp.pop %v145
    %v147 = vmul.f32 %v142, %v146
    %148 = vst.msk [vmem:[#allocation2] sm:$0x3] %vm136, %v147
    // Predicated region
    $region14: #{net_forward.5} parent=1 // pred_check
      _
    $region15: #{net_forward.5} parent=1 // pred_check_branch
      %150 = sbr.rel (0) target = $region17
    $region16: #{net_forward.5} parent=1 // pred_region
      %s152 = ssub.s32 32, 32
      %153 = vsyncadd [#allocation3], %s152
      %s155 = sshll.u32 [#allocation2], 4
      %s156 = int_to_ptr.vmem [resolvable:$true] %s155
      %158 = dma.vmem_to_hbm [thread:$0]  %s156, 32, %s3, [#allocation3]
    $region17: #{net_forward.5} parent=1 // pred_fallthru
      _
    // Predicated region
    $region18: #{net_forward.5} parent=1 // pred_check
      _
    $region19: #{net_forward.5} parent=1 // pred_check_branch
      %160 = sbr.rel (0) target = $region21
    $region20: #{net_forward.5} parent=1 // pred_region
      %161 = dma.done [#allocation3], 32
    $region21: #{net_forward.5} parent=1 // pred_fallthru
      _
    %162 = vsyncpa [#allocation3], 1

// kernel: net_forward.3
$region0: #{net_forward.3}
  #allocation0 [shape = 'u32[]', space=smem, size = 0x4, offset = 0x4, fixed_abs, tag = 'smem constant byte address 0x4 - core index']
  #allocation1 [shape = 'u32[144,128]{1,0:T(1,128)}', space=vmem, size = 0x12000, scoped, tag = 'internal scratch']
  #allocation2 [shape = 'bf16[46,52,32]{2,1,0:T(8,128)(2,1)}', space=vmem, size = 0xa1000, scoped, tag = 'scratch operand']
  #allocation3 [shape = 'bf16[46,48,160]{2,1,0:T(8,128)(2,1)}', space=vmem, size = 0x114000, scoped, tag = 'scratch operand']
  %s0 = inlined_call_operand.vmem [shape: bf16[2,84,96,100], index: 0, kind: input, shape index: {}]
  %s1 = inlined_call_operand.vmem [shape: bf16[100,32], index: 1, kind: input, shape index: {}]
  %s2 = inlined_call_operand.vmem [shape: f32[1,32], index: 2, kind: input, shape index: {}]
  %s3 = inlined_call_operand.vmem [shape: bf16[5,160,64], index: 3, kind: input, shape index: {}]
  %s4 = inlined_call_operand.vmem [shape: f32[1,64], index: 4, kind: input, shape index: {}]
  %s5 = inlined_call_operand.vmem [shape: bf16[2,21,21,64], index: 5, kind: output, shape index: {}]
  %s6 = sld [smem:[#allocation0]]
  $region74: #{net_forward.3} parent=0
    _
  %s8 = ssub.s32 1, %s6
  %s9 = scalar_select 0, %s8, %s6
  loop: start=0, step=1, limit=4
  $region2: #{net_forward.3} parent=0 // loop_pre_header
    _
  $region3: #{net_forward.3} parent=0 // loop_header
    %s11 = sphi 0, %s15
    %p12 = scmp.ge.s32.totalorder %s11, 4
    %s21 = sphi 0, %s23
    %s24 = sphi 0, %s21
    %s25 = sphi 0, %s24
    %s41 = sphi 0, %s25
    %s45 = sphi 0, %s45
    %s47 = sphi 0, %s45
    %s48 = sphi 0, %s47
    %s62 = sphi 0, %s48
    %s66 = sphi 0, %s66
    %s68 = sphi 0, %s66
    %s69 = sphi 0, %s68
    %s83 = sphi 0, %s69
    %s87 = sphi 0, %s87
    %s89 = sphi 0, %s87
    %s90 = sphi 0, %s89
    %s104 = sphi 0, %s90
    %s108 = sphi 0, %s108
    %s110 = sphi 0, %s108
    %s111 = sphi 0, %s110
    %s125 = sphi 0, %s111
    %s131 = sphi 0, %s133
    %s134 = sphi 0, %s131
    %s135 = sphi 0, %s134
    %s151 = sphi 0, %s135
  $region4: #{net_forward.3} parent=0 // loop_header_branch
    %14 = sbr.rel (%p12) target = $region8
  $region5: #{net_forward.3} parent=0 // loop_body
    %s16 = ssub.s32 %s11, 1
    %s17 = ssub.s32 %s11, 2
    %s18 = sadd.s32 %s11, 1
    %s19 = ssub.s32 %s11, %s18
    %p20 = scmp.eq.s32.totalorder %s19, 0
    %s22 = sadd.s32 %s21, 1
    %s23 = scalar_select %p20, %s21, %s22
    %p26 = pneg %p20
    %p27 = scmp.eq.s32.totalorder %s11, 1
    %p28 = por %p26, %p27
    %p29 = scmp.ne.s32.totalorder %s21, %s24
    %p30 = scmp.eq.s32.totalorder %s11, 0
    %p31 = por %p29, %p30
    %p32 = scmp.ne.s32.totalorder %s21, %s24
    %p33 = scmp.eq.s32.totalorder %s16, 1
    %p34 = por %p32, %p33
    %p35 = scmp.ne.s32.totalorder %s24, %s25
    %p36 = scmp.eq.s32.totalorder %s16, 0
    %p37 = por %p35, %p36
    %p38 = scmp.ne.s32.totalorder %s24, %s25
    %p39 = scmp.eq.s32.totalorder %s17, 1
    %p40 = por %p38, %p39
    %p42 = scmp.ne.s32.totalorder %s25, %s41
    %p43 = scmp.eq.s32.totalorder %s17, 0
    %p44 = por %p42, %p43
    %s46 = sadd.s32 %s45, 1
    %p49 = scmp.eq.s32.totalorder %s11, 1
    %p50 = scmp.ne.s32.totalorder %s45, %s47
    %p51 = scmp.eq.s32.totalorder %s11, 0
    %p52 = por %p50, %p51
    %p53 = scmp.ne.s32.totalorder %s45, %s47
    %p54 = scmp.eq.s32.totalorder %s16, 1
    %p55 = por %p53, %p54
    %p56 = scmp.ne.s32.totalorder %s47, %s48
    %p57 = scmp.eq.s32.totalorder %s16, 0
    %p58 = por %p56, %p57
    %p59 = scmp.ne.s32.totalorder %s47, %s48
    %p60 = scmp.eq.s32.totalorder %s17, 1
    %p61 = por %p59, %p60
    %p63 = scmp.ne.s32.totalorder %s48, %s62
    %p64 = scmp.eq.s32.totalorder %s17, 0
    %p65 = por %p63, %p64
    %s67 = sadd.s32 %s66, 1
    %p70 = scmp.eq.s32.totalorder %s11, 1
    %p71 = scmp.ne.s32.totalorder %s66, %s68
    %p72 = scmp.eq.s32.totalorder %s11, 0
    %p73 = por %p71, %p72
    %p74 = scmp.ne.s32.totalorder %s66, %s68
    %p75 = scmp.eq.s32.totalorder %s16, 1
    %p76 = por %p74, %p75
    %p77 = scmp.ne.s32.totalorder %s68, %s69
    %p78 = scmp.eq.s32.totalorder %s16, 0
    %p79 = por %p77, %p78
    %p80 = scmp.ne.s32.totalorder %s68, %s69
    %p81 = scmp.eq.s32.totalorder %s17, 1
    %p82 = por %p80, %p81
    %p84 = scmp.ne.s32.totalorder %s69, %s83
    %p85 = scmp.eq.s32.totalorder %s17, 0
    %p86 = por %p84, %p85
    %s88 = sadd.s32 %s87, 1
    %p91 = scmp.eq.s32.totalorder %s11, 1
    %p92 = scmp.ne.s32.totalorder %s87, %s89
    %p93 = scmp.eq.s32.totalorder %s11, 0
    %p94 = por %p92, %p93
    %p95 = scmp.ne.s32.totalorder %s87, %s89
    %p96 = scmp.eq.s32.totalorder %s16, 1
    %p97 = por %p95, %p96
    %p98 = scmp.ne.s32.totalorder %s89, %s90
    %p99 = scmp.eq.s32.totalorder %s16, 0
    %p100 = por %p98, %p99
    %p101 = scmp.ne.s32.totalorder %s89, %s90
    %p102 = scmp.eq.s32.totalorder %s17, 1
    %p103 = por %p101, %p102
    %p105 = scmp.ne.s32.totalorder %s90, %s104
    %p106 = scmp.eq.s32.totalorder %s17, 0
    %p107 = por %p105, %p106
    %s109 = sadd.s32 %s108, 1
    %p112 = scmp.eq.s32.totalorder %s11, 1
    %p113 = scmp.ne.s32.totalorder %s108, %s110
    %p114 = scmp.eq.s32.totalorder %s11, 0
    %p115 = por %p113, %p114
    %p116 = scmp.ne.s32.totalorder %s108, %s110
    %p117 = scmp.eq.s32.totalorder %s16, 1
    %p118 = por %p116, %p117
    %p119 = scmp.ne.s32.totalorder %s110, %s111
    %p120 = scmp.eq.s32.totalorder %s16, 0
    %p121 = por %p119, %p120
    %p122 = scmp.ne.s32.totalorder %s110, %s111
    %p123 = scmp.eq.s32.totalorder %s17, 1
    %p124 = por %p122, %p123
    %p126 = scmp.ne.s32.totalorder %s111, %s125
    %p127 = scmp.eq.s32.totalorder %s17, 0
    %p128 = por %p126, %p127
    %s129 = ssub.s32 %s11, %s18
    %p130 = scmp.eq.s32.totalorder %s129, 0
    %s132 = sadd.s32 %s131, 1
    %s133 = scalar_select %p130, %s131, %s132
    %p136 = pneg %p130
    %p137 = scmp.eq.s32.totalorder %s11, 1
    %p138 = por %p136, %p137
    %p139 = scmp.ne.s32.totalorder %s131, %s134
    %p140 = scmp.eq.s32.totalorder %s11, 0
    %p141 = por %p139, %p140
    %p142 = scmp.ne.s32.totalorder %s131, %s134
    %p143 = scmp.eq.s32.totalorder %s16, 1
    %p144 = por %p142, %p143
    %p145 = scmp.ne.s32.totalorder %s134, %s135
    %p146 = scmp.eq.s32.totalorder %s16, 0
    %p147 = por %p145, %p146
    %p148 = scmp.ne.s32.totalorder %s134, %s135
    %p149 = scmp.eq.s32.totalorder %s17, 1
    %p150 = por %p148, %p149
    %p152 = scmp.ne.s32.totalorder %s135, %s151
    %p153 = scmp.eq.s32.totalorder %s17, 0
    %p154 = por %p152, %p153
    %p155 = scmp.le.s32.totalorder 1, %s11
    %p156 = scmp.lt.s32.totalorder %s11, 3
    %p157 = pnand %p155, %p156
    %p158 = pneg %p157
    // Predicated region
    $region9: #{net_forward.3} parent=5 // pred_check
      _
    $region10: #{net_forward.3} parent=5 // pred_check_branch
      %160 = sbr.rel (%p157) target = $region12
    $region11: #{net_forward.3} parent=5 // pred_region
      %s161 = ssub.s32 %s11, 1
      // Predicated region
      $region13: #{net_forward.3} parent=11 // pred_check
        %p162 = pneg %p58
      $region14: #{net_forward.3} parent=11 // pred_check_branch
        %164 = sbr.rel (%p162) target = $region16
      $region15: #{net_forward.3} parent=11 // pred_region
        _
      $region16: #{net_forward.3} parent=11 // pred_fallthru
        _
      // Predicated region
      $region17: #{net_forward.3} parent=11 // pred_check
        %p165 = pneg %p79
      $region18: #{net_forward.3} parent=11 // pred_check_branch
        %167 = sbr.rel (%p165) target = $region20
      $region19: #{net_forward.3} parent=11 // pred_region
        _
      $region20: #{net_forward.3} parent=11 // pred_fallthru
        _
      // Predicated region
      $region21: #{net_forward.3} parent=11 // pred_check
        %p168 = pneg %p100
      $region22: #{net_forward.3} parent=11 // pred_check_branch
        %170 = sbr.rel (%p168) target = $region24
      $region23: #{net_forward.3} parent=11 // pred_region
        _
      $region24: #{net_forward.3} parent=11 // pred_fallthru
        _
      // Predicated region
      $region25: #{net_forward.3} parent=11 // pred_check
        %p171 = pneg %p121
      $region26: #{net_forward.3} parent=11 // pred_check_branch
        %173 = sbr.rel (%p171) target = $region28
      $region27: #{net_forward.3} parent=11 // pred_region
        _
      $region28: #{net_forward.3} parent=11 // pred_fallthru
        _
    $region12: #{net_forward.3} parent=5 // pred_fallthru
      _
    %p174 = scmp.lt.s32.totalorder %s11, 2
    // Predicated region
    $region29: #{net_forward.3} parent=5 // pred_check
      %p175 = pneg %p174
    $region30: #{net_forward.3} parent=5 // pred_check_branch
      %177 = sbr.rel (%p175) target = $region32
    $region31: #{net_forward.3} parent=5 // pred_region
      // Predicated region
      $region33: #{net_forward.3} parent=31 // pred_check
        %p178 = pneg %p31
      $region34: #{net_forward.3} parent=31 // pred_check_branch
        %180 = sbr.rel (%p178) target = $region36
      $region35: #{net_forward.3} parent=31 // pred_region
        %p181 = scmp.lt.s32.totalorder %s11, 1
        %s182 = scalar_select %p181, %s11, 1
        %s183 = smul.addr %s182, 1008
        %s184 = smul.addr %s183, 4
        %s185 = scalar_lea.vmem %s0, %s184
      $region36: #{net_forward.3} parent=31 // pred_fallthru
        _
    $region32: #{net_forward.3} parent=5 // pred_fallthru
      _
    %p186 = scmp.le.s32.totalorder 1, %s11
    %p187 = scmp.lt.s32.totalorder %s11, 3
    %p188 = pnand %p186, %p187
    %p189 = pneg %p188
    // Predicated region
    $region37: #{net_forward.3} parent=5 // pred_check
      _
    $region38: #{net_forward.3} parent=5 // pred_check_branch
      %191 = sbr.rel (%p188) target = $region40
    $region39: #{net_forward.3} parent=5 // pred_region
      %s192 = ssub.s32 %s11, 1
      %p193 = scmp.lt.s32.totalorder %s16, 1
      %s194 = scalar_select %p193, %s16, 1
      %s195 = smul.addr %s194, 1008
      %s196 = smul.addr %s195, 4
      %s197 = scalar_lea.vmem %s0, %s196
      %p198 = pneg %p37
      %p199 = pneg %p34
      %p200 = pneg %p58
      %p201 = pneg %p55
      %p202 = pneg %p79
      %p203 = pneg %p76
      %p204 = pneg %p100
      %p205 = pneg %p97
      %p206 = pneg %p121
      %p207 = pneg %p118
      %p208 = pneg %p147
      %p209 = pneg %p144
      %p210 = scmp.lt.s32.totalorder %s16, 1
      %s211 = scalar_select %p210, %s16, 1
      %s212 = smul.addr %s211, 63
      %s213 = smul.addr %s212, 4
      %s214 = scalar_lea.vmem %s5, %s213
      %p215 = scmp.lt.s32.totalorder %s16, 1
      %s216 = scalar_select %p215, %s16, 1
      %s217 = smul.addr %s216, 1008
      %s218 = smul.addr %s217, 4
      %s219 = scalar_lea.vmem %s0, %s218
      %p220 = scmp.lt.s32.totalorder %s16, 1
      %s221 = scalar_select %p220, %s16, 1
      %s222 = smul.addr %s221, 63
      %s223 = smul.addr %s222, 4
      %s224 = scalar_lea.vmem %s5, %s223
      %vm226 = vcmask 257024
      %227 = vst.msk [vmem:[#allocation2] sm:$0xf] %vm226, 0
      %228 = vst.msk [vmem:[#allocation2 + $0x4] sm:$0xf] %vm226, 0
      %229 = vst.msk [vmem:[#allocation2 + $0x8] sm:$0xf] %vm226, 0
      %230 = vst.msk [vmem:[#allocation2 + $0xc] sm:$0xf] %vm226, 0
      %231 = vst.msk [vmem:[#allocation2 + $0x10] sm:$0xf] %vm226, 0
      %232 = vst.msk [vmem:[#allocation2 + $0x14] sm:$0xf] %vm226, 0
      %vm233 = vcmask 254976
      %234 = vst.msk [vmem:[#allocation2 + $0x18] sm:$0x3] %vm233, 0
      %235 = vst.msk [vmem:[#allocation2 + $0x1c] sm:$0xf] %vm226, 0
      %236 = vst.msk [vmem:[#allocation2 + $0x20] sm:$0xf] %vm226, 0
      %237 = vst.msk [vmem:[#allocation2 + $0x24] sm:$0xf] %vm226, 0
      %238 = vst.msk [vmem:[#allocation2 + $0x28] sm:$0xf] %vm226, 0
      %239 = vst.msk [vmem:[#allocation2 + $0x2c] sm:$0xf] %vm226, 0
      %240 = vst.msk [vmem:[#allocation2 + $0x30] sm:$0xf] %vm226, 0
      %241 = vst.msk [vmem:[#allocation2 + $0x34] sm:$0x3] %vm233, 0
      %242 = vst.msk [vmem:[#allocation2 + $0x38] sm:$0xf] %vm226, 0
      %243 = vst.msk [vmem:[#allocation2 + $0x3c] sm:$0xf] %vm226, 0
      %244 = vst.msk [vmem:[#allocation2 + $0x40] sm:$0xf] %vm226, 0
      %245 = vst.msk [vmem:[#allocation2 + $0x44] sm:$0xf] %vm226, 0
      %246 = vst.msk [vmem:[#allocation2 + $0x48] sm:$0xf] %vm226, 0
      %247 = vst.msk [vmem:[#allocation2 + $0x4c] sm:$0xf] %vm226, 0
      %248 = vst.msk [vmem:[#allocation2 + $0x50] sm:$0x3] %vm233, 0
      %249 = vst.msk [vmem:[#allocation2 + $0x54] sm:$0xf] %vm226, 0
      %250 = vst.msk [vmem:[#allocation2 + $0x58] sm:$0xf] %vm226, 0
      %251 = vst.msk [vmem:[#allocation2 + $0x5c] sm:$0xf] %vm226, 0
      %252 = vst.msk [vmem:[#allocation2 + $0x60] sm:$0xf] %vm226, 0
      %253 = vst.msk [vmem:[#allocation2 + $0x64] sm:$0xf] %vm226, 0
      %254 = vst.msk [vmem:[#allocation2 + $0x68] sm:$0xf] %vm226, 0
      %255 = vst.msk [vmem:[#allocation2 + $0x6c] sm:$0x3] %vm233, 0
      %256 = vst.msk [vmem:[#allocation2 + $0x70] sm:$0xf] %vm226, 0
      %257 = vst.msk [vmem:[#allocation2 + $0x74] sm:$0xf] %vm226, 0
      %258 = vst.msk [vmem:[#allocation2 + $0x78] sm:$0xf] %vm226, 0
      %259 = vst.msk [vmem:[#allocation2 + $0x7c] sm:$0xf] %vm226, 0
      %260 = vst.msk [vmem:[#allocation2 + $0x80] sm:$0xf] %vm226, 0
      %261 = vst.msk [vmem:[#allocation2 + $0x84] sm:$0xf] %vm226, 0
      %262 = vst.msk [vmem:[#allocation2 + $0x88] sm:$0x3] %vm233, 0
      %263 = vst.msk [vmem:[#allocation2 + $0x8c] sm:$0xf] %vm226, 0
      %264 = vst.msk [vmem:[#allocation2 + $0x90] sm:$0xf] %vm226, 0
      %265 = vst.msk [vmem:[#allocation2 + $0x94] sm:$0xf] %vm226, 0
      %266 = vst.msk [vmem:[#allocation2 + $0x98] sm:$0xf] %vm226, 0
      %267 = vst.msk [vmem:[#allocation2 + $0x9c] sm:$0xf] %vm226, 0
      %268 = vst.msk [vmem:[#allocation2 + $0xa0] sm:$0xf] %vm226, 0
      %269 = vst.msk [vmem:[#allocation2 + $0xa4] sm:$0x3] %vm233, 0
      %270 = vst.msk [vmem:[#allocation2 + $0xa8] sm:$0xf] %vm226, 0
      %271 = vst.msk [vmem:[#allocation2 + $0xac] sm:$0xf] %vm226, 0
      %272 = vst.msk [vmem:[#allocation2 + $0xb0] sm:$0xf] %vm226, 0
      %273 = vst.msk [vmem:[#allocation2 + $0xb4] sm:$0xf] %vm226, 0
      %274 = vst.msk [vmem:[#allocation2 + $0xb8] sm:$0xf] %vm226, 0
      %275 = vst.msk [vmem:[#allocation2 + $0xbc] sm:$0xf] %vm226, 0
      %276 = vst.msk [vmem:[#allocation2 + $0xc0] sm:$0x3] %vm233, 0
      %277 = vst.msk [vmem:[#allocation2 + $0xc4] sm:$0xf] %vm226, 0
      %278 = vst.msk [vmem:[#allocation2 + $0xc8] sm:$0xf] %vm226, 0
      %279 = vst.msk [vmem:[#allocation2 + $0xcc] sm:$0xf] %vm226, 0
      %280 = vst.msk [vmem:[#allocation2 + $0xd0] sm:$0xf] %vm226, 0
      %281 = vst.msk [vmem:[#allocation2 + $0xd4] sm:$0xf] %vm226, 0
      %282 = vst.msk [vmem:[#allocation2 + $0xd8] sm:$0xf] %vm226, 0
      %283 = vst.msk [vmem:[#allocation2 + $0xdc] sm:$0x3] %vm233, 0
      %284 = vst.msk [vmem:[#allocation2 + $0xe0] sm:$0xf] %vm226, 0
      %285 = vst.msk [vmem:[#allocation2 + $0xe4] sm:$0xf] %vm226, 0
      %286 = vst.msk [vmem:[#allocation2 + $0xe8] sm:$0xf] %vm226, 0
      %287 = vst.msk [vmem:[#allocation2 + $0xec] sm:$0xf] %vm226, 0
      %288 = vst.msk [vmem:[#allocation2 + $0xf0] sm:$0xf] %vm226, 0
      %289 = vst.msk [vmem:[#allocation2 + $0xf4] sm:$0xf] %vm226, 0
      %290 = vst.msk [vmem:[#allocation2 + $0xf8] sm:$0x3] %vm233, 0
      %291 = vst.msk [vmem:[#allocation2 + $0xfc] sm:$0xf] %vm226, 0
      %292 = vst.msk [vmem:[#allocation2 + $0x100] sm:$0xf] %vm226, 0
      %293 = vst.msk [vmem:[#allocation2 + $0x104] sm:$0xf] %vm226, 0
      %294 = vst.msk [vmem:[#allocation2 + $0x108] sm:$0xf] %vm226, 0
      %295 = vst.msk [vmem:[#allocation2 + $0x10c] sm:$0xf] %vm226, 0
      %296 = vst.msk [vmem:[#allocation2 + $0x110] sm:$0xf] %vm226, 0
      %297 = vst.msk [vmem:[#allocation2 + $0x114] sm:$0x3] %vm233, 0
      %298 = vst.msk [vmem:[#allocation2 + $0x118] sm:$0xf] %vm226, 0
      %299 = vst.msk [vmem:[#allocation2 + $0x11c] sm:$0xf] %vm226, 0
      %300 = vst.msk [vmem:[#allocation2 + $0x120] sm:$0xf] %vm226, 0
      %301 = vst.msk [vmem:[#allocation2 + $0x124] sm:$0xf] %vm226, 0
      %302 = vst.msk [vmem:[#allocation2 + $0x128] sm:$0xf] %vm226, 0
      %303 = vst.msk [vmem:[#allocation2 + $0x12c] sm:$0xf] %vm226, 0
      %304 = vst.msk [vmem:[#allocation2 + $0x130] sm:$0x3] %vm233, 0
      %305 = vst.msk [vmem:[#allocation2 + $0x134] sm:$0xf] %vm226, 0
      %306 = vst.msk [vmem:[#allocation2 + $0x138] sm:$0xf] %vm226, 0
      %307 = vst.msk [vmem:[#allocation2 + $0x13c] sm:$0xf] %vm226, 0
      %308 = vst.msk [vmem:[#allocation2 + $0x140] sm:$0xf] %vm226, 0
      %309 = vst.msk [vmem:[#allocation2 + $0x144] sm:$0xf] %vm226, 0
      %310 = vst.msk [vmem:[#allocation2 + $0x148] sm:$0xf] %vm226, 0
      %311 = vst.msk [vmem:[#allocation2 + $0x14c] sm:$0x3] %vm233, 0
      %312 = vst.msk [vmem:[#allocation2 + $0x150] sm:$0xf] %vm226, 0
      %313 = vst.msk [vmem:[#allocation2 + $0x154] sm:$0xf] %vm226, 0
      %314 = vst.msk [vmem:[#allocation2 + $0x158] sm:$0xf] %vm226, 0
      %315 = vst.msk [vmem:[#allocation2 + $0x15c] sm:$0xf] %vm226, 0
      %316 = vst.msk [vmem:[#allocation2 + $0x160] sm:$0xf] %vm226, 0
      %317 = vst.msk [vmem:[#allocation2 + $0x164] sm:$0xf] %vm226, 0
      %318 = vst.msk [vmem:[#allocation2 + $0x168] sm:$0x3] %vm233, 0
      %319 = vst.msk [vmem:[#allocation2 + $0x16c] sm:$0xf] %vm226, 0
      %320 = vst.msk [vmem:[#allocation2 + $0x170] sm:$0xf] %vm226, 0
      %321 = vst.msk [vmem:[#allocation2 + $0x174] sm:$0xf] %vm226, 0
      %322 = vst.msk [vmem:[#allocation2 + $0x178] sm:$0xf] %vm226, 0
      %323 = vst.msk [vmem:[#allocation2 + $0x17c] sm:$0xf] %vm226, 0
      %324 = vst.msk [vmem:[#allocation2 + $0x180] sm:$0xf] %vm226, 0
      %325 = vst.msk [vmem:[#allocation2 + $0x184] sm:$0x3] %vm233, 0
      %326 = vst.msk [vmem:[#allocation2 + $0x188] sm:$0xf] %vm226, 0
      %327 = vst.msk [vmem:[#allocation2 + $0x18c] sm:$0xf] %vm226, 0
      %328 = vst.msk [vmem:[#allocation2 + $0x190] sm:$0xf] %vm226, 0
      %329 = vst.msk [vmem:[#allocation2 + $0x194] sm:$0xf] %vm226, 0
      %330 = vst.msk [vmem:[#allocation2 + $0x198] sm:$0xf] %vm226, 0
      %331 = vst.msk [vmem:[#allocation2 + $0x19c] sm:$0xf] %vm226, 0
      %332 = vst.msk [vmem:[#allocation2 + $0x1a0] sm:$0x3] %vm233, 0
      %333 = vst.msk [vmem:[#allocation2 + $0x1a4] sm:$0xf] %vm226, 0
      %334 = vst.msk [vmem:[#allocation2 + $0x1a8] sm:$0xf] %vm226, 0
      %335 = vst.msk [vmem:[#allocation2 + $0x1ac] sm:$0xf] %vm226, 0
      %336 = vst.msk [vmem:[#allocation2 + $0x1b0] sm:$0xf] %vm226, 0
      %337 = vst.msk [vmem:[#allocation2 + $0x1b4] sm:$0xf] %vm226, 0
      %338 = vst.msk [vmem:[#allocation2 + $0x1b8] sm:$0xf] %vm226, 0
      %339 = vst.msk [vmem:[#allocation2 + $0x1bc] sm:$0x3] %vm233, 0
      %340 = vst.msk [vmem:[#allocation2 + $0x1c0] sm:$0xf] %vm226, 0
      %341 = vst.msk [vmem:[#allocation2 + $0x1c4] sm:$0xf] %vm226, 0
      %342 = vst.msk [vmem:[#allocation2 + $0x1c8] sm:$0xf] %vm226, 0
      %343 = vst.msk [vmem:[#allocation2 + $0x1cc] sm:$0xf] %vm226, 0
      %344 = vst.msk [vmem:[#allocation2 + $0x1d0] sm:$0xf] %vm226, 0
      %345 = vst.msk [vmem:[#allocation2 + $0x1d4] sm:$0xf] %vm226, 0
      %346 = vst.msk [vmem:[#allocation2 + $0x1d8] sm:$0x3] %vm233, 0
      %347 = vst.msk [vmem:[#allocation2 + $0x1dc] sm:$0xf] %vm226, 0
      %348 = vst.msk [vmem:[#allocation2 + $0x1e0] sm:$0xf] %vm226, 0
      %349 = vst.msk [vmem:[#allocation2 + $0x1e4] sm:$0xf] %vm226, 0
      %350 = vst.msk [vmem:[#allocation2 + $0x1e8] sm:$0xf] %vm226, 0
      %351 = vst.msk [vmem:[#allocation2 + $0x1ec] sm:$0xf] %vm226, 0
      %352 = vst.msk [vmem:[#allocation2 + $0x1f0] sm:$0xf] %vm226, 0
      %353 = vst.msk [vmem:[#allocation2 + $0x1f4] sm:$0x3] %vm233, 0
      %354 = vst.msk [vmem:[#allocation2 + $0x1f8] sm:$0xf] %vm226, 0
      %355 = vst.msk [vmem:[#allocation2 + $0x1fc] sm:$0xf] %vm226, 0
      %356 = vst.msk [vmem:[#allocation2 + $0x200] sm:$0xf] %vm226, 0
      %357 = vst.msk [vmem:[#allocation2 + $0x204] sm:$0xf] %vm226, 0
      %358 = vst.msk [vmem:[#allocation2 + $0x208] sm:$0xf] %vm226, 0
      %359 = vst.msk [vmem:[#allocation2 + $0x20c] sm:$0xf] %vm226, 0
      %360 = vst.msk [vmem:[#allocation2 + $0x210] sm:$0x3] %vm233, 0
      %361 = vst.msk [vmem:[#allocation2 + $0x214] sm:$0xf] %vm226, 0
      %362 = vst.msk [vmem:[#allocation2 + $0x218] sm:$0xf] %vm226, 0
      %363 = vst.msk [vmem:[#allocation2 + $0x21c] sm:$0xf] %vm226, 0
      %364 = vst.msk [vmem:[#allocation2 + $0x220] sm:$0xf] %vm226, 0
      %365 = vst.msk [vmem:[#allocation2 + $0x224] sm:$0xf] %vm226, 0
      %366 = vst.msk [vmem:[#allocation2 + $0x228] sm:$0xf] %vm226, 0
      %367 = vst.msk [vmem:[#allocation2 + $0x22c] sm:$0x3] %vm233, 0
      %368 = vst.msk [vmem:[#allocation2 + $0x230] sm:$0xf] %vm226, 0
      %369 = vst.msk [vmem:[#allocation2 + $0x234] sm:$0xf] %vm226, 0
      %370 = vst.msk [vmem:[#allocation2 + $0x238] sm:$0xf] %vm226, 0
      %371 = vst.msk [vmem:[#allocation2 + $0x23c] sm:$0xf] %vm226, 0
      %372 = vst.msk [vmem:[#allocation2 + $0x240] sm:$0xf] %vm226, 0
      %373 = vst.msk [vmem:[#allocation2 + $0x244] sm:$0xf] %vm226, 0
      %374 = vst.msk [vmem:[#allocation2 + $0x248] sm:$0x3] %vm233, 0
      %375 = vst.msk [vmem:[#allocation2 + $0x24c] sm:$0xf] %vm226, 0
      %376 = vst.msk [vmem:[#allocation2 + $0x250] sm:$0xf] %vm226, 0
      %377 = vst.msk [vmem:[#allocation2 + $0x254] sm:$0xf] %vm226, 0
      %378 = vst.msk [vmem:[#allocation2 + $0x258] sm:$0xf] %vm226, 0
      %379 = vst.msk [vmem:[#allocation2 + $0x25c] sm:$0xf] %vm226, 0
      %380 = vst.msk [vmem:[#allocation2 + $0x260] sm:$0xf] %vm226, 0
      %381 = vst.msk [vmem:[#allocation2 + $0x264] sm:$0x3] %vm233, 0
      %382 = vst.msk [vmem:[#allocation2 + $0x268] sm:$0xf] %vm226, 0
      %383 = vst.msk [vmem:[#allocation2 + $0x26c] sm:$0xf] %vm226, 0
      %384 = vst.msk [vmem:[#allocation2 + $0x270] sm:$0xf] %vm226, 0
      %385 = vst.msk [vmem:[#allocation2 + $0x274] sm:$0xf] %vm226, 0
      %386 = vst.msk [vmem:[#allocation2 + $0x278] sm:$0xf] %vm226, 0
      %387 = vst.msk [vmem:[#allocation2 + $0x27c] sm:$0xf] %vm226, 0
      %388 = vst.msk [vmem:[#allocation2 + $0x280] sm:$0x3] %vm233, 0
      %389 = vst.msk [vmem:[#allocation2 + $0x284] sm:$0xf] %vm226, 0
      %390 = vst.msk [vmem:[#allocation2 + $0x288] sm:$0xf] %vm226, 0
      %391 = vst.msk [vmem:[#allocation2 + $0x28c] sm:$0xf] %vm226, 0
      %392 = vst.msk [vmem:[#allocation2 + $0x290] sm:$0xf] %vm226, 0
      %393 = vst.msk [vmem:[#allocation2 + $0x294] sm:$0xf] %vm226, 0
      %394 = vst.msk [vmem:[#allocation2 + $0x298] sm:$0xf] %vm226, 0
      %395 = vst.msk [vmem:[#allocation2 + $0x29c] sm:$0x3] %vm233, 0
      %396 = vst.msk [vmem:[#allocation2 + $0x2a0] sm:$0xf] %vm226, 0
      %397 = vst.msk [vmem:[#allocation2 + $0x2a4] sm:$0xf] %vm226, 0
      %398 = vst.msk [vmem:[#allocation2 + $0x2a8] sm:$0xf] %vm226, 0
      %399 = vst.msk [vmem:[#allocation2 + $0x2ac] sm:$0xf] %vm226, 0
      %400 = vst.msk [vmem:[#allocation2 + $0x2b0] sm:$0xf] %vm226, 0
      %401 = vst.msk [vmem:[#allocation2 + $0x2b4] sm:$0xf] %vm226, 0
      %402 = vst.msk [vmem:[#allocation2 + $0x2b8] sm:$0x3] %vm233, 0
      %403 = vst.msk [vmem:[#allocation2 + $0x2bc] sm:$0xf] %vm226, 0
      %404 = vst.msk [vmem:[#allocation2 + $0x2c0] sm:$0xf] %vm226, 0
      %405 = vst.msk [vmem:[#allocation2 + $0x2c4] sm:$0xf] %vm226, 0
      %406 = vst.msk [vmem:[#allocation2 + $0x2c8] sm:$0xf] %vm226, 0
      %407 = vst.msk [vmem:[#allocation2 + $0x2cc] sm:$0xf] %vm226, 0
      %408 = vst.msk [vmem:[#allocation2 + $0x2d0] sm:$0xf] %vm226, 0
      %409 = vst.msk [vmem:[#allocation2 + $0x2d4] sm:$0x3] %vm233, 0
      %410 = vst.msk [vmem:[#allocation2 + $0x2d8] sm:$0xf] %vm226, 0
      %411 = vst.msk [vmem:[#allocation2 + $0x2dc] sm:$0xf] %vm226, 0
      %412 = vst.msk [vmem:[#allocation2 + $0x2e0] sm:$0xf] %vm226, 0
      %413 = vst.msk [vmem:[#allocation2 + $0x2e4] sm:$0xf] %vm226, 0
      %414 = vst.msk [vmem:[#allocation2 + $0x2e8] sm:$0xf] %vm226, 0
      %415 = vst.msk [vmem:[#allocation2 + $0x2ec] sm:$0xf] %vm226, 0
      %416 = vst.msk [vmem:[#allocation2 + $0x2f0] sm:$0x3] %vm233, 0
      %417 = vst.msk [vmem:[#allocation2 + $0x2f4] sm:$0xf] %vm226, 0
      %418 = vst.msk [vmem:[#allocation2 + $0x2f8] sm:$0xf] %vm226, 0
      %419 = vst.msk [vmem:[#allocation2 + $0x2fc] sm:$0xf] %vm226, 0
      %420 = vst.msk [vmem:[#allocation2 + $0x300] sm:$0xf] %vm226, 0
      %421 = vst.msk [vmem:[#allocation2 + $0x304] sm:$0xf] %vm226, 0
      %422 = vst.msk [vmem:[#allocation2 + $0x308] sm:$0xf] %vm226, 0
      %423 = vst.msk [vmem:[#allocation2 + $0x30c] sm:$0x3] %vm233, 0
      %424 = vst.msk [vmem:[#allocation2 + $0x310] sm:$0xf] %vm226, 0
      %425 = vst.msk [vmem:[#allocation2 + $0x314] sm:$0xf] %vm226, 0
      %426 = vst.msk [vmem:[#allocation2 + $0x318] sm:$0xf] %vm226, 0
      %427 = vst.msk [vmem:[#allocation2 + $0x31c] sm:$0xf] %vm226, 0
      %428 = vst.msk [vmem:[#allocation2 + $0x320] sm:$0xf] %vm226, 0
      %429 = vst.msk [vmem:[#allocation2 + $0x324] sm:$0xf] %vm226, 0
      %430 = vst.msk [vmem:[#allocation2 + $0x328] sm:$0x3] %vm233, 0
      %431 = vst.msk [vmem:[#allocation2 + $0x32c] sm:$0xf] %vm226, 0
      %432 = vst.msk [vmem:[#allocation2 + $0x330] sm:$0xf] %vm226, 0
      %433 = vst.msk [vmem:[#allocation2 + $0x334] sm:$0xf] %vm226, 0
      %434 = vst.msk [vmem:[#allocation2 + $0x338] sm:$0xf] %vm226, 0
      %435 = vst.msk [vmem:[#allocation2 + $0x33c] sm:$0xf] %vm226, 0
      %436 = vst.msk [vmem:[#allocation2 + $0x340] sm:$0xf] %vm226, 0
      %437 = vst.msk [vmem:[#allocation2 + $0x344] sm:$0x3] %vm233, 0
      %438 = vst.msk [vmem:[#allocation2 + $0x348] sm:$0xf] %vm226, 0
      %439 = vst.msk [vmem:[#allocation2 + $0x34c] sm:$0xf] %vm226, 0
      %440 = vst.msk [vmem:[#allocation2 + $0x350] sm:$0xf] %vm226, 0
      %441 = vst.msk [vmem:[#allocation2 + $0x354] sm:$0xf] %vm226, 0
      %442 = vst.msk [vmem:[#allocation2 + $0x358] sm:$0xf] %vm226, 0
      %443 = vst.msk [vmem:[#allocation2 + $0x35c] sm:$0xf] %vm226, 0
      %444 = vst.msk [vmem:[#allocation2 + $0x360] sm:$0x3] %vm233, 0
      %445 = vst.msk [vmem:[#allocation2 + $0x364] sm:$0xf] %vm226, 0
      %446 = vst.msk [vmem:[#allocation2 + $0x368] sm:$0xf] %vm226, 0
      %447 = vst.msk [vmem:[#allocation2 + $0x36c] sm:$0xf] %vm226, 0
      %448 = vst.msk [vmem:[#allocation2 + $0x370] sm:$0xf] %vm226, 0
      %449 = vst.msk [vmem:[#allocation2 + $0x374] sm:$0xf] %vm226, 0
      %450 = vst.msk [vmem:[#allocation2 + $0x378] sm:$0xf] %vm226, 0
      %451 = vst.msk [vmem:[#allocation2 + $0x37c] sm:$0x3] %vm233, 0
      %452 = vst.msk [vmem:[#allocation2 + $0x380] sm:$0xf] %vm226, 0
      %453 = vst.msk [vmem:[#allocation2 + $0x384] sm:$0xf] %vm226, 0
      %454 = vst.msk [vmem:[#allocation2 + $0x388] sm:$0xf] %vm226, 0
      %455 = vst.msk [vmem:[#allocation2 + $0x38c] sm:$0xf] %vm226, 0
      %456 = vst.msk [vmem:[#allocation2 + $0x390] sm:$0xf] %vm226, 0
      %457 = vst.msk [vmem:[#allocation2 + $0x394] sm:$0xf] %vm226, 0
      %458 = vst.msk [vmem:[#allocation2 + $0x398] sm:$0x3] %vm233, 0
      %459 = vst.msk [vmem:[#allocation2 + $0x39c] sm:$0xf] %vm226, 0
      %460 = vst.msk [vmem:[#allocation2 + $0x3a0] sm:$0xf] %vm226, 0
      %461 = vst.msk [vmem:[#allocation2 + $0x3a4] sm:$0xf] %vm226, 0
      %462 = vst.msk [vmem:[#allocation2 + $0x3a8] sm:$0xf] %vm226, 0
      %463 = vst.msk [vmem:[#allocation2 + $0x3ac] sm:$0xf] %vm226, 0
      %464 = vst.msk [vmem:[#allocation2 + $0x3b0] sm:$0xf] %vm226, 0
      %465 = vst.msk [vmem:[#allocation2 + $0x3b4] sm:$0x3] %vm233, 0
      %466 = vst.msk [vmem:[#allocation2 + $0x3b8] sm:$0xf] %vm226, 0
      %467 = vst.msk [vmem:[#allocation2 + $0x3bc] sm:$0xf] %vm226, 0
      %468 = vst.msk [vmem:[#allocation2 + $0x3c0] sm:$0xf] %vm226, 0
      %469 = vst.msk [vmem:[#allocation2 + $0x3c4] sm:$0xf] %vm226, 0
      %470 = vst.msk [vmem:[#allocation2 + $0x3c8] sm:$0xf] %vm226, 0
      %471 = vst.msk [vmem:[#allocation2 + $0x3cc] sm:$0xf] %vm226, 0
      %472 = vst.msk [vmem:[#allocation2 + $0x3d0] sm:$0x3] %vm233, 0
      %473 = vst.msk [vmem:[#allocation2 + $0x3d4] sm:$0xf] %vm226, 0
      %474 = vst.msk [vmem:[#allocation2 + $0x3d8] sm:$0xf] %vm226, 0
      %475 = vst.msk [vmem:[#allocation2 + $0x3dc] sm:$0xf] %vm226, 0
      %476 = vst.msk [vmem:[#allocation2 + $0x3e0] sm:$0xf] %vm226, 0
      %477 = vst.msk [vmem:[#allocation2 + $0x3e4] sm:$0xf] %vm226, 0
      %478 = vst.msk [vmem:[#allocation2 + $0x3e8] sm:$0xf] %vm226, 0
      %479 = vst.msk [vmem:[#allocation2 + $0x3ec] sm:$0x3] %vm233, 0
      %480 = vst.msk [vmem:[#allocation2 + $0x3f0] sm:$0xf] %vm226, 0
      %481 = vst.msk [vmem:[#allocation2 + $0x3f4] sm:$0xf] %vm226, 0
      %482 = vst.msk [vmem:[#allocation2 + $0x3f8] sm:$0xf] %vm226, 0
      %483 = vst.msk [vmem:[#allocation2 + $0x3fc] sm:$0xf] %vm226, 0
      %484 = vst.msk [vmem:[#allocation2 + $0x400] sm:$0xf] %vm226, 0
      %485 = vst.msk [vmem:[#allocation2 + $0x404] sm:$0xf] %vm226, 0
      %486 = vst.msk [vmem:[#allocation2 + $0x408] sm:$0x3] %vm233, 0
      %487 = vst.msk [vmem:[#allocation2 + $0x40c] sm:$0xf] %vm226, 0
      %488 = vst.msk [vmem:[#allocation2 + $0x410] sm:$0xf] %vm226, 0
      %489 = vst.msk [vmem:[#allocation2 + $0x414] sm:$0xf] %vm226, 0
      %490 = vst.msk [vmem:[#allocation2 + $0x418] sm:$0xf] %vm226, 0
      %491 = vst.msk [vmem:[#allocation2 + $0x41c] sm:$0xf] %vm226, 0
      %492 = vst.msk [vmem:[#allocation2 + $0x420] sm:$0xf] %vm226, 0
      %493 = vst.msk [vmem:[#allocation2 + $0x424] sm:$0x3] %vm233, 0
      %494 = vst.msk [vmem:[#allocation2 + $0x428] sm:$0xf] %vm226, 0
      %495 = vst.msk [vmem:[#allocation2 + $0x42c] sm:$0xf] %vm226, 0
      %496 = vst.msk [vmem:[#allocation2 + $0x430] sm:$0xf] %vm226, 0
      %497 = vst.msk [vmem:[#allocation2 + $0x434] sm:$0xf] %vm226, 0
      %498 = vst.msk [vmem:[#allocation2 + $0x438] sm:$0xf] %vm226, 0
      %499 = vst.msk [vmem:[#allocation2 + $0x43c] sm:$0xf] %vm226, 0
      %500 = vst.msk [vmem:[#allocation2 + $0x440] sm:$0x3] %vm233, 0
      %501 = vst.msk [vmem:[#allocation2 + $0x444] sm:$0xf] %vm226, 0
      %502 = vst.msk [vmem:[#allocation2 + $0x448] sm:$0xf] %vm226, 0
      %503 = vst.msk [vmem:[#allocation2 + $0x44c] sm:$0xf] %vm226, 0
      %504 = vst.msk [vmem:[#allocation2 + $0x450] sm:$0xf] %vm226, 0
      %505 = vst.msk [vmem:[#allocation2 + $0x454] sm:$0xf] %vm226, 0
      %506 = vst.msk [vmem:[#allocation2 + $0x458] sm:$0xf] %vm226, 0
      %507 = vst.msk [vmem:[#allocation2 + $0x45c] sm:$0x3] %vm233, 0
      %508 = vst.msk [vmem:[#allocation2 + $0x460] sm:$0xf] %vm226, 0
      %509 = vst.msk [vmem:[#allocation2 + $0x464] sm:$0xf] %vm226, 0
      %510 = vst.msk [vmem:[#allocation2 + $0x468] sm:$0xf] %vm226, 0
      %511 = vst.msk [vmem:[#allocation2 + $0x46c] sm:$0xf] %vm226, 0
      %512 = vst.msk [vmem:[#allocation2 + $0x470] sm:$0xf] %vm226, 0
      %513 = vst.msk [vmem:[#allocation2 + $0x474] sm:$0xf] %vm226, 0
      %514 = vst.msk [vmem:[#allocation2 + $0x478] sm:$0x3] %vm233, 0
      %515 = vst.msk [vmem:[#allocation2 + $0x47c] sm:$0xf] %vm226, 0
      %516 = vst.msk [vmem:[#allocation2 + $0x480] sm:$0xf] %vm226, 0
      %517 = vst.msk [vmem:[#allocation2 + $0x484] sm:$0xf] %vm226, 0
      %518 = vst.msk [vmem:[#allocation2 + $0x488] sm:$0xf] %vm226, 0
      %519 = vst.msk [vmem:[#allocation2 + $0x48c] sm:$0xf] %vm226, 0
      %520 = vst.msk [vmem:[#allocation2 + $0x490] sm:$0xf] %vm226, 0
      %521 = vst.msk [vmem:[#allocation2 + $0x494] sm:$0x3] %vm233, 0
      %522 = vst.msk [vmem:[#allocation2 + $0x498] sm:$0xf] %vm226, 0
      %523 = vst.msk [vmem:[#allocation2 + $0x49c] sm:$0xf] %vm226, 0
      %524 = vst.msk [vmem:[#allocation2 + $0x4a0] sm:$0xf] %vm226, 0
      %525 = vst.msk [vmem:[#allocation2 + $0x4a4] sm:$0xf] %vm226, 0
      %526 = vst.msk [vmem:[#allocation2 + $0x4a8] sm:$0xf] %vm226, 0
      %527 = vst.msk [vmem:[#allocation2 + $0x4ac] sm:$0xf] %vm226, 0
      %528 = vst.msk [vmem:[#allocation2 + $0x4b0] sm:$0x3] %vm233, 0
      %529 = vst.msk [vmem:[#allocation2 + $0x4b4] sm:$0xf] %vm226, 0
      %530 = vst.msk [vmem:[#allocation2 + $0x4b8] sm:$0xf] %vm226, 0
      %531 = vst.msk [vmem:[#allocation2 + $0x4bc] sm:$0xf] %vm226, 0
      %532 = vst.msk [vmem:[#allocation2 + $0x4c0] sm:$0xf] %vm226, 0
      %533 = vst.msk [vmem:[#allocation2 + $0x4c4] sm:$0xf] %vm226, 0
      %534 = vst.msk [vmem:[#allocation2 + $0x4c8] sm:$0xf] %vm226, 0
      %535 = vst.msk [vmem:[#allocation2 + $0x4cc] sm:$0x3] %vm233, 0
      %536 = vst.msk [vmem:[#allocation2 + $0x4d0] sm:$0xf] %vm226, 0
      %537 = vst.msk [vmem:[#allocation2 + $0x4d4] sm:$0xf] %vm226, 0
      %538 = vst.msk [vmem:[#allocation2 + $0x4d8] sm:$0xf] %vm226, 0
      %539 = vst.msk [vmem:[#allocation2 + $0x4dc] sm:$0xf] %vm226, 0
      %540 = vst.msk [vmem:[#allocation2 + $0x4e0] sm:$0xf] %vm226, 0
      %541 = vst.msk [vmem:[#allocation2 + $0x4e4] sm:$0xf] %vm226, 0
      %542 = vst.msk [vmem:[#allocation2 + $0x4e8] sm:$0x3] %vm233, 0
      %543 = vst.msk [vmem:[#allocation2 + $0x4ec] sm:$0xf] %vm226, 0
      %544 = vst.msk [vmem:[#allocation2 + $0x4f0] sm:$0xf] %vm226, 0
      %545 = vst.msk [vmem:[#allocation2 + $0x4f4] sm:$0xf] %vm226, 0
      %546 = vst.msk [vmem:[#allocation2 + $0x4f8] sm:$0xf] %vm226, 0
      %547 = vst.msk [vmem:[#allocation2 + $0x4fc] sm:$0xf] %vm226, 0
      %548 = vst.msk [vmem:[#allocation2 + $0x500] sm:$0xf] %vm226, 0
      %549 = vst.msk [vmem:[#allocation2 + $0x504] sm:$0x3] %vm233, 0
      %v550 = vld [vmem:[%s1] sm:$0xf]
      %v551 = vld [vmem:[%s1 + $0x4] sm:$0xf]
      %v552 = vld [vmem:[%s1 + $0x8] sm:$0xf]
      %v553 = vld [vmem:[%s1 + $0xc] sm:$0xf]
      %v554 = vld [vmem:[%s1 + $0x10] sm:$0xf]
      %v555 = vld [vmem:[%s1 + $0x14] sm:$0xf]
      %v556 = vld [vmem:[%s1 + $0x18] sm:$0xf]
      %v557 = vld [vmem:[%s1 + $0x1c] sm:$0xf]
      %v558 = vld [vmem:[%s1 + $0x20] sm:$0xf]
      %v559 = vld [vmem:[%s1 + $0x24] sm:$0xf]
      %v560 = vld [vmem:[%s1 + $0x28] sm:$0xf]
      %v561 = vld [vmem:[%s1 + $0x2c] sm:$0xf]
      %v562 = vld [vmem:[%s1 + $0x30] sm:$0x3]
      %v563 = vld [vmem:[%s2] sm:$0x1]
      loop: start=0, step=1, limit=42
      $region41: #{net_forward.3} parent=39 // loop_pre_header
        _
      $region42: #{net_forward.3} parent=39 // loop_header
        %s565 = sphi 0, %s569
        %p566 = scmp.ge.s32.totalorder %s565, 42
      $region43: #{net_forward.3} parent=39 // loop_header_branch
        %568 = sbr.rel (%p566) target = $region47
      $region44: #{net_forward.3} parent=39 // loop_body
        %s570 = smul.u32 %s565, 2
        %s571 = smul.u32 %s570, 12
        %s572 = smul.addr %s571, 4
        %s573 = scalar_lea.vmem %s219, %s572
        %v574 = vld [vmem:[%s573] sm:$0xf]
        %v575 = vld [vmem:[%s573 + $0x4] sm:$0xf]
        %v576 = vld [vmem:[%s573 + $0x8] sm:$0xf]
        %v577 = vld [vmem:[%s573 + $0xc] sm:$0xf]
        %v578 = vld [vmem:[%s573 + $0x10] sm:$0xf]
        %v579 = vld [vmem:[%s573 + $0x14] sm:$0xf]
        %v580 = vld [vmem:[%s573 + $0x18] sm:$0xf]
        %v581 = vld [vmem:[%s573 + $0x1c] sm:$0xf]
        %v582 = vld [vmem:[%s573 + $0x20] sm:$0xf]
        %v583 = vld [vmem:[%s573 + $0x24] sm:$0xf]
        %v584 = vld [vmem:[%s573 + $0x28] sm:$0xf]
        %v585 = vld [vmem:[%s573 + $0x2c] sm:$0xf]
        %v586 = vld [vmem:[%s573 + $0x30] sm:$0xf]
        %v587 = vld [vmem:[%s573 + $0x34] sm:$0xf]
        %v588 = vld [vmem:[%s573 + $0x38] sm:$0xf]
        %v589 = vld [vmem:[%s573 + $0x3c] sm:$0xf]
        %v590 = vld [vmem:[%s573 + $0x40] sm:$0xf]
        %v591 = vld [vmem:[%s573 + $0x44] sm:$0xf]
        %v592 = vld [vmem:[%s573 + $0x48] sm:$0xf]
        %v593 = vld [vmem:[%s573 + $0x4c] sm:$0xf]
        %v594 = vld [vmem:[%s573 + $0x50] sm:$0xf]
        %v595 = vld [vmem:[%s573 + $0x54] sm:$0xf]
        %v596 = vld [vmem:[%s573 + $0x58] sm:$0xf]
        %v597 = vld [vmem:[%s573 + $0x5c] sm:$0xf]
        %v599 = vlaneseq
        %v600 = vshrl.u32 %v599, 7
        %v601 = vsub.s32 0, %v600
        %v602 = vrot.slane %v563, %v601
        %v628 = vunpack.c.l.b16 %v574
        %v629 = vunpack.c.l.b16 %v575
        %v630 = vunpack.c.l.b16 %v576
        %v631 = vunpack.c.l.b16 %v577
        %v632 = vunpack.c.l.b16 %v578
        %v633 = vunpack.c.l.b16 %v579
        %v634 = vunpack.c.l.b16 %v580
        %v635 = vunpack.c.l.b16 %v581
        %v636 = vunpack.c.l.b16 %v582
        %v637 = vunpack.c.l.b16 %v583
        %v638 = vunpack.c.l.b16 %v584
        %v639 = vunpack.c.l.b16 %v585
        %v640 = vunpack.c.l.b16 %v586
        %v641 = vunpack.c.l.b16 %v587
        %v642 = vunpack.c.l.b16 %v588
        %v643 = vunpack.c.l.b16 %v589
        %v644 = vunpack.c.l.b16 %v590
        %v645 = vunpack.c.l.b16 %v591
        %v646 = vunpack.c.l.b16 %v592
        %v647 = vunpack.c.l.b16 %v593
        %v648 = vunpack.c.l.b16 %v594
        %v649 = vunpack.c.l.b16 %v595
        %v650 = vunpack.c.l.b16 %v596
        %v651 = vunpack.c.l.b16 %v597
        %v652 = vpack.c.b16 %v629, %v628
        %v653 = vpack.c.b16 %v631, %v630
        %v654 = vpack.c.b16 %v633, %v632
        %v655 = vpack.c.b16 %v635, %v634
        %v656 = vpack.c.b16 %v637, %v636
        %v657 = vpack.c.b16 %v639, %v638
        %v658 = vpack.c.b16 %v641, %v640
        %v659 = vpack.c.b16 %v643, %v642
        %v660 = vpack.c.b16 %v645, %v644
        %v661 = vpack.c.b16 %v647, %v646
        %v662 = vpack.c.b16 %v649, %v648
        %v663 = vpack.c.b16 %v651, %v650
        %v677 = vunpack.c.l.b16 %v550
        %v678 = vunpack.c.l.b16 %v551
        %v679 = vunpack.c.l.b16 %v552
        %v680 = vunpack.c.l.b16 %v553
        %v681 = vunpack.c.l.b16 %v554
        %v682 = vunpack.c.l.b16 %v555
        %v683 = vunpack.c.l.b16 %v556
        %v684 = vunpack.c.l.b16 %v557
        %v685 = vunpack.c.l.b16 %v558
        %v686 = vunpack.c.l.b16 %v559
        %v687 = vunpack.c.l.b16 %v560
        %v688 = vunpack.c.l.b16 %v561
        %v689 = vunpack.c.l.b16 %v562
        %v690 = vpack.c.b16 %v678, %v677
        %v691 = vpack.c.b16 %v680, %v679
        %v692 = vpack.c.b16 %v682, %v681
        %v693 = vpack.c.b16 %v684, %v683
        %v694 = vpack.c.b16 %v686, %v685
        %v695 = vpack.c.b16 %v688, %v687
        %v696 = vpack.c.b16 %v689, %v689
        %vm703 = vcmask 818176
        %v705 = vsel %vm703, %v652, 0
        %v708 = vsel %vm703, %v653, 0
        %v711 = vsel %vm703, %v654, 0
        %v714 = vsel %vm703, %v655, 0
        %v717 = vsel %vm703, %v656, 0
        %v720 = vsel %vm703, %v657, 0
        %v723 = vsel %vm703, %v658, 0
        %v726 = vsel %vm703, %v659, 0
        %v729 = vsel %vm703, %v660, 0
        %v732 = vsel %vm703, %v661, 0
        %v735 = vsel %vm703, %v662, 0
        %v738 = vsel %vm703, %v663, 0
        %vm740 = vcmask 1041408
        %v742 = vsel %vm740, %v696, 0
        %744 = vmatprep.subr.bf16.mxu0 0
        %745 = vmatpush1.bf16.msra.mxu0 0
        %746 = vmatprep.subr.bf16.mxu0 0
        %747 = vmatpush1.bf16.msra.mxu0 %v742
        %748 = vmatprep.subr.bf16.mxu0 0
        %749 = vmatpush1.bf16.msra.mxu0 %v695
        %750 = vmatprep.subr.bf16.mxu0 0
        %751 = vmatpush1.bf16.msra.mxu0 %v694
        %752 = vmatprep.subr.bf16.mxu0 0
        %753 = vmatpush1.bf16.msra.mxu0 %v693
        %754 = vmatprep.subr.bf16.mxu0 0
        %755 = vmatpush1.bf16.msra.mxu0 %v692
        %756 = vmatprep.subr.bf16.mxu0 0
        %757 = vmatpush1.bf16.msra.mxu0 %v691
        %758 = vmatprep.subr.bf16.mxu0 0
        %759 = vmatpush1.bf16.msra.mxu0 %v690
        %760 = vmatprep.subr.bf16.mxu0 0
        %761 = vmatpush2.bf16.msra.mxu0 0
        %762 = vmatprep.subr.bf16.mxu0 0
        %763 = vmatpush2.bf16.msra.mxu0 0
        %764 = vmatprep.subr.bf16.mxu0 0
        %765 = vmatpush2.bf16.msra.mxu0 0
        %766 = vmatprep.subr.bf16.mxu0 0
        %767 = vmatpush2.bf16.msra.mxu0 0
        %768 = vmatprep.subr.bf16.mxu0 0
        %769 = vmatpush2.bf16.msra.mxu0 0
        %770 = vmatprep.subr.bf16.mxu0 0
        %771 = vmatpush2.bf16.msra.mxu0 0
        %772 = vmatprep.subr.bf16.mxu0 0
        %773 = vmatpush2.bf16.msra.mxu0 0
        %774 = vmatprep.subr.bf16.mxu0 0
        %775 = vmatpush2.bf16.msra.mxu0 0
        %776 = vmatprep.mubr.bf16.mxu0 0
        %777 = vmatmul.mubr.bf16.gmra.mxu0 %v705
        %v778 = vpop.f32.mrf.mxu0
        %v779 = vadd.f32 %v602, %v778
        %v780 = vpop.f32.mrf.mxu0
        %v781 = vpop.f32.mrf.mxu0
        %v782 = vadd.f32 %v602, %v781
        %v783 = vpop.f32.mrf.mxu0
        %784 = vmatprep.mubr.bf16.mxu0 0
        %785 = vmatmul.mubr.bf16.gmra.mxu0 %v708
        %v786 = vpop.f32.mrf.mxu0
        %v787 = vadd.f32 %v602, %v786
        %v788 = vpop.f32.mrf.mxu0
        %v789 = vpop.f32.mrf.mxu0
        %v790 = vadd.f32 %v602, %v789
        %v791 = vpop.f32.mrf.mxu0
        %792 = vmatprep.mubr.bf16.mxu0 0
        %793 = vmatmul.mubr.bf16.gmra.mxu0 %v711
        %v794 = vpop.f32.mrf.mxu0
        %v795 = vadd.f32 %v602, %v794
        %v796 = vpop.f32.mrf.mxu0
        %v797 = vpop.f32.mrf.mxu0
        %v798 = vadd.f32 %v602, %v797
        %v799 = vpop.f32.mrf.mxu0
        %800 = vmatprep.mubr.bf16.mxu0 0
        %801 = vmatmul.mubr.bf16.gmra.mxu0 %v714
        %v802 = vpop.f32.mrf.mxu0
        %v803 = vadd.f32 %v602, %v802
        %v804 = vpop.f32.mrf.mxu0
        %v805 = vpop.f32.mrf.mxu0
        %v806 = vadd.f32 %v602, %v805
        %v807 = vpop.f32.mrf.mxu0
        %808 = vmatprep.mubr.bf16.mxu0 0
        %809 = vmatmul.mubr.bf16.gmra.mxu0 %v717
        %v810 = vpop.f32.mrf.mxu0
        %v811 = vadd.f32 %v602, %v810
        %v812 = vpop.f32.mrf.mxu0
        %v813 = vpop.f32.mrf.mxu0
        %v814 = vadd.f32 %v602, %v813
        %v815 = vpop.f32.mrf.mxu0
        %816 = vmatprep.mubr.bf16.mxu0 0
        %817 = vmatmul.mubr.bf16.gmra.mxu0 %v720
        %v818 = vpop.f32.mrf.mxu0
        %v819 = vadd.f32 %v602, %v818
        %v820 = vpop.f32.mrf.mxu0
        %v821 = vpop.f32.mrf.mxu0
        %v822 = vpop.f32.mrf.mxu0
        %823 = vmatprep.mubr.bf16.mxu0 0
        %824 = vmatmul.mubr.bf16.gmra.mxu0 %v723
        %v825 = vpop.f32.mrf.mxu0
        %v826 = vadd.f32 %v602, %v825
        %v827 = vpop.f32.mrf.mxu0
        %v828 = vpop.f32.mrf.mxu0
        %v829 = vadd.f32 %v602, %v828
        %v830 = vpop.f32.mrf.mxu0
        %831 = vmatprep.mubr.bf16.mxu0 0
        %832 = vmatmul.mubr.bf16.gmra.mxu0 %v726
        %v833 = vpop.f32.mrf.mxu0
        %v834 = vadd.f32 %v602, %v833
        %v835 = vpop.f32.mrf.mxu0
        %v836 = vpop.f32.mrf.mxu0
        %v837 = vadd.f32 %v602, %v836
        %v838 = vpop.f32.mrf.mxu0
        %839 = vmatprep.mubr.bf16.mxu0 0
        %840 = vmatmul.mubr.bf16.gmra.mxu0 %v729
        %v841 = vpop.f32.mrf.mxu0
        %v842 = vadd.f32 %v602, %v841
        %v843 = vpop.f32.mrf.mxu0
        %v844 = vpop.f32.mrf.mxu0
        %v845 = vadd.f32 %v602, %v844
        %v846 = vpop.f32.mrf.mxu0
        %847 = vmatprep.mubr.bf16.mxu0 0
        %848 = vmatmul.mubr.bf16.gmra.mxu0 %v732
        %v849 = vpop.f32.mrf.mxu0
        %v850 = vadd.f32 %v602, %v849
        %v851 = vpop.f32.mrf.mxu0
        %v852 = vpop.f32.mrf.mxu0
        %v853 = vadd.f32 %v602, %v852
        %v854 = vpop.f32.mrf.mxu0
        %855 = vmatprep.mubr.bf16.mxu0 0
        %856 = vmatmul.mubr.bf16.gmra.mxu0 %v735
        %v857 = vpop.f32.mrf.mxu0
        %v858 = vadd.f32 %v602, %v857
        %v859 = vpop.f32.mrf.mxu0
        %v860 = vpop.f32.mrf.mxu0
        %v861 = vadd.f32 %v602, %v860
        %v862 = vpop.f32.mrf.mxu0
        %863 = vmatprep.mubr.bf16.mxu0 0
        %864 = vmatmul.mubr.bf16.gmra.mxu0 %v738
        %v865 = vpop.f32.mrf.mxu0
        %v866 = vadd.f32 %v602, %v865
        %v867 = vpop.f32.mrf.mxu0
        %v868 = vpop.f32.mrf.mxu0
        %v869 = vpop.f32.mrf.mxu0
        %870 = vdwg.mxu0
        %v871 = vmax.f32 %v779, 0.0
        %v872 = vmax.f32 %v782, 0.0
        %v873 = vmax.f32 %v787, 0.0
        %v874 = vmax.f32 %v790, 0.0
        %v875 = vmax.f32 %v795, 0.0
        %v876 = vmax.f32 %v798, 0.0
        %v877 = vmax.f32 %v803, 0.0
        %v878 = vmax.f32 %v806, 0.0
        %v879 = vmax.f32 %v811, 0.0
        %v880 = vmax.f32 %v814, 0.0
        %v881 = vmax.f32 %v819, 0.0
        %v882 = vmax.f32 %v826, 0.0
        %v883 = vmax.f32 %v829, 0.0
        %v884 = vmax.f32 %v834, 0.0
        %v885 = vmax.f32 %v837, 0.0
        %v886 = vmax.f32 %v842, 0.0
        %v887 = vmax.f32 %v845, 0.0
        %v888 = vmax.f32 %v850, 0.0
        %v889 = vmax.f32 %v853, 0.0
        %v890 = vmax.f32 %v858, 0.0
        %v891 = vmax.f32 %v861, 0.0
        %v892 = vmax.f32 %v866, 0.0
        %v893 = vmax.f32 %v871, %v882
        %v894 = vmax.f32 %v872, %v883
        %v895 = vmax.f32 %v873, %v884
        %v896 = vmax.f32 %v874, %v885
        %v897 = vmax.f32 %v875, %v886
        %v898 = vmax.f32 %v876, %v887
        %v899 = vmax.f32 %v877, %v888
        %v900 = vmax.f32 %v878, %v889
        %v901 = vmax.f32 %v879, %v890
        %v902 = vmax.f32 %v880, %v891
        %v903 = vmax.f32 %v881, %v892
        %v915 = vcombine.high %v893, %v893
        %v917 = vunpack.c.l.s4 1983009808
        %v918 = vunpack.c.0.s8 %v917
        %v919 = vlaneseq
        %v920 = vshrl.u32 %v919, 7
        %v921 = vsub.s32 %v918, %v920
        %v922 = vrot.slane %v893, %v921
        %v924 = vunpack.c.l.s4 1983009808
        %v925 = vunpack.c.0.s8 %v924
        %v926 = vlaneseq
        %v927 = vshrl.u32 %v926, 7
        %v928 = vsub.s32 %v925, %v927
        %v929 = vrot.slane %v915, %v928
        %v930 = vcombine.high %v922, %v922
        %v931 = vcombine.high %v929, %v929
        %v932 = vcombine.high %v894, %v894
        %v934 = vunpack.c.l.s4 1983009808
        %v935 = vunpack.c.0.s8 %v934
        %v936 = vlaneseq
        %v937 = vshrl.u32 %v936, 7
        %v938 = vsub.s32 %v935, %v937
        %v939 = vrot.slane %v894, %v938
        %v941 = vunpack.c.l.s4 1983009808
        %v942 = vunpack.c.0.s8 %v941
        %v943 = vlaneseq
        %v944 = vshrl.u32 %v943, 7
        %v945 = vsub.s32 %v942, %v944
        %v946 = vrot.slane %v932, %v945
        %v947 = vcombine.high %v939, %v939
        %v948 = vcombine.high %v946, %v946
        %v949 = vcombine.high %v895, %v895
        %v951 = vunpack.c.l.s4 1983009808
        %v952 = vunpack.c.0.s8 %v951
        %v953 = vlaneseq
        %v954 = vshrl.u32 %v953, 7
        %v955 = vsub.s32 %v952, %v954
        %v956 = vrot.slane %v895, %v955
        %v958 = vunpack.c.l.s4 1983009808
        %v959 = vunpack.c.0.s8 %v958
        %v960 = vlaneseq
        %v961 = vshrl.u32 %v960, 7
        %v962 = vsub.s32 %v959, %v961
        %v963 = vrot.slane %v949, %v962
        %v964 = vcombine.high %v956, %v956
        %v965 = vcombine.high %v963, %v963
        %v966 = vcombine.high %v896, %v896
        %v968 = vunpack.c.l.s4 1983009808
        %v969 = vunpack.c.0.s8 %v968
        %v970 = vlaneseq
        %v971 = vshrl.u32 %v970, 7
        %v972 = vsub.s32 %v969, %v971
        %v973 = vrot.slane %v896, %v972
        %v975 = vunpack.c.l.s4 1983009808
        %v976 = vunpack.c.0.s8 %v975
        %v977 = vlaneseq
        %v978 = vshrl.u32 %v977, 7
        %v979 = vsub.s32 %v976, %v978
        %v980 = vrot.slane %v966, %v979
        %v981 = vcombine.high %v973, %v973
        %v982 = vcombine.high %v980, %v980
        %v983 = vcombine.high %v897, %v897
        %v985 = vunpack.c.l.s4 1983009808
        %v986 = vunpack.c.0.s8 %v985
        %v987 = vlaneseq
        %v988 = vshrl.u32 %v987, 7
        %v989 = vsub.s32 %v986, %v988
        %v990 = vrot.slane %v897, %v989
        %v992 = vunpack.c.l.s4 1983009808
        %v993 = vunpack.c.0.s8 %v992
        %v994 = vlaneseq
        %v995 = vshrl.u32 %v994, 7
        %v996 = vsub.s32 %v993, %v995
        %v997 = vrot.slane %v983, %v996
        %v998 = vcombine.high %v990, %v990
        %v999 = vcombine.high %v997, %v997
        %v1000 = vcombine.high %v898, %v898
        %v1002 = vunpack.c.l.s4 1983009808
        %v1003 = vunpack.c.0.s8 %v1002
        %v1004 = vlaneseq
        %v1005 = vshrl.u32 %v1004, 7
        %v1006 = vsub.s32 %v1003, %v1005
        %v1007 = vrot.slane %v898, %v1006
        %v1009 = vunpack.c.l.s4 1983009808
        %v1010 = vunpack.c.0.s8 %v1009
        %v1011 = vlaneseq
        %v1012 = vshrl.u32 %v1011, 7
        %v1013 = vsub.s32 %v1010, %v1012
        %v1014 = vrot.slane %v1000, %v1013
        %v1015 = vcombine.high %v1007, %v1007
        %v1016 = vcombine.high %v1014, %v1014
        %v1017 = vcombine.high %v899, %v899
        %v1019 = vunpack.c.l.s4 1983009808
        %v1020 = vunpack.c.0.s8 %v1019
        %v1021 = vlaneseq
        %v1022 = vshrl.u32 %v1021, 7
        %v1023 = vsub.s32 %v1020, %v1022
        %v1024 = vrot.slane %v899, %v1023
        %v1026 = vunpack.c.l.s4 1983009808
        %v1027 = vunpack.c.0.s8 %v1026
        %v1028 = vlaneseq
        %v1029 = vshrl.u32 %v1028, 7
        %v1030 = vsub.s32 %v1027, %v1029
        %v1031 = vrot.slane %v1017, %v1030
        %v1032 = vcombine.high %v1024, %v1024
        %v1033 = vcombine.high %v1031, %v1031
        %v1034 = vcombine.high %v900, %v900
        %v1036 = vunpack.c.l.s4 1983009808
        %v1037 = vunpack.c.0.s8 %v1036
        %v1038 = vlaneseq
        %v1039 = vshrl.u32 %v1038, 7
        %v1040 = vsub.s32 %v1037, %v1039
        %v1041 = vrot.slane %v900, %v1040
        %v1043 = vunpack.c.l.s4 1983009808
        %v1044 = vunpack.c.0.s8 %v1043
        %v1045 = vlaneseq
        %v1046 = vshrl.u32 %v1045, 7
        %v1047 = vsub.s32 %v1044, %v1046
        %v1048 = vrot.slane %v1034, %v1047
        %v1049 = vcombine.high %v1041, %v1041
        %v1050 = vcombine.high %v1048, %v1048
        %v1051 = vcombine.high %v901, %v901
        %v1053 = vunpack.c.l.s4 1983009808
        %v1054 = vunpack.c.0.s8 %v1053
        %v1055 = vlaneseq
        %v1056 = vshrl.u32 %v1055, 7
        %v1057 = vsub.s32 %v1054, %v1056
        %v1058 = vrot.slane %v901, %v1057
        %v1060 = vunpack.c.l.s4 1983009808
        %v1061 = vunpack.c.0.s8 %v1060
        %v1062 = vlaneseq
        %v1063 = vshrl.u32 %v1062, 7
        %v1064 = vsub.s32 %v1061, %v1063
        %v1065 = vrot.slane %v1051, %v1064
        %v1066 = vcombine.high %v1058, %v1058
        %v1067 = vcombine.high %v1065, %v1065
        %v1068 = vcombine.high %v902, %v902
        %v1070 = vunpack.c.l.s4 1983009808
        %v1071 = vunpack.c.0.s8 %v1070
        %v1072 = vlaneseq
        %v1073 = vshrl.u32 %v1072, 7
        %v1074 = vsub.s32 %v1071, %v1073
        %v1075 = vrot.slane %v902, %v1074
        %v1077 = vunpack.c.l.s4 1983009808
        %v1078 = vunpack.c.0.s8 %v1077
        %v1079 = vlaneseq
        %v1080 = vshrl.u32 %v1079, 7
        %v1081 = vsub.s32 %v1078, %v1080
        %v1082 = vrot.slane %v1068, %v1081
        %v1083 = vcombine.high %v1075, %v1075
        %v1084 = vcombine.high %v1082, %v1082
        %v1086 = vunpack.c.l.s4 1983009808
        %v1087 = vunpack.c.0.s8 %v1086
        %v1088 = vlaneseq
        %v1089 = vshrl.u32 %v1088, 7
        %v1090 = vsub.s32 %v1087, %v1089
        %v1091 = vrot.slane %v903, %v1090
        %v1092 = vcombine.high %v1091, %v1091
        %v1135 = vrot.slane %v922, 7
        %v1136 = vrot.slane %v1135, 2
        %v1137 = vrot.slane %v930, 7
        %v1138 = vrot.slane %v1137, 2
        %v1139 = vrot.slane %v929, 7
        %v1140 = vrot.slane %v1139, 2
        %v1141 = vrot.slane %v931, 7
        %v1142 = vrot.slane %v1141, 2
        %v1143 = vrot.slane %v939, 7
        %v1144 = vrot.slane %v1143, 2
        %v1145 = vrot.slane %v947, 7
        %v1146 = vrot.slane %v1145, 2
        %v1147 = vrot.slane %v946, 7
        %v1148 = vrot.slane %v1147, 2
        %v1149 = vrot.slane %v948, 7
        %v1150 = vrot.slane %v1149, 2
        %v1151 = vrot.slane %v956, 7
        %v1152 = vrot.slane %v1151, 2
        %v1153 = vrot.slane %v964, 7
        %v1154 = vrot.slane %v1153, 2
        %v1155 = vrot.slane %v963, 7
        %v1156 = vrot.slane %v1155, 2
        %v1157 = vrot.slane %v965, 7
        %v1158 = vrot.slane %v1157, 2
        %v1159 = vrot.slane %v973, 7
        %v1160 = vrot.slane %v1159, 2
        %v1161 = vrot.slane %v981, 7
        %v1162 = vrot.slane %v1161, 2
        %v1163 = vrot.slane %v980, 7
        %v1164 = vrot.slane %v1163, 2
        %v1165 = vrot.slane %v982, 7
        %v1166 = vrot.slane %v1165, 2
        %v1167 = vrot.slane %v990, 7
        %v1168 = vrot.slane %v1167, 2
        %v1169 = vrot.slane %v998, 7
        %v1170 = vrot.slane %v1169, 2
        %v1171 = vrot.slane %v997, 7
        %v1172 = vrot.slane %v1171, 2
        %v1173 = vrot.slane %v999, 7
        %v1174 = vrot.slane %v1173, 2
        %v1175 = vrot.slane %v1007, 7
        %v1176 = vrot.slane %v1175, 2
        %v1177 = vrot.slane %v1015, 7
        %v1178 = vrot.slane %v1177, 2
        %v1179 = vrot.slane %v1014, 7
        %v1180 = vrot.slane %v1179, 2
        %v1181 = vrot.slane %v1016, 7
        %v1182 = vrot.slane %v1181, 2
        %v1183 = vrot.slane %v1024, 7
        %v1184 = vrot.slane %v1183, 2
        %v1185 = vrot.slane %v1032, 7
        %v1186 = vrot.slane %v1185, 2
        %v1187 = vrot.slane %v1031, 7
        %v1188 = vrot.slane %v1187, 2
        %v1189 = vrot.slane %v1033, 7
        %v1190 = vrot.slane %v1189, 2
        %v1191 = vrot.slane %v1041, 7
        %v1192 = vrot.slane %v1191, 2
        %v1193 = vrot.slane %v1049, 7
        %v1194 = vrot.slane %v1193, 2
        %v1195 = vrot.slane %v1048, 7
        %v1196 = vrot.slane %v1195, 2
        %v1197 = vrot.slane %v1050, 7
        %v1198 = vrot.slane %v1197, 2
        %v1199 = vrot.slane %v1058, 7
        %v1200 = vrot.slane %v1199, 2
        %v1201 = vrot.slane %v1066, 7
        %v1202 = vrot.slane %v1201, 2
        %v1203 = vrot.slane %v1065, 7
        %v1204 = vrot.slane %v1203, 2
        %v1205 = vrot.slane %v1067, 7
        %v1206 = vrot.slane %v1205, 2
        %v1207 = vrot.slane %v1075, 7
        %v1208 = vrot.slane %v1207, 2
        %v1209 = vrot.slane %v1083, 7
        %v1210 = vrot.slane %v1209, 2
        %v1211 = vrot.slane %v1082, 7
        %v1212 = vrot.slane %v1211, 2
        %v1213 = vrot.slane %v1084, 7
        %v1214 = vrot.slane %v1213, 2
        %v1215 = vrot.slane %v1091, 7
        %v1216 = vrot.slane %v1215, 2
        %v1217 = vrot.slane %v1092, 7
        %v1218 = vrot.slane %v1217, 2
        %v1261 = vmax.f32 %v922, %v1136
        %v1262 = vmax.f32 %v930, %v1138
        %v1263 = vmax.f32 %v929, %v1140
        %v1264 = vmax.f32 %v931, %v1142
        %v1265 = vmax.f32 %v939, %v1144
        %v1266 = vmax.f32 %v947, %v1146
        %v1267 = vmax.f32 %v946, %v1148
        %v1268 = vmax.f32 %v948, %v1150
        %v1269 = vmax.f32 %v956, %v1152
        %v1270 = vmax.f32 %v964, %v1154
        %v1271 = vmax.f32 %v963, %v1156
        %v1272 = vmax.f32 %v965, %v1158
        %v1273 = vmax.f32 %v973, %v1160
        %v1274 = vmax.f32 %v981, %v1162
        %v1275 = vmax.f32 %v980, %v1164
        %v1276 = vmax.f32 %v982, %v1166
        %v1277 = vmax.f32 %v990, %v1168
        %v1278 = vmax.f32 %v998, %v1170
        %v1279 = vmax.f32 %v997, %v1172
        %v1280 = vmax.f32 %v999, %v1174
        %v1281 = vmax.f32 %v1007, %v1176
        %v1282 = vmax.f32 %v1015, %v1178
        %v1283 = vmax.f32 %v1014, %v1180
        %v1284 = vmax.f32 %v1016, %v1182
        %v1285 = vmax.f32 %v1024, %v1184
        %v1286 = vmax.f32 %v1032, %v1186
        %v1287 = vmax.f32 %v1031, %v1188
        %v1288 = vmax.f32 %v1033, %v1190
        %v1289 = vmax.f32 %v1041, %v1192
        %v1290 = vmax.f32 %v1049, %v1194
        %v1291 = vmax.f32 %v1048, %v1196
        %v1292 = vmax.f32 %v1050, %v1198
        %v1293 = vmax.f32 %v1058, %v1200
        %v1294 = vmax.f32 %v1066, %v1202
        %v1295 = vmax.f32 %v1065, %v1204
        %v1296 = vmax.f32 %v1067, %v1206
        %v1297 = vmax.f32 %v1075, %v1208
        %v1298 = vmax.f32 %v1083, %v1210
        %v1299 = vmax.f32 %v1082, %v1212
        %v1300 = vmax.f32 %v1084, %v1214
        %v1301 = vmax.f32 %v1091, %v1216
        %v1302 = vmax.f32 %v1092, %v1218
        %v1303 = vpack.c.bf16 %v1261, %v1261
        %v1304 = vpack.c.bf16 %v1262, %v1262
        %v1305 = vpack.c.bf16 %v1263, %v1263
        %v1306 = vpack.c.bf16 %v1264, %v1264
        %v1307 = vpack.c.bf16 %v1265, %v1265
        %v1308 = vpack.c.bf16 %v1266, %v1266
        %v1309 = vpack.c.bf16 %v1267, %v1267
        %v1310 = vpack.c.bf16 %v1268, %v1268
        %v1311 = vpack.c.bf16 %v1269, %v1269
        %v1312 = vpack.c.bf16 %v1270, %v1270
        %v1313 = vpack.c.bf16 %v1271, %v1271
        %v1314 = vpack.c.bf16 %v1272, %v1272
        %v1315 = vpack.c.bf16 %v1273, %v1273
        %v1316 = vpack.c.bf16 %v1274, %v1274
        %v1317 = vpack.c.bf16 %v1275, %v1275
        %v1318 = vpack.c.bf16 %v1276, %v1276
        %v1319 = vpack.c.bf16 %v1277, %v1277
        %v1320 = vpack.c.bf16 %v1278, %v1278
        %v1321 = vpack.c.bf16 %v1279, %v1279
        %v1322 = vpack.c.bf16 %v1280, %v1280
        %v1323 = vpack.c.bf16 %v1281, %v1281
        %v1324 = vpack.c.bf16 %v1282, %v1282
        %v1325 = vpack.c.bf16 %v1283, %v1283
        %v1326 = vpack.c.bf16 %v1284, %v1284
        %v1327 = vpack.c.bf16 %v1285, %v1285
        %v1328 = vpack.c.bf16 %v1286, %v1286
        %v1329 = vpack.c.bf16 %v1287, %v1287
        %v1330 = vpack.c.bf16 %v1288, %v1288
        %v1331 = vpack.c.bf16 %v1289, %v1289
        %v1332 = vpack.c.bf16 %v1290, %v1290
        %v1333 = vpack.c.bf16 %v1291, %v1291
        %v1334 = vpack.c.bf16 %v1292, %v1292
        %v1335 = vpack.c.bf16 %v1293, %v1293
        %v1336 = vpack.c.bf16 %v1294, %v1294
        %v1337 = vpack.c.bf16 %v1295, %v1295
        %v1338 = vpack.c.bf16 %v1296, %v1296
        %v1339 = vpack.c.bf16 %v1297, %v1297
        %v1340 = vpack.c.bf16 %v1298, %v1298
        %v1341 = vpack.c.bf16 %v1299, %v1299
        %v1342 = vpack.c.bf16 %v1300, %v1300
        %v1343 = vpack.c.bf16 %v1301, %v1301
        %v1344 = vpack.c.bf16 %v1302, %v1302
        %s1345 = sadd.s32 %s565, 2
        %v1388 = vunpack.c.l.b16 %v1303
        %v1389 = vunpack.c.l.b16 %v1304
        %v1390 = vunpack.c.l.b16 %v1305
        %v1391 = vunpack.c.l.b16 %v1306
        %v1392 = vunpack.c.l.b16 %v1307
        %v1393 = vunpack.c.l.b16 %v1308
        %v1394 = vunpack.c.l.b16 %v1309
        %v1395 = vunpack.c.l.b16 %v1310
        %v1396 = vunpack.c.l.b16 %v1311
        %v1397 = vunpack.c.l.b16 %v1312
        %v1398 = vunpack.c.l.b16 %v1313
        %v1399 = vunpack.c.l.b16 %v1314
        %v1400 = vunpack.c.l.b16 %v1315
        %v1401 = vunpack.c.l.b16 %v1316
        %v1402 = vunpack.c.l.b16 %v1317
        %v1403 = vunpack.c.l.b16 %v1318
        %v1404 = vunpack.c.l.b16 %v1319
        %v1405 = vunpack.c.l.b16 %v1320
        %v1406 = vunpack.c.l.b16 %v1321
        %v1407 = vunpack.c.l.b16 %v1322
        %v1408 = vunpack.c.l.b16 %v1323
        %v1409 = vunpack.c.l.b16 %v1324
        %v1410 = vunpack.c.l.b16 %v1325
        %v1411 = vunpack.c.l.b16 %v1326
        %v1412 = vunpack.c.l.b16 %v1327
        %v1413 = vunpack.c.l.b16 %v1328
        %v1414 = vunpack.c.l.b16 %v1329
        %v1415 = vunpack.c.l.b16 %v1330
        %v1416 = vunpack.c.l.b16 %v1331
        %v1417 = vunpack.c.l.b16 %v1332
        %v1418 = vunpack.c.l.b16 %v1333
        %v1419 = vunpack.c.l.b16 %v1334
        %v1420 = vunpack.c.l.b16 %v1335
        %v1421 = vunpack.c.l.b16 %v1336
        %v1422 = vunpack.c.l.b16 %v1337
        %v1423 = vunpack.c.l.b16 %v1338
        %v1424 = vunpack.c.l.b16 %v1339
        %v1425 = vunpack.c.l.b16 %v1340
        %v1426 = vunpack.c.l.b16 %v1341
        %v1427 = vunpack.c.l.b16 %v1342
        %v1428 = vunpack.c.l.b16 %v1343
        %v1429 = vunpack.c.l.b16 %v1344
        %v1430 = vpack.c.b16 %v1388, %v1388
        %v1431 = vpack.c.b16 %v1389, %v1389
        %v1432 = vpack.c.b16 %v1390, %v1390
        %v1433 = vpack.c.b16 %v1391, %v1391
        %v1434 = vpack.c.b16 %v1392, %v1392
        %v1435 = vpack.c.b16 %v1393, %v1393
        %v1436 = vpack.c.b16 %v1394, %v1394
        %v1437 = vpack.c.b16 %v1395, %v1395
        %v1438 = vpack.c.b16 %v1396, %v1396
        %v1439 = vpack.c.b16 %v1397, %v1397
        %v1440 = vpack.c.b16 %v1398, %v1398
        %v1441 = vpack.c.b16 %v1399, %v1399
        %v1442 = vpack.c.b16 %v1400, %v1400
        %v1443 = vpack.c.b16 %v1401, %v1401
        %v1444 = vpack.c.b16 %v1402, %v1402
        %v1445 = vpack.c.b16 %v1403, %v1403
        %v1446 = vpack.c.b16 %v1404, %v1404
        %v1447 = vpack.c.b16 %v1405, %v1405
        %v1448 = vpack.c.b16 %v1406, %v1406
        %v1449 = vpack.c.b16 %v1407, %v1407
        %v1450 = vpack.c.b16 %v1408, %v1408
        %v1451 = vpack.c.b16 %v1409, %v1409
        %v1452 = vpack.c.b16 %v1410, %v1410
        %v1453 = vpack.c.b16 %v1411, %v1411
        %v1454 = vpack.c.b16 %v1412, %v1412
        %v1455 = vpack.c.b16 %v1413, %v1413
        %v1456 = vpack.c.b16 %v1414, %v1414
        %v1457 = vpack.c.b16 %v1415, %v1415
        %v1458 = vpack.c.b16 %v1416, %v1416
        %v1459 = vpack.c.b16 %v1417, %v1417
        %v1460 = vpack.c.b16 %v1418, %v1418
        %v1461 = vpack.c.b16 %v1419, %v1419
        %v1462 = vpack.c.b16 %v1420, %v1420
        %v1463 = vpack.c.b16 %v1421, %v1421
        %v1464 = vpack.c.b16 %v1422, %v1422
        %v1465 = vpack.c.b16 %v1423, %v1423
        %v1466 = vpack.c.b16 %v1424, %v1424
        %v1467 = vpack.c.b16 %v1425, %v1425
        %v1468 = vpack.c.b16 %v1426, %v1426
        %v1469 = vpack.c.b16 %v1427, %v1427
        %v1470 = vpack.c.b16 %v1428, %v1428
        %v1471 = vpack.c.b16 %v1429, %v1429
        %v1472 = vunpack.c.l.b16 %v1430
        %v1473 = vunpack.c.l.b16 %v1431
        %v1474 = vunpack.c.l.b16 %v1432
        %v1475 = vunpack.c.l.b16 %v1433
        %v1476 = vunpack.c.l.b16 %v1434
        %v1477 = vunpack.c.l.b16 %v1435
        %v1478 = vunpack.c.l.b16 %v1436
        %v1479 = vunpack.c.l.b16 %v1437
        %v1480 = vunpack.c.l.b16 %v1438
        %v1481 = vunpack.c.l.b16 %v1439
        %v1482 = vunpack.c.l.b16 %v1440
        %v1483 = vunpack.c.l.b16 %v1441
        %v1484 = vunpack.c.l.b16 %v1442
        %v1485 = vunpack.c.l.b16 %v1443
        %v1486 = vunpack.c.l.b16 %v1444
        %v1487 = vunpack.c.l.b16 %v1445
        %v1488 = vunpack.c.l.b16 %v1446
        %v1489 = vunpack.c.l.b16 %v1447
        %v1490 = vunpack.c.l.b16 %v1448
        %v1491 = vunpack.c.l.b16 %v1449
        %v1492 = vunpack.c.l.b16 %v1450
        %v1493 = vunpack.c.l.b16 %v1451
        %v1494 = vunpack.c.l.b16 %v1452
        %v1495 = vunpack.c.l.b16 %v1453
        %v1496 = vunpack.c.l.b16 %v1454
        %v1497 = vunpack.c.l.b16 %v1455
        %v1498 = vunpack.c.l.b16 %v1456
        %v1499 = vunpack.c.l.b16 %v1457
        %v1500 = vunpack.c.l.b16 %v1458
        %v1501 = vunpack.c.l.b16 %v1459
        %v1502 = vunpack.c.l.b16 %v1460
        %v1503 = vunpack.c.l.b16 %v1461
        %v1504 = vunpack.c.l.b16 %v1462
        %v1505 = vunpack.c.l.b16 %v1463
        %v1506 = vunpack.c.l.b16 %v1464
        %v1507 = vunpack.c.l.b16 %v1465
        %v1508 = vunpack.c.l.b16 %v1466
        %v1509 = vunpack.c.l.b16 %v1467
        %v1510 = vunpack.c.l.b16 %v1468
        %v1511 = vunpack.c.l.b16 %v1469
        %v1512 = vunpack.c.l.b16 %v1470
        %v1513 = vunpack.c.l.b16 %v1471
        %v1514 = vrot.slane %v1472, 6
        %v1515 = vrot.slane %v1473, 5
        %vm1516 = vcmask 1043459
        %v1517 = vsel %vm1516, %v1515, %v1514
        %v1518 = vrot.slane %v1474, 4
        %vm1519 = vcmask 1044484
        %v1520 = vsel %vm1519, %v1518, %v1517
        %v1521 = vrot.slane %v1475, 3
        %vm1522 = vcmask 1045509
        %v1523 = vsel %vm1522, %v1521, %v1520
        %v1524 = vrot.slane %v1476, 2
        %vm1525 = vcmask 1046534
        %v1526 = vsel %vm1525, %v1524, %v1523
        %v1527 = vrot.slane %v1477, 1
        %vm1528 = vcmask 1047559
        %v1529 = vsel %vm1528, %v1527, %v1526
        %v1530 = vrot.slane %v1479, 7
        %vm1531 = vcmask 1041409
        %v1532 = vsel %vm1531, %v1530, %v1478
        %v1533 = vrot.slane %v1480, 6
        %vm1534 = vcmask 1042434
        %v1535 = vsel %vm1534, %v1533, %v1532
        %v1536 = vrot.slane %v1481, 5
        %v1537 = vsel %vm1516, %v1536, %v1535
        %v1538 = vrot.slane %v1482, 4
        %v1539 = vsel %vm1519, %v1538, %v1537
        %v1540 = vrot.slane %v1483, 3
        %v1541 = vsel %vm1522, %v1540, %v1539
        %v1542 = vrot.slane %v1484, 2
        %v1543 = vsel %vm1525, %v1542, %v1541
        %v1544 = vrot.slane %v1485, 1
        %v1545 = vsel %vm1528, %v1544, %v1543
        %v1546 = vrot.slane %v1487, 7
        %v1547 = vsel %vm1531, %v1546, %v1486
        %v1548 = vrot.slane %v1488, 6
        %v1549 = vsel %vm1534, %v1548, %v1547
        %v1550 = vrot.slane %v1489, 5
        %v1551 = vsel %vm1516, %v1550, %v1549
        %v1552 = vrot.slane %v1490, 4
        %v1553 = vsel %vm1519, %v1552, %v1551
        %v1554 = vrot.slane %v1491, 3
        %v1555 = vsel %vm1522, %v1554, %v1553
        %v1556 = vrot.slane %v1492, 2
        %v1557 = vsel %vm1525, %v1556, %v1555
        %v1558 = vrot.slane %v1493, 1
        %v1559 = vsel %vm1528, %v1558, %v1557
        %v1560 = vrot.slane %v1495, 7
        %v1561 = vsel %vm1531, %v1560, %v1494
        %v1562 = vrot.slane %v1496, 6
        %v1563 = vsel %vm1534, %v1562, %v1561
        %v1564 = vrot.slane %v1497, 5
        %v1565 = vsel %vm1516, %v1564, %v1563
        %v1566 = vrot.slane %v1498, 4
        %v1567 = vsel %vm1519, %v1566, %v1565
        %v1568 = vrot.slane %v1499, 3
        %v1569 = vsel %vm1522, %v1568, %v1567
        %v1570 = vrot.slane %v1500, 2
        %v1571 = vsel %vm1525, %v1570, %v1569
        %v1572 = vrot.slane %v1501, 1
        %v1573 = vsel %vm1528, %v1572, %v1571
        %v1574 = vrot.slane %v1503, 7
        %v1575 = vsel %vm1531, %v1574, %v1502
        %v1576 = vrot.slane %v1504, 6
        %v1577 = vsel %vm1534, %v1576, %v1575
        %v1578 = vrot.slane %v1505, 5
        %v1579 = vsel %vm1516, %v1578, %v1577
        %v1580 = vrot.slane %v1506, 4
        %v1581 = vsel %vm1519, %v1580, %v1579
        %v1582 = vrot.slane %v1507, 3
        %v1583 = vsel %vm1522, %v1582, %v1581
        %v1584 = vrot.slane %v1508, 2
        %v1585 = vsel %vm1525, %v1584, %v1583
        %v1586 = vrot.slane %v1509, 1
        %v1587 = vsel %vm1528, %v1586, %v1585
        %v1588 = vrot.slane %v1511, 7
        %v1589 = vsel %vm1531, %v1588, %v1510
        %v1590 = vrot.slane %v1512, 6
        %v1591 = vsel %vm1534, %v1590, %v1589
        %v1592 = vrot.slane %v1513, 5
        %v1593 = vsel %vm1516, %v1592, %v1591
        %v1594 = vpack.c.b16 %v1529, %v1529
        %v1595 = vpack.c.b16 %v1545, %v1545
        %v1596 = vpack.c.b16 %v1559, %v1559
        %v1597 = vpack.c.b16 %v1573, %v1573
        %v1598 = vpack.c.b16 %v1587, %v1587
        %v1599 = vpack.c.b16 %v1593, %v1593
        %s1606 = smul.u32 %s1345, 7
        %s1607 = smul.addr %s1606, 4
        %s1608 = scalar_lea.vmem [#allocation2], %s1607
        %vm1609 = vcmask 257025
        %1610 = vst.msk [vmem:[%s1608] sm:$0xe] %vm1609, %v1594
        %1611 = vst.msk [vmem:[%s1608 + $0x4] sm:$0xf] %vm226, %v1595
        %1612 = vst.msk [vmem:[%s1608 + $0x8] sm:$0xf] %vm226, %v1596
        %1613 = vst.msk [vmem:[%s1608 + $0xc] sm:$0xf] %vm226, %v1597
        %1614 = vst.msk [vmem:[%s1608 + $0x10] sm:$0xf] %vm226, %v1598
        %1615 = vst.msk [vmem:[%s1608 + $0x14] sm:$0x3] %vm233, %v1599
      $region45: #{net_forward.3} parent=39 // loop_footer
        %s569 = sadd.s32 1, %s565
      $region46: #{net_forward.3} parent=39 // loop_footer_branch
        %564 = sbr.rel target = $region42
      $region47: #{net_forward.3} parent=39 // loop_exit
        _
      %v1616 = vld [vmem:[#allocation2] sm:$0xf]
      %v1617 = vld [vmem:[#allocation2 + $0x4] sm:$0xf]
      %v1618 = vld [vmem:[#allocation2 + $0x8] sm:$0xf]
      %v1619 = vld [vmem:[#allocation2 + $0xc] sm:$0xf]
      %v1620 = vld [vmem:[#allocation2 + $0x10] sm:$0xf]
      %v1621 = vld [vmem:[#allocation2 + $0x14] sm:$0xf]
      %v1622 = vld [vmem:[#allocation2 + $0x1c] sm:$0xf]
      %v1623 = vld [vmem:[#allocation2 + $0x20] sm:$0xf]
      %v1624 = vld [vmem:[#allocation2 + $0x24] sm:$0xf]
      %v1625 = vld [vmem:[#allocation2 + $0x28] sm:$0xf]
      %v1626 = vld [vmem:[#allocation2 + $0x2c] sm:$0xf]
      %v1627 = vld [vmem:[#allocation2 + $0x30] sm:$0xf]
      %v1628 = vld [vmem:[#allocation2 + $0x38] sm:$0xf]
      %v1629 = vld [vmem:[#allocation2 + $0x3c] sm:$0xf]
      %v1630 = vld [vmem:[#allocation2 + $0x40] sm:$0xf]
      %v1631 = vld [vmem:[#allocation2 + $0x44] sm:$0xf]
      %v1632 = vld [vmem:[#allocation2 + $0x48] sm:$0xf]
      %v1633 = vld [vmem:[#allocation2 + $0x4c] sm:$0xf]
      %v1634 = vld [vmem:[#allocation2 + $0x54] sm:$0xf]
      %v1635 = vld [vmem:[#allocation2 + $0x58] sm:$0xf]
      %v1636 = vld [vmem:[#allocation2 + $0x5c] sm:$0xf]
      %v1637 = vld [vmem:[#allocation2 + $0x60] sm:$0xf]
      %v1638 = vld [vmem:[#allocation2 + $0x64] sm:$0xf]
      %v1639 = vld [vmem:[#allocation2 + $0x68] sm:$0xf]
      %v1640 = vld [vmem:[#allocation2 + $0x70] sm:$0xf]
      %v1641 = vld [vmem:[#allocation2 + $0x74] sm:$0xf]
      %v1642 = vld [vmem:[#allocation2 + $0x78] sm:$0xf]
      %v1643 = vld [vmem:[#allocation2 + $0x7c] sm:$0xf]
      %v1644 = vld [vmem:[#allocation2 + $0x80] sm:$0xf]
      %v1645 = vld [vmem:[#allocation2 + $0x84] sm:$0xf]
      %v1646 = vld [vmem:[#allocation2 + $0x8c] sm:$0xf]
      %v1647 = vld [vmem:[#allocation2 + $0x90] sm:$0xf]
      %v1648 = vld [vmem:[#allocation2 + $0x94] sm:$0xf]
      %v1649 = vld [vmem:[#allocation2 + $0x98] sm:$0xf]
      %v1650 = vld [vmem:[#allocation2 + $0x9c] sm:$0xf]
      %v1651 = vld [vmem:[#allocation2 + $0xa0] sm:$0xf]
      %v1652 = vld [vmem:[#allocation2 + $0xa8] sm:$0xf]
      %v1653 = vld [vmem:[#allocation2 + $0xac] sm:$0xf]
      %v1654 = vld [vmem:[#allocation2 + $0xb0] sm:$0xf]
      %v1655 = vld [vmem:[#allocation2 + $0xb4] sm:$0xf]
      %v1656 = vld [vmem:[#allocation2 + $0xb8] sm:$0xf]
      %v1657 = vld [vmem:[#allocation2 + $0xbc] sm:$0xf]
      %v1658 = vld [vmem:[#allocation2 + $0xc4] sm:$0xf]
      %v1659 = vld [vmem:[#allocation2 + $0xc8] sm:$0xf]
      %v1660 = vld [vmem:[#allocation2 + $0xcc] sm:$0xf]
      %v1661 = vld [vmem:[#allocation2 + $0xd0] sm:$0xf]
      %v1662 = vld [vmem:[#allocation2 + $0xd4] sm:$0xf]
      %v1663 = vld [vmem:[#allocation2 + $0xd8] sm:$0xf]
      %v1664 = vld [vmem:[#allocation2 + $0xe0] sm:$0xf]
      %v1665 = vld [vmem:[#allocation2 + $0xe4] sm:$0xf]
      %v1666 = vld [vmem:[#allocation2 + $0xe8] sm:$0xf]
      %v1667 = vld [vmem:[#allocation2 + $0xec] sm:$0xf]
      %v1668 = vld [vmem:[#allocation2 + $0xf0] sm:$0xf]
      %v1669 = vld [vmem:[#allocation2 + $0xf4] sm:$0xf]
      %v1670 = vld [vmem:[#allocation2 + $0xfc] sm:$0xf]
      %v1671 = vld [vmem:[#allocation2 + $0x100] sm:$0xf]
      %v1672 = vld [vmem:[#allocation2 + $0x104] sm:$0xf]
      %v1673 = vld [vmem:[#allocation2 + $0x108] sm:$0xf]
      %v1674 = vld [vmem:[#allocation2 + $0x10c] sm:$0xf]
      %v1675 = vld [vmem:[#allocation2 + $0x110] sm:$0xf]
      %v1676 = vld [vmem:[#allocation2 + $0x118] sm:$0xf]
      %v1677 = vld [vmem:[#allocation2 + $0x11c] sm:$0xf]
      %v1678 = vld [vmem:[#allocation2 + $0x120] sm:$0xf]
      %v1679 = vld [vmem:[#allocation2 + $0x124] sm:$0xf]
      %v1680 = vld [vmem:[#allocation2 + $0x128] sm:$0xf]
      %v1681 = vld [vmem:[#allocation2 + $0x12c] sm:$0xf]
      %v1682 = vld [vmem:[#allocation2 + $0x134] sm:$0xf]
      %v1683 = vld [vmem:[#allocation2 + $0x138] sm:$0xf]
      %v1684 = vld [vmem:[#allocation2 + $0x13c] sm:$0xf]
      %v1685 = vld [vmem:[#allocation2 + $0x140] sm:$0xf]
      %v1686 = vld [vmem:[#allocation2 + $0x144] sm:$0xf]
      %v1687 = vld [vmem:[#allocation2 + $0x148] sm:$0xf]
      %v1688 = vld [vmem:[#allocation2 + $0x150] sm:$0xf]
      %v1689 = vld [vmem:[#allocation2 + $0x154] sm:$0xf]
      %v1690 = vld [vmem:[#allocation2 + $0x158] sm:$0xf]
      %v1691 = vld [vmem:[#allocation2 + $0x15c] sm:$0xf]
      %v1692 = vld [vmem:[#allocation2 + $0x160] sm:$0xf]
      %v1693 = vld [vmem:[#allocation2 + $0x164] sm:$0xf]
      %v1694 = vld [vmem:[#allocation2 + $0x16c] sm:$0xf]
      %v1695 = vld [vmem:[#allocation2 + $0x170] sm:$0xf]
      %v1696 = vld [vmem:[#allocation2 + $0x174] sm:$0xf]
      %v1697 = vld [vmem:[#allocation2 + $0x178] sm:$0xf]
      %v1698 = vld [vmem:[#allocation2 + $0x17c] sm:$0xf]
      %v1699 = vld [vmem:[#allocation2 + $0x180] sm:$0xf]
      %v1700 = vld [vmem:[#allocation2 + $0x188] sm:$0xf]
      %v1701 = vld [vmem:[#allocation2 + $0x18c] sm:$0xf]
      %v1702 = vld [vmem:[#allocation2 + $0x190] sm:$0xf]
      %v1703 = vld [vmem:[#allocation2 + $0x194] sm:$0xf]
      %v1704 = vld [vmem:[#allocation2 + $0x198] sm:$0xf]
      %v1705 = vld [vmem:[#allocation2 + $0x19c] sm:$0xf]
      %v1706 = vld [vmem:[#allocation2 + $0x1a4] sm:$0xf]
      %v1707 = vld [vmem:[#allocation2 + $0x1a8] sm:$0xf]
      %v1708 = vld [vmem:[#allocation2 + $0x1ac] sm:$0xf]
      %v1709 = vld [vmem:[#allocation2 + $0x1b0] sm:$0xf]
      %v1710 = vld [vmem:[#allocation2 + $0x1b4] sm:$0xf]
      %v1711 = vld [vmem:[#allocation2 + $0x1b8] sm:$0xf]
      %v1712 = vld [vmem:[#allocation2 + $0x1c0] sm:$0xf]
      %v1713 = vld [vmem:[#allocation2 + $0x1c4] sm:$0xf]
      %v1714 = vld [vmem:[#allocation2 + $0x1c8] sm:$0xf]
      %v1715 = vld [vmem:[#allocation2 + $0x1cc] sm:$0xf]
      %v1716 = vld [vmem:[#allocation2 + $0x1d0] sm:$0xf]
      %v1717 = vld [vmem:[#allocation2 + $0x1d4] sm:$0xf]
      %v1718 = vld [vmem:[#allocation2 + $0x1dc] sm:$0xf]
      %v1719 = vld [vmem:[#allocation2 + $0x1e0] sm:$0xf]
      %v1720 = vld [vmem:[#allocation2 + $0x1e4] sm:$0xf]
      %v1721 = vld [vmem:[#allocation2 + $0x1e8] sm:$0xf]
      %v1722 = vld [vmem:[#allocation2 + $0x1ec] sm:$0xf]
      %v1723 = vld [vmem:[#allocation2 + $0x1f0] sm:$0xf]
      %v1724 = vld [vmem:[#allocation2 + $0x1f8] sm:$0xf]
      %v1725 = vld [vmem:[#allocation2 + $0x1fc] sm:$0xf]
      %v1726 = vld [vmem:[#allocation2 + $0x200] sm:$0xf]
      %v1727 = vld [vmem:[#allocation2 + $0x204] sm:$0xf]
      %v1728 = vld [vmem:[#allocation2 + $0x208] sm:$0xf]
      %v1729 = vld [vmem:[#allocation2 + $0x20c] sm:$0xf]
      %v1730 = vld [vmem:[#allocation2 + $0x214] sm:$0xf]
      %v1731 = vld [vmem:[#allocation2 + $0x218] sm:$0xf]
      %v1732 = vld [vmem:[#allocation2 + $0x21c] sm:$0xf]
      %v1733 = vld [vmem:[#allocation2 + $0x220] sm:$0xf]
      %v1734 = vld [vmem:[#allocation2 + $0x224] sm:$0xf]
      %v1735 = vld [vmem:[#allocation2 + $0x228] sm:$0xf]
      %v1736 = vld [vmem:[#allocation2 + $0x230] sm:$0xf]
      %v1737 = vld [vmem:[#allocation2 + $0x234] sm:$0xf]
      %v1738 = vld [vmem:[#allocation2 + $0x238] sm:$0xf]
      %v1739 = vld [vmem:[#allocation2 + $0x23c] sm:$0xf]
      %v1740 = vld [vmem:[#allocation2 + $0x240] sm:$0xf]
      %v1741 = vld [vmem:[#allocation2 + $0x244] sm:$0xf]
      %v1742 = vld [vmem:[#allocation2 + $0x24c] sm:$0xf]
      %v1743 = vld [vmem:[#allocation2 + $0x250] sm:$0xf]
      %v1744 = vld [vmem:[#allocation2 + $0x254] sm:$0xf]
      %v1745 = vld [vmem:[#allocation2 + $0x258] sm:$0xf]
      %v1746 = vld [vmem:[#allocation2 + $0x25c] sm:$0xf]
      %v1747 = vld [vmem:[#allocation2 + $0x260] sm:$0xf]
      %v1748 = vld [vmem:[#allocation2 + $0x268] sm:$0xf]
      %v1749 = vld [vmem:[#allocation2 + $0x26c] sm:$0xf]
      %v1750 = vld [vmem:[#allocation2 + $0x270] sm:$0xf]
      %v1751 = vld [vmem:[#allocation2 + $0x274] sm:$0xf]
      %v1752 = vld [vmem:[#allocation2 + $0x278] sm:$0xf]
      %v1753 = vld [vmem:[#allocation2 + $0x27c] sm:$0xf]
      %v1754 = vld [vmem:[#allocation2 + $0x284] sm:$0xf]
      %v1755 = vld [vmem:[#allocation2 + $0x288] sm:$0xf]
      %v1756 = vld [vmem:[#allocation2 + $0x28c] sm:$0xf]
      %v1757 = vld [vmem:[#allocation2 + $0x290] sm:$0xf]
      %v1758 = vld [vmem:[#allocation2 + $0x294] sm:$0xf]
      %v1759 = vld [vmem:[#allocation2 + $0x298] sm:$0xf]
      %v1760 = vld [vmem:[#allocation2 + $0x2a0] sm:$0xf]
      %v1761 = vld [vmem:[#allocation2 + $0x2a4] sm:$0xf]
      %v1762 = vld [vmem:[#allocation2 + $0x2a8] sm:$0xf]
      %v1763 = vld [vmem:[#allocation2 + $0x2ac] sm:$0xf]
      %v1764 = vld [vmem:[#allocation2 + $0x2b0] sm:$0xf]
      %v1765 = vld [vmem:[#allocation2 + $0x2b4] sm:$0xf]
      %v1766 = vld [vmem:[#allocation2 + $0x2bc] sm:$0xf]
      %v1767 = vld [vmem:[#allocation2 + $0x2c0] sm:$0xf]
      %v1768 = vld [vmem:[#allocation2 + $0x2c4] sm:$0xf]
      %v1769 = vld [vmem:[#allocation2 + $0x2c8] sm:$0xf]
      %v1770 = vld [vmem:[#allocation2 + $0x2cc] sm:$0xf]
      %v1771 = vld [vmem:[#allocation2 + $0x2d0] sm:$0xf]
      %v1772 = vld [vmem:[#allocation2 + $0x2d8] sm:$0xf]
      %v1773 = vld [vmem:[#allocation2 + $0x2dc] sm:$0xf]
      %v1774 = vld [vmem:[#allocation2 + $0x2e0] sm:$0xf]
      %v1775 = vld [vmem:[#allocation2 + $0x2e4] sm:$0xf]
      %v1776 = vld [vmem:[#allocation2 + $0x2e8] sm:$0xf]
      %v1777 = vld [vmem:[#allocation2 + $0x2ec] sm:$0xf]
      %v1778 = vld [vmem:[#allocation2 + $0x2f4] sm:$0xf]
      %v1779 = vld [vmem:[#allocation2 + $0x2f8] sm:$0xf]
      %v1780 = vld [vmem:[#allocation2 + $0x2fc] sm:$0xf]
      %v1781 = vld [vmem:[#allocation2 + $0x300] sm:$0xf]
      %v1782 = vld [vmem:[#allocation2 + $0x304] sm:$0xf]
      %v1783 = vld [vmem:[#allocation2 + $0x308] sm:$0xf]
      %v1784 = vld [vmem:[#allocation2 + $0x310] sm:$0xf]
      %v1785 = vld [vmem:[#allocation2 + $0x314] sm:$0xf]
      %v1786 = vld [vmem:[#allocation2 + $0x318] sm:$0xf]
      %v1787 = vld [vmem:[#allocation2 + $0x31c] sm:$0xf]
      %v1788 = vld [vmem:[#allocation2 + $0x320] sm:$0xf]
      %v1789 = vld [vmem:[#allocation2 + $0x324] sm:$0xf]
      %v1790 = vld [vmem:[#allocation2 + $0x32c] sm:$0xf]
      %v1791 = vld [vmem:[#allocation2 + $0x330] sm:$0xf]
      %v1792 = vld [vmem:[#allocation2 + $0x334] sm:$0xf]
      %v1793 = vld [vmem:[#allocation2 + $0x338] sm:$0xf]
      %v1794 = vld [vmem:[#allocation2 + $0x33c] sm:$0xf]
      %v1795 = vld [vmem:[#allocation2 + $0x340] sm:$0xf]
      %v1796 = vld [vmem:[#allocation2 + $0x348] sm:$0xf]
      %v1797 = vld [vmem:[#allocation2 + $0x34c] sm:$0xf]
      %v1798 = vld [vmem:[#allocation2 + $0x350] sm:$0xf]
      %v1799 = vld [vmem:[#allocation2 + $0x354] sm:$0xf]
      %v1800 = vld [vmem:[#allocation2 + $0x358] sm:$0xf]
      %v1801 = vld [vmem:[#allocation2 + $0x35c] sm:$0xf]
      %v1802 = vld [vmem:[#allocation2 + $0x364] sm:$0xf]
      %v1803 = vld [vmem:[#allocation2 + $0x368] sm:$0xf]
      %v1804 = vld [vmem:[#allocation2 + $0x36c] sm:$0xf]
      %v1805 = vld [vmem:[#allocation2 + $0x370] sm:$0xf]
      %v1806 = vld [vmem:[#allocation2 + $0x374] sm:$0xf]
      %v1807 = vld [vmem:[#allocation2 + $0x378] sm:$0xf]
      %v1808 = vld [vmem:[#allocation2 + $0x380] sm:$0xf]
      %v1809 = vld [vmem:[#allocation2 + $0x384] sm:$0xf]
      %v1810 = vld [vmem:[#allocation2 + $0x388] sm:$0xf]
      %v1811 = vld [vmem:[#allocation2 + $0x38c] sm:$0xf]
      %v1812 = vld [vmem:[#allocation2 + $0x390] sm:$0xf]
      %v1813 = vld [vmem:[#allocation2 + $0x394] sm:$0xf]
      %v1814 = vld [vmem:[#allocation2 + $0x39c] sm:$0xf]
      %v1815 = vld [vmem:[#allocation2 + $0x3a0] sm:$0xf]
      %v1816 = vld [vmem:[#allocation2 + $0x3a4] sm:$0xf]
      %v1817 = vld [vmem:[#allocation2 + $0x3a8] sm:$0xf]
      %v1818 = vld [vmem:[#allocation2 + $0x3ac] sm:$0xf]
      %v1819 = vld [vmem:[#allocation2 + $0x3b0] sm:$0xf]
      %v1820 = vld [vmem:[#allocation2 + $0x3b8] sm:$0xf]
      %v1821 = vld [vmem:[#allocation2 + $0x3bc] sm:$0xf]
      %v1822 = vld [vmem:[#allocation2 + $0x3c0] sm:$0xf]
      %v1823 = vld [vmem:[#allocation2 + $0x3c4] sm:$0xf]
      %v1824 = vld [vmem:[#allocation2 + $0x3c8] sm:$0xf]
      %v1825 = vld [vmem:[#allocation2 + $0x3cc] sm:$0xf]
      %v1826 = vld [vmem:[#allocation2 + $0x3d4] sm:$0xf]
      %v1827 = vld [vmem:[#allocation2 + $0x3d8] sm:$0xf]
      %v1828 = vld [vmem:[#allocation2 + $0x3dc] sm:$0xf]
      %v1829 = vld [vmem:[#allocation2 + $0x3e0] sm:$0xf]
      %v1830 = vld [vmem:[#allocation2 + $0x3e4] sm:$0xf]
      %v1831 = vld [vmem:[#allocation2 + $0x3e8] sm:$0xf]
      %v1832 = vld [vmem:[#allocation2 + $0x3f0] sm:$0xf]
      %v1833 = vld [vmem:[#allocation2 + $0x3f4] sm:$0xf]
      %v1834 = vld [vmem:[#allocation2 + $0x3f8] sm:$0xf]
      %v1835 = vld [vmem:[#allocation2 + $0x3fc] sm:$0xf]
      %v1836 = vld [vmem:[#allocation2 + $0x400] sm:$0xf]
      %v1837 = vld [vmem:[#allocation2 + $0x404] sm:$0xf]
      %v1838 = vld [vmem:[#allocation2 + $0x40c] sm:$0xf]
      %v1839 = vld [vmem:[#allocation2 + $0x410] sm:$0xf]
      %v1840 = vld [vmem:[#allocation2 + $0x414] sm:$0xf]
      %v1841 = vld [vmem:[#allocation2 + $0x418] sm:$0xf]
      %v1842 = vld [vmem:[#allocation2 + $0x41c] sm:$0xf]
      %v1843 = vld [vmem:[#allocation2 + $0x420] sm:$0xf]
      %v1844 = vld [vmem:[#allocation2 + $0x428] sm:$0xf]
      %v1845 = vld [vmem:[#allocation2 + $0x42c] sm:$0xf]
      %v1846 = vld [vmem:[#allocation2 + $0x430] sm:$0xf]
      %v1847 = vld [vmem:[#allocation2 + $0x434] sm:$0xf]
      %v1848 = vld [vmem:[#allocation2 + $0x438] sm:$0xf]
      %v1849 = vld [vmem:[#allocation2 + $0x43c] sm:$0xf]
      %v1850 = vld [vmem:[#allocation2 + $0x444] sm:$0xf]
      %v1851 = vld [vmem:[#allocation2 + $0x448] sm:$0xf]
      %v1852 = vld [vmem:[#allocation2 + $0x44c] sm:$0xf]
      %v1853 = vld [vmem:[#allocation2 + $0x450] sm:$0xf]
      %v1854 = vld [vmem:[#allocation2 + $0x454] sm:$0xf]
      %v1855 = vld [vmem:[#allocation2 + $0x458] sm:$0xf]
      %v1856 = vld [vmem:[#allocation2 + $0x460] sm:$0xf]
      %v1857 = vld [vmem:[#allocation2 + $0x464] sm:$0xf]
      %v1858 = vld [vmem:[#allocation2 + $0x468] sm:$0xf]
      %v1859 = vld [vmem:[#allocation2 + $0x46c] sm:$0xf]
      %v1860 = vld [vmem:[#allocation2 + $0x470] sm:$0xf]
      %v1861 = vld [vmem:[#allocation2 + $0x474] sm:$0xf]
      %v1862 = vld [vmem:[#allocation2 + $0x47c] sm:$0xf]
      %v1863 = vld [vmem:[#allocation2 + $0x480] sm:$0xf]
      %v1864 = vld [vmem:[#allocation2 + $0x484] sm:$0xf]
      %v1865 = vld [vmem:[#allocation2 + $0x488] sm:$0xf]
      %v1866 = vld [vmem:[#allocation2 + $0x48c] sm:$0xf]
      %v1867 = vld [vmem:[#allocation2 + $0x490] sm:$0xf]
      %v1868 = vld [vmem:[#allocation2 + $0x498] sm:$0xf]
      %v1869 = vld [vmem:[#allocation2 + $0x49c] sm:$0xf]
      %v1870 = vld [vmem:[#allocation2 + $0x4a0] sm:$0xf]
      %v1871 = vld [vmem:[#allocation2 + $0x4a4] sm:$0xf]
      %v1872 = vld [vmem:[#allocation2 + $0x4a8] sm:$0xf]
      %v1873 = vld [vmem:[#allocation2 + $0x4ac] sm:$0xf]
      %v1874 = vld [vmem:[#allocation2 + $0x4b4] sm:$0xf]
      %v1875 = vld [vmem:[#allocation2 + $0x4b8] sm:$0xf]
      %v1876 = vld [vmem:[#allocation2 + $0x4bc] sm:$0xf]
      %v1877 = vld [vmem:[#allocation2 + $0x4c0] sm:$0xf]
      %v1878 = vld [vmem:[#allocation2 + $0x4c4] sm:$0xf]
      %v1879 = vld [vmem:[#allocation2 + $0x4c8] sm:$0xf]
      %v1880 = vld [vmem:[#allocation2 + $0x4d0] sm:$0xf]
      %v1881 = vld [vmem:[#allocation2 + $0x4d4] sm:$0xf]
      %v1882 = vld [vmem:[#allocation2 + $0x4d8] sm:$0xf]
      %v1883 = vld [vmem:[#allocation2 + $0x4dc] sm:$0xf]
      %v1884 = vld [vmem:[#allocation2 + $0x4e0] sm:$0xf]
      %v1885 = vld [vmem:[#allocation2 + $0x4e4] sm:$0xf]
      %v1886 = vld [vmem:[#allocation2 + $0x4ec] sm:$0xf]
      %v1887 = vld [vmem:[#allocation2 + $0x4f0] sm:$0xf]
      %v1888 = vld [vmem:[#allocation2 + $0x4f4] sm:$0xf]
      %v1889 = vld [vmem:[#allocation2 + $0x4f8] sm:$0xf]
      %v1890 = vld [vmem:[#allocation2 + $0x4fc] sm:$0xf]
      %v1891 = vld [vmem:[#allocation2 + $0x500] sm:$0xf]
      %v1892 = vld [vmem:[#allocation2 + $0x18] sm:$0x1]
      %v1893 = vld [vmem:[#allocation2 + $0x34] sm:$0x1]
      %v1894 = vld [vmem:[#allocation2 + $0x50] sm:$0x1]
      %v1895 = vld [vmem:[#allocation2 + $0x6c] sm:$0x1]
      %v1896 = vld [vmem:[#allocation2 + $0x88] sm:$0x1]
      %v1897 = vld [vmem:[#allocation2 + $0xa4] sm:$0x1]
      %v1898 = vld [vmem:[#allocation2 + $0xc0] sm:$0x1]
      %v1899 = vld [vmem:[#allocation2 + $0xdc] sm:$0x1]
      %v1900 = vld [vmem:[#allocation2 + $0xf8] sm:$0x1]
      %v1901 = vld [vmem:[#allocation2 + $0x114] sm:$0x1]
      %v1902 = vld [vmem:[#allocation2 + $0x130] sm:$0x1]
      %v1903 = vld [vmem:[#allocation2 + $0x14c] sm:$0x1]
      %v1904 = vld [vmem:[#allocation2 + $0x168] sm:$0x1]
      %v1905 = vld [vmem:[#allocation2 + $0x184] sm:$0x1]
      %v1906 = vld [vmem:[#allocation2 + $0x1a0] sm:$0x1]
      %v1907 = vld [vmem:[#allocation2 + $0x1bc] sm:$0x1]
      %v1908 = vld [vmem:[#allocation2 + $0x1d8] sm:$0x1]
      %v1909 = vld [vmem:[#allocation2 + $0x1f4] sm:$0x1]
      %v1910 = vld [vmem:[#allocation2 + $0x210] sm:$0x1]
      %v1911 = vld [vmem:[#allocation2 + $0x22c] sm:$0x1]
      %v1912 = vld [vmem:[#allocation2 + $0x248] sm:$0x1]
      %v1913 = vld [vmem:[#allocation2 + $0x264] sm:$0x1]
      %v1914 = vld [vmem:[#allocation2 + $0x280] sm:$0x1]
      %v1915 = vld [vmem:[#allocation2 + $0x29c] sm:$0x1]
      %v1916 = vld [vmem:[#allocation2 + $0x2b8] sm:$0x1]
      %v1917 = vld [vmem:[#allocation2 + $0x2d4] sm:$0x1]
      %v1918 = vld [vmem:[#allocation2 + $0x2f0] sm:$0x1]
      %v1919 = vld [vmem:[#allocation2 + $0x30c] sm:$0x1]
      %v1920 = vld [vmem:[#allocation2 + $0x328] sm:$0x1]
      %v1921 = vld [vmem:[#allocation2 + $0x344] sm:$0x1]
      %v1922 = vld [vmem:[#allocation2 + $0x360] sm:$0x1]
      %v1923 = vld [vmem:[#allocation2 + $0x37c] sm:$0x1]
      %v1924 = vld [vmem:[#allocation2 + $0x398] sm:$0x1]
      %v1925 = vld [vmem:[#allocation2 + $0x3b4] sm:$0x1]
      %v1926 = vld [vmem:[#allocation2 + $0x3d0] sm:$0x1]
      %v1927 = vld [vmem:[#allocation2 + $0x3ec] sm:$0x1]
      %v1928 = vld [vmem:[#allocation2 + $0x408] sm:$0x1]
      %v1929 = vld [vmem:[#allocation2 + $0x424] sm:$0x1]
      %v1930 = vld [vmem:[#allocation2 + $0x440] sm:$0x1]
      %v1931 = vld [vmem:[#allocation2 + $0x45c] sm:$0x1]
      %v1932 = vld [vmem:[#allocation2 + $0x478] sm:$0x1]
      %v1933 = vld [vmem:[#allocation2 + $0x494] sm:$0x1]
      %v1934 = vld [vmem:[#allocation2 + $0x4b0] sm:$0x1]
      %v1935 = vld [vmem:[#allocation2 + $0x4cc] sm:$0x1]
      %v1936 = vld [vmem:[#allocation2 + $0x4e8] sm:$0x1]
      %v1937 = vld [vmem:[#allocation2 + $0x504] sm:$0x1]
      %v1938 = vld [vmem:[#allocation2] sm:$0xe]
      %v1939 = vld [vmem:[#allocation2 + $0x1c] sm:$0xe]
      %v1940 = vld [vmem:[#allocation2 + $0x38] sm:$0xe]
      %v1941 = vld [vmem:[#allocation2 + $0x54] sm:$0xe]
      %v1942 = vld [vmem:[#allocation2 + $0x70] sm:$0xe]
      %v1943 = vld [vmem:[#allocation2 + $0x8c] sm:$0xe]
      %v1944 = vld [vmem:[#allocation2 + $0xa8] sm:$0xe]
      %v1945 = vld [vmem:[#allocation2 + $0xc4] sm:$0xe]
      %v1946 = vld [vmem:[#allocation2 + $0xe0] sm:$0xe]
      %v1947 = vld [vmem:[#allocation2 + $0xfc] sm:$0xe]
      %v1948 = vld [vmem:[#allocation2 + $0x118] sm:$0xe]
      %v1949 = vld [vmem:[#allocation2 + $0x134] sm:$0xe]
      %v1950 = vld [vmem:[#allocation2 + $0x150] sm:$0xe]
      %v1951 = vld [vmem:[#allocation2 + $0x16c] sm:$0xe]
      %v1952 = vld [vmem:[#allocation2 + $0x188] sm:$0xe]
      %v1953 = vld [vmem:[#allocation2 + $0x1a4] sm:$0xe]
      %v1954 = vld [vmem:[#allocation2 + $0x1c0] sm:$0xe]
      %v1955 = vld [vmem:[#allocation2 + $0x1dc] sm:$0xe]
      %v1956 = vld [vmem:[#allocation2 + $0x1f8] sm:$0xe]
      %v1957 = vld [vmem:[#allocation2 + $0x214] sm:$0xe]
      %v1958 = vld [vmem:[#allocation2 + $0x230] sm:$0xe]
      %v1959 = vld [vmem:[#allocation2 + $0x24c] sm:$0xe]
      %v1960 = vld [vmem:[#allocation2 + $0x268] sm:$0xe]
      %v1961 = vld [vmem:[#allocation2 + $0x284] sm:$0xe]
      %v1962 = vld [vmem:[#allocation2 + $0x2a0] sm:$0xe]
      %v1963 = vld [vmem:[#allocation2 + $0x2bc] sm:$0xe]
      %v1964 = vld [vmem:[#allocation2 + $0x2d8] sm:$0xe]
      %v1965 = vld [vmem:[#allocation2 + $0x2f4] sm:$0xe]
      %v1966 = vld [vmem:[#allocation2 + $0x310] sm:$0xe]
      %v1967 = vld [vmem:[#allocation2 + $0x32c] sm:$0xe]
      %v1968 = vld [vmem:[#allocation2 + $0x348] sm:$0xe]
      %v1969 = vld [vmem:[#allocation2 + $0x364] sm:$0xe]
      %v1970 = vld [vmem:[#allocation2 + $0x380] sm:$0xe]
      %v1971 = vld [vmem:[#allocation2 + $0x39c] sm:$0xe]
      %v1972 = vld [vmem:[#allocation2 + $0x3b8] sm:$0xe]
      %v1973 = vld [vmem:[#allocation2 + $0x3d4] sm:$0xe]
      %v1974 = vld [vmem:[#allocation2 + $0x3f0] sm:$0xe]
      %v1975 = vld [vmem:[#allocation2 + $0x40c] sm:$0xe]
      %v1976 = vld [vmem:[#allocation2 + $0x428] sm:$0xe]
      %v1977 = vld [vmem:[#allocation2 + $0x444] sm:$0xe]
      %v1978 = vld [vmem:[#allocation2 + $0x460] sm:$0xe]
      %v1979 = vld [vmem:[#allocation2 + $0x47c] sm:$0xe]
      %v1980 = vld [vmem:[#allocation2 + $0x498] sm:$0xe]
      %v1981 = vld [vmem:[#allocation2 + $0x4b4] sm:$0xe]
      %v1982 = vld [vmem:[#allocation2 + $0x4d0] sm:$0xe]
      %v1983 = vld [vmem:[#allocation2 + $0x4ec] sm:$0xe]
      %v1984 = vld [vmem:[#allocation2 + $0x18] sm:$0x3]
      %v1985 = vld [vmem:[#allocation2 + $0x34] sm:$0x3]
      %v1986 = vld [vmem:[#allocation2 + $0x50] sm:$0x3]
      %v1987 = vld [vmem:[#allocation2 + $0x6c] sm:$0x3]
      %v1988 = vld [vmem:[#allocation2 + $0x88] sm:$0x3]
      %v1989 = vld [vmem:[#allocation2 + $0xa4] sm:$0x3]
      %v1990 = vld [vmem:[#allocation2 + $0xc0] sm:$0x3]
      %v1991 = vld [vmem:[#allocation2 + $0xdc] sm:$0x3]
      %v1992 = vld [vmem:[#allocation2 + $0xf8] sm:$0x3]
      %v1993 = vld [vmem:[#allocation2 + $0x114] sm:$0x3]
      %v1994 = vld [vmem:[#allocation2 + $0x130] sm:$0x3]
      %v1995 = vld [vmem:[#allocation2 + $0x14c] sm:$0x3]
      %v1996 = vld [vmem:[#allocation2 + $0x168] sm:$0x3]
      %v1997 = vld [vmem:[#allocation2 + $0x184] sm:$0x3]
      %v1998 = vld [vmem:[#allocation2 + $0x1a0] sm:$0x3]
      %v1999 = vld [vmem:[#allocation2 + $0x1bc] sm:$0x3]
      %v2000 = vld [vmem:[#allocation2 + $0x1d8] sm:$0x3]
      %v2001 = vld [vmem:[#allocation2 + $0x1f4] sm:$0x3]
      %v2002 = vld [vmem:[#allocation2 + $0x210] sm:$0x3]
      %v2003 = vld [vmem:[#allocation2 + $0x22c] sm:$0x3]
      %v2004 = vld [vmem:[#allocation2 + $0x248] sm:$0x3]
      %v2005 = vld [vmem:[#allocation2 + $0x264] sm:$0x3]
      %v2006 = vld [vmem:[#allocation2 + $0x280] sm:$0x3]
      %v2007 = vld [vmem:[#allocation2 + $0x29c] sm:$0x3]
      %v2008 = vld [vmem:[#allocation2 + $0x2b8] sm:$0x3]
      %v2009 = vld [vmem:[#allocation2 + $0x2d4] sm:$0x3]
      %v2010 = vld [vmem:[#allocation2 + $0x2f0] sm:$0x3]
      %v2011 = vld [vmem:[#allocation2 + $0x30c] sm:$0x3]
      %v2012 = vld [vmem:[#allocation2 + $0x328] sm:$0x3]
      %v2013 = vld [vmem:[#allocation2 + $0x344] sm:$0x3]
      %v2014 = vld [vmem:[#allocation2 + $0x360] sm:$0x3]
      %v2015 = vld [vmem:[#allocation2 + $0x37c] sm:$0x3]
      %v2016 = vld [vmem:[#allocation2 + $0x398] sm:$0x3]
      %v2017 = vld [vmem:[#allocation2 + $0x3b4] sm:$0x3]
      %v2018 = vld [vmem:[#allocation2 + $0x3d0] sm:$0x3]
      %v2019 = vld [vmem:[#allocation2 + $0x3ec] sm:$0x3]
      %v2020 = vld [vmem:[#allocation2 + $0x408] sm:$0x3]
      %v2021 = vld [vmem:[#allocation2 + $0x424] sm:$0x3]
      %v2022 = vld [vmem:[#allocation2 + $0x440] sm:$0x3]
      %v2023 = vld [vmem:[#allocation2 + $0x45c] sm:$0x3]
      %v2024 = vld [vmem:[#allocation2 + $0x478] sm:$0x3]
      %v2025 = vld [vmem:[#allocation2 + $0x494] sm:$0x3]
      %v2026 = vld [vmem:[#allocation2 + $0x4b0] sm:$0x3]
      %v2027 = vld [vmem:[#allocation2 + $0x4cc] sm:$0x3]
      %v2028 = vld [vmem:[#allocation2 + $0x4e8] sm:$0x3]
      %v2029 = vld [vmem:[#allocation2 + $0x504] sm:$0x3]
      %v2030 = vld [vmem:[#allocation2] sm:$0xc]
      %v2031 = vld [vmem:[#allocation2 + $0x1c] sm:$0xc]
      %v2032 = vld [vmem:[#allocation2 + $0x38] sm:$0xc]
      %v2033 = vld [vmem:[#allocation2 + $0x54] sm:$0xc]
      %v2034 = vld [vmem:[#allocation2 + $0x70] sm:$0xc]
      %v2035 = vld [vmem:[#allocation2 + $0x8c] sm:$0xc]
      %v2036 = vld [vmem:[#allocation2 + $0xa8] sm:$0xc]
      %v2037 = vld [vmem:[#allocation2 + $0xc4] sm:$0xc]
      %v2038 = vld [vmem:[#allocation2 + $0xe0] sm:$0xc]
      %v2039 = vld [vmem:[#allocation2 + $0xfc] sm:$0xc]
      %v2040 = vld [vmem:[#allocation2 + $0x118] sm:$0xc]
      %v2041 = vld [vmem:[#allocation2 + $0x134] sm:$0xc]
      %v2042 = vld [vmem:[#allocation2 + $0x150] sm:$0xc]
      %v2043 = vld [vmem:[#allocation2 + $0x16c] sm:$0xc]
      %v2044 = vld [vmem:[#allocation2 + $0x188] sm:$0xc]
      %v2045 = vld [vmem:[#allocation2 + $0x1a4] sm:$0xc]
      %v2046 = vld [vmem:[#allocation2 + $0x1c0] sm:$0xc]
      %v2047 = vld [vmem:[#allocation2 + $0x1dc] sm:$0xc]
      %v2048 = vld [vmem:[#allocation2 + $0x1f8] sm:$0xc]
      %v2049 = vld [vmem:[#allocation2 + $0x214] sm:$0xc]
      %v2050 = vld [vmem:[#allocation2 + $0x230] sm:$0xc]
      %v2051 = vld [vmem:[#allocation2 + $0x24c] sm:$0xc]
      %v2052 = vld [vmem:[#allocation2 + $0x268] sm:$0xc]
      %v2053 = vld [vmem:[#allocation2 + $0x284] sm:$0xc]
      %v2054 = vld [vmem:[#allocation2 + $0x2a0] sm:$0xc]
      %v2055 = vld [vmem:[#allocation2 + $0x2bc] sm:$0xc]
      %v2056 = vld [vmem:[#allocation2 + $0x2d8] sm:$0xc]
      %v2057 = vld [vmem:[#allocation2 + $0x2f4] sm:$0xc]
      %v2058 = vld [vmem:[#allocation2 + $0x310] sm:$0xc]
      %v2059 = vld [vmem:[#allocation2 + $0x32c] sm:$0xc]
      %v2060 = vld [vmem:[#allocation2 + $0x348] sm:$0xc]
      %v2061 = vld [vmem:[#allocation2 + $0x364] sm:$0xc]
      %v2062 = vld [vmem:[#allocation2 + $0x380] sm:$0xc]
      %v2063 = vld [vmem:[#allocation2 + $0x39c] sm:$0xc]
      %v2064 = vld [vmem:[#allocation2 + $0x3b8] sm:$0xc]
      %v2065 = vld [vmem:[#allocation2 + $0x3d4] sm:$0xc]
      %v2066 = vld [vmem:[#allocation2 + $0x3f0] sm:$0xc]
      %v2067 = vld [vmem:[#allocation2 + $0x40c] sm:$0xc]
      %v2068 = vld [vmem:[#allocation2 + $0x428] sm:$0xc]
      %v2069 = vld [vmem:[#allocation2 + $0x444] sm:$0xc]
      %v2070 = vld [vmem:[#allocation2 + $0x460] sm:$0xc]
      %v2071 = vld [vmem:[#allocation2 + $0x47c] sm:$0xc]
      %v2072 = vld [vmem:[#allocation2 + $0x498] sm:$0xc]
      %v2073 = vld [vmem:[#allocation2 + $0x4b4] sm:$0xc]
      %v2074 = vld [vmem:[#allocation2 + $0x4d0] sm:$0xc]
      %v2075 = vld [vmem:[#allocation2 + $0x4ec] sm:$0xc]
      %v2352 = vunpack.c.l.b16 %v1616
      %v2353 = vunpack.c.l.b16 %v1617
      %v2354 = vunpack.c.l.b16 %v1618
      %v2355 = vunpack.c.l.b16 %v1619
      %v2356 = vunpack.c.l.b16 %v1620
      %v2357 = vunpack.c.l.b16 %v1621
      %v2358 = vunpack.c.l.b16 %v1622
      %v2359 = vunpack.c.l.b16 %v1623
      %v2360 = vunpack.c.l.b16 %v1624
      %v2361 = vunpack.c.l.b16 %v1625
      %v2362 = vunpack.c.l.b16 %v1626
      %v2363 = vunpack.c.l.b16 %v1627
      %v2364 = vunpack.c.l.b16 %v1628
      %v2365 = vunpack.c.l.b16 %v1629
      %v2366 = vunpack.c.l.b16 %v1630
      %v2367 = vunpack.c.l.b16 %v1631
      %v2368 = vunpack.c.l.b16 %v1632
      %v2369 = vunpack.c.l.b16 %v1633
      %v2370 = vunpack.c.l.b16 %v1634
      %v2371 = vunpack.c.l.b16 %v1635
      %v2372 = vunpack.c.l.b16 %v1636
      %v2373 = vunpack.c.l.b16 %v1637
      %v2374 = vunpack.c.l.b16 %v1638
      %v2375 = vunpack.c.l.b16 %v1639
      %v2376 = vunpack.c.l.b16 %v1640
      %v2377 = vunpack.c.l.b16 %v1641
      %v2378 = vunpack.c.l.b16 %v1642
      %v2379 = vunpack.c.l.b16 %v1643
      %v2380 = vunpack.c.l.b16 %v1644
      %v2381 = vunpack.c.l.b16 %v1645
      %v2382 = vunpack.c.l.b16 %v1646
      %v2383 = vunpack.c.l.b16 %v1647
      %v2384 = vunpack.c.l.b16 %v1648
      %v2385 = vunpack.c.l.b16 %v1649
      %v2386 = vunpack.c.l.b16 %v1650
      %v2387 = vunpack.c.l.b16 %v1651
      %v2388 = vunpack.c.l.b16 %v1652
      %v2389 = vunpack.c.l.b16 %v1653
      %v2390 = vunpack.c.l.b16 %v1654
      %v2391 = vunpack.c.l.b16 %v1655
      %v2392 = vunpack.c.l.b16 %v1656
      %v2393 = vunpack.c.l.b16 %v1657
      %v2394 = vunpack.c.l.b16 %v1658
      %v2395 = vunpack.c.l.b16 %v1659
      %v2396 = vunpack.c.l.b16 %v1660
      %v2397 = vunpack.c.l.b16 %v1661
      %v2398 = vunpack.c.l.b16 %v1662
      %v2399 = vunpack.c.l.b16 %v1663
      %v2400 = vunpack.c.l.b16 %v1664
      %v2401 = vunpack.c.l.b16 %v1665
      %v2402 = vunpack.c.l.b16 %v1666
      %v2403 = vunpack.c.l.b16 %v1667
      %v2404 = vunpack.c.l.b16 %v1668
      %v2405 = vunpack.c.l.b16 %v1669
      %v2406 = vunpack.c.l.b16 %v1670
      %v2407 = vunpack.c.l.b16 %v1671
      %v2408 = vunpack.c.l.b16 %v1672
      %v2409 = vunpack.c.l.b16 %v1673
      %v2410 = vunpack.c.l.b16 %v1674
      %v2411 = vunpack.c.l.b16 %v1675
      %v2412 = vunpack.c.l.b16 %v1676
      %v2413 = vunpack.c.l.b16 %v1677
      %v2414 = vunpack.c.l.b16 %v1678
      %v2415 = vunpack.c.l.b16 %v1679
      %v2416 = vunpack.c.l.b16 %v1680
      %v2417 = vunpack.c.l.b16 %v1681
      %v2418 = vunpack.c.l.b16 %v1682
      %v2419 = vunpack.c.l.b16 %v1683
      %v2420 = vunpack.c.l.b16 %v1684
      %v2421 = vunpack.c.l.b16 %v1685
      %v2422 = vunpack.c.l.b16 %v1686
      %v2423 = vunpack.c.l.b16 %v1687
      %v2424 = vunpack.c.l.b16 %v1688
      %v2425 = vunpack.c.l.b16 %v1689
      %v2426 = vunpack.c.l.b16 %v1690
      %v2427 = vunpack.c.l.b16 %v1691
      %v2428 = vunpack.c.l.b16 %v1692
      %v2429 = vunpack.c.l.b16 %v1693
      %v2430 = vunpack.c.l.b16 %v1694
      %v2431 = vunpack.c.l.b16 %v1695
      %v2432 = vunpack.c.l.b16 %v1696
      %v2433 = vunpack.c.l.b16 %v1697
      %v2434 = vunpack.c.l.b16 %v1698
      %v2435 = vunpack.c.l.b16 %v1699
      %v2436 = vunpack.c.l.b16 %v1700
      %v2437 = vunpack.c.l.b16 %v1701
      %v2438 = vunpack.c.l.b16 %v1702
      %v2439 = vunpack.c.l.b16 %v1703
      %v2440 = vunpack.c.l.b16 %v1704
      %v2441 = vunpack.c.l.b16 %v1705
      %v2442 = vunpack.c.l.b16 %v1706
      %v2443 = vunpack.c.l.b16 %v1707
      %v2444 = vunpack.c.l.b16 %v1708
      %v2445 = vunpack.c.l.b16 %v1709
      %v2446 = vunpack.c.l.b16 %v1710
      %v2447 = vunpack.c.l.b16 %v1711
      %v2448 = vunpack.c.l.b16 %v1712
      %v2449 = vunpack.c.l.b16 %v1713
      %v2450 = vunpack.c.l.b16 %v1714
      %v2451 = vunpack.c.l.b16 %v1715
      %v2452 = vunpack.c.l.b16 %v1716
      %v2453 = vunpack.c.l.b16 %v1717
      %v2454 = vunpack.c.l.b16 %v1718
      %v2455 = vunpack.c.l.b16 %v1719
      %v2456 = vunpack.c.l.b16 %v1720
      %v2457 = vunpack.c.l.b16 %v1721
      %v2458 = vunpack.c.l.b16 %v1722
      %v2459 = vunpack.c.l.b16 %v1723
      %v2460 = vunpack.c.l.b16 %v1724
      %v2461 = vunpack.c.l.b16 %v1725
      %v2462 = vunpack.c.l.b16 %v1726
      %v2463 = vunpack.c.l.b16 %v1727
      %v2464 = vunpack.c.l.b16 %v1728
      %v2465 = vunpack.c.l.b16 %v1729
      %v2466 = vunpack.c.l.b16 %v1730
      %v2467 = vunpack.c.l.b16 %v1731
      %v2468 = vunpack.c.l.b16 %v1732
      %v2469 = vunpack.c.l.b16 %v1733
      %v2470 = vunpack.c.l.b16 %v1734
      %v2471 = vunpack.c.l.b16 %v1735
      %v2472 = vunpack.c.l.b16 %v1736
      %v2473 = vunpack.c.l.b16 %v1737
      %v2474 = vunpack.c.l.b16 %v1738
      %v2475 = vunpack.c.l.b16 %v1739
      %v2476 = vunpack.c.l.b16 %v1740
      %v2477 = vunpack.c.l.b16 %v1741
      %v2478 = vunpack.c.l.b16 %v1742
      %v2479 = vunpack.c.l.b16 %v1743
      %v2480 = vunpack.c.l.b16 %v1744
      %v2481 = vunpack.c.l.b16 %v1745
      %v2482 = vunpack.c.l.b16 %v1746
      %v2483 = vunpack.c.l.b16 %v1747
      %v2484 = vunpack.c.l.b16 %v1748
      %v2485 = vunpack.c.l.b16 %v1749
      %v2486 = vunpack.c.l.b16 %v1750
      %v2487 = vunpack.c.l.b16 %v1751
      %v2488 = vunpack.c.l.b16 %v1752
      %v2489 = vunpack.c.l.b16 %v1753
      %v2490 = vunpack.c.l.b16 %v1754
      %v2491 = vunpack.c.l.b16 %v1755
      %v2492 = vunpack.c.l.b16 %v1756
      %v2493 = vunpack.c.l.b16 %v1757
      %v2494 = vunpack.c.l.b16 %v1758
      %v2495 = vunpack.c.l.b16 %v1759
      %v2496 = vunpack.c.l.b16 %v1760
      %v2497 = vunpack.c.l.b16 %v1761
      %v2498 = vunpack.c.l.b16 %v1762
      %v2499 = vunpack.c.l.b16 %v1763
      %v2500 = vunpack.c.l.b16 %v1764
      %v2501 = vunpack.c.l.b16 %v1765
      %v2502 = vunpack.c.l.b16 %v1766
      %v2503 = vunpack.c.l.b16 %v1767
      %v2504 = vunpack.c.l.b16 %v1768
      %v2505 = vunpack.c.l.b16 %v1769
      %v2506 = vunpack.c.l.b16 %v1770
      %v2507 = vunpack.c.l.b16 %v1771
      %v2508 = vunpack.c.l.b16 %v1772
      %v2509 = vunpack.c.l.b16 %v1773
      %v2510 = vunpack.c.l.b16 %v1774
      %v2511 = vunpack.c.l.b16 %v1775
      %v2512 = vunpack.c.l.b16 %v1776
      %v2513 = vunpack.c.l.b16 %v1777
      %v2514 = vunpack.c.l.b16 %v1778
      %v2515 = vunpack.c.l.b16 %v1779
      %v2516 = vunpack.c.l.b16 %v1780
      %v2517 = vunpack.c.l.b16 %v1781
      %v2518 = vunpack.c.l.b16 %v1782
      %v2519 = vunpack.c.l.b16 %v1783
      %v2520 = vunpack.c.l.b16 %v1784
      %v2521 = vunpack.c.l.b16 %v1785
      %v2522 = vunpack.c.l.b16 %v1786
      %v2523 = vunpack.c.l.b16 %v1787
      %v2524 = vunpack.c.l.b16 %v1788
      %v2525 = vunpack.c.l.b16 %v1789
      %v2526 = vunpack.c.l.b16 %v1790
      %v2527 = vunpack.c.l.b16 %v1791
      %v2528 = vunpack.c.l.b16 %v1792
      %v2529 = vunpack.c.l.b16 %v1793
      %v2530 = vunpack.c.l.b16 %v1794
      %v2531 = vunpack.c.l.b16 %v1795
      %v2532 = vunpack.c.l.b16 %v1796
      %v2533 = vunpack.c.l.b16 %v1797
      %v2534 = vunpack.c.l.b16 %v1798
      %v2535 = vunpack.c.l.b16 %v1799
      %v2536 = vunpack.c.l.b16 %v1800
      %v2537 = vunpack.c.l.b16 %v1801
      %v2538 = vunpack.c.l.b16 %v1802
      %v2539 = vunpack.c.l.b16 %v1803
      %v2540 = vunpack.c.l.b16 %v1804
      %v2541 = vunpack.c.l.b16 %v1805
      %v2542 = vunpack.c.l.b16 %v1806
      %v2543 = vunpack.c.l.b16 %v1807
      %v2544 = vunpack.c.l.b16 %v1808
      %v2545 = vunpack.c.l.b16 %v1809
      %v2546 = vunpack.c.l.b16 %v1810
      %v2547 = vunpack.c.l.b16 %v1811
      %v2548 = vunpack.c.l.b16 %v1812
      %v2549 = vunpack.c.l.b16 %v1813
      %v2550 = vunpack.c.l.b16 %v1814
      %v2551 = vunpack.c.l.b16 %v1815
      %v2552 = vunpack.c.l.b16 %v1816
      %v2553 = vunpack.c.l.b16 %v1817
      %v2554 = vunpack.c.l.b16 %v1818
      %v2555 = vunpack.c.l.b16 %v1819
      %v2556 = vunpack.c.l.b16 %v1820
      %v2557 = vunpack.c.l.b16 %v1821
      %v2558 = vunpack.c.l.b16 %v1822
      %v2559 = vunpack.c.l.b16 %v1823
      %v2560 = vunpack.c.l.b16 %v1824
      %v2561 = vunpack.c.l.b16 %v1825
      %v2562 = vunpack.c.l.b16 %v1826
      %v2563 = vunpack.c.l.b16 %v1827
      %v2564 = vunpack.c.l.b16 %v1828
      %v2565 = vunpack.c.l.b16 %v1829
      %v2566 = vunpack.c.l.b16 %v1830
      %v2567 = vunpack.c.l.b16 %v1831
      %v2568 = vunpack.c.l.b16 %v1832
      %v2569 = vunpack.c.l.b16 %v1833
      %v2570 = vunpack.c.l.b16 %v1834
      %v2571 = vunpack.c.l.b16 %v1835
      %v2572 = vunpack.c.l.b16 %v1836
      %v2573 = vunpack.c.l.b16 %v1837
      %v2574 = vunpack.c.l.b16 %v1838
      %v2575 = vunpack.c.l.b16 %v1839
      %v2576 = vunpack.c.l.b16 %v1840
      %v2577 = vunpack.c.l.b16 %v1841
      %v2578 = vunpack.c.l.b16 %v1842
      %v2579 = vunpack.c.l.b16 %v1843
      %v2580 = vunpack.c.l.b16 %v1844
      %v2581 = vunpack.c.l.b16 %v1845
      %v2582 = vunpack.c.l.b16 %v1846
      %v2583 = vunpack.c.l.b16 %v1847
      %v2584 = vunpack.c.l.b16 %v1848
      %v2585 = vunpack.c.l.b16 %v1849
      %v2586 = vunpack.c.l.b16 %v1850
      %v2587 = vunpack.c.l.b16 %v1851
      %v2588 = vunpack.c.l.b16 %v1852
      %v2589 = vunpack.c.l.b16 %v1853
      %v2590 = vunpack.c.l.b16 %v1854
      %v2591 = vunpack.c.l.b16 %v1855
      %v2592 = vunpack.c.l.b16 %v1856
      %v2593 = vunpack.c.l.b16 %v1857
      %v2594 = vunpack.c.l.b16 %v1858
      %v2595 = vunpack.c.l.b16 %v1859
      %v2596 = vunpack.c.l.b16 %v1860
      %v2597 = vunpack.c.l.b16 %v1861
      %v2598 = vunpack.c.l.b16 %v1862
      %v2599 = vunpack.c.l.b16 %v1863
      %v2600 = vunpack.c.l.b16 %v1864
      %v2601 = vunpack.c.l.b16 %v1865
      %v2602 = vunpack.c.l.b16 %v1866
      %v2603 = vunpack.c.l.b16 %v1867
      %v2604 = vunpack.c.l.b16 %v1868
      %v2605 = vunpack.c.l.b16 %v1869
      %v2606 = vunpack.c.l.b16 %v1870
      %v2607 = vunpack.c.l.b16 %v1871
      %v2608 = vunpack.c.l.b16 %v1872
      %v2609 = vunpack.c.l.b16 %v1873
      %v2610 = vunpack.c.l.b16 %v1874
      %v2611 = vunpack.c.l.b16 %v1875
      %v2612 = vunpack.c.l.b16 %v1876
      %v2613 = vunpack.c.l.b16 %v1877
      %v2614 = vunpack.c.l.b16 %v1878
      %v2615 = vunpack.c.l.b16 %v1879
      %v2616 = vunpack.c.l.b16 %v1880
      %v2617 = vunpack.c.l.b16 %v1881
      %v2618 = vunpack.c.l.b16 %v1882
      %v2619 = vunpack.c.l.b16 %v1883
      %v2620 = vunpack.c.l.b16 %v1884
      %v2621 = vunpack.c.l.b16 %v1885
      %v2622 = vunpack.c.l.b16 %v1886
      %v2623 = vunpack.c.l.b16 %v1887
      %v2624 = vunpack.c.l.b16 %v1888
      %v2625 = vunpack.c.l.b16 %v1889
      %v2626 = vunpack.c.l.b16 %v1890
      %v2627 = vunpack.c.l.b16 %v1891
      %v2628 = vpack.c.b16 %v2353, %v2352
      %v2629 = vpack.c.b16 %v2355, %v2354
      %v2630 = vpack.c.b16 %v2357, %v2356
      %v2631 = vpack.c.b16 %v2359, %v2358
      %v2632 = vpack.c.b16 %v2361, %v2360
      %v2633 = vpack.c.b16 %v2363, %v2362
      %v2634 = vpack.c.b16 %v2365, %v2364
      %v2635 = vpack.c.b16 %v2367, %v2366
      %v2636 = vpack.c.b16 %v2369, %v2368
      %v2637 = vpack.c.b16 %v2371, %v2370
      %v2638 = vpack.c.b16 %v2373, %v2372
      %v2639 = vpack.c.b16 %v2375, %v2374
      %v2640 = vpack.c.b16 %v2377, %v2376
      %v2641 = vpack.c.b16 %v2379, %v2378
      %v2642 = vpack.c.b16 %v2381, %v2380
      %v2643 = vpack.c.b16 %v2383, %v2382
      %v2644 = vpack.c.b16 %v2385, %v2384
      %v2645 = vpack.c.b16 %v2387, %v2386
      %v2646 = vpack.c.b16 %v2389, %v2388
      %v2647 = vpack.c.b16 %v2391, %v2390
      %v2648 = vpack.c.b16 %v2393, %v2392
      %v2649 = vpack.c.b16 %v2395, %v2394
      %v2650 = vpack.c.b16 %v2397, %v2396
      %v2651 = vpack.c.b16 %v2399, %v2398
      %v2652 = vpack.c.b16 %v2401, %v2400
      %v2653 = vpack.c.b16 %v2403, %v2402
      %v2654 = vpack.c.b16 %v2405, %v2404
      %v2655 = vpack.c.b16 %v2407, %v2406
      %v2656 = vpack.c.b16 %v2409, %v2408
      %v2657 = vpack.c.b16 %v2411, %v2410
      %v2658 = vpack.c.b16 %v2413, %v2412
      %v2659 = vpack.c.b16 %v2415, %v2414
      %v2660 = vpack.c.b16 %v2417, %v2416
      %v2661 = vpack.c.b16 %v2419, %v2418
      %v2662 = vpack.c.b16 %v2421, %v2420
      %v2663 = vpack.c.b16 %v2423, %v2422
      %v2664 = vpack.c.b16 %v2425, %v2424
      %v2665 = vpack.c.b16 %v2427, %v2426
      %v2666 = vpack.c.b16 %v2429, %v2428
      %v2667 = vpack.c.b16 %v2431, %v2430
      %v2668 = vpack.c.b16 %v2433, %v2432
      %v2669 = vpack.c.b16 %v2435, %v2434
      %v2670 = vpack.c.b16 %v2437, %v2436
      %v2671 = vpack.c.b16 %v2439, %v2438
      %v2672 = vpack.c.b16 %v2441, %v2440
      %v2673 = vpack.c.b16 %v2443, %v2442
      %v2674 = vpack.c.b16 %v2445, %v2444
      %v2675 = vpack.c.b16 %v2447, %v2446
      %v2676 = vpack.c.b16 %v2449, %v2448
      %v2677 = vpack.c.b16 %v2451, %v2450
      %v2678 = vpack.c.b16 %v2453, %v2452
      %v2679 = vpack.c.b16 %v2455, %v2454
      %v2680 = vpack.c.b16 %v2457, %v2456
      %v2681 = vpack.c.b16 %v2459, %v2458
      %v2682 = vpack.c.b16 %v2461, %v2460
      %v2683 = vpack.c.b16 %v2463, %v2462
      %v2684 = vpack.c.b16 %v2465, %v2464
      %v2685 = vpack.c.b16 %v2467, %v2466
      %v2686 = vpack.c.b16 %v2469, %v2468
      %v2687 = vpack.c.b16 %v2471, %v2470
      %v2688 = vpack.c.b16 %v2473, %v2472
      %v2689 = vpack.c.b16 %v2475, %v2474
      %v2690 = vpack.c.b16 %v2477, %v2476
      %v2691 = vpack.c.b16 %v2479, %v2478
      %v2692 = vpack.c.b16 %v2481, %v2480
      %v2693 = vpack.c.b16 %v2483, %v2482
      %v2694 = vpack.c.b16 %v2485, %v2484
      %v2695 = vpack.c.b16 %v2487, %v2486
      %v2696 = vpack.c.b16 %v2489, %v2488
      %v2697 = vpack.c.b16 %v2491, %v2490
      %v2698 = vpack.c.b16 %v2493, %v2492
      %v2699 = vpack.c.b16 %v2495, %v2494
      %v2700 = vpack.c.b16 %v2497, %v2496
      %v2701 = vpack.c.b16 %v2499, %v2498
      %v2702 = vpack.c.b16 %v2501, %v2500
      %v2703 = vpack.c.b16 %v2503, %v2502
      %v2704 = vpack.c.b16 %v2505, %v2504
      %v2705 = vpack.c.b16 %v2507, %v2506
      %v2706 = vpack.c.b16 %v2509, %v2508
      %v2707 = vpack.c.b16 %v2511, %v2510
      %v2708 = vpack.c.b16 %v2513, %v2512
      %v2709 = vpack.c.b16 %v2515, %v2514
      %v2710 = vpack.c.b16 %v2517, %v2516
      %v2711 = vpack.c.b16 %v2519, %v2518
      %v2712 = vpack.c.b16 %v2521, %v2520
      %v2713 = vpack.c.b16 %v2523, %v2522
      %v2714 = vpack.c.b16 %v2525, %v2524
      %v2715 = vpack.c.b16 %v2527, %v2526
      %v2716 = vpack.c.b16 %v2529, %v2528
      %v2717 = vpack.c.b16 %v2531, %v2530
      %v2718 = vpack.c.b16 %v2533, %v2532
      %v2719 = vpack.c.b16 %v2535, %v2534
      %v2720 = vpack.c.b16 %v2537, %v2536
      %v2721 = vpack.c.b16 %v2539, %v2538
      %v2722 = vpack.c.b16 %v2541, %v2540
      %v2723 = vpack.c.b16 %v2543, %v2542
      %v2724 = vpack.c.b16 %v2545, %v2544
      %v2725 = vpack.c.b16 %v2547, %v2546
      %v2726 = vpack.c.b16 %v2549, %v2548
      %v2727 = vpack.c.b16 %v2551, %v2550
      %v2728 = vpack.c.b16 %v2553, %v2552
      %v2729 = vpack.c.b16 %v2555, %v2554
      %v2730 = vpack.c.b16 %v2557, %v2556
      %v2731 = vpack.c.b16 %v2559, %v2558
      %v2732 = vpack.c.b16 %v2561, %v2560
      %v2733 = vpack.c.b16 %v2563, %v2562
      %v2734 = vpack.c.b16 %v2565, %v2564
      %v2735 = vpack.c.b16 %v2567, %v2566
      %v2736 = vpack.c.b16 %v2569, %v2568
      %v2737 = vpack.c.b16 %v2571, %v2570
      %v2738 = vpack.c.b16 %v2573, %v2572
      %v2739 = vpack.c.b16 %v2575, %v2574
      %v2740 = vpack.c.b16 %v2577, %v2576
      %v2741 = vpack.c.b16 %v2579, %v2578
      %v2742 = vpack.c.b16 %v2581, %v2580
      %v2743 = vpack.c.b16 %v2583, %v2582
      %v2744 = vpack.c.b16 %v2585, %v2584
      %v2745 = vpack.c.b16 %v2587, %v2586
      %v2746 = vpack.c.b16 %v2589, %v2588
      %v2747 = vpack.c.b16 %v2591, %v2590
      %v2748 = vpack.c.b16 %v2593, %v2592
      %v2749 = vpack.c.b16 %v2595, %v2594
      %v2750 = vpack.c.b16 %v2597, %v2596
      %v2751 = vpack.c.b16 %v2599, %v2598
      %v2752 = vpack.c.b16 %v2601, %v2600
      %v2753 = vpack.c.b16 %v2603, %v2602
      %v2754 = vpack.c.b16 %v2605, %v2604
      %v2755 = vpack.c.b16 %v2607, %v2606
      %v2756 = vpack.c.b16 %v2609, %v2608
      %v2757 = vpack.c.b16 %v2611, %v2610
      %v2758 = vpack.c.b16 %v2613, %v2612
      %v2759 = vpack.c.b16 %v2615, %v2614
      %v2760 = vpack.c.b16 %v2617, %v2616
      %v2761 = vpack.c.b16 %v2619, %v2618
      %v2762 = vpack.c.b16 %v2621, %v2620
      %v2763 = vpack.c.b16 %v2623, %v2622
      %v2764 = vpack.c.b16 %v2625, %v2624
      %v2765 = vpack.c.b16 %v2627, %v2626
      %v2812 = vunpack.c.l.b16 %v1892
      %v2813 = vunpack.c.l.b16 %v1893
      %v2814 = vunpack.c.l.b16 %v1894
      %v2815 = vunpack.c.l.b16 %v1895
      %v2816 = vunpack.c.l.b16 %v1896
      %v2817 = vunpack.c.l.b16 %v1897
      %v2818 = vunpack.c.l.b16 %v1898
      %v2819 = vunpack.c.l.b16 %v1899
      %v2820 = vunpack.c.l.b16 %v1900
      %v2821 = vunpack.c.l.b16 %v1901
      %v2822 = vunpack.c.l.b16 %v1902
      %v2823 = vunpack.c.l.b16 %v1903
      %v2824 = vunpack.c.l.b16 %v1904
      %v2825 = vunpack.c.l.b16 %v1905
      %v2826 = vunpack.c.l.b16 %v1906
      %v2827 = vunpack.c.l.b16 %v1907
      %v2828 = vunpack.c.l.b16 %v1908
      %v2829 = vunpack.c.l.b16 %v1909
      %v2830 = vunpack.c.l.b16 %v1910
      %v2831 = vunpack.c.l.b16 %v1911
      %v2832 = vunpack.c.l.b16 %v1912
      %v2833 = vunpack.c.l.b16 %v1913
      %v2834 = vunpack.c.l.b16 %v1914
      %v2835 = vunpack.c.l.b16 %v1915
      %v2836 = vunpack.c.l.b16 %v1916
      %v2837 = vunpack.c.l.b16 %v1917
      %v2838 = vunpack.c.l.b16 %v1918
      %v2839 = vunpack.c.l.b16 %v1919
      %v2840 = vunpack.c.l.b16 %v1920
      %v2841 = vunpack.c.l.b16 %v1921
      %v2842 = vunpack.c.l.b16 %v1922
      %v2843 = vunpack.c.l.b16 %v1923
      %v2844 = vunpack.c.l.b16 %v1924
      %v2845 = vunpack.c.l.b16 %v1925
      %v2846 = vunpack.c.l.b16 %v1926
      %v2847 = vunpack.c.l.b16 %v1927
      %v2848 = vunpack.c.l.b16 %v1928
      %v2849 = vunpack.c.l.b16 %v1929
      %v2850 = vunpack.c.l.b16 %v1930
      %v2851 = vunpack.c.l.b16 %v1931
      %v2852 = vunpack.c.l.b16 %v1932
      %v2853 = vunpack.c.l.b16 %v1933
      %v2854 = vunpack.c.l.b16 %v1934
      %v2855 = vunpack.c.l.b16 %v1935
      %v2856 = vunpack.c.l.b16 %v1936
      %v2857 = vunpack.c.l.b16 %v1937
      %v2858 = vpack.c.b16 %v2812, %v2812
      %v2859 = vpack.c.b16 %v2813, %v2813
      %v2860 = vpack.c.b16 %v2814, %v2814
      %v2861 = vpack.c.b16 %v2815, %v2815
      %v2862 = vpack.c.b16 %v2816, %v2816
      %v2863 = vpack.c.b16 %v2817, %v2817
      %v2864 = vpack.c.b16 %v2818, %v2818
      %v2865 = vpack.c.b16 %v2819, %v2819
      %v2866 = vpack.c.b16 %v2820, %v2820
      %v2867 = vpack.c.b16 %v2821, %v2821
      %v2868 = vpack.c.b16 %v2822, %v2822
      %v2869 = vpack.c.b16 %v2823, %v2823
      %v2870 = vpack.c.b16 %v2824, %v2824
      %v2871 = vpack.c.b16 %v2825, %v2825
      %v2872 = vpack.c.b16 %v2826, %v2826
      %v2873 = vpack.c.b16 %v2827, %v2827
      %v2874 = vpack.c.b16 %v2828, %v2828
      %v2875 = vpack.c.b16 %v2829, %v2829
      %v2876 = vpack.c.b16 %v2830, %v2830
      %v2877 = vpack.c.b16 %v2831, %v2831
      %v2878 = vpack.c.b16 %v2832, %v2832
      %v2879 = vpack.c.b16 %v2833, %v2833
      %v2880 = vpack.c.b16 %v2834, %v2834
      %v2881 = vpack.c.b16 %v2835, %v2835
      %v2882 = vpack.c.b16 %v2836, %v2836
      %v2883 = vpack.c.b16 %v2837, %v2837
      %v2884 = vpack.c.b16 %v2838, %v2838
      %v2885 = vpack.c.b16 %v2839, %v2839
      %v2886 = vpack.c.b16 %v2840, %v2840
      %v2887 = vpack.c.b16 %v2841, %v2841
      %v2888 = vpack.c.b16 %v2842, %v2842
      %v2889 = vpack.c.b16 %v2843, %v2843
      %v2890 = vpack.c.b16 %v2844, %v2844
      %v2891 = vpack.c.b16 %v2845, %v2845
      %v2892 = vpack.c.b16 %v2846, %v2846
      %v2893 = vpack.c.b16 %v2847, %v2847
      %v2894 = vpack.c.b16 %v2848, %v2848
      %v2895 = vpack.c.b16 %v2849, %v2849
      %v2896 = vpack.c.b16 %v2850, %v2850
      %v2897 = vpack.c.b16 %v2851, %v2851
      %v2898 = vpack.c.b16 %v2852, %v2852
      %v2899 = vpack.c.b16 %v2853, %v2853
      %v2900 = vpack.c.b16 %v2854, %v2854
      %v2901 = vpack.c.b16 %v2855, %v2855
      %v2902 = vpack.c.b16 %v2856, %v2856
      %v2903 = vpack.c.b16 %v2857, %v2857
      %vm2904 = vsmask.f32 7424
      %v2906 = vshrl.u32 %v2628, 16
      %v2908 = vshll.u32 %v2628, 16
      %v2910 = vrot.slane %v2908, 1
      %v2911 = vor.u32 %v2906, %v2910
      %v2913 = vshll.u32 %v2629, 16
      %v2915 = vrot.slane %v2913, 1
      %v2916 = vsel %vm2904, %v2911, %v2915
      %v2917 = vshrl.u32 %v2629, 16
      %v2919 = vor.u32 %v2917, %v2915
      %v2921 = vshll.u32 %v2630, 16
      %v2923 = vrot.slane %v2921, 1
      %v2924 = vsel %vm2904, %v2919, %v2923
      %v2925 = vshrl.u32 %v2630, 16
      %v2927 = vor.u32 %v2925, %v2923
      %v2929 = vshll.u32 %v2858, 16
      %v2931 = vrot.slane %v2929, 1
      %v2932 = vsel %vm2904, %v2927, %v2931
      %v2934 = vshrl.u32 %v2631, 16
      %v2936 = vshll.u32 %v2631, 16
      %v2938 = vrot.slane %v2936, 1
      %v2939 = vor.u32 %v2934, %v2938
      %v2941 = vshll.u32 %v2632, 16
      %v2943 = vrot.slane %v2941, 1
      %v2944 = vsel %vm2904, %v2939, %v2943
      %v2945 = vshrl.u32 %v2632, 16
      %v2947 = vor.u32 %v2945, %v2943
      %v2949 = vshll.u32 %v2633, 16
      %v2951 = vrot.slane %v2949, 1
      %v2952 = vsel %vm2904, %v2947, %v2951
      %v2953 = vshrl.u32 %v2633, 16
      %v2955 = vor.u32 %v2953, %v2951
      %v2957 = vshll.u32 %v2859, 16
      %v2959 = vrot.slane %v2957, 1
      %v2960 = vsel %vm2904, %v2955, %v2959
      %v2962 = vshrl.u32 %v2634, 16
      %v2964 = vshll.u32 %v2634, 16
      %v2966 = vrot.slane %v2964, 1
      %v2967 = vor.u32 %v2962, %v2966
      %v2969 = vshll.u32 %v2635, 16
      %v2971 = vrot.slane %v2969, 1
      %v2972 = vsel %vm2904, %v2967, %v2971
      %v2973 = vshrl.u32 %v2635, 16
      %v2975 = vor.u32 %v2973, %v2971
      %v2977 = vshll.u32 %v2636, 16
      %v2979 = vrot.slane %v2977, 1
      %v2980 = vsel %vm2904, %v2975, %v2979
      %v2981 = vshrl.u32 %v2636, 16
      %v2983 = vor.u32 %v2981, %v2979
      %v2985 = vshll.u32 %v2860, 16
      %v2987 = vrot.slane %v2985, 1
      %v2988 = vsel %vm2904, %v2983, %v2987
      %v2990 = vshrl.u32 %v2637, 16
      %v2992 = vshll.u32 %v2637, 16
      %v2994 = vrot.slane %v2992, 1
      %v2995 = vor.u32 %v2990, %v2994
      %v2997 = vshll.u32 %v2638, 16
      %v2999 = vrot.slane %v2997, 1
      %v3000 = vsel %vm2904, %v2995, %v2999
      %v3001 = vshrl.u32 %v2638, 16
      %v3003 = vor.u32 %v3001, %v2999
      %v3005 = vshll.u32 %v2639, 16
      %v3007 = vrot.slane %v3005, 1
      %v3008 = vsel %vm2904, %v3003, %v3007
      %v3009 = vshrl.u32 %v2639, 16
      %v3011 = vor.u32 %v3009, %v3007
      %v3013 = vshll.u32 %v2861, 16
      %v3015 = vrot.slane %v3013, 1
      %v3016 = vsel %vm2904, %v3011, %v3015
      %v3018 = vshrl.u32 %v2640, 16
      %v3020 = vshll.u32 %v2640, 16
      %v3022 = vrot.slane %v3020, 1
      %v3023 = vor.u32 %v3018, %v3022
      %v3025 = vshll.u32 %v2641, 16
      %v3027 = vrot.slane %v3025, 1
      %v3028 = vsel %vm2904, %v3023, %v3027
      %v3029 = vshrl.u32 %v2641, 16
      %v3031 = vor.u32 %v3029, %v3027
      %v3033 = vshll.u32 %v2642, 16
      %v3035 = vrot.slane %v3033, 1
      %v3036 = vsel %vm2904, %v3031, %v3035
      %v3037 = vshrl.u32 %v2642, 16
      %v3039 = vor.u32 %v3037, %v3035
      %v3041 = vshll.u32 %v2862, 16
      %v3043 = vrot.slane %v3041, 1
      %v3044 = vsel %vm2904, %v3039, %v3043
      %v3046 = vshrl.u32 %v2643, 16
      %v3048 = vshll.u32 %v2643, 16
      %v3050 = vrot.slane %v3048, 1
      %v3051 = vor.u32 %v3046, %v3050
      %v3053 = vshll.u32 %v2644, 16
      %v3055 = vrot.slane %v3053, 1
      %v3056 = vsel %vm2904, %v3051, %v3055
      %v3057 = vshrl.u32 %v2644, 16
      %v3059 = vor.u32 %v3057, %v3055
      %v3061 = vshll.u32 %v2645, 16
      %v3063 = vrot.slane %v3061, 1
      %v3064 = vsel %vm2904, %v3059, %v3063
      %v3065 = vshrl.u32 %v2645, 16
      %v3067 = vor.u32 %v3065, %v3063
      %v3069 = vshll.u32 %v2863, 16
      %v3071 = vrot.slane %v3069, 1
      %v3072 = vsel %vm2904, %v3067, %v3071
      %v3074 = vshrl.u32 %v2646, 16
      %v3076 = vshll.u32 %v2646, 16
      %v3078 = vrot.slane %v3076, 1
      %v3079 = vor.u32 %v3074, %v3078
      %v3081 = vshll.u32 %v2647, 16
      %v3083 = vrot.slane %v3081, 1
      %v3084 = vsel %vm2904, %v3079, %v3083
      %v3085 = vshrl.u32 %v2647, 16
      %v3087 = vor.u32 %v3085, %v3083
      %v3089 = vshll.u32 %v2648, 16
      %v3091 = vrot.slane %v3089, 1
      %v3092 = vsel %vm2904, %v3087, %v3091
      %v3093 = vshrl.u32 %v2648, 16
      %v3095 = vor.u32 %v3093, %v3091
      %v3097 = vshll.u32 %v2864, 16
      %v3099 = vrot.slane %v3097, 1
      %v3100 = vsel %vm2904, %v3095, %v3099
      %v3102 = vshrl.u32 %v2649, 16
      %v3104 = vshll.u32 %v2649, 16
      %v3106 = vrot.slane %v3104, 1
      %v3107 = vor.u32 %v3102, %v3106
      %v3109 = vshll.u32 %v2650, 16
      %v3111 = vrot.slane %v3109, 1
      %v3112 = vsel %vm2904, %v3107, %v3111
      %v3113 = vshrl.u32 %v2650, 16
      %v3115 = vor.u32 %v3113, %v3111
      %v3117 = vshll.u32 %v2651, 16
      %v3119 = vrot.slane %v3117, 1
      %v3120 = vsel %vm2904, %v3115, %v3119
      %v3121 = vshrl.u32 %v2651, 16
      %v3123 = vor.u32 %v3121, %v3119
      %v3125 = vshll.u32 %v2865, 16
      %v3127 = vrot.slane %v3125, 1
      %v3128 = vsel %vm2904, %v3123, %v3127
      %v3130 = vshrl.u32 %v2652, 16
      %v3132 = vshll.u32 %v2652, 16
      %v3134 = vrot.slane %v3132, 1
      %v3135 = vor.u32 %v3130, %v3134
      %v3137 = vshll.u32 %v2653, 16
      %v3139 = vrot.slane %v3137, 1
      %v3140 = vsel %vm2904, %v3135, %v3139
      %v3141 = vshrl.u32 %v2653, 16
      %v3143 = vor.u32 %v3141, %v3139
      %v3145 = vshll.u32 %v2654, 16
      %v3147 = vrot.slane %v3145, 1
      %v3148 = vsel %vm2904, %v3143, %v3147
      %v3149 = vshrl.u32 %v2654, 16
      %v3151 = vor.u32 %v3149, %v3147
      %v3153 = vshll.u32 %v2866, 16
      %v3155 = vrot.slane %v3153, 1
      %v3156 = vsel %vm2904, %v3151, %v3155
      %v3158 = vshrl.u32 %v2655, 16
      %v3160 = vshll.u32 %v2655, 16
      %v3162 = vrot.slane %v3160, 1
      %v3163 = vor.u32 %v3158, %v3162
      %v3165 = vshll.u32 %v2656, 16
      %v3167 = vrot.slane %v3165, 1
      %v3168 = vsel %vm2904, %v3163, %v3167
      %v3169 = vshrl.u32 %v2656, 16
      %v3171 = vor.u32 %v3169, %v3167
      %v3173 = vshll.u32 %v2657, 16
      %v3175 = vrot.slane %v3173, 1
      %v3176 = vsel %vm2904, %v3171, %v3175
      %v3177 = vshrl.u32 %v2657, 16
      %v3179 = vor.u32 %v3177, %v3175
      %v3181 = vshll.u32 %v2867, 16
      %v3183 = vrot.slane %v3181, 1
      %v3184 = vsel %vm2904, %v3179, %v3183
      %v3186 = vshrl.u32 %v2658, 16
      %v3188 = vshll.u32 %v2658, 16
      %v3190 = vrot.slane %v3188, 1
      %v3191 = vor.u32 %v3186, %v3190
      %v3193 = vshll.u32 %v2659, 16
      %v3195 = vrot.slane %v3193, 1
      %v3196 = vsel %vm2904, %v3191, %v3195
      %v3197 = vshrl.u32 %v2659, 16
      %v3199 = vor.u32 %v3197, %v3195
      %v3201 = vshll.u32 %v2660, 16
      %v3203 = vrot.slane %v3201, 1
      %v3204 = vsel %vm2904, %v3199, %v3203
      %v3205 = vshrl.u32 %v2660, 16
      %v3207 = vor.u32 %v3205, %v3203
      %v3209 = vshll.u32 %v2868, 16
      %v3211 = vrot.slane %v3209, 1
      %v3212 = vsel %vm2904, %v3207, %v3211
      %v3214 = vshrl.u32 %v2661, 16
      %v3216 = vshll.u32 %v2661, 16
      %v3218 = vrot.slane %v3216, 1
      %v3219 = vor.u32 %v3214, %v3218
      %v3221 = vshll.u32 %v2662, 16
      %v3223 = vrot.slane %v3221, 1
      %v3224 = vsel %vm2904, %v3219, %v3223
      %v3225 = vshrl.u32 %v2662, 16
      %v3227 = vor.u32 %v3225, %v3223
      %v3229 = vshll.u32 %v2663, 16
      %v3231 = vrot.slane %v3229, 1
      %v3232 = vsel %vm2904, %v3227, %v3231
      %v3233 = vshrl.u32 %v2663, 16
      %v3235 = vor.u32 %v3233, %v3231
      %v3237 = vshll.u32 %v2869, 16
      %v3239 = vrot.slane %v3237, 1
      %v3240 = vsel %vm2904, %v3235, %v3239
      %v3242 = vshrl.u32 %v2664, 16
      %v3244 = vshll.u32 %v2664, 16
      %v3246 = vrot.slane %v3244, 1
      %v3247 = vor.u32 %v3242, %v3246
      %v3249 = vshll.u32 %v2665, 16
      %v3251 = vrot.slane %v3249, 1
      %v3252 = vsel %vm2904, %v3247, %v3251
      %v3253 = vshrl.u32 %v2665, 16
      %v3255 = vor.u32 %v3253, %v3251
      %v3257 = vshll.u32 %v2666, 16
      %v3259 = vrot.slane %v3257, 1
      %v3260 = vsel %vm2904, %v3255, %v3259
      %v3261 = vshrl.u32 %v2666, 16
      %v3263 = vor.u32 %v3261, %v3259
      %v3265 = vshll.u32 %v2870, 16
      %v3267 = vrot.slane %v3265, 1
      %v3268 = vsel %vm2904, %v3263, %v3267
      %v3270 = vshrl.u32 %v2667, 16
      %v3272 = vshll.u32 %v2667, 16
      %v3274 = vrot.slane %v3272, 1
      %v3275 = vor.u32 %v3270, %v3274
      %v3277 = vshll.u32 %v2668, 16
      %v3279 = vrot.slane %v3277, 1
      %v3280 = vsel %vm2904, %v3275, %v3279
      %v3281 = vshrl.u32 %v2668, 16
      %v3283 = vor.u32 %v3281, %v3279
      %v3285 = vshll.u32 %v2669, 16
      %v3287 = vrot.slane %v3285, 1
      %v3288 = vsel %vm2904, %v3283, %v3287
      %v3289 = vshrl.u32 %v2669, 16
      %v3291 = vor.u32 %v3289, %v3287
      %v3293 = vshll.u32 %v2871, 16
      %v3295 = vrot.slane %v3293, 1
      %v3296 = vsel %vm2904, %v3291, %v3295
      %v3298 = vshrl.u32 %v2670, 16
      %v3300 = vshll.u32 %v2670, 16
      %v3302 = vrot.slane %v3300, 1
      %v3303 = vor.u32 %v3298, %v3302
      %v3305 = vshll.u32 %v2671, 16
      %v3307 = vrot.slane %v3305, 1
      %v3308 = vsel %vm2904, %v3303, %v3307
      %v3309 = vshrl.u32 %v2671, 16
      %v3311 = vor.u32 %v3309, %v3307
      %v3313 = vshll.u32 %v2672, 16
      %v3315 = vrot.slane %v3313, 1
      %v3316 = vsel %vm2904, %v3311, %v3315
      %v3317 = vshrl.u32 %v2672, 16
      %v3319 = vor.u32 %v3317, %v3315
      %v3321 = vshll.u32 %v2872, 16
      %v3323 = vrot.slane %v3321, 1
      %v3324 = vsel %vm2904, %v3319, %v3323
      %v3326 = vshrl.u32 %v2673, 16
      %v3328 = vshll.u32 %v2673, 16
      %v3330 = vrot.slane %v3328, 1
      %v3331 = vor.u32 %v3326, %v3330
      %v3333 = vshll.u32 %v2674, 16
      %v3335 = vrot.slane %v3333, 1
      %v3336 = vsel %vm2904, %v3331, %v3335
      %v3337 = vshrl.u32 %v2674, 16
      %v3339 = vor.u32 %v3337, %v3335
      %v3341 = vshll.u32 %v2675, 16
      %v3343 = vrot.slane %v3341, 1
      %v3344 = vsel %vm2904, %v3339, %v3343
      %v3345 = vshrl.u32 %v2675, 16
      %v3347 = vor.u32 %v3345, %v3343
      %v3349 = vshll.u32 %v2873, 16
      %v3351 = vrot.slane %v3349, 1
      %v3352 = vsel %vm2904, %v3347, %v3351
      %v3354 = vshrl.u32 %v2676, 16
      %v3356 = vshll.u32 %v2676, 16
      %v3358 = vrot.slane %v3356, 1
      %v3359 = vor.u32 %v3354, %v3358
      %v3361 = vshll.u32 %v2677, 16
      %v3363 = vrot.slane %v3361, 1
      %v3364 = vsel %vm2904, %v3359, %v3363
      %v3365 = vshrl.u32 %v2677, 16
      %v3367 = vor.u32 %v3365, %v3363
      %v3369 = vshll.u32 %v2678, 16
      %v3371 = vrot.slane %v3369, 1
      %v3372 = vsel %vm2904, %v3367, %v3371
      %v3373 = vshrl.u32 %v2678, 16
      %v3375 = vor.u32 %v3373, %v3371
      %v3377 = vshll.u32 %v2874, 16
      %v3379 = vrot.slane %v3377, 1
      %v3380 = vsel %vm2904, %v3375, %v3379
      %v3382 = vshrl.u32 %v2679, 16
      %v3384 = vshll.u32 %v2679, 16
      %v3386 = vrot.slane %v3384, 1
      %v3387 = vor.u32 %v3382, %v3386
      %v3389 = vshll.u32 %v2680, 16
      %v3391 = vrot.slane %v3389, 1
      %v3392 = vsel %vm2904, %v3387, %v3391
      %v3393 = vshrl.u32 %v2680, 16
      %v3395 = vor.u32 %v3393, %v3391
      %v3397 = vshll.u32 %v2681, 16
      %v3399 = vrot.slane %v3397, 1
      %v3400 = vsel %vm2904, %v3395, %v3399
      %v3401 = vshrl.u32 %v2681, 16
      %v3403 = vor.u32 %v3401, %v3399
      %v3405 = vshll.u32 %v2875, 16
      %v3407 = vrot.slane %v3405, 1
      %v3408 = vsel %vm2904, %v3403, %v3407
      %v3410 = vshrl.u32 %v2682, 16
      %v3412 = vshll.u32 %v2682, 16
      %v3414 = vrot.slane %v3412, 1
      %v3415 = vor.u32 %v3410, %v3414
      %v3417 = vshll.u32 %v2683, 16
      %v3419 = vrot.slane %v3417, 1
      %v3420 = vsel %vm2904, %v3415, %v3419
      %v3421 = vshrl.u32 %v2683, 16
      %v3423 = vor.u32 %v3421, %v3419
      %v3425 = vshll.u32 %v2684, 16
      %v3427 = vrot.slane %v3425, 1
      %v3428 = vsel %vm2904, %v3423, %v3427
      %v3429 = vshrl.u32 %v2684, 16
      %v3431 = vor.u32 %v3429, %v3427
      %v3433 = vshll.u32 %v2876, 16
      %v3435 = vrot.slane %v3433, 1
      %v3436 = vsel %vm2904, %v3431, %v3435
      %v3438 = vshrl.u32 %v2685, 16
      %v3440 = vshll.u32 %v2685, 16
      %v3442 = vrot.slane %v3440, 1
      %v3443 = vor.u32 %v3438, %v3442
      %v3445 = vshll.u32 %v2686, 16
      %v3447 = vrot.slane %v3445, 1
      %v3448 = vsel %vm2904, %v3443, %v3447
      %v3449 = vshrl.u32 %v2686, 16
      %v3451 = vor.u32 %v3449, %v3447
      %v3453 = vshll.u32 %v2687, 16
      %v3455 = vrot.slane %v3453, 1
      %v3456 = vsel %vm2904, %v3451, %v3455
      %v3457 = vshrl.u32 %v2687, 16
      %v3459 = vor.u32 %v3457, %v3455
      %v3461 = vshll.u32 %v2877, 16
      %v3463 = vrot.slane %v3461, 1
      %v3464 = vsel %vm2904, %v3459, %v3463
      %v3466 = vshrl.u32 %v2688, 16
      %v3468 = vshll.u32 %v2688, 16
      %v3470 = vrot.slane %v3468, 1
      %v3471 = vor.u32 %v3466, %v3470
      %v3473 = vshll.u32 %v2689, 16
      %v3475 = vrot.slane %v3473, 1
      %v3476 = vsel %vm2904, %v3471, %v3475
      %v3477 = vshrl.u32 %v2689, 16
      %v3479 = vor.u32 %v3477, %v3475
      %v3481 = vshll.u32 %v2690, 16
      %v3483 = vrot.slane %v3481, 1
      %v3484 = vsel %vm2904, %v3479, %v3483
      %v3485 = vshrl.u32 %v2690, 16
      %v3487 = vor.u32 %v3485, %v3483
      %v3489 = vshll.u32 %v2878, 16
      %v3491 = vrot.slane %v3489, 1
      %v3492 = vsel %vm2904, %v3487, %v3491
      %v3494 = vshrl.u32 %v2691, 16
      %v3496 = vshll.u32 %v2691, 16
      %v3498 = vrot.slane %v3496, 1
      %v3499 = vor.u32 %v3494, %v3498
      %v3501 = vshll.u32 %v2692, 16
      %v3503 = vrot.slane %v3501, 1
      %v3504 = vsel %vm2904, %v3499, %v3503
      %v3505 = vshrl.u32 %v2692, 16
      %v3507 = vor.u32 %v3505, %v3503
      %v3509 = vshll.u32 %v2693, 16
      %v3511 = vrot.slane %v3509, 1
      %v3512 = vsel %vm2904, %v3507, %v3511
      %v3513 = vshrl.u32 %v2693, 16
      %v3515 = vor.u32 %v3513, %v3511
      %v3517 = vshll.u32 %v2879, 16
      %v3519 = vrot.slane %v3517, 1
      %v3520 = vsel %vm2904, %v3515, %v3519
      %v3522 = vshrl.u32 %v2694, 16
      %v3524 = vshll.u32 %v2694, 16
      %v3526 = vrot.slane %v3524, 1
      %v3527 = vor.u32 %v3522, %v3526
      %v3529 = vshll.u32 %v2695, 16
      %v3531 = vrot.slane %v3529, 1
      %v3532 = vsel %vm2904, %v3527, %v3531
      %v3533 = vshrl.u32 %v2695, 16
      %v3535 = vor.u32 %v3533, %v3531
      %v3537 = vshll.u32 %v2696, 16
      %v3539 = vrot.slane %v3537, 1
      %v3540 = vsel %vm2904, %v3535, %v3539
      %v3541 = vshrl.u32 %v2696, 16
      %v3543 = vor.u32 %v3541, %v3539
      %v3545 = vshll.u32 %v2880, 16
      %v3547 = vrot.slane %v3545, 1
      %v3548 = vsel %vm2904, %v3543, %v3547
      %v3550 = vshrl.u32 %v2697, 16
      %v3552 = vshll.u32 %v2697, 16
      %v3554 = vrot.slane %v3552, 1
      %v3555 = vor.u32 %v3550, %v3554
      %v3557 = vshll.u32 %v2698, 16
      %v3559 = vrot.slane %v3557, 1
      %v3560 = vsel %vm2904, %v3555, %v3559
      %v3561 = vshrl.u32 %v2698, 16
      %v3563 = vor.u32 %v3561, %v3559
      %v3565 = vshll.u32 %v2699, 16
      %v3567 = vrot.slane %v3565, 1
      %v3568 = vsel %vm2904, %v3563, %v3567
      %v3569 = vshrl.u32 %v2699, 16
      %v3571 = vor.u32 %v3569, %v3567
      %v3573 = vshll.u32 %v2881, 16
      %v3575 = vrot.slane %v3573, 1
      %v3576 = vsel %vm2904, %v3571, %v3575
      %v3578 = vshrl.u32 %v2700, 16
      %v3580 = vshll.u32 %v2700, 16
      %v3582 = vrot.slane %v3580, 1
      %v3583 = vor.u32 %v3578, %v3582
      %v3585 = vshll.u32 %v2701, 16
      %v3587 = vrot.slane %v3585, 1
      %v3588 = vsel %vm2904, %v3583, %v3587
      %v3589 = vshrl.u32 %v2701, 16
      %v3591 = vor.u32 %v3589, %v3587
      %v3593 = vshll.u32 %v2702, 16
      %v3595 = vrot.slane %v3593, 1
      %v3596 = vsel %vm2904, %v3591, %v3595
      %v3597 = vshrl.u32 %v2702, 16
      %v3599 = vor.u32 %v3597, %v3595
      %v3601 = vshll.u32 %v2882, 16
      %v3603 = vrot.slane %v3601, 1
      %v3604 = vsel %vm2904, %v3599, %v3603
      %v3606 = vshrl.u32 %v2703, 16
      %v3608 = vshll.u32 %v2703, 16
      %v3610 = vrot.slane %v3608, 1
      %v3611 = vor.u32 %v3606, %v3610
      %v3613 = vshll.u32 %v2704, 16
      %v3615 = vrot.slane %v3613, 1
      %v3616 = vsel %vm2904, %v3611, %v3615
      %v3617 = vshrl.u32 %v2704, 16
      %v3619 = vor.u32 %v3617, %v3615
      %v3621 = vshll.u32 %v2705, 16
      %v3623 = vrot.slane %v3621, 1
      %v3624 = vsel %vm2904, %v3619, %v3623
      %v3625 = vshrl.u32 %v2705, 16
      %v3627 = vor.u32 %v3625, %v3623
      %v3629 = vshll.u32 %v2883, 16
      %v3631 = vrot.slane %v3629, 1
      %v3632 = vsel %vm2904, %v3627, %v3631
      %v3634 = vshrl.u32 %v2706, 16
      %v3636 = vshll.u32 %v2706, 16
      %v3638 = vrot.slane %v3636, 1
      %v3639 = vor.u32 %v3634, %v3638
      %v3641 = vshll.u32 %v2707, 16
      %v3643 = vrot.slane %v3641, 1
      %v3644 = vsel %vm2904, %v3639, %v3643
      %v3645 = vshrl.u32 %v2707, 16
      %v3647 = vor.u32 %v3645, %v3643
      %v3649 = vshll.u32 %v2708, 16
      %v3651 = vrot.slane %v3649, 1
      %v3652 = vsel %vm2904, %v3647, %v3651
      %v3653 = vshrl.u32 %v2708, 16
      %v3655 = vor.u32 %v3653, %v3651
      %v3657 = vshll.u32 %v2884, 16
      %v3659 = vrot.slane %v3657, 1
      %v3660 = vsel %vm2904, %v3655, %v3659
      %v3662 = vshrl.u32 %v2709, 16
      %v3664 = vshll.u32 %v2709, 16
      %v3666 = vrot.slane %v3664, 1
      %v3667 = vor.u32 %v3662, %v3666
      %v3669 = vshll.u32 %v2710, 16
      %v3671 = vrot.slane %v3669, 1
      %v3672 = vsel %vm2904, %v3667, %v3671
      %v3673 = vshrl.u32 %v2710, 16
      %v3675 = vor.u32 %v3673, %v3671
      %v3677 = vshll.u32 %v2711, 16
      %v3679 = vrot.slane %v3677, 1
      %v3680 = vsel %vm2904, %v3675, %v3679
      %v3681 = vshrl.u32 %v2711, 16
      %v3683 = vor.u32 %v3681, %v3679
      %v3685 = vshll.u32 %v2885, 16
      %v3687 = vrot.slane %v3685, 1
      %v3688 = vsel %vm2904, %v3683, %v3687
      %v3690 = vshrl.u32 %v2712, 16
      %v3692 = vshll.u32 %v2712, 16
      %v3694 = vrot.slane %v3692, 1
      %v3695 = vor.u32 %v3690, %v3694
      %v3697 = vshll.u32 %v2713, 16
      %v3699 = vrot.slane %v3697, 1
      %v3700 = vsel %vm2904, %v3695, %v3699
      %v3701 = vshrl.u32 %v2713, 16
      %v3703 = vor.u32 %v3701, %v3699
      %v3705 = vshll.u32 %v2714, 16
      %v3707 = vrot.slane %v3705, 1
      %v3708 = vsel %vm2904, %v3703, %v3707
      %v3709 = vshrl.u32 %v2714, 16
      %v3711 = vor.u32 %v3709, %v3707
      %v3713 = vshll.u32 %v2886, 16
      %v3715 = vrot.slane %v3713, 1
      %v3716 = vsel %vm2904, %v3711, %v3715
      %v3718 = vshrl.u32 %v2715, 16
      %v3720 = vshll.u32 %v2715, 16
      %v3722 = vrot.slane %v3720, 1
      %v3723 = vor.u32 %v3718, %v3722
      %v3725 = vshll.u32 %v2716, 16
      %v3727 = vrot.slane %v3725, 1
      %v3728 = vsel %vm2904, %v3723, %v3727
      %v3729 = vshrl.u32 %v2716, 16
      %v3731 = vor.u32 %v3729, %v3727
      %v3733 = vshll.u32 %v2717, 16
      %v3735 = vrot.slane %v3733, 1
      %v3736 = vsel %vm2904, %v3731, %v3735
      %v3737 = vshrl.u32 %v2717, 16
      %v3739 = vor.u32 %v3737, %v3735
      %v3741 = vshll.u32 %v2887, 16
      %v3743 = vrot.slane %v3741, 1
      %v3744 = vsel %vm2904, %v3739, %v3743
      %v3746 = vshrl.u32 %v2718, 16
      %v3748 = vshll.u32 %v2718, 16
      %v3750 = vrot.slane %v3748, 1
      %v3751 = vor.u32 %v3746, %v3750
      %v3753 = vshll.u32 %v2719, 16
      %v3755 = vrot.slane %v3753, 1
      %v3756 = vsel %vm2904, %v3751, %v3755
      %v3757 = vshrl.u32 %v2719, 16
      %v3759 = vor.u32 %v3757, %v3755
      %v3761 = vshll.u32 %v2720, 16
      %v3763 = vrot.slane %v3761, 1
      %v3764 = vsel %vm2904, %v3759, %v3763
      %v3765 = vshrl.u32 %v2720, 16
      %v3767 = vor.u32 %v3765, %v3763
      %v3769 = vshll.u32 %v2888, 16
      %v3771 = vrot.slane %v3769, 1
      %v3772 = vsel %vm2904, %v3767, %v3771
      %v3774 = vshrl.u32 %v2721, 16
      %v3776 = vshll.u32 %v2721, 16
      %v3778 = vrot.slane %v3776, 1
      %v3779 = vor.u32 %v3774, %v3778
      %v3781 = vshll.u32 %v2722, 16
      %v3783 = vrot.slane %v3781, 1
      %v3784 = vsel %vm2904, %v3779, %v3783
      %v3785 = vshrl.u32 %v2722, 16
      %v3787 = vor.u32 %v3785, %v3783
      %v3789 = vshll.u32 %v2723, 16
      %v3791 = vrot.slane %v3789, 1
      %v3792 = vsel %vm2904, %v3787, %v3791
      %v3793 = vshrl.u32 %v2723, 16
      %v3795 = vor.u32 %v3793, %v3791
      %v3797 = vshll.u32 %v2889, 16
      %v3799 = vrot.slane %v3797, 1
      %v3800 = vsel %vm2904, %v3795, %v3799
      %v3802 = vshrl.u32 %v2724, 16
      %v3804 = vshll.u32 %v2724, 16
      %v3806 = vrot.slane %v3804, 1
      %v3807 = vor.u32 %v3802, %v3806
      %v3809 = vshll.u32 %v2725, 16
      %v3811 = vrot.slane %v3809, 1
      %v3812 = vsel %vm2904, %v3807, %v3811
      %v3813 = vshrl.u32 %v2725, 16
      %v3815 = vor.u32 %v3813, %v3811
      %v3817 = vshll.u32 %v2726, 16
      %v3819 = vrot.slane %v3817, 1
      %v3820 = vsel %vm2904, %v3815, %v3819
      %v3821 = vshrl.u32 %v2726, 16
      %v3823 = vor.u32 %v3821, %v3819
      %v3825 = vshll.u32 %v2890, 16
      %v3827 = vrot.slane %v3825, 1
      %v3828 = vsel %vm2904, %v3823, %v3827
      %v3830 = vshrl.u32 %v2727, 16
      %v3832 = vshll.u32 %v2727, 16
      %v3834 = vrot.slane %v3832, 1
      %v3835 = vor.u32 %v3830, %v3834
      %v3837 = vshll.u32 %v2728, 16
      %v3839 = vrot.slane %v3837, 1
      %v3840 = vsel %vm2904, %v3835, %v3839
      %v3841 = vshrl.u32 %v2728, 16
      %v3843 = vor.u32 %v3841, %v3839
      %v3845 = vshll.u32 %v2729, 16
      %v3847 = vrot.slane %v3845, 1
      %v3848 = vsel %vm2904, %v3843, %v3847
      %v3849 = vshrl.u32 %v2729, 16
      %v3851 = vor.u32 %v3849, %v3847
      %v3853 = vshll.u32 %v2891, 16
      %v3855 = vrot.slane %v3853, 1
      %v3856 = vsel %vm2904, %v3851, %v3855
      %v3858 = vshrl.u32 %v2730, 16
      %v3860 = vshll.u32 %v2730, 16
      %v3862 = vrot.slane %v3860, 1
      %v3863 = vor.u32 %v3858, %v3862
      %v3865 = vshll.u32 %v2731, 16
      %v3867 = vrot.slane %v3865, 1
      %v3868 = vsel %vm2904, %v3863, %v3867
      %v3869 = vshrl.u32 %v2731, 16
      %v3871 = vor.u32 %v3869, %v3867
      %v3873 = vshll.u32 %v2732, 16
      %v3875 = vrot.slane %v3873, 1
      %v3876 = vsel %vm2904, %v3871, %v3875
      %v3877 = vshrl.u32 %v2732, 16
      %v3879 = vor.u32 %v3877, %v3875
      %v3881 = vshll.u32 %v2892, 16
      %v3883 = vrot.slane %v3881, 1
      %v3884 = vsel %vm2904, %v3879, %v3883
      %v3886 = vshrl.u32 %v2733, 16
      %v3888 = vshll.u32 %v2733, 16
      %v3890 = vrot.slane %v3888, 1
      %v3891 = vor.u32 %v3886, %v3890
      %v3893 = vshll.u32 %v2734, 16
      %v3895 = vrot.slane %v3893, 1
      %v3896 = vsel %vm2904, %v3891, %v3895
      %v3897 = vshrl.u32 %v2734, 16
      %v3899 = vor.u32 %v3897, %v3895
      %v3901 = vshll.u32 %v2735, 16
      %v3903 = vrot.slane %v3901, 1
      %v3904 = vsel %vm2904, %v3899, %v3903
      %v3905 = vshrl.u32 %v2735, 16
      %v3907 = vor.u32 %v3905, %v3903
      %v3909 = vshll.u32 %v2893, 16
      %v3911 = vrot.slane %v3909, 1
      %v3912 = vsel %vm2904, %v3907, %v3911
      %v3914 = vshrl.u32 %v2736, 16
      %v3916 = vshll.u32 %v2736, 16
      %v3918 = vrot.slane %v3916, 1
      %v3919 = vor.u32 %v3914, %v3918
      %v3921 = vshll.u32 %v2737, 16
      %v3923 = vrot.slane %v3921, 1
      %v3924 = vsel %vm2904, %v3919, %v3923
      %v3925 = vshrl.u32 %v2737, 16
      %v3927 = vor.u32 %v3925, %v3923
      %v3929 = vshll.u32 %v2738, 16
      %v3931 = vrot.slane %v3929, 1
      %v3932 = vsel %vm2904, %v3927, %v3931
      %v3933 = vshrl.u32 %v2738, 16
      %v3935 = vor.u32 %v3933, %v3931
      %v3937 = vshll.u32 %v2894, 16
      %v3939 = vrot.slane %v3937, 1
      %v3940 = vsel %vm2904, %v3935, %v3939
      %v3942 = vshrl.u32 %v2739, 16
      %v3944 = vshll.u32 %v2739, 16
      %v3946 = vrot.slane %v3944, 1
      %v3947 = vor.u32 %v3942, %v3946
      %v3949 = vshll.u32 %v2740, 16
      %v3951 = vrot.slane %v3949, 1
      %v3952 = vsel %vm2904, %v3947, %v3951
      %v3953 = vshrl.u32 %v2740, 16
      %v3955 = vor.u32 %v3953, %v3951
      %v3957 = vshll.u32 %v2741, 16
      %v3959 = vrot.slane %v3957, 1
      %v3960 = vsel %vm2904, %v3955, %v3959
      %v3961 = vshrl.u32 %v2741, 16
      %v3963 = vor.u32 %v3961, %v3959
      %v3965 = vshll.u32 %v2895, 16
      %v3967 = vrot.slane %v3965, 1
      %v3968 = vsel %vm2904, %v3963, %v3967
      %v3970 = vshrl.u32 %v2742, 16
      %v3972 = vshll.u32 %v2742, 16
      %v3974 = vrot.slane %v3972, 1
      %v3975 = vor.u32 %v3970, %v3974
      %v3977 = vshll.u32 %v2743, 16
      %v3979 = vrot.slane %v3977, 1
      %v3980 = vsel %vm2904, %v3975, %v3979
      %v3981 = vshrl.u32 %v2743, 16
      %v3983 = vor.u32 %v3981, %v3979
      %v3985 = vshll.u32 %v2744, 16
      %v3987 = vrot.slane %v3985, 1
      %v3988 = vsel %vm2904, %v3983, %v3987
      %v3989 = vshrl.u32 %v2744, 16
      %v3991 = vor.u32 %v3989, %v3987
      %v3993 = vshll.u32 %v2896, 16
      %v3995 = vrot.slane %v3993, 1
      %v3996 = vsel %vm2904, %v3991, %v3995
      %v3998 = vshrl.u32 %v2745, 16
      %v4000 = vshll.u32 %v2745, 16
      %v4002 = vrot.slane %v4000, 1
      %v4003 = vor.u32 %v3998, %v4002
      %v4005 = vshll.u32 %v2746, 16
      %v4007 = vrot.slane %v4005, 1
      %v4008 = vsel %vm2904, %v4003, %v4007
      %v4009 = vshrl.u32 %v2746, 16
      %v4011 = vor.u32 %v4009, %v4007
      %v4013 = vshll.u32 %v2747, 16
      %v4015 = vrot.slane %v4013, 1
      %v4016 = vsel %vm2904, %v4011, %v4015
      %v4017 = vshrl.u32 %v2747, 16
      %v4019 = vor.u32 %v4017, %v4015
      %v4021 = vshll.u32 %v2897, 16
      %v4023 = vrot.slane %v4021, 1
      %v4024 = vsel %vm2904, %v4019, %v4023
      %v4026 = vshrl.u32 %v2748, 16
      %v4028 = vshll.u32 %v2748, 16
      %v4030 = vrot.slane %v4028, 1
      %v4031 = vor.u32 %v4026, %v4030
      %v4033 = vshll.u32 %v2749, 16
      %v4035 = vrot.slane %v4033, 1
      %v4036 = vsel %vm2904, %v4031, %v4035
      %v4037 = vshrl.u32 %v2749, 16
      %v4039 = vor.u32 %v4037, %v4035
      %v4041 = vshll.u32 %v2750, 16
      %v4043 = vrot.slane %v4041, 1
      %v4044 = vsel %vm2904, %v4039, %v4043
      %v4045 = vshrl.u32 %v2750, 16
      %v4047 = vor.u32 %v4045, %v4043
      %v4049 = vshll.u32 %v2898, 16
      %v4051 = vrot.slane %v4049, 1
      %v4052 = vsel %vm2904, %v4047, %v4051
      %v4054 = vshrl.u32 %v2751, 16
      %v4056 = vshll.u32 %v2751, 16
      %v4058 = vrot.slane %v4056, 1
      %v4059 = vor.u32 %v4054, %v4058
      %v4061 = vshll.u32 %v2752, 16
      %v4063 = vrot.slane %v4061, 1
      %v4064 = vsel %vm2904, %v4059, %v4063
      %v4065 = vshrl.u32 %v2752, 16
      %v4067 = vor.u32 %v4065, %v4063
      %v4069 = vshll.u32 %v2753, 16
      %v4071 = vrot.slane %v4069, 1
      %v4072 = vsel %vm2904, %v4067, %v4071
      %v4073 = vshrl.u32 %v2753, 16
      %v4075 = vor.u32 %v4073, %v4071
      %v4077 = vshll.u32 %v2899, 16
      %v4079 = vrot.slane %v4077, 1
      %v4080 = vsel %vm2904, %v4075, %v4079
      %v4082 = vshrl.u32 %v2754, 16
      %v4084 = vshll.u32 %v2754, 16
      %v4086 = vrot.slane %v4084, 1
      %v4087 = vor.u32 %v4082, %v4086
      %v4089 = vshll.u32 %v2755, 16
      %v4091 = vrot.slane %v4089, 1
      %v4092 = vsel %vm2904, %v4087, %v4091
      %v4093 = vshrl.u32 %v2755, 16
      %v4095 = vor.u32 %v4093, %v4091
      %v4097 = vshll.u32 %v2756, 16
      %v4099 = vrot.slane %v4097, 1
      %v4100 = vsel %vm2904, %v4095, %v4099
      %v4101 = vshrl.u32 %v2756, 16
      %v4103 = vor.u32 %v4101, %v4099
      %v4105 = vshll.u32 %v2900, 16
      %v4107 = vrot.slane %v4105, 1
      %v4108 = vsel %vm2904, %v4103, %v4107
      %v4110 = vshrl.u32 %v2757, 16
      %v4112 = vshll.u32 %v2757, 16
      %v4114 = vrot.slane %v4112, 1
      %v4115 = vor.u32 %v4110, %v4114
      %v4117 = vshll.u32 %v2758, 16
      %v4119 = vrot.slane %v4117, 1
      %v4120 = vsel %vm2904, %v4115, %v4119
      %v4121 = vshrl.u32 %v2758, 16
      %v4123 = vor.u32 %v4121, %v4119
      %v4125 = vshll.u32 %v2759, 16
      %v4127 = vrot.slane %v4125, 1
      %v4128 = vsel %vm2904, %v4123, %v4127
      %v4129 = vshrl.u32 %v2759, 16
      %v4131 = vor.u32 %v4129, %v4127
      %v4133 = vshll.u32 %v2901, 16
      %v4135 = vrot.slane %v4133, 1
      %v4136 = vsel %vm2904, %v4131, %v4135
      %v4138 = vshrl.u32 %v2760, 16
      %v4140 = vshll.u32 %v2760, 16
      %v4142 = vrot.slane %v4140, 1
      %v4143 = vor.u32 %v4138, %v4142
      %v4145 = vshll.u32 %v2761, 16
      %v4147 = vrot.slane %v4145, 1
      %v4148 = vsel %vm2904, %v4143, %v4147
      %v4149 = vshrl.u32 %v2761, 16
      %v4151 = vor.u32 %v4149, %v4147
      %v4153 = vshll.u32 %v2762, 16
      %v4155 = vrot.slane %v4153, 1
      %v4156 = vsel %vm2904, %v4151, %v4155
      %v4157 = vshrl.u32 %v2762, 16
      %v4159 = vor.u32 %v4157, %v4155
      %v4161 = vshll.u32 %v2902, 16
      %v4163 = vrot.slane %v4161, 1
      %v4164 = vsel %vm2904, %v4159, %v4163
      %v4166 = vshrl.u32 %v2763, 16
      %v4168 = vshll.u32 %v2763, 16
      %v4170 = vrot.slane %v4168, 1
      %v4171 = vor.u32 %v4166, %v4170
      %v4173 = vshll.u32 %v2764, 16
      %v4175 = vrot.slane %v4173, 1
      %v4176 = vsel %vm2904, %v4171, %v4175
      %v4177 = vshrl.u32 %v2764, 16
      %v4179 = vor.u32 %v4177, %v4175
      %v4181 = vshll.u32 %v2765, 16
      %v4183 = vrot.slane %v4181, 1
      %v4184 = vsel %vm2904, %v4179, %v4183
      %v4185 = vshrl.u32 %v2765, 16
      %v4187 = vor.u32 %v4185, %v4183
      %v4189 = vshll.u32 %v2903, 16
      %v4191 = vrot.slane %v4189, 1
      %v4192 = vsel %vm2904, %v4187, %v4191
      %4193 = vrot.lane.b32.xlu0 %v2916, 32
      %v4194 = vpop.permute.xlu0 %4193
      %4195 = vrot.lane.b32.xlu0 %v2924, 32
      %v4196 = vpop.permute.xlu0 %4195
      %4197 = vrot.lane.b32.xlu0 %v2932, 32
      %v4198 = vpop.permute.xlu0 %4197
      %4199 = vrot.lane.b32.xlu0 %v2944, 32
      %v4200 = vpop.permute.xlu0 %4199
      %4201 = vrot.lane.b32.xlu0 %v2952, 32
      %v4202 = vpop.permute.xlu0 %4201
      %4203 = vrot.lane.b32.xlu0 %v2960, 32
      %v4204 = vpop.permute.xlu0 %4203
      %4205 = vrot.lane.b32.xlu0 %v2972, 32
      %v4206 = vpop.permute.xlu0 %4205
      %4207 = vrot.lane.b32.xlu0 %v2980, 32
      %v4208 = vpop.permute.xlu0 %4207
      %4209 = vrot.lane.b32.xlu0 %v2988, 32
      %v4210 = vpop.permute.xlu0 %4209
      %4211 = vrot.lane.b32.xlu0 %v3000, 32
      %v4212 = vpop.permute.xlu0 %4211
      %4213 = vrot.lane.b32.xlu0 %v3008, 32
      %v4214 = vpop.permute.xlu0 %4213
      %4215 = vrot.lane.b32.xlu0 %v3016, 32
      %v4216 = vpop.permute.xlu0 %4215
      %4217 = vrot.lane.b32.xlu0 %v3028, 32
      %v4218 = vpop.permute.xlu0 %4217
      %4219 = vrot.lane.b32.xlu0 %v3036, 32
      %v4220 = vpop.permute.xlu0 %4219
      %4221 = vrot.lane.b32.xlu0 %v3044, 32
      %v4222 = vpop.permute.xlu0 %4221
      %4223 = vrot.lane.b32.xlu0 %v3056, 32
      %v4224 = vpop.permute.xlu0 %4223
      %4225 = vrot.lane.b32.xlu0 %v3064, 32
      %v4226 = vpop.permute.xlu0 %4225
      %4227 = vrot.lane.b32.xlu0 %v3072, 32
      %v4228 = vpop.permute.xlu0 %4227
      %4229 = vrot.lane.b32.xlu0 %v3084, 32
      %v4230 = vpop.permute.xlu0 %4229
      %4231 = vrot.lane.b32.xlu0 %v3092, 32
      %v4232 = vpop.permute.xlu0 %4231
      %4233 = vrot.lane.b32.xlu0 %v3100, 32
      %v4234 = vpop.permute.xlu0 %4233
      %4235 = vrot.lane.b32.xlu0 %v3112, 32
      %v4236 = vpop.permute.xlu0 %4235
      %4237 = vrot.lane.b32.xlu0 %v3120, 32
      %v4238 = vpop.permute.xlu0 %4237
      %4239 = vrot.lane.b32.xlu0 %v3128, 32
      %v4240 = vpop.permute.xlu0 %4239
      %4241 = vrot.lane.b32.xlu0 %v3140, 32
      %v4242 = vpop.permute.xlu0 %4241
      %4243 = vrot.lane.b32.xlu0 %v3148, 32
      %v4244 = vpop.permute.xlu0 %4243
      %4245 = vrot.lane.b32.xlu0 %v3156, 32
      %v4246 = vpop.permute.xlu0 %4245
      %4247 = vrot.lane.b32.xlu0 %v3168, 32
      %v4248 = vpop.permute.xlu0 %4247
      %4249 = vrot.lane.b32.xlu0 %v3176, 32
      %v4250 = vpop.permute.xlu0 %4249
      %4251 = vrot.lane.b32.xlu0 %v3184, 32
      %v4252 = vpop.permute.xlu0 %4251
      %4253 = vrot.lane.b32.xlu0 %v3196, 32
      %v4254 = vpop.permute.xlu0 %4253
      %4255 = vrot.lane.b32.xlu0 %v3204, 32
      %v4256 = vpop.permute.xlu0 %4255
      %4257 = vrot.lane.b32.xlu0 %v3212, 32
      %v4258 = vpop.permute.xlu0 %4257
      %4259 = vrot.lane.b32.xlu0 %v3224, 32
      %v4260 = vpop.permute.xlu0 %4259
      %4261 = vrot.lane.b32.xlu0 %v3232, 32
      %v4262 = vpop.permute.xlu0 %4261
      %4263 = vrot.lane.b32.xlu0 %v3240, 32
      %v4264 = vpop.permute.xlu0 %4263
      %4265 = vrot.lane.b32.xlu0 %v3252, 32
      %v4266 = vpop.permute.xlu0 %4265
      %4267 = vrot.lane.b32.xlu0 %v3260, 32
      %v4268 = vpop.permute.xlu0 %4267
      %4269 = vrot.lane.b32.xlu0 %v3268, 32
      %v4270 = vpop.permute.xlu0 %4269
      %4271 = vrot.lane.b32.xlu0 %v3280, 32
      %v4272 = vpop.permute.xlu0 %4271
      %4273 = vrot.lane.b32.xlu0 %v3288, 32
      %v4274 = vpop.permute.xlu0 %4273
      %4275 = vrot.lane.b32.xlu0 %v3296, 32
      %v4276 = vpop.permute.xlu0 %4275
      %4277 = vrot.lane.b32.xlu0 %v3308, 32
      %v4278 = vpop.permute.xlu0 %4277
      %4279 = vrot.lane.b32.xlu0 %v3316, 32
      %v4280 = vpop.permute.xlu0 %4279
      %4281 = vrot.lane.b32.xlu0 %v3324, 32
      %v4282 = vpop.permute.xlu0 %4281
      %4283 = vrot.lane.b32.xlu0 %v3336, 32
      %v4284 = vpop.permute.xlu0 %4283
      %4285 = vrot.lane.b32.xlu0 %v3344, 32
      %v4286 = vpop.permute.xlu0 %4285
      %4287 = vrot.lane.b32.xlu0 %v3352, 32
      %v4288 = vpop.permute.xlu0 %4287
      %4289 = vrot.lane.b32.xlu0 %v3364, 32
      %v4290 = vpop.permute.xlu0 %4289
      %4291 = vrot.lane.b32.xlu0 %v3372, 32
      %v4292 = vpop.permute.xlu0 %4291
      %4293 = vrot.lane.b32.xlu0 %v3380, 32
      %v4294 = vpop.permute.xlu0 %4293
      %4295 = vrot.lane.b32.xlu0 %v3392, 32
      %v4296 = vpop.permute.xlu0 %4295
      %4297 = vrot.lane.b32.xlu0 %v3400, 32
      %v4298 = vpop.permute.xlu0 %4297
      %4299 = vrot.lane.b32.xlu0 %v3408, 32
      %v4300 = vpop.permute.xlu0 %4299
      %4301 = vrot.lane.b32.xlu0 %v3420, 32
      %v4302 = vpop.permute.xlu0 %4301
      %4303 = vrot.lane.b32.xlu0 %v3428, 32
      %v4304 = vpop.permute.xlu0 %4303
      %4305 = vrot.lane.b32.xlu0 %v3436, 32
      %v4306 = vpop.permute.xlu0 %4305
      %4307 = vrot.lane.b32.xlu0 %v3448, 32
      %v4308 = vpop.permute.xlu0 %4307
      %4309 = vrot.lane.b32.xlu0 %v3456, 32
      %v4310 = vpop.permute.xlu0 %4309
      %4311 = vrot.lane.b32.xlu0 %v3464, 32
      %v4312 = vpop.permute.xlu0 %4311
      %4313 = vrot.lane.b32.xlu0 %v3476, 32
      %v4314 = vpop.permute.xlu0 %4313
      %4315 = vrot.lane.b32.xlu0 %v3484, 32
      %v4316 = vpop.permute.xlu0 %4315
      %4317 = vrot.lane.b32.xlu0 %v3492, 32
      %v4318 = vpop.permute.xlu0 %4317
      %4319 = vrot.lane.b32.xlu0 %v3504, 32
      %v4320 = vpop.permute.xlu0 %4319
      %4321 = vrot.lane.b32.xlu0 %v3512, 32
      %v4322 = vpop.permute.xlu0 %4321
      %4323 = vrot.lane.b32.xlu0 %v3520, 32
      %v4324 = vpop.permute.xlu0 %4323
      %4325 = vrot.lane.b32.xlu0 %v3532, 32
      %v4326 = vpop.permute.xlu0 %4325
      %4327 = vrot.lane.b32.xlu0 %v3540, 32
      %v4328 = vpop.permute.xlu0 %4327
      %4329 = vrot.lane.b32.xlu0 %v3548, 32
      %v4330 = vpop.permute.xlu0 %4329
      %4331 = vrot.lane.b32.xlu0 %v3560, 32
      %v4332 = vpop.permute.xlu0 %4331
      %4333 = vrot.lane.b32.xlu0 %v3568, 32
      %v4334 = vpop.permute.xlu0 %4333
      %4335 = vrot.lane.b32.xlu0 %v3576, 32
      %v4336 = vpop.permute.xlu0 %4335
      %4337 = vrot.lane.b32.xlu0 %v3588, 32
      %v4338 = vpop.permute.xlu0 %4337
      %4339 = vrot.lane.b32.xlu0 %v3596, 32
      %v4340 = vpop.permute.xlu0 %4339
      %4341 = vrot.lane.b32.xlu0 %v3604, 32
      %v4342 = vpop.permute.xlu0 %4341
      %4343 = vrot.lane.b32.xlu0 %v3616, 32
      %v4344 = vpop.permute.xlu0 %4343
      %4345 = vrot.lane.b32.xlu0 %v3624, 32
      %v4346 = vpop.permute.xlu0 %4345
      %4347 = vrot.lane.b32.xlu0 %v3632, 32
      %v4348 = vpop.permute.xlu0 %4347
      %4349 = vrot.lane.b32.xlu0 %v3644, 32
      %v4350 = vpop.permute.xlu0 %4349
      %4351 = vrot.lane.b32.xlu0 %v3652, 32
      %v4352 = vpop.permute.xlu0 %4351
      %4353 = vrot.lane.b32.xlu0 %v3660, 32
      %v4354 = vpop.permute.xlu0 %4353
      %4355 = vrot.lane.b32.xlu0 %v3672, 32
      %v4356 = vpop.permute.xlu0 %4355
      %4357 = vrot.lane.b32.xlu0 %v3680, 32
      %v4358 = vpop.permute.xlu0 %4357
      %4359 = vrot.lane.b32.xlu0 %v3688, 32
      %v4360 = vpop.permute.xlu0 %4359
      %4361 = vrot.lane.b32.xlu0 %v3700, 32
      %v4362 = vpop.permute.xlu0 %4361
      %4363 = vrot.lane.b32.xlu0 %v3708, 32
      %v4364 = vpop.permute.xlu0 %4363
      %4365 = vrot.lane.b32.xlu0 %v3716, 32
      %v4366 = vpop.permute.xlu0 %4365
      %4367 = vrot.lane.b32.xlu0 %v3728, 32
      %v4368 = vpop.permute.xlu0 %4367
      %4369 = vrot.lane.b32.xlu0 %v3736, 32
      %v4370 = vpop.permute.xlu0 %4369
      %4371 = vrot.lane.b32.xlu0 %v3744, 32
      %v4372 = vpop.permute.xlu0 %4371
      %4373 = vrot.lane.b32.xlu0 %v3756, 32
      %v4374 = vpop.permute.xlu0 %4373
      %4375 = vrot.lane.b32.xlu0 %v3764, 32
      %v4376 = vpop.permute.xlu0 %4375
      %4377 = vrot.lane.b32.xlu0 %v3772, 32
      %v4378 = vpop.permute.xlu0 %4377
      %4379 = vrot.lane.b32.xlu0 %v3784, 32
      %v4380 = vpop.permute.xlu0 %4379
      %4381 = vrot.lane.b32.xlu0 %v3792, 32
      %v4382 = vpop.permute.xlu0 %4381
      %4383 = vrot.lane.b32.xlu0 %v3800, 32
      %v4384 = vpop.permute.xlu0 %4383
      %4385 = vrot.lane.b32.xlu0 %v3812, 32
      %v4386 = vpop.permute.xlu0 %4385
      %4387 = vrot.lane.b32.xlu0 %v3820, 32
      %v4388 = vpop.permute.xlu0 %4387
      %4389 = vrot.lane.b32.xlu0 %v3828, 32
      %v4390 = vpop.permute.xlu0 %4389
      %4391 = vrot.lane.b32.xlu0 %v3840, 32
      %v4392 = vpop.permute.xlu0 %4391
      %4393 = vrot.lane.b32.xlu0 %v3848, 32
      %v4394 = vpop.permute.xlu0 %4393
      %4395 = vrot.lane.b32.xlu0 %v3856, 32
      %v4396 = vpop.permute.xlu0 %4395
      %4397 = vrot.lane.b32.xlu0 %v3868, 32
      %v4398 = vpop.permute.xlu0 %4397
      %4399 = vrot.lane.b32.xlu0 %v3876, 32
      %v4400 = vpop.permute.xlu0 %4399
      %4401 = vrot.lane.b32.xlu0 %v3884, 32
      %v4402 = vpop.permute.xlu0 %4401
      %4403 = vrot.lane.b32.xlu0 %v3896, 32
      %v4404 = vpop.permute.xlu0 %4403
      %4405 = vrot.lane.b32.xlu0 %v3904, 32
      %v4406 = vpop.permute.xlu0 %4405
      %4407 = vrot.lane.b32.xlu0 %v3912, 32
      %v4408 = vpop.permute.xlu0 %4407
      %4409 = vrot.lane.b32.xlu0 %v3924, 32
      %v4410 = vpop.permute.xlu0 %4409
      %4411 = vrot.lane.b32.xlu0 %v3932, 32
      %v4412 = vpop.permute.xlu0 %4411
      %4413 = vrot.lane.b32.xlu0 %v3940, 32
      %v4414 = vpop.permute.xlu0 %4413
      %4415 = vrot.lane.b32.xlu0 %v3952, 32
      %v4416 = vpop.permute.xlu0 %4415
      %4417 = vrot.lane.b32.xlu0 %v3960, 32
      %v4418 = vpop.permute.xlu0 %4417
      %4419 = vrot.lane.b32.xlu0 %v3968, 32
      %v4420 = vpop.permute.xlu0 %4419
      %4421 = vrot.lane.b32.xlu0 %v3980, 32
      %v4422 = vpop.permute.xlu0 %4421
      %4423 = vrot.lane.b32.xlu0 %v3988, 32
      %v4424 = vpop.permute.xlu0 %4423
      %4425 = vrot.lane.b32.xlu0 %v3996, 32
      %v4426 = vpop.permute.xlu0 %4425
      %4427 = vrot.lane.b32.xlu0 %v4008, 32
      %v4428 = vpop.permute.xlu0 %4427
      %4429 = vrot.lane.b32.xlu0 %v4016, 32
      %v4430 = vpop.permute.xlu0 %4429
      %4431 = vrot.lane.b32.xlu0 %v4024, 32
      %v4432 = vpop.permute.xlu0 %4431
      %4433 = vrot.lane.b32.xlu0 %v4036, 32
      %v4434 = vpop.permute.xlu0 %4433
      %4435 = vrot.lane.b32.xlu0 %v4044, 32
      %v4436 = vpop.permute.xlu0 %4435
      %4437 = vrot.lane.b32.xlu0 %v4052, 32
      %v4438 = vpop.permute.xlu0 %4437
      %4439 = vrot.lane.b32.xlu0 %v4064, 32
      %v4440 = vpop.permute.xlu0 %4439
      %4441 = vrot.lane.b32.xlu0 %v4072, 32
      %v4442 = vpop.permute.xlu0 %4441
      %4443 = vrot.lane.b32.xlu0 %v4080, 32
      %v4444 = vpop.permute.xlu0 %4443
      %4445 = vrot.lane.b32.xlu0 %v4092, 32
      %v4446 = vpop.permute.xlu0 %4445
      %4447 = vrot.lane.b32.xlu0 %v4100, 32
      %v4448 = vpop.permute.xlu0 %4447
      %4449 = vrot.lane.b32.xlu0 %v4108, 32
      %v4450 = vpop.permute.xlu0 %4449
      %4451 = vrot.lane.b32.xlu0 %v4120, 32
      %v4452 = vpop.permute.xlu0 %4451
      %4453 = vrot.lane.b32.xlu0 %v4128, 32
      %v4454 = vpop.permute.xlu0 %4453
      %4455 = vrot.lane.b32.xlu0 %v4136, 32
      %v4456 = vpop.permute.xlu0 %4455
      %4457 = vrot.lane.b32.xlu0 %v4148, 32
      %v4458 = vpop.permute.xlu0 %4457
      %4459 = vrot.lane.b32.xlu0 %v4156, 32
      %v4460 = vpop.permute.xlu0 %4459
      %4461 = vrot.lane.b32.xlu0 %v4164, 32
      %v4462 = vpop.permute.xlu0 %4461
      %4463 = vrot.lane.b32.xlu0 %v4176, 32
      %v4464 = vpop.permute.xlu0 %4463
      %4465 = vrot.lane.b32.xlu0 %v4184, 32
      %v4466 = vpop.permute.xlu0 %4465
      %4467 = vrot.lane.b32.xlu0 %v4192, 32
      %v4468 = vpop.permute.xlu0 %4467
      %v4515 = vunpack.c.l.b16 %v1938
      %v4516 = vunpack.c.l.b16 %v1939
      %v4517 = vunpack.c.l.b16 %v1940
      %v4518 = vunpack.c.l.b16 %v1941
      %v4519 = vunpack.c.l.b16 %v1942
      %v4520 = vunpack.c.l.b16 %v1943
      %v4521 = vunpack.c.l.b16 %v1944
      %v4522 = vunpack.c.l.b16 %v1945
      %v4523 = vunpack.c.l.b16 %v1946
      %v4524 = vunpack.c.l.b16 %v1947
      %v4525 = vunpack.c.l.b16 %v1948
      %v4526 = vunpack.c.l.b16 %v1949
      %v4527 = vunpack.c.l.b16 %v1950
      %v4528 = vunpack.c.l.b16 %v1951
      %v4529 = vunpack.c.l.b16 %v1952
      %v4530 = vunpack.c.l.b16 %v1953
      %v4531 = vunpack.c.l.b16 %v1954
      %v4532 = vunpack.c.l.b16 %v1955
      %v4533 = vunpack.c.l.b16 %v1956
      %v4534 = vunpack.c.l.b16 %v1957
      %v4535 = vunpack.c.l.b16 %v1958
      %v4536 = vunpack.c.l.b16 %v1959
      %v4537 = vunpack.c.l.b16 %v1960
      %v4538 = vunpack.c.l.b16 %v1961
      %v4539 = vunpack.c.l.b16 %v1962
      %v4540 = vunpack.c.l.b16 %v1963
      %v4541 = vunpack.c.l.b16 %v1964
      %v4542 = vunpack.c.l.b16 %v1965
      %v4543 = vunpack.c.l.b16 %v1966
      %v4544 = vunpack.c.l.b16 %v1967
      %v4545 = vunpack.c.l.b16 %v1968
      %v4546 = vunpack.c.l.b16 %v1969
      %v4547 = vunpack.c.l.b16 %v1970
      %v4548 = vunpack.c.l.b16 %v1971
      %v4549 = vunpack.c.l.b16 %v1972
      %v4550 = vunpack.c.l.b16 %v1973
      %v4551 = vunpack.c.l.b16 %v1974
      %v4552 = vunpack.c.l.b16 %v1975
      %v4553 = vunpack.c.l.b16 %v1976
      %v4554 = vunpack.c.l.b16 %v1977
      %v4555 = vunpack.c.l.b16 %v1978
      %v4556 = vunpack.c.l.b16 %v1979
      %v4557 = vunpack.c.l.b16 %v1980
      %v4558 = vunpack.c.l.b16 %v1981
      %v4559 = vunpack.c.l.b16 %v1982
      %v4560 = vunpack.c.l.b16 %v1983
      %v4561 = vpack.c.b16 %v2353, %v4515
      %v4562 = vpack.c.b16 %v2359, %v4516
      %v4563 = vpack.c.b16 %v2365, %v4517
      %v4564 = vpack.c.b16 %v2371, %v4518
      %v4565 = vpack.c.b16 %v2377, %v4519
      %v4566 = vpack.c.b16 %v2383, %v4520
      %v4567 = vpack.c.b16 %v2389, %v4521
      %v4568 = vpack.c.b16 %v2395, %v4522
      %v4569 = vpack.c.b16 %v2401, %v4523
      %v4570 = vpack.c.b16 %v2407, %v4524
      %v4571 = vpack.c.b16 %v2413, %v4525
      %v4572 = vpack.c.b16 %v2419, %v4526
      %v4573 = vpack.c.b16 %v2425, %v4527
      %v4574 = vpack.c.b16 %v2431, %v4528
      %v4575 = vpack.c.b16 %v2437, %v4529
      %v4576 = vpack.c.b16 %v2443, %v4530
      %v4577 = vpack.c.b16 %v2449, %v4531
      %v4578 = vpack.c.b16 %v2455, %v4532
      %v4579 = vpack.c.b16 %v2461, %v4533
      %v4580 = vpack.c.b16 %v2467, %v4534
      %v4581 = vpack.c.b16 %v2473, %v4535
      %v4582 = vpack.c.b16 %v2479, %v4536
      %v4583 = vpack.c.b16 %v2485, %v4537
      %v4584 = vpack.c.b16 %v2491, %v4538
      %v4585 = vpack.c.b16 %v2497, %v4539
      %v4586 = vpack.c.b16 %v2503, %v4540
      %v4587 = vpack.c.b16 %v2509, %v4541
      %v4588 = vpack.c.b16 %v2515, %v4542
      %v4589 = vpack.c.b16 %v2521, %v4543
      %v4590 = vpack.c.b16 %v2527, %v4544
      %v4591 = vpack.c.b16 %v2533, %v4545
      %v4592 = vpack.c.b16 %v2539, %v4546
      %v4593 = vpack.c.b16 %v2545, %v4547
      %v4594 = vpack.c.b16 %v2551, %v4548
      %v4595 = vpack.c.b16 %v2557, %v4549
      %v4596 = vpack.c.b16 %v2563, %v4550
      %v4597 = vpack.c.b16 %v2569, %v4551
      %v4598 = vpack.c.b16 %v2575, %v4552
      %v4599 = vpack.c.b16 %v2581, %v4553
      %v4600 = vpack.c.b16 %v2587, %v4554
      %v4601 = vpack.c.b16 %v2593, %v4555
      %v4602 = vpack.c.b16 %v2599, %v4556
      %v4603 = vpack.c.b16 %v2605, %v4557
      %v4604 = vpack.c.b16 %v2611, %v4558
      %v4605 = vpack.c.b16 %v2617, %v4559
      %v4606 = vpack.c.b16 %v2623, %v4560
      %vm4607 = vcmask 1046528
      %v4608 = vrot.slane %v4561, 1
      %v4609 = vrot.slane %v2629, 1
      %v4610 = vsel %vm4607, %v4608, %v4609
      %v4611 = vrot.slane %v2630, 1
      %v4612 = vsel %vm4607, %v4609, %v4611
      %v4613 = vrot.slane %v2858, 1
      %v4614 = vsel %vm4607, %v4611, %v4613
      %v4615 = vrot.slane %v4562, 1
      %v4616 = vrot.slane %v2632, 1
      %v4617 = vsel %vm4607, %v4615, %v4616
      %v4618 = vrot.slane %v2633, 1
      %v4619 = vsel %vm4607, %v4616, %v4618
      %v4620 = vrot.slane %v2859, 1
      %v4621 = vsel %vm4607, %v4618, %v4620
      %v4622 = vrot.slane %v4563, 1
      %v4623 = vrot.slane %v2635, 1
      %v4624 = vsel %vm4607, %v4622, %v4623
      %v4625 = vrot.slane %v2636, 1
      %v4626 = vsel %vm4607, %v4623, %v4625
      %v4627 = vrot.slane %v2860, 1
      %v4628 = vsel %vm4607, %v4625, %v4627
      %v4629 = vrot.slane %v4564, 1
      %v4630 = vrot.slane %v2638, 1
      %v4631 = vsel %vm4607, %v4629, %v4630
      %v4632 = vrot.slane %v2639, 1
      %v4633 = vsel %vm4607, %v4630, %v4632
      %v4634 = vrot.slane %v2861, 1
      %v4635 = vsel %vm4607, %v4632, %v4634
      %v4636 = vrot.slane %v4565, 1
      %v4637 = vrot.slane %v2641, 1
      %v4638 = vsel %vm4607, %v4636, %v4637
      %v4639 = vrot.slane %v2642, 1
      %v4640 = vsel %vm4607, %v4637, %v4639
      %v4641 = vrot.slane %v2862, 1
      %v4642 = vsel %vm4607, %v4639, %v4641
      %v4643 = vrot.slane %v4566, 1
      %v4644 = vrot.slane %v2644, 1
      %v4645 = vsel %vm4607, %v4643, %v4644
      %v4646 = vrot.slane %v2645, 1
      %v4647 = vsel %vm4607, %v4644, %v4646
      %v4648 = vrot.slane %v2863, 1
      %v4649 = vsel %vm4607, %v4646, %v4648
      %v4650 = vrot.slane %v4567, 1
      %v4651 = vrot.slane %v2647, 1
      %v4652 = vsel %vm4607, %v4650, %v4651
      %v4653 = vrot.slane %v2648, 1
      %v4654 = vsel %vm4607, %v4651, %v4653
      %v4655 = vrot.slane %v2864, 1
      %v4656 = vsel %vm4607, %v4653, %v4655
      %v4657 = vrot.slane %v4568, 1
      %v4658 = vrot.slane %v2650, 1
      %v4659 = vsel %vm4607, %v4657, %v4658
      %v4660 = vrot.slane %v2651, 1
      %v4661 = vsel %vm4607, %v4658, %v4660
      %v4662 = vrot.slane %v2865, 1
      %v4663 = vsel %vm4607, %v4660, %v4662
      %v4664 = vrot.slane %v4569, 1
      %v4665 = vrot.slane %v2653, 1
      %v4666 = vsel %vm4607, %v4664, %v4665
      %v4667 = vrot.slane %v2654, 1
      %v4668 = vsel %vm4607, %v4665, %v4667
      %v4669 = vrot.slane %v2866, 1
      %v4670 = vsel %vm4607, %v4667, %v4669
      %v4671 = vrot.slane %v4570, 1
      %v4672 = vrot.slane %v2656, 1
      %v4673 = vsel %vm4607, %v4671, %v4672
      %v4674 = vrot.slane %v2657, 1
      %v4675 = vsel %vm4607, %v4672, %v4674
      %v4676 = vrot.slane %v2867, 1
      %v4677 = vsel %vm4607, %v4674, %v4676
      %v4678 = vrot.slane %v4571, 1
      %v4679 = vrot.slane %v2659, 1
      %v4680 = vsel %vm4607, %v4678, %v4679
      %v4681 = vrot.slane %v2660, 1
      %v4682 = vsel %vm4607, %v4679, %v4681
      %v4683 = vrot.slane %v2868, 1
      %v4684 = vsel %vm4607, %v4681, %v4683
      %v4685 = vrot.slane %v4572, 1
      %v4686 = vrot.slane %v2662, 1
      %v4687 = vsel %vm4607, %v4685, %v4686
      %v4688 = vrot.slane %v2663, 1
      %v4689 = vsel %vm4607, %v4686, %v4688
      %v4690 = vrot.slane %v2869, 1
      %v4691 = vsel %vm4607, %v4688, %v4690
      %v4692 = vrot.slane %v4573, 1
      %v4693 = vrot.slane %v2665, 1
      %v4694 = vsel %vm4607, %v4692, %v4693
      %v4695 = vrot.slane %v2666, 1
      %v4696 = vsel %vm4607, %v4693, %v4695
      %v4697 = vrot.slane %v2870, 1
      %v4698 = vsel %vm4607, %v4695, %v4697
      %v4699 = vrot.slane %v4574, 1
      %v4700 = vrot.slane %v2668, 1
      %v4701 = vsel %vm4607, %v4699, %v4700
      %v4702 = vrot.slane %v2669, 1
      %v4703 = vsel %vm4607, %v4700, %v4702
      %v4704 = vrot.slane %v2871, 1
      %v4705 = vsel %vm4607, %v4702, %v4704
      %v4706 = vrot.slane %v4575, 1
      %v4707 = vrot.slane %v2671, 1
      %v4708 = vsel %vm4607, %v4706, %v4707
      %v4709 = vrot.slane %v2672, 1
      %v4710 = vsel %vm4607, %v4707, %v4709
      %v4711 = vrot.slane %v2872, 1
      %v4712 = vsel %vm4607, %v4709, %v4711
      %v4713 = vrot.slane %v4576, 1
      %v4714 = vrot.slane %v2674, 1
      %v4715 = vsel %vm4607, %v4713, %v4714
      %v4716 = vrot.slane %v2675, 1
      %v4717 = vsel %vm4607, %v4714, %v4716
      %v4718 = vrot.slane %v2873, 1
      %v4719 = vsel %vm4607, %v4716, %v4718
      %v4720 = vrot.slane %v4577, 1
      %v4721 = vrot.slane %v2677, 1
      %v4722 = vsel %vm4607, %v4720, %v4721
      %v4723 = vrot.slane %v2678, 1
      %v4724 = vsel %vm4607, %v4721, %v4723
      %v4725 = vrot.slane %v2874, 1
      %v4726 = vsel %vm4607, %v4723, %v4725
      %v4727 = vrot.slane %v4578, 1
      %v4728 = vrot.slane %v2680, 1
      %v4729 = vsel %vm4607, %v4727, %v4728
      %v4730 = vrot.slane %v2681, 1
      %v4731 = vsel %vm4607, %v4728, %v4730
      %v4732 = vrot.slane %v2875, 1
      %v4733 = vsel %vm4607, %v4730, %v4732
      %v4734 = vrot.slane %v4579, 1
      %v4735 = vrot.slane %v2683, 1
      %v4736 = vsel %vm4607, %v4734, %v4735
      %v4737 = vrot.slane %v2684, 1
      %v4738 = vsel %vm4607, %v4735, %v4737
      %v4739 = vrot.slane %v2876, 1
      %v4740 = vsel %vm4607, %v4737, %v4739
      %v4741 = vrot.slane %v4580, 1
      %v4742 = vrot.slane %v2686, 1
      %v4743 = vsel %vm4607, %v4741, %v4742
      %v4744 = vrot.slane %v2687, 1
      %v4745 = vsel %vm4607, %v4742, %v4744
      %v4746 = vrot.slane %v2877, 1
      %v4747 = vsel %vm4607, %v4744, %v4746
      %v4748 = vrot.slane %v4581, 1
      %v4749 = vrot.slane %v2689, 1
      %v4750 = vsel %vm4607, %v4748, %v4749
      %v4751 = vrot.slane %v2690, 1
      %v4752 = vsel %vm4607, %v4749, %v4751
      %v4753 = vrot.slane %v2878, 1
      %v4754 = vsel %vm4607, %v4751, %v4753
      %v4755 = vrot.slane %v4582, 1
      %v4756 = vrot.slane %v2692, 1
      %v4757 = vsel %vm4607, %v4755, %v4756
      %v4758 = vrot.slane %v2693, 1
      %v4759 = vsel %vm4607, %v4756, %v4758
      %v4760 = vrot.slane %v2879, 1
      %v4761 = vsel %vm4607, %v4758, %v4760
      %v4762 = vrot.slane %v4583, 1
      %v4763 = vrot.slane %v2695, 1
      %v4764 = vsel %vm4607, %v4762, %v4763
      %v4765 = vrot.slane %v2696, 1
      %v4766 = vsel %vm4607, %v4763, %v4765
      %v4767 = vrot.slane %v2880, 1
      %v4768 = vsel %vm4607, %v4765, %v4767
      %v4769 = vrot.slane %v4584, 1
      %v4770 = vrot.slane %v2698, 1
      %v4771 = vsel %vm4607, %v4769, %v4770
      %v4772 = vrot.slane %v2699, 1
      %v4773 = vsel %vm4607, %v4770, %v4772
      %v4774 = vrot.slane %v2881, 1
      %v4775 = vsel %vm4607, %v4772, %v4774
      %v4776 = vrot.slane %v4585, 1
      %v4777 = vrot.slane %v2701, 1
      %v4778 = vsel %vm4607, %v4776, %v4777
      %v4779 = vrot.slane %v2702, 1
      %v4780 = vsel %vm4607, %v4777, %v4779
      %v4781 = vrot.slane %v2882, 1
      %v4782 = vsel %vm4607, %v4779, %v4781
      %v4783 = vrot.slane %v4586, 1
      %v4784 = vrot.slane %v2704, 1
      %v4785 = vsel %vm4607, %v4783, %v4784
      %v4786 = vrot.slane %v2705, 1
      %v4787 = vsel %vm4607, %v4784, %v4786
      %v4788 = vrot.slane %v2883, 1
      %v4789 = vsel %vm4607, %v4786, %v4788
      %v4790 = vrot.slane %v4587, 1
      %v4791 = vrot.slane %v2707, 1
      %v4792 = vsel %vm4607, %v4790, %v4791
      %v4793 = vrot.slane %v2708, 1
      %v4794 = vsel %vm4607, %v4791, %v4793
      %v4795 = vrot.slane %v2884, 1
      %v4796 = vsel %vm4607, %v4793, %v4795
      %v4797 = vrot.slane %v4588, 1
      %v4798 = vrot.slane %v2710, 1
      %v4799 = vsel %vm4607, %v4797, %v4798
      %v4800 = vrot.slane %v2711, 1
      %v4801 = vsel %vm4607, %v4798, %v4800
      %v4802 = vrot.slane %v2885, 1
      %v4803 = vsel %vm4607, %v4800, %v4802
      %v4804 = vrot.slane %v4589, 1
      %v4805 = vrot.slane %v2713, 1
      %v4806 = vsel %vm4607, %v4804, %v4805
      %v4807 = vrot.slane %v2714, 1
      %v4808 = vsel %vm4607, %v4805, %v4807
      %v4809 = vrot.slane %v2886, 1
      %v4810 = vsel %vm4607, %v4807, %v4809
      %v4811 = vrot.slane %v4590, 1
      %v4812 = vrot.slane %v2716, 1
      %v4813 = vsel %vm4607, %v4811, %v4812
      %v4814 = vrot.slane %v2717, 1
      %v4815 = vsel %vm4607, %v4812, %v4814
      %v4816 = vrot.slane %v2887, 1
      %v4817 = vsel %vm4607, %v4814, %v4816
      %v4818 = vrot.slane %v4591, 1
      %v4819 = vrot.slane %v2719, 1
      %v4820 = vsel %vm4607, %v4818, %v4819
      %v4821 = vrot.slane %v2720, 1
      %v4822 = vsel %vm4607, %v4819, %v4821
      %v4823 = vrot.slane %v2888, 1
      %v4824 = vsel %vm4607, %v4821, %v4823
      %v4825 = vrot.slane %v4592, 1
      %v4826 = vrot.slane %v2722, 1
      %v4827 = vsel %vm4607, %v4825, %v4826
      %v4828 = vrot.slane %v2723, 1
      %v4829 = vsel %vm4607, %v4826, %v4828
      %v4830 = vrot.slane %v2889, 1
      %v4831 = vsel %vm4607, %v4828, %v4830
      %v4832 = vrot.slane %v4593, 1
      %v4833 = vrot.slane %v2725, 1
      %v4834 = vsel %vm4607, %v4832, %v4833
      %v4835 = vrot.slane %v2726, 1
      %v4836 = vsel %vm4607, %v4833, %v4835
      %v4837 = vrot.slane %v2890, 1
      %v4838 = vsel %vm4607, %v4835, %v4837
      %v4839 = vrot.slane %v4594, 1
      %v4840 = vrot.slane %v2728, 1
      %v4841 = vsel %vm4607, %v4839, %v4840
      %v4842 = vrot.slane %v2729, 1
      %v4843 = vsel %vm4607, %v4840, %v4842
      %v4844 = vrot.slane %v2891, 1
      %v4845 = vsel %vm4607, %v4842, %v4844
      %v4846 = vrot.slane %v4595, 1
      %v4847 = vrot.slane %v2731, 1
      %v4848 = vsel %vm4607, %v4846, %v4847
      %v4849 = vrot.slane %v2732, 1
      %v4850 = vsel %vm4607, %v4847, %v4849
      %v4851 = vrot.slane %v2892, 1
      %v4852 = vsel %vm4607, %v4849, %v4851
      %v4853 = vrot.slane %v4596, 1
      %v4854 = vrot.slane %v2734, 1
      %v4855 = vsel %vm4607, %v4853, %v4854
      %v4856 = vrot.slane %v2735, 1
      %v4857 = vsel %vm4607, %v4854, %v4856
      %v4858 = vrot.slane %v2893, 1
      %v4859 = vsel %vm4607, %v4856, %v4858
      %v4860 = vrot.slane %v4597, 1
      %v4861 = vrot.slane %v2737, 1
      %v4862 = vsel %vm4607, %v4860, %v4861
      %v4863 = vrot.slane %v2738, 1
      %v4864 = vsel %vm4607, %v4861, %v4863
      %v4865 = vrot.slane %v2894, 1
      %v4866 = vsel %vm4607, %v4863, %v4865
      %v4867 = vrot.slane %v4598, 1
      %v4868 = vrot.slane %v2740, 1
      %v4869 = vsel %vm4607, %v4867, %v4868
      %v4870 = vrot.slane %v2741, 1
      %v4871 = vsel %vm4607, %v4868, %v4870
      %v4872 = vrot.slane %v2895, 1
      %v4873 = vsel %vm4607, %v4870, %v4872
      %v4874 = vrot.slane %v4599, 1
      %v4875 = vrot.slane %v2743, 1
      %v4876 = vsel %vm4607, %v4874, %v4875
      %v4877 = vrot.slane %v2744, 1
      %v4878 = vsel %vm4607, %v4875, %v4877
      %v4879 = vrot.slane %v2896, 1
      %v4880 = vsel %vm4607, %v4877, %v4879
      %v4881 = vrot.slane %v4600, 1
      %v4882 = vrot.slane %v2746, 1
      %v4883 = vsel %vm4607, %v4881, %v4882
      %v4884 = vrot.slane %v2747, 1
      %v4885 = vsel %vm4607, %v4882, %v4884
      %v4886 = vrot.slane %v2897, 1
      %v4887 = vsel %vm4607, %v4884, %v4886
      %v4888 = vrot.slane %v4601, 1
      %v4889 = vrot.slane %v2749, 1
      %v4890 = vsel %vm4607, %v4888, %v4889
      %v4891 = vrot.slane %v2750, 1
      %v4892 = vsel %vm4607, %v4889, %v4891
      %v4893 = vrot.slane %v2898, 1
      %v4894 = vsel %vm4607, %v4891, %v4893
      %v4895 = vrot.slane %v4602, 1
      %v4896 = vrot.slane %v2752, 1
      %v4897 = vsel %vm4607, %v4895, %v4896
      %v4898 = vrot.slane %v2753, 1
      %v4899 = vsel %vm4607, %v4896, %v4898
      %v4900 = vrot.slane %v2899, 1
      %v4901 = vsel %vm4607, %v4898, %v4900
      %v4902 = vrot.slane %v4603, 1
      %v4903 = vrot.slane %v2755, 1
      %v4904 = vsel %vm4607, %v4902, %v4903
      %v4905 = vrot.slane %v2756, 1
      %v4906 = vsel %vm4607, %v4903, %v4905
      %v4907 = vrot.slane %v2900, 1
      %v4908 = vsel %vm4607, %v4905, %v4907
      %v4909 = vrot.slane %v4604, 1
      %v4910 = vrot.slane %v2758, 1
      %v4911 = vsel %vm4607, %v4909, %v4910
      %v4912 = vrot.slane %v2759, 1
      %v4913 = vsel %vm4607, %v4910, %v4912
      %v4914 = vrot.slane %v2901, 1
      %v4915 = vsel %vm4607, %v4912, %v4914
      %v4916 = vrot.slane %v4605, 1
      %v4917 = vrot.slane %v2761, 1
      %v4918 = vsel %vm4607, %v4916, %v4917
      %v4919 = vrot.slane %v2762, 1
      %v4920 = vsel %vm4607, %v4917, %v4919
      %v4921 = vrot.slane %v2902, 1
      %v4922 = vsel %vm4607, %v4919, %v4921
      %v4923 = vrot.slane %v4606, 1
      %v4924 = vrot.slane %v2764, 1
      %v4925 = vsel %vm4607, %v4923, %v4924
      %v4926 = vrot.slane %v2765, 1
      %v4927 = vsel %vm4607, %v4924, %v4926
      %v4928 = vrot.slane %v2903, 1
      %v4929 = vsel %vm4607, %v4926, %v4928
      %4930 = vrot.lane.b32.xlu0 %v4610, 64
      %v4931 = vpop.permute.xlu0 %4930
      %4932 = vrot.lane.b32.xlu0 %v4612, 64
      %v4933 = vpop.permute.xlu0 %4932
      %4934 = vrot.lane.b32.xlu0 %v4614, 64
      %v4935 = vpop.permute.xlu0 %4934
      %4936 = vrot.lane.b32.xlu0 %v4617, 64
      %v4937 = vpop.permute.xlu0 %4936
      %4938 = vrot.lane.b32.xlu0 %v4619, 64
      %v4939 = vpop.permute.xlu0 %4938
      %4940 = vrot.lane.b32.xlu0 %v4621, 64
      %v4941 = vpop.permute.xlu0 %4940
      %4942 = vrot.lane.b32.xlu0 %v4624, 64
      %v4943 = vpop.permute.xlu0 %4942
      %4944 = vrot.lane.b32.xlu0 %v4626, 64
      %v4945 = vpop.permute.xlu0 %4944
      %4946 = vrot.lane.b32.xlu0 %v4628, 64
      %v4947 = vpop.permute.xlu0 %4946
      %4948 = vrot.lane.b32.xlu0 %v4631, 64
      %v4949 = vpop.permute.xlu0 %4948
      %4950 = vrot.lane.b32.xlu0 %v4633, 64
      %v4951 = vpop.permute.xlu0 %4950
      %4952 = vrot.lane.b32.xlu0 %v4635, 64
      %v4953 = vpop.permute.xlu0 %4952
      %4954 = vrot.lane.b32.xlu0 %v4638, 64
      %v4955 = vpop.permute.xlu0 %4954
      %4956 = vrot.lane.b32.xlu0 %v4640, 64
      %v4957 = vpop.permute.xlu0 %4956
      %4958 = vrot.lane.b32.xlu0 %v4642, 64
      %v4959 = vpop.permute.xlu0 %4958
      %4960 = vrot.lane.b32.xlu0 %v4645, 64
      %v4961 = vpop.permute.xlu0 %4960
      %4962 = vrot.lane.b32.xlu0 %v4647, 64
      %v4963 = vpop.permute.xlu0 %4962
      %4964 = vrot.lane.b32.xlu0 %v4649, 64
      %v4965 = vpop.permute.xlu0 %4964
      %4966 = vrot.lane.b32.xlu0 %v4652, 64
      %v4967 = vpop.permute.xlu0 %4966
      %4968 = vrot.lane.b32.xlu0 %v4654, 64
      %v4969 = vpop.permute.xlu0 %4968
      %4970 = vrot.lane.b32.xlu0 %v4656, 64
      %v4971 = vpop.permute.xlu0 %4970
      %4972 = vrot.lane.b32.xlu0 %v4659, 64
      %v4973 = vpop.permute.xlu0 %4972
      %4974 = vrot.lane.b32.xlu0 %v4661, 64
      %v4975 = vpop.permute.xlu0 %4974
      %4976 = vrot.lane.b32.xlu0 %v4663, 64
      %v4977 = vpop.permute.xlu0 %4976
      %4978 = vrot.lane.b32.xlu0 %v4666, 64
      %v4979 = vpop.permute.xlu0 %4978
      %4980 = vrot.lane.b32.xlu0 %v4668, 64
      %v4981 = vpop.permute.xlu0 %4980
      %4982 = vrot.lane.b32.xlu0 %v4670, 64
      %v4983 = vpop.permute.xlu0 %4982
      %4984 = vrot.lane.b32.xlu0 %v4673, 64
      %v4985 = vpop.permute.xlu0 %4984
      %4986 = vrot.lane.b32.xlu0 %v4675, 64
      %v4987 = vpop.permute.xlu0 %4986
      %4988 = vrot.lane.b32.xlu0 %v4677, 64
      %v4989 = vpop.permute.xlu0 %4988
      %4990 = vrot.lane.b32.xlu0 %v4680, 64
      %v4991 = vpop.permute.xlu0 %4990
      %4992 = vrot.lane.b32.xlu0 %v4682, 64
      %v4993 = vpop.permute.xlu0 %4992
      %4994 = vrot.lane.b32.xlu0 %v4684, 64
      %v4995 = vpop.permute.xlu0 %4994
      %4996 = vrot.lane.b32.xlu0 %v4687, 64
      %v4997 = vpop.permute.xlu0 %4996
      %4998 = vrot.lane.b32.xlu0 %v4689, 64
      %v4999 = vpop.permute.xlu0 %4998
      %5000 = vrot.lane.b32.xlu0 %v4691, 64
      %v5001 = vpop.permute.xlu0 %5000
      %5002 = vrot.lane.b32.xlu0 %v4694, 64
      %v5003 = vpop.permute.xlu0 %5002
      %5004 = vrot.lane.b32.xlu0 %v4696, 64
      %v5005 = vpop.permute.xlu0 %5004
      %5006 = vrot.lane.b32.xlu0 %v4698, 64
      %v5007 = vpop.permute.xlu0 %5006
      %5008 = vrot.lane.b32.xlu0 %v4701, 64
      %v5009 = vpop.permute.xlu0 %5008
      %5010 = vrot.lane.b32.xlu0 %v4703, 64
      %v5011 = vpop.permute.xlu0 %5010
      %5012 = vrot.lane.b32.xlu0 %v4705, 64
      %v5013 = vpop.permute.xlu0 %5012
      %5014 = vrot.lane.b32.xlu0 %v4708, 64
      %v5015 = vpop.permute.xlu0 %5014
      %5016 = vrot.lane.b32.xlu0 %v4710, 64
      %v5017 = vpop.permute.xlu0 %5016
      %5018 = vrot.lane.b32.xlu0 %v4712, 64
      %v5019 = vpop.permute.xlu0 %5018
      %5020 = vrot.lane.b32.xlu0 %v4715, 64
      %v5021 = vpop.permute.xlu0 %5020
      %5022 = vrot.lane.b32.xlu0 %v4717, 64
      %v5023 = vpop.permute.xlu0 %5022
      %5024 = vrot.lane.b32.xlu0 %v4719, 64
      %v5025 = vpop.permute.xlu0 %5024
      %5026 = vrot.lane.b32.xlu0 %v4722, 64
      %v5027 = vpop.permute.xlu0 %5026
      %5028 = vrot.lane.b32.xlu0 %v4724, 64
      %v5029 = vpop.permute.xlu0 %5028
      %5030 = vrot.lane.b32.xlu0 %v4726, 64
      %v5031 = vpop.permute.xlu0 %5030
      %5032 = vrot.lane.b32.xlu0 %v4729, 64
      %v5033 = vpop.permute.xlu0 %5032
      %5034 = vrot.lane.b32.xlu0 %v4731, 64
      %v5035 = vpop.permute.xlu0 %5034
      %5036 = vrot.lane.b32.xlu0 %v4733, 64
      %v5037 = vpop.permute.xlu0 %5036
      %5038 = vrot.lane.b32.xlu0 %v4736, 64
      %v5039 = vpop.permute.xlu0 %5038
      %5040 = vrot.lane.b32.xlu0 %v4738, 64
      %v5041 = vpop.permute.xlu0 %5040
      %5042 = vrot.lane.b32.xlu0 %v4740, 64
      %v5043 = vpop.permute.xlu0 %5042
      %5044 = vrot.lane.b32.xlu0 %v4743, 64
      %v5045 = vpop.permute.xlu0 %5044
      %5046 = vrot.lane.b32.xlu0 %v4745, 64
      %v5047 = vpop.permute.xlu0 %5046
      %5048 = vrot.lane.b32.xlu0 %v4747, 64
      %v5049 = vpop.permute.xlu0 %5048
      %5050 = vrot.lane.b32.xlu0 %v4750, 64
      %v5051 = vpop.permute.xlu0 %5050
      %5052 = vrot.lane.b32.xlu0 %v4752, 64
      %v5053 = vpop.permute.xlu0 %5052
      %5054 = vrot.lane.b32.xlu0 %v4754, 64
      %v5055 = vpop.permute.xlu0 %5054
      %5056 = vrot.lane.b32.xlu0 %v4757, 64
      %v5057 = vpop.permute.xlu0 %5056
      %5058 = vrot.lane.b32.xlu0 %v4759, 64
      %v5059 = vpop.permute.xlu0 %5058
      %5060 = vrot.lane.b32.xlu0 %v4761, 64
      %v5061 = vpop.permute.xlu0 %5060
      %5062 = vrot.lane.b32.xlu0 %v4764, 64
      %v5063 = vpop.permute.xlu0 %5062
      %5064 = vrot.lane.b32.xlu0 %v4766, 64
      %v5065 = vpop.permute.xlu0 %5064
      %5066 = vrot.lane.b32.xlu0 %v4768, 64
      %v5067 = vpop.permute.xlu0 %5066
      %5068 = vrot.lane.b32.xlu0 %v4771, 64
      %v5069 = vpop.permute.xlu0 %5068
      %5070 = vrot.lane.b32.xlu0 %v4773, 64
      %v5071 = vpop.permute.xlu0 %5070
      %5072 = vrot.lane.b32.xlu0 %v4775, 64
      %v5073 = vpop.permute.xlu0 %5072
      %5074 = vrot.lane.b32.xlu0 %v4778, 64
      %v5075 = vpop.permute.xlu0 %5074
      %5076 = vrot.lane.b32.xlu0 %v4780, 64
      %v5077 = vpop.permute.xlu0 %5076
      %5078 = vrot.lane.b32.xlu0 %v4782, 64
      %v5079 = vpop.permute.xlu0 %5078
      %5080 = vrot.lane.b32.xlu0 %v4785, 64
      %v5081 = vpop.permute.xlu0 %5080
      %5082 = vrot.lane.b32.xlu0 %v4787, 64
      %v5083 = vpop.permute.xlu0 %5082
      %5084 = vrot.lane.b32.xlu0 %v4789, 64
      %v5085 = vpop.permute.xlu0 %5084
      %5086 = vrot.lane.b32.xlu0 %v4792, 64
      %v5087 = vpop.permute.xlu0 %5086
      %5088 = vrot.lane.b32.xlu0 %v4794, 64
      %v5089 = vpop.permute.xlu0 %5088
      %5090 = vrot.lane.b32.xlu0 %v4796, 64
      %v5091 = vpop.permute.xlu0 %5090
      %5092 = vrot.lane.b32.xlu0 %v4799, 64
      %v5093 = vpop.permute.xlu0 %5092
      %5094 = vrot.lane.b32.xlu0 %v4801, 64
      %v5095 = vpop.permute.xlu0 %5094
      %5096 = vrot.lane.b32.xlu0 %v4803, 64
      %v5097 = vpop.permute.xlu0 %5096
      %5098 = vrot.lane.b32.xlu0 %v4806, 64
      %v5099 = vpop.permute.xlu0 %5098
      %5100 = vrot.lane.b32.xlu0 %v4808, 64
      %v5101 = vpop.permute.xlu0 %5100
      %5102 = vrot.lane.b32.xlu0 %v4810, 64
      %v5103 = vpop.permute.xlu0 %5102
      %5104 = vrot.lane.b32.xlu0 %v4813, 64
      %v5105 = vpop.permute.xlu0 %5104
      %5106 = vrot.lane.b32.xlu0 %v4815, 64
      %v5107 = vpop.permute.xlu0 %5106
      %5108 = vrot.lane.b32.xlu0 %v4817, 64
      %v5109 = vpop.permute.xlu0 %5108
      %5110 = vrot.lane.b32.xlu0 %v4820, 64
      %v5111 = vpop.permute.xlu0 %5110
      %5112 = vrot.lane.b32.xlu0 %v4822, 64
      %v5113 = vpop.permute.xlu0 %5112
      %5114 = vrot.lane.b32.xlu0 %v4824, 64
      %v5115 = vpop.permute.xlu0 %5114
      %5116 = vrot.lane.b32.xlu0 %v4827, 64
      %v5117 = vpop.permute.xlu0 %5116
      %5118 = vrot.lane.b32.xlu0 %v4829, 64
      %v5119 = vpop.permute.xlu0 %5118
      %5120 = vrot.lane.b32.xlu0 %v4831, 64
      %v5121 = vpop.permute.xlu0 %5120
      %5122 = vrot.lane.b32.xlu0 %v4834, 64
      %v5123 = vpop.permute.xlu0 %5122
      %5124 = vrot.lane.b32.xlu0 %v4836, 64
      %v5125 = vpop.permute.xlu0 %5124
      %5126 = vrot.lane.b32.xlu0 %v4838, 64
      %v5127 = vpop.permute.xlu0 %5126
      %5128 = vrot.lane.b32.xlu0 %v4841, 64
      %v5129 = vpop.permute.xlu0 %5128
      %5130 = vrot.lane.b32.xlu0 %v4843, 64
      %v5131 = vpop.permute.xlu0 %5130
      %5132 = vrot.lane.b32.xlu0 %v4845, 64
      %v5133 = vpop.permute.xlu0 %5132
      %5134 = vrot.lane.b32.xlu0 %v4848, 64
      %v5135 = vpop.permute.xlu0 %5134
      %5136 = vrot.lane.b32.xlu0 %v4850, 64
      %v5137 = vpop.permute.xlu0 %5136
      %5138 = vrot.lane.b32.xlu0 %v4852, 64
      %v5139 = vpop.permute.xlu0 %5138
      %5140 = vrot.lane.b32.xlu0 %v4855, 64
      %v5141 = vpop.permute.xlu0 %5140
      %5142 = vrot.lane.b32.xlu0 %v4857, 64
      %v5143 = vpop.permute.xlu0 %5142
      %5144 = vrot.lane.b32.xlu0 %v4859, 64
      %v5145 = vpop.permute.xlu0 %5144
      %5146 = vrot.lane.b32.xlu0 %v4862, 64
      %v5147 = vpop.permute.xlu0 %5146
      %5148 = vrot.lane.b32.xlu0 %v4864, 64
      %v5149 = vpop.permute.xlu0 %5148
      %5150 = vrot.lane.b32.xlu0 %v4866, 64
      %v5151 = vpop.permute.xlu0 %5150
      %5152 = vrot.lane.b32.xlu0 %v4869, 64
      %v5153 = vpop.permute.xlu0 %5152
      %5154 = vrot.lane.b32.xlu0 %v4871, 64
      %v5155 = vpop.permute.xlu0 %5154
      %5156 = vrot.lane.b32.xlu0 %v4873, 64
      %v5157 = vpop.permute.xlu0 %5156
      %5158 = vrot.lane.b32.xlu0 %v4876, 64
      %v5159 = vpop.permute.xlu0 %5158
      %5160 = vrot.lane.b32.xlu0 %v4878, 64
      %v5161 = vpop.permute.xlu0 %5160
      %5162 = vrot.lane.b32.xlu0 %v4880, 64
      %v5163 = vpop.permute.xlu0 %5162
      %5164 = vrot.lane.b32.xlu0 %v4883, 64
      %v5165 = vpop.permute.xlu0 %5164
      %5166 = vrot.lane.b32.xlu0 %v4885, 64
      %v5167 = vpop.permute.xlu0 %5166
      %5168 = vrot.lane.b32.xlu0 %v4887, 64
      %v5169 = vpop.permute.xlu0 %5168
      %5170 = vrot.lane.b32.xlu0 %v4890, 64
      %v5171 = vpop.permute.xlu0 %5170
      %5172 = vrot.lane.b32.xlu0 %v4892, 64
      %v5173 = vpop.permute.xlu0 %5172
      %5174 = vrot.lane.b32.xlu0 %v4894, 64
      %v5175 = vpop.permute.xlu0 %5174
      %5176 = vrot.lane.b32.xlu0 %v4897, 64
      %v5177 = vpop.permute.xlu0 %5176
      %5178 = vrot.lane.b32.xlu0 %v4899, 64
      %v5179 = vpop.permute.xlu0 %5178
      %5180 = vrot.lane.b32.xlu0 %v4901, 64
      %v5181 = vpop.permute.xlu0 %5180
      %5182 = vrot.lane.b32.xlu0 %v4904, 64
      %v5183 = vpop.permute.xlu0 %5182
      %5184 = vrot.lane.b32.xlu0 %v4906, 64
      %v5185 = vpop.permute.xlu0 %5184
      %5186 = vrot.lane.b32.xlu0 %v4908, 64
      %v5187 = vpop.permute.xlu0 %5186
      %5188 = vrot.lane.b32.xlu0 %v4911, 64
      %v5189 = vpop.permute.xlu0 %5188
      %5190 = vrot.lane.b32.xlu0 %v4913, 64
      %v5191 = vpop.permute.xlu0 %5190
      %5192 = vrot.lane.b32.xlu0 %v4915, 64
      %v5193 = vpop.permute.xlu0 %5192
      %5194 = vrot.lane.b32.xlu0 %v4918, 64
      %v5195 = vpop.permute.xlu0 %5194
      %5196 = vrot.lane.b32.xlu0 %v4920, 64
      %v5197 = vpop.permute.xlu0 %5196
      %5198 = vrot.lane.b32.xlu0 %v4922, 64
      %v5199 = vpop.permute.xlu0 %5198
      %5200 = vrot.lane.b32.xlu0 %v4925, 64
      %v5201 = vpop.permute.xlu0 %5200
      %5202 = vrot.lane.b32.xlu0 %v4927, 64
      %v5203 = vpop.permute.xlu0 %5202
      %5204 = vrot.lane.b32.xlu0 %v4929, 64
      %v5205 = vpop.permute.xlu0 %5204
      %v5252 = vunpack.c.l.b16 %v1984
      %v5253 = vunpack.c.l.b16 %v1985
      %v5254 = vunpack.c.l.b16 %v1986
      %v5255 = vunpack.c.l.b16 %v1987
      %v5256 = vunpack.c.l.b16 %v1988
      %v5257 = vunpack.c.l.b16 %v1989
      %v5258 = vunpack.c.l.b16 %v1990
      %v5259 = vunpack.c.l.b16 %v1991
      %v5260 = vunpack.c.l.b16 %v1992
      %v5261 = vunpack.c.l.b16 %v1993
      %v5262 = vunpack.c.l.b16 %v1994
      %v5263 = vunpack.c.l.b16 %v1995
      %v5264 = vunpack.c.l.b16 %v1996
      %v5265 = vunpack.c.l.b16 %v1997
      %v5266 = vunpack.c.l.b16 %v1998
      %v5267 = vunpack.c.l.b16 %v1999
      %v5268 = vunpack.c.l.b16 %v2000
      %v5269 = vunpack.c.l.b16 %v2001
      %v5270 = vunpack.c.l.b16 %v2002
      %v5271 = vunpack.c.l.b16 %v2003
      %v5272 = vunpack.c.l.b16 %v2004
      %v5273 = vunpack.c.l.b16 %v2005
      %v5274 = vunpack.c.l.b16 %v2006
      %v5275 = vunpack.c.l.b16 %v2007
      %v5276 = vunpack.c.l.b16 %v2008
      %v5277 = vunpack.c.l.b16 %v2009
      %v5278 = vunpack.c.l.b16 %v2010
      %v5279 = vunpack.c.l.b16 %v2011
      %v5280 = vunpack.c.l.b16 %v2012
      %v5281 = vunpack.c.l.b16 %v2013
      %v5282 = vunpack.c.l.b16 %v2014
      %v5283 = vunpack.c.l.b16 %v2015
      %v5284 = vunpack.c.l.b16 %v2016
      %v5285 = vunpack.c.l.b16 %v2017
      %v5286 = vunpack.c.l.b16 %v2018
      %v5287 = vunpack.c.l.b16 %v2019
      %v5288 = vunpack.c.l.b16 %v2020
      %v5289 = vunpack.c.l.b16 %v2021
      %v5290 = vunpack.c.l.b16 %v2022
      %v5291 = vunpack.c.l.b16 %v2023
      %v5292 = vunpack.c.l.b16 %v2024
      %v5293 = vunpack.c.l.b16 %v2025
      %v5294 = vunpack.c.l.b16 %v2026
      %v5295 = vunpack.c.l.b16 %v2027
      %v5296 = vunpack.c.l.b16 %v2028
      %v5297 = vunpack.c.l.b16 %v2029
      %v5298 = vpack.c.b16 %v5252, %v5252
      %v5299 = vpack.c.b16 %v5253, %v5253
      %v5300 = vpack.c.b16 %v5254, %v5254
      %v5301 = vpack.c.b16 %v5255, %v5255
      %v5302 = vpack.c.b16 %v5256, %v5256
      %v5303 = vpack.c.b16 %v5257, %v5257
      %v5304 = vpack.c.b16 %v5258, %v5258
      %v5305 = vpack.c.b16 %v5259, %v5259
      %v5306 = vpack.c.b16 %v5260, %v5260
      %v5307 = vpack.c.b16 %v5261, %v5261
      %v5308 = vpack.c.b16 %v5262, %v5262
      %v5309 = vpack.c.b16 %v5263, %v5263
      %v5310 = vpack.c.b16 %v5264, %v5264
      %v5311 = vpack.c.b16 %v5265, %v5265
      %v5312 = vpack.c.b16 %v5266, %v5266
      %v5313 = vpack.c.b16 %v5267, %v5267
      %v5314 = vpack.c.b16 %v5268, %v5268
      %v5315 = vpack.c.b16 %v5269, %v5269
      %v5316 = vpack.c.b16 %v5270, %v5270
      %v5317 = vpack.c.b16 %v5271, %v5271
      %v5318 = vpack.c.b16 %v5272, %v5272
      %v5319 = vpack.c.b16 %v5273, %v5273
      %v5320 = vpack.c.b16 %v5274, %v5274
      %v5321 = vpack.c.b16 %v5275, %v5275
      %v5322 = vpack.c.b16 %v5276, %v5276
      %v5323 = vpack.c.b16 %v5277, %v5277
      %v5324 = vpack.c.b16 %v5278, %v5278
      %v5325 = vpack.c.b16 %v5279, %v5279
      %v5326 = vpack.c.b16 %v5280, %v5280
      %v5327 = vpack.c.b16 %v5281, %v5281
      %v5328 = vpack.c.b16 %v5282, %v5282
      %v5329 = vpack.c.b16 %v5283, %v5283
      %v5330 = vpack.c.b16 %v5284, %v5284
      %v5331 = vpack.c.b16 %v5285, %v5285
      %v5332 = vpack.c.b16 %v5286, %v5286
      %v5333 = vpack.c.b16 %v5287, %v5287
      %v5334 = vpack.c.b16 %v5288, %v5288
      %v5335 = vpack.c.b16 %v5289, %v5289
      %v5336 = vpack.c.b16 %v5290, %v5290
      %v5337 = vpack.c.b16 %v5291, %v5291
      %v5338 = vpack.c.b16 %v5292, %v5292
      %v5339 = vpack.c.b16 %v5293, %v5293
      %v5340 = vpack.c.b16 %v5294, %v5294
      %v5341 = vpack.c.b16 %v5295, %v5295
      %v5342 = vpack.c.b16 %v5296, %v5296
      %v5343 = vpack.c.b16 %v5297, %v5297
      %vm5344 = vsmask.f32 6400
      %v5346 = vshrl.u32 %v4561, 16
      %v5348 = vrot.slane %v5346, 1
      %v5349 = vshll.u32 %v4561, 16
      %v5351 = vrot.slane %v5349, 2
      %v5352 = vor.u32 %v5348, %v5351
      %v5353 = vrot.slane %v2917, 1
      %v5354 = vrot.slane %v2913, 2
      %v5355 = vor.u32 %v5353, %v5354
      %v5356 = vsel %vm5344, %v5352, %v5355
      %v5357 = vrot.slane %v2925, 1
      %v5358 = vrot.slane %v2921, 2
      %v5359 = vor.u32 %v5357, %v5358
      %v5360 = vsel %vm5344, %v5355, %v5359
      %v5362 = vshrl.u32 %v5298, 16
      %v5364 = vrot.slane %v5362, 1
      %v5365 = vshll.u32 %v5298, 16
      %v5367 = vrot.slane %v5365, 2
      %v5368 = vor.u32 %v5364, %v5367
      %v5369 = vsel %vm5344, %v5359, %v5368
      %v5371 = vshrl.u32 %v4562, 16
      %v5373 = vrot.slane %v5371, 1
      %v5374 = vshll.u32 %v4562, 16
      %v5376 = vrot.slane %v5374, 2
      %v5377 = vor.u32 %v5373, %v5376
      %v5378 = vrot.slane %v2945, 1
      %v5379 = vrot.slane %v2941, 2
      %v5380 = vor.u32 %v5378, %v5379
      %v5381 = vsel %vm5344, %v5377, %v5380
      %v5382 = vrot.slane %v2953, 1
      %v5383 = vrot.slane %v2949, 2
      %v5384 = vor.u32 %v5382, %v5383
      %v5385 = vsel %vm5344, %v5380, %v5384
      %v5387 = vshrl.u32 %v5299, 16
      %v5389 = vrot.slane %v5387, 1
      %v5390 = vshll.u32 %v5299, 16
      %v5392 = vrot.slane %v5390, 2
      %v5393 = vor.u32 %v5389, %v5392
      %v5394 = vsel %vm5344, %v5384, %v5393
      %v5396 = vshrl.u32 %v4563, 16
      %v5398 = vrot.slane %v5396, 1
      %v5399 = vshll.u32 %v4563, 16
      %v5401 = vrot.slane %v5399, 2
      %v5402 = vor.u32 %v5398, %v5401
      %v5403 = vrot.slane %v2973, 1
      %v5404 = vrot.slane %v2969, 2
      %v5405 = vor.u32 %v5403, %v5404
      %v5406 = vsel %vm5344, %v5402, %v5405
      %v5407 = vrot.slane %v2981, 1
      %v5408 = vrot.slane %v2977, 2
      %v5409 = vor.u32 %v5407, %v5408
      %v5410 = vsel %vm5344, %v5405, %v5409
      %v5412 = vshrl.u32 %v5300, 16
      %v5414 = vrot.slane %v5412, 1
      %v5415 = vshll.u32 %v5300, 16
      %v5417 = vrot.slane %v5415, 2
      %v5418 = vor.u32 %v5414, %v5417
      %v5419 = vsel %vm5344, %v5409, %v5418
      %v5421 = vshrl.u32 %v4564, 16
      %v5423 = vrot.slane %v5421, 1
      %v5424 = vshll.u32 %v4564, 16
      %v5426 = vrot.slane %v5424, 2
      %v5427 = vor.u32 %v5423, %v5426
      %v5428 = vrot.slane %v3001, 1
      %v5429 = vrot.slane %v2997, 2
      %v5430 = vor.u32 %v5428, %v5429
      %v5431 = vsel %vm5344, %v5427, %v5430
      %v5432 = vrot.slane %v3009, 1
      %v5433 = vrot.slane %v3005, 2
      %v5434 = vor.u32 %v5432, %v5433
      %v5435 = vsel %vm5344, %v5430, %v5434
      %v5437 = vshrl.u32 %v5301, 16
      %v5439 = vrot.slane %v5437, 1
      %v5440 = vshll.u32 %v5301, 16
      %v5442 = vrot.slane %v5440, 2
      %v5443 = vor.u32 %v5439, %v5442
      %v5444 = vsel %vm5344, %v5434, %v5443
      %v5446 = vshrl.u32 %v4565, 16
      %v5448 = vrot.slane %v5446, 1
      %v5449 = vshll.u32 %v4565, 16
      %v5451 = vrot.slane %v5449, 2
      %v5452 = vor.u32 %v5448, %v5451
      %v5453 = vrot.slane %v3029, 1
      %v5454 = vrot.slane %v3025, 2
      %v5455 = vor.u32 %v5453, %v5454
      %v5456 = vsel %vm5344, %v5452, %v5455
      %v5457 = vrot.slane %v3037, 1
      %v5458 = vrot.slane %v3033, 2
      %v5459 = vor.u32 %v5457, %v5458
      %v5460 = vsel %vm5344, %v5455, %v5459
      %v5462 = vshrl.u32 %v5302, 16
      %v5464 = vrot.slane %v5462, 1
      %v5465 = vshll.u32 %v5302, 16
      %v5467 = vrot.slane %v5465, 2
      %v5468 = vor.u32 %v5464, %v5467
      %v5469 = vsel %vm5344, %v5459, %v5468
      %v5471 = vshrl.u32 %v4566, 16
      %v5473 = vrot.slane %v5471, 1
      %v5474 = vshll.u32 %v4566, 16
      %v5476 = vrot.slane %v5474, 2
      %v5477 = vor.u32 %v5473, %v5476
      %v5478 = vrot.slane %v3057, 1
      %v5479 = vrot.slane %v3053, 2
      %v5480 = vor.u32 %v5478, %v5479
      %v5481 = vsel %vm5344, %v5477, %v5480
      %v5482 = vrot.slane %v3065, 1
      %v5483 = vrot.slane %v3061, 2
      %v5484 = vor.u32 %v5482, %v5483
      %v5485 = vsel %vm5344, %v5480, %v5484
      %v5487 = vshrl.u32 %v5303, 16
      %v5489 = vrot.slane %v5487, 1
      %v5490 = vshll.u32 %v5303, 16
      %v5492 = vrot.slane %v5490, 2
      %v5493 = vor.u32 %v5489, %v5492
      %v5494 = vsel %vm5344, %v5484, %v5493
      %v5496 = vshrl.u32 %v4567, 16
      %v5498 = vrot.slane %v5496, 1
      %v5499 = vshll.u32 %v4567, 16
      %v5501 = vrot.slane %v5499, 2
      %v5502 = vor.u32 %v5498, %v5501
      %v5503 = vrot.slane %v3085, 1
      %v5504 = vrot.slane %v3081, 2
      %v5505 = vor.u32 %v5503, %v5504
      %v5506 = vsel %vm5344, %v5502, %v5505
      %v5507 = vrot.slane %v3093, 1
      %v5508 = vrot.slane %v3089, 2
      %v5509 = vor.u32 %v5507, %v5508
      %v5510 = vsel %vm5344, %v5505, %v5509
      %v5512 = vshrl.u32 %v5304, 16
      %v5514 = vrot.slane %v5512, 1
      %v5515 = vshll.u32 %v5304, 16
      %v5517 = vrot.slane %v5515, 2
      %v5518 = vor.u32 %v5514, %v5517
      %v5519 = vsel %vm5344, %v5509, %v5518
      %v5521 = vshrl.u32 %v4568, 16
      %v5523 = vrot.slane %v5521, 1
      %v5524 = vshll.u32 %v4568, 16
      %v5526 = vrot.slane %v5524, 2
      %v5527 = vor.u32 %v5523, %v5526
      %v5528 = vrot.slane %v3113, 1
      %v5529 = vrot.slane %v3109, 2
      %v5530 = vor.u32 %v5528, %v5529
      %v5531 = vsel %vm5344, %v5527, %v5530
      %v5532 = vrot.slane %v3121, 1
      %v5533 = vrot.slane %v3117, 2
      %v5534 = vor.u32 %v5532, %v5533
      %v5535 = vsel %vm5344, %v5530, %v5534
      %v5537 = vshrl.u32 %v5305, 16
      %v5539 = vrot.slane %v5537, 1
      %v5540 = vshll.u32 %v5305, 16
      %v5542 = vrot.slane %v5540, 2
      %v5543 = vor.u32 %v5539, %v5542
      %v5544 = vsel %vm5344, %v5534, %v5543
      %v5546 = vshrl.u32 %v4569, 16
      %v5548 = vrot.slane %v5546, 1
      %v5549 = vshll.u32 %v4569, 16
      %v5551 = vrot.slane %v5549, 2
      %v5552 = vor.u32 %v5548, %v5551
      %v5553 = vrot.slane %v3141, 1
      %v5554 = vrot.slane %v3137, 2
      %v5555 = vor.u32 %v5553, %v5554
      %v5556 = vsel %vm5344, %v5552, %v5555
      %v5557 = vrot.slane %v3149, 1
      %v5558 = vrot.slane %v3145, 2
      %v5559 = vor.u32 %v5557, %v5558
      %v5560 = vsel %vm5344, %v5555, %v5559
      %v5562 = vshrl.u32 %v5306, 16
      %v5564 = vrot.slane %v5562, 1
      %v5565 = vshll.u32 %v5306, 16
      %v5567 = vrot.slane %v5565, 2
      %v5568 = vor.u32 %v5564, %v5567
      %v5569 = vsel %vm5344, %v5559, %v5568
      %v5571 = vshrl.u32 %v4570, 16
      %v5573 = vrot.slane %v5571, 1
      %v5574 = vshll.u32 %v4570, 16
      %v5576 = vrot.slane %v5574, 2
      %v5577 = vor.u32 %v5573, %v5576
      %v5578 = vrot.slane %v3169, 1
      %v5579 = vrot.slane %v3165, 2
      %v5580 = vor.u32 %v5578, %v5579
      %v5581 = vsel %vm5344, %v5577, %v5580
      %v5582 = vrot.slane %v3177, 1
      %v5583 = vrot.slane %v3173, 2
      %v5584 = vor.u32 %v5582, %v5583
      %v5585 = vsel %vm5344, %v5580, %v5584
      %v5587 = vshrl.u32 %v5307, 16
      %v5589 = vrot.slane %v5587, 1
      %v5590 = vshll.u32 %v5307, 16
      %v5592 = vrot.slane %v5590, 2
      %v5593 = vor.u32 %v5589, %v5592
      %v5594 = vsel %vm5344, %v5584, %v5593
      %v5596 = vshrl.u32 %v4571, 16
      %v5598 = vrot.slane %v5596, 1
      %v5599 = vshll.u32 %v4571, 16
      %v5601 = vrot.slane %v5599, 2
      %v5602 = vor.u32 %v5598, %v5601
      %v5603 = vrot.slane %v3197, 1
      %v5604 = vrot.slane %v3193, 2
      %v5605 = vor.u32 %v5603, %v5604
      %v5606 = vsel %vm5344, %v5602, %v5605
      %v5607 = vrot.slane %v3205, 1
      %v5608 = vrot.slane %v3201, 2
      %v5609 = vor.u32 %v5607, %v5608
      %v5610 = vsel %vm5344, %v5605, %v5609
      %v5612 = vshrl.u32 %v5308, 16
      %v5614 = vrot.slane %v5612, 1
      %v5615 = vshll.u32 %v5308, 16
      %v5617 = vrot.slane %v5615, 2
      %v5618 = vor.u32 %v5614, %v5617
      %v5619 = vsel %vm5344, %v5609, %v5618
      %v5621 = vshrl.u32 %v4572, 16
      %v5623 = vrot.slane %v5621, 1
      %v5624 = vshll.u32 %v4572, 16
      %v5626 = vrot.slane %v5624, 2
      %v5627 = vor.u32 %v5623, %v5626
      %v5628 = vrot.slane %v3225, 1
      %v5629 = vrot.slane %v3221, 2
      %v5630 = vor.u32 %v5628, %v5629
      %v5631 = vsel %vm5344, %v5627, %v5630
      %v5632 = vrot.slane %v3233, 1
      %v5633 = vrot.slane %v3229, 2
      %v5634 = vor.u32 %v5632, %v5633
      %v5635 = vsel %vm5344, %v5630, %v5634
      %v5637 = vshrl.u32 %v5309, 16
      %v5639 = vrot.slane %v5637, 1
      %v5640 = vshll.u32 %v5309, 16
      %v5642 = vrot.slane %v5640, 2
      %v5643 = vor.u32 %v5639, %v5642
      %v5644 = vsel %vm5344, %v5634, %v5643
      %v5646 = vshrl.u32 %v4573, 16
      %v5648 = vrot.slane %v5646, 1
      %v5649 = vshll.u32 %v4573, 16
      %v5651 = vrot.slane %v5649, 2
      %v5652 = vor.u32 %v5648, %v5651
      %v5653 = vrot.slane %v3253, 1
      %v5654 = vrot.slane %v3249, 2
      %v5655 = vor.u32 %v5653, %v5654
      %v5656 = vsel %vm5344, %v5652, %v5655
      %v5657 = vrot.slane %v3261, 1
      %v5658 = vrot.slane %v3257, 2
      %v5659 = vor.u32 %v5657, %v5658
      %v5660 = vsel %vm5344, %v5655, %v5659
      %v5662 = vshrl.u32 %v5310, 16
      %v5664 = vrot.slane %v5662, 1
      %v5665 = vshll.u32 %v5310, 16
      %v5667 = vrot.slane %v5665, 2
      %v5668 = vor.u32 %v5664, %v5667
      %v5669 = vsel %vm5344, %v5659, %v5668
      %v5671 = vshrl.u32 %v4574, 16
      %v5673 = vrot.slane %v5671, 1
      %v5674 = vshll.u32 %v4574, 16
      %v5676 = vrot.slane %v5674, 2
      %v5677 = vor.u32 %v5673, %v5676
      %v5678 = vrot.slane %v3281, 1
      %v5679 = vrot.slane %v3277, 2
      %v5680 = vor.u32 %v5678, %v5679
      %v5681 = vsel %vm5344, %v5677, %v5680
      %v5682 = vrot.slane %v3289, 1
      %v5683 = vrot.slane %v3285, 2
      %v5684 = vor.u32 %v5682, %v5683
      %v5685 = vsel %vm5344, %v5680, %v5684
      %v5687 = vshrl.u32 %v5311, 16
      %v5689 = vrot.slane %v5687, 1
      %v5690 = vshll.u32 %v5311, 16
      %v5692 = vrot.slane %v5690, 2
      %v5693 = vor.u32 %v5689, %v5692
      %v5694 = vsel %vm5344, %v5684, %v5693
      %v5696 = vshrl.u32 %v4575, 16
      %v5698 = vrot.slane %v5696, 1
      %v5699 = vshll.u32 %v4575, 16
      %v5701 = vrot.slane %v5699, 2
      %v5702 = vor.u32 %v5698, %v5701
      %v5703 = vrot.slane %v3309, 1
      %v5704 = vrot.slane %v3305, 2
      %v5705 = vor.u32 %v5703, %v5704
      %v5706 = vsel %vm5344, %v5702, %v5705
      %v5707 = vrot.slane %v3317, 1
      %v5708 = vrot.slane %v3313, 2
      %v5709 = vor.u32 %v5707, %v5708
      %v5710 = vsel %vm5344, %v5705, %v5709
      %v5712 = vshrl.u32 %v5312, 16
      %v5714 = vrot.slane %v5712, 1
      %v5715 = vshll.u32 %v5312, 16
      %v5717 = vrot.slane %v5715, 2
      %v5718 = vor.u32 %v5714, %v5717
      %v5719 = vsel %vm5344, %v5709, %v5718
      %v5721 = vshrl.u32 %v4576, 16
      %v5723 = vrot.slane %v5721, 1
      %v5724 = vshll.u32 %v4576, 16
      %v5726 = vrot.slane %v5724, 2
      %v5727 = vor.u32 %v5723, %v5726
      %v5728 = vrot.slane %v3337, 1
      %v5729 = vrot.slane %v3333, 2
      %v5730 = vor.u32 %v5728, %v5729
      %v5731 = vsel %vm5344, %v5727, %v5730
      %v5732 = vrot.slane %v3345, 1
      %v5733 = vrot.slane %v3341, 2
      %v5734 = vor.u32 %v5732, %v5733
      %v5735 = vsel %vm5344, %v5730, %v5734
      %v5737 = vshrl.u32 %v5313, 16
      %v5739 = vrot.slane %v5737, 1
      %v5740 = vshll.u32 %v5313, 16
      %v5742 = vrot.slane %v5740, 2
      %v5743 = vor.u32 %v5739, %v5742
      %v5744 = vsel %vm5344, %v5734, %v5743
      %v5746 = vshrl.u32 %v4577, 16
      %v5748 = vrot.slane %v5746, 1
      %v5749 = vshll.u32 %v4577, 16
      %v5751 = vrot.slane %v5749, 2
      %v5752 = vor.u32 %v5748, %v5751
      %v5753 = vrot.slane %v3365, 1
      %v5754 = vrot.slane %v3361, 2
      %v5755 = vor.u32 %v5753, %v5754
      %v5756 = vsel %vm5344, %v5752, %v5755
      %v5757 = vrot.slane %v3373, 1
      %v5758 = vrot.slane %v3369, 2
      %v5759 = vor.u32 %v5757, %v5758
      %v5760 = vsel %vm5344, %v5755, %v5759
      %v5762 = vshrl.u32 %v5314, 16
      %v5764 = vrot.slane %v5762, 1
      %v5765 = vshll.u32 %v5314, 16
      %v5767 = vrot.slane %v5765, 2
      %v5768 = vor.u32 %v5764, %v5767
      %v5769 = vsel %vm5344, %v5759, %v5768
      %v5771 = vshrl.u32 %v4578, 16
      %v5773 = vrot.slane %v5771, 1
      %v5774 = vshll.u32 %v4578, 16
      %v5776 = vrot.slane %v5774, 2
      %v5777 = vor.u32 %v5773, %v5776
      %v5778 = vrot.slane %v3393, 1
      %v5779 = vrot.slane %v3389, 2
      %v5780 = vor.u32 %v5778, %v5779
      %v5781 = vsel %vm5344, %v5777, %v5780
      %v5782 = vrot.slane %v3401, 1
      %v5783 = vrot.slane %v3397, 2
      %v5784 = vor.u32 %v5782, %v5783
      %v5785 = vsel %vm5344, %v5780, %v5784
      %v5787 = vshrl.u32 %v5315, 16
      %v5789 = vrot.slane %v5787, 1
      %v5790 = vshll.u32 %v5315, 16
      %v5792 = vrot.slane %v5790, 2
      %v5793 = vor.u32 %v5789, %v5792
      %v5794 = vsel %vm5344, %v5784, %v5793
      %v5796 = vshrl.u32 %v4579, 16
      %v5798 = vrot.slane %v5796, 1
      %v5799 = vshll.u32 %v4579, 16
      %v5801 = vrot.slane %v5799, 2
      %v5802 = vor.u32 %v5798, %v5801
      %v5803 = vrot.slane %v3421, 1
      %v5804 = vrot.slane %v3417, 2
      %v5805 = vor.u32 %v5803, %v5804
      %v5806 = vsel %vm5344, %v5802, %v5805
      %v5807 = vrot.slane %v3429, 1
      %v5808 = vrot.slane %v3425, 2
      %v5809 = vor.u32 %v5807, %v5808
      %v5810 = vsel %vm5344, %v5805, %v5809
      %v5812 = vshrl.u32 %v5316, 16
      %v5814 = vrot.slane %v5812, 1
      %v5815 = vshll.u32 %v5316, 16
      %v5817 = vrot.slane %v5815, 2
      %v5818 = vor.u32 %v5814, %v5817
      %v5819 = vsel %vm5344, %v5809, %v5818
      %v5821 = vshrl.u32 %v4580, 16
      %v5823 = vrot.slane %v5821, 1
      %v5824 = vshll.u32 %v4580, 16
      %v5826 = vrot.slane %v5824, 2
      %v5827 = vor.u32 %v5823, %v5826
      %v5828 = vrot.slane %v3449, 1
      %v5829 = vrot.slane %v3445, 2
      %v5830 = vor.u32 %v5828, %v5829
      %v5831 = vsel %vm5344, %v5827, %v5830
      %v5832 = vrot.slane %v3457, 1
      %v5833 = vrot.slane %v3453, 2
      %v5834 = vor.u32 %v5832, %v5833
      %v5835 = vsel %vm5344, %v5830, %v5834
      %v5837 = vshrl.u32 %v5317, 16
      %v5839 = vrot.slane %v5837, 1
      %v5840 = vshll.u32 %v5317, 16
      %v5842 = vrot.slane %v5840, 2
      %v5843 = vor.u32 %v5839, %v5842
      %v5844 = vsel %vm5344, %v5834, %v5843
      %v5846 = vshrl.u32 %v4581, 16
      %v5848 = vrot.slane %v5846, 1
      %v5849 = vshll.u32 %v4581, 16
      %v5851 = vrot.slane %v5849, 2
      %v5852 = vor.u32 %v5848, %v5851
      %v5853 = vrot.slane %v3477, 1
      %v5854 = vrot.slane %v3473, 2
      %v5855 = vor.u32 %v5853, %v5854
      %v5856 = vsel %vm5344, %v5852, %v5855
      %v5857 = vrot.slane %v3485, 1
      %v5858 = vrot.slane %v3481, 2
      %v5859 = vor.u32 %v5857, %v5858
      %v5860 = vsel %vm5344, %v5855, %v5859
      %v5862 = vshrl.u32 %v5318, 16
      %v5864 = vrot.slane %v5862, 1
      %v5865 = vshll.u32 %v5318, 16
      %v5867 = vrot.slane %v5865, 2
      %v5868 = vor.u32 %v5864, %v5867
      %v5869 = vsel %vm5344, %v5859, %v5868
      %v5871 = vshrl.u32 %v4582, 16
      %v5873 = vrot.slane %v5871, 1
      %v5874 = vshll.u32 %v4582, 16
      %v5876 = vrot.slane %v5874, 2
      %v5877 = vor.u32 %v5873, %v5876
      %v5878 = vrot.slane %v3505, 1
      %v5879 = vrot.slane %v3501, 2
      %v5880 = vor.u32 %v5878, %v5879
      %v5881 = vsel %vm5344, %v5877, %v5880
      %v5882 = vrot.slane %v3513, 1
      %v5883 = vrot.slane %v3509, 2
      %v5884 = vor.u32 %v5882, %v5883
      %v5885 = vsel %vm5344, %v5880, %v5884
      %v5887 = vshrl.u32 %v5319, 16
      %v5889 = vrot.slane %v5887, 1
      %v5890 = vshll.u32 %v5319, 16
      %v5892 = vrot.slane %v5890, 2
      %v5893 = vor.u32 %v5889, %v5892
      %v5894 = vsel %vm5344, %v5884, %v5893
      %v5896 = vshrl.u32 %v4583, 16
      %v5898 = vrot.slane %v5896, 1
      %v5899 = vshll.u32 %v4583, 16
      %v5901 = vrot.slane %v5899, 2
      %v5902 = vor.u32 %v5898, %v5901
      %v5903 = vrot.slane %v3533, 1
      %v5904 = vrot.slane %v3529, 2
      %v5905 = vor.u32 %v5903, %v5904
      %v5906 = vsel %vm5344, %v5902, %v5905
      %v5907 = vrot.slane %v3541, 1
      %v5908 = vrot.slane %v3537, 2
      %v5909 = vor.u32 %v5907, %v5908
      %v5910 = vsel %vm5344, %v5905, %v5909
      %v5912 = vshrl.u32 %v5320, 16
      %v5914 = vrot.slane %v5912, 1
      %v5915 = vshll.u32 %v5320, 16
      %v5917 = vrot.slane %v5915, 2
      %v5918 = vor.u32 %v5914, %v5917
      %v5919 = vsel %vm5344, %v5909, %v5918
      %v5921 = vshrl.u32 %v4584, 16
      %v5923 = vrot.slane %v5921, 1
      %v5924 = vshll.u32 %v4584, 16
      %v5926 = vrot.slane %v5924, 2
      %v5927 = vor.u32 %v5923, %v5926
      %v5928 = vrot.slane %v3561, 1
      %v5929 = vrot.slane %v3557, 2
      %v5930 = vor.u32 %v5928, %v5929
      %v5931 = vsel %vm5344, %v5927, %v5930
      %v5932 = vrot.slane %v3569, 1
      %v5933 = vrot.slane %v3565, 2
      %v5934 = vor.u32 %v5932, %v5933
      %v5935 = vsel %vm5344, %v5930, %v5934
      %v5937 = vshrl.u32 %v5321, 16
      %v5939 = vrot.slane %v5937, 1
      %v5940 = vshll.u32 %v5321, 16
      %v5942 = vrot.slane %v5940, 2
      %v5943 = vor.u32 %v5939, %v5942
      %v5944 = vsel %vm5344, %v5934, %v5943
      %v5946 = vshrl.u32 %v4585, 16
      %v5948 = vrot.slane %v5946, 1
      %v5949 = vshll.u32 %v4585, 16
      %v5951 = vrot.slane %v5949, 2
      %v5952 = vor.u32 %v5948, %v5951
      %v5953 = vrot.slane %v3589, 1
      %v5954 = vrot.slane %v3585, 2
      %v5955 = vor.u32 %v5953, %v5954
      %v5956 = vsel %vm5344, %v5952, %v5955
      %v5957 = vrot.slane %v3597, 1
      %v5958 = vrot.slane %v3593, 2
      %v5959 = vor.u32 %v5957, %v5958
      %v5960 = vsel %vm5344, %v5955, %v5959
      %v5962 = vshrl.u32 %v5322, 16
      %v5964 = vrot.slane %v5962, 1
      %v5965 = vshll.u32 %v5322, 16
      %v5967 = vrot.slane %v5965, 2
      %v5968 = vor.u32 %v5964, %v5967
      %v5969 = vsel %vm5344, %v5959, %v5968
      %v5971 = vshrl.u32 %v4586, 16
      %v5973 = vrot.slane %v5971, 1
      %v5974 = vshll.u32 %v4586, 16
      %v5976 = vrot.slane %v5974, 2
      %v5977 = vor.u32 %v5973, %v5976
      %v5978 = vrot.slane %v3617, 1
      %v5979 = vrot.slane %v3613, 2
      %v5980 = vor.u32 %v5978, %v5979
      %v5981 = vsel %vm5344, %v5977, %v5980
      %v5982 = vrot.slane %v3625, 1
      %v5983 = vrot.slane %v3621, 2
      %v5984 = vor.u32 %v5982, %v5983
      %v5985 = vsel %vm5344, %v5980, %v5984
      %v5987 = vshrl.u32 %v5323, 16
      %v5989 = vrot.slane %v5987, 1
      %v5990 = vshll.u32 %v5323, 16
      %v5992 = vrot.slane %v5990, 2
      %v5993 = vor.u32 %v5989, %v5992
      %v5994 = vsel %vm5344, %v5984, %v5993
      %v5996 = vshrl.u32 %v4587, 16
      %v5998 = vrot.slane %v5996, 1
      %v5999 = vshll.u32 %v4587, 16
      %v6001 = vrot.slane %v5999, 2
      %v6002 = vor.u32 %v5998, %v6001
      %v6003 = vrot.slane %v3645, 1
      %v6004 = vrot.slane %v3641, 2
      %v6005 = vor.u32 %v6003, %v6004
      %v6006 = vsel %vm5344, %v6002, %v6005
      %v6007 = vrot.slane %v3653, 1
      %v6008 = vrot.slane %v3649, 2
      %v6009 = vor.u32 %v6007, %v6008
      %v6010 = vsel %vm5344, %v6005, %v6009
      %v6012 = vshrl.u32 %v5324, 16
      %v6014 = vrot.slane %v6012, 1
      %v6015 = vshll.u32 %v5324, 16
      %v6017 = vrot.slane %v6015, 2
      %v6018 = vor.u32 %v6014, %v6017
      %v6019 = vsel %vm5344, %v6009, %v6018
      %v6021 = vshrl.u32 %v4588, 16
      %v6023 = vrot.slane %v6021, 1
      %v6024 = vshll.u32 %v4588, 16
      %v6026 = vrot.slane %v6024, 2
      %v6027 = vor.u32 %v6023, %v6026
      %v6028 = vrot.slane %v3673, 1
      %v6029 = vrot.slane %v3669, 2
      %v6030 = vor.u32 %v6028, %v6029
      %v6031 = vsel %vm5344, %v6027, %v6030
      %v6032 = vrot.slane %v3681, 1
      %v6033 = vrot.slane %v3677, 2
      %v6034 = vor.u32 %v6032, %v6033
      %v6035 = vsel %vm5344, %v6030, %v6034
      %v6037 = vshrl.u32 %v5325, 16
      %v6039 = vrot.slane %v6037, 1
      %v6040 = vshll.u32 %v5325, 16
      %v6042 = vrot.slane %v6040, 2
      %v6043 = vor.u32 %v6039, %v6042
      %v6044 = vsel %vm5344, %v6034, %v6043
      %v6046 = vshrl.u32 %v4589, 16
      %v6048 = vrot.slane %v6046, 1
      %v6049 = vshll.u32 %v4589, 16
      %v6051 = vrot.slane %v6049, 2
      %v6052 = vor.u32 %v6048, %v6051
      %v6053 = vrot.slane %v3701, 1
      %v6054 = vrot.slane %v3697, 2
      %v6055 = vor.u32 %v6053, %v6054
      %v6056 = vsel %vm5344, %v6052, %v6055
      %v6057 = vrot.slane %v3709, 1
      %v6058 = vrot.slane %v3705, 2
      %v6059 = vor.u32 %v6057, %v6058
      %v6060 = vsel %vm5344, %v6055, %v6059
      %v6062 = vshrl.u32 %v5326, 16
      %v6064 = vrot.slane %v6062, 1
      %v6065 = vshll.u32 %v5326, 16
      %v6067 = vrot.slane %v6065, 2
      %v6068 = vor.u32 %v6064, %v6067
      %v6069 = vsel %vm5344, %v6059, %v6068
      %v6071 = vshrl.u32 %v4590, 16
      %v6073 = vrot.slane %v6071, 1
      %v6074 = vshll.u32 %v4590, 16
      %v6076 = vrot.slane %v6074, 2
      %v6077 = vor.u32 %v6073, %v6076
      %v6078 = vrot.slane %v3729, 1
      %v6079 = vrot.slane %v3725, 2
      %v6080 = vor.u32 %v6078, %v6079
      %v6081 = vsel %vm5344, %v6077, %v6080
      %v6082 = vrot.slane %v3737, 1
      %v6083 = vrot.slane %v3733, 2
      %v6084 = vor.u32 %v6082, %v6083
      %v6085 = vsel %vm5344, %v6080, %v6084
      %v6087 = vshrl.u32 %v5327, 16
      %v6089 = vrot.slane %v6087, 1
      %v6090 = vshll.u32 %v5327, 16
      %v6092 = vrot.slane %v6090, 2
      %v6093 = vor.u32 %v6089, %v6092
      %v6094 = vsel %vm5344, %v6084, %v6093
      %v6096 = vshrl.u32 %v4591, 16
      %v6098 = vrot.slane %v6096, 1
      %v6099 = vshll.u32 %v4591, 16
      %v6101 = vrot.slane %v6099, 2
      %v6102 = vor.u32 %v6098, %v6101
      %v6103 = vrot.slane %v3757, 1
      %v6104 = vrot.slane %v3753, 2
      %v6105 = vor.u32 %v6103, %v6104
      %v6106 = vsel %vm5344, %v6102, %v6105
      %v6107 = vrot.slane %v3765, 1
      %v6108 = vrot.slane %v3761, 2
      %v6109 = vor.u32 %v6107, %v6108
      %v6110 = vsel %vm5344, %v6105, %v6109
      %v6112 = vshrl.u32 %v5328, 16
      %v6114 = vrot.slane %v6112, 1
      %v6115 = vshll.u32 %v5328, 16
      %v6117 = vrot.slane %v6115, 2
      %v6118 = vor.u32 %v6114, %v6117
      %v6119 = vsel %vm5344, %v6109, %v6118
      %v6121 = vshrl.u32 %v4592, 16
      %v6123 = vrot.slane %v6121, 1
      %v6124 = vshll.u32 %v4592, 16
      %v6126 = vrot.slane %v6124, 2
      %v6127 = vor.u32 %v6123, %v6126
      %v6128 = vrot.slane %v3785, 1
      %v6129 = vrot.slane %v3781, 2
      %v6130 = vor.u32 %v6128, %v6129
      %v6131 = vsel %vm5344, %v6127, %v6130
      %v6132 = vrot.slane %v3793, 1
      %v6133 = vrot.slane %v3789, 2
      %v6134 = vor.u32 %v6132, %v6133
      %v6135 = vsel %vm5344, %v6130, %v6134
      %v6137 = vshrl.u32 %v5329, 16
      %v6139 = vrot.slane %v6137, 1
      %v6140 = vshll.u32 %v5329, 16
      %v6142 = vrot.slane %v6140, 2
      %v6143 = vor.u32 %v6139, %v6142
      %v6144 = vsel %vm5344, %v6134, %v6143
      %v6146 = vshrl.u32 %v4593, 16
      %v6148 = vrot.slane %v6146, 1
      %v6149 = vshll.u32 %v4593, 16
      %v6151 = vrot.slane %v6149, 2
      %v6152 = vor.u32 %v6148, %v6151
      %v6153 = vrot.slane %v3813, 1
      %v6154 = vrot.slane %v3809, 2
      %v6155 = vor.u32 %v6153, %v6154
      %v6156 = vsel %vm5344, %v6152, %v6155
      %v6157 = vrot.slane %v3821, 1
      %v6158 = vrot.slane %v3817, 2
      %v6159 = vor.u32 %v6157, %v6158
      %v6160 = vsel %vm5344, %v6155, %v6159
      %v6162 = vshrl.u32 %v5330, 16
      %v6164 = vrot.slane %v6162, 1
      %v6165 = vshll.u32 %v5330, 16
      %v6167 = vrot.slane %v6165, 2
      %v6168 = vor.u32 %v6164, %v6167
      %v6169 = vsel %vm5344, %v6159, %v6168
      %v6171 = vshrl.u32 %v4594, 16
      %v6173 = vrot.slane %v6171, 1
      %v6174 = vshll.u32 %v4594, 16
      %v6176 = vrot.slane %v6174, 2
      %v6177 = vor.u32 %v6173, %v6176
      %v6178 = vrot.slane %v3841, 1
      %v6179 = vrot.slane %v3837, 2
      %v6180 = vor.u32 %v6178, %v6179
      %v6181 = vsel %vm5344, %v6177, %v6180
      %v6182 = vrot.slane %v3849, 1
      %v6183 = vrot.slane %v3845, 2
      %v6184 = vor.u32 %v6182, %v6183
      %v6185 = vsel %vm5344, %v6180, %v6184
      %v6187 = vshrl.u32 %v5331, 16
      %v6189 = vrot.slane %v6187, 1
      %v6190 = vshll.u32 %v5331, 16
      %v6192 = vrot.slane %v6190, 2
      %v6193 = vor.u32 %v6189, %v6192
      %v6194 = vsel %vm5344, %v6184, %v6193
      %v6196 = vshrl.u32 %v4595, 16
      %v6198 = vrot.slane %v6196, 1
      %v6199 = vshll.u32 %v4595, 16
      %v6201 = vrot.slane %v6199, 2
      %v6202 = vor.u32 %v6198, %v6201
      %v6203 = vrot.slane %v3869, 1
      %v6204 = vrot.slane %v3865, 2
      %v6205 = vor.u32 %v6203, %v6204
      %v6206 = vsel %vm5344, %v6202, %v6205
      %v6207 = vrot.slane %v3877, 1
      %v6208 = vrot.slane %v3873, 2
      %v6209 = vor.u32 %v6207, %v6208
      %v6210 = vsel %vm5344, %v6205, %v6209
      %v6212 = vshrl.u32 %v5332, 16
      %v6214 = vrot.slane %v6212, 1
      %v6215 = vshll.u32 %v5332, 16
      %v6217 = vrot.slane %v6215, 2
      %v6218 = vor.u32 %v6214, %v6217
      %v6219 = vsel %vm5344, %v6209, %v6218
      %v6221 = vshrl.u32 %v4596, 16
      %v6223 = vrot.slane %v6221, 1
      %v6224 = vshll.u32 %v4596, 16
      %v6226 = vrot.slane %v6224, 2
      %v6227 = vor.u32 %v6223, %v6226
      %v6228 = vrot.slane %v3897, 1
      %v6229 = vrot.slane %v3893, 2
      %v6230 = vor.u32 %v6228, %v6229
      %v6231 = vsel %vm5344, %v6227, %v6230
      %v6232 = vrot.slane %v3905, 1
      %v6233 = vrot.slane %v3901, 2
      %v6234 = vor.u32 %v6232, %v6233
      %v6235 = vsel %vm5344, %v6230, %v6234
      %v6237 = vshrl.u32 %v5333, 16
      %v6239 = vrot.slane %v6237, 1
      %v6240 = vshll.u32 %v5333, 16
      %v6242 = vrot.slane %v6240, 2
      %v6243 = vor.u32 %v6239, %v6242
      %v6244 = vsel %vm5344, %v6234, %v6243
      %v6246 = vshrl.u32 %v4597, 16
      %v6248 = vrot.slane %v6246, 1
      %v6249 = vshll.u32 %v4597, 16
      %v6251 = vrot.slane %v6249, 2
      %v6252 = vor.u32 %v6248, %v6251
      %v6253 = vrot.slane %v3925, 1
      %v6254 = vrot.slane %v3921, 2
      %v6255 = vor.u32 %v6253, %v6254
      %v6256 = vsel %vm5344, %v6252, %v6255
      %v6257 = vrot.slane %v3933, 1
      %v6258 = vrot.slane %v3929, 2
      %v6259 = vor.u32 %v6257, %v6258
      %v6260 = vsel %vm5344, %v6255, %v6259
      %v6262 = vshrl.u32 %v5334, 16
      %v6264 = vrot.slane %v6262, 1
      %v6265 = vshll.u32 %v5334, 16
      %v6267 = vrot.slane %v6265, 2
      %v6268 = vor.u32 %v6264, %v6267
      %v6269 = vsel %vm5344, %v6259, %v6268
      %v6271 = vshrl.u32 %v4598, 16
      %v6273 = vrot.slane %v6271, 1
      %v6274 = vshll.u32 %v4598, 16
      %v6276 = vrot.slane %v6274, 2
      %v6277 = vor.u32 %v6273, %v6276
      %v6278 = vrot.slane %v3953, 1
      %v6279 = vrot.slane %v3949, 2
      %v6280 = vor.u32 %v6278, %v6279
      %v6281 = vsel %vm5344, %v6277, %v6280
      %v6282 = vrot.slane %v3961, 1
      %v6283 = vrot.slane %v3957, 2
      %v6284 = vor.u32 %v6282, %v6283
      %v6285 = vsel %vm5344, %v6280, %v6284
      %v6287 = vshrl.u32 %v5335, 16
      %v6289 = vrot.slane %v6287, 1
      %v6290 = vshll.u32 %v5335, 16
      %v6292 = vrot.slane %v6290, 2
      %v6293 = vor.u32 %v6289, %v6292
      %v6294 = vsel %vm5344, %v6284, %v6293
      %v6296 = vshrl.u32 %v4599, 16
      %v6298 = vrot.slane %v6296, 1
      %v6299 = vshll.u32 %v4599, 16
      %v6301 = vrot.slane %v6299, 2
      %v6302 = vor.u32 %v6298, %v6301
      %v6303 = vrot.slane %v3981, 1
      %v6304 = vrot.slane %v3977, 2
      %v6305 = vor.u32 %v6303, %v6304
      %v6306 = vsel %vm5344, %v6302, %v6305
      %v6307 = vrot.slane %v3989, 1
      %v6308 = vrot.slane %v3985, 2
      %v6309 = vor.u32 %v6307, %v6308
      %v6310 = vsel %vm5344, %v6305, %v6309
      %v6312 = vshrl.u32 %v5336, 16
      %v6314 = vrot.slane %v6312, 1
      %v6315 = vshll.u32 %v5336, 16
      %v6317 = vrot.slane %v6315, 2
      %v6318 = vor.u32 %v6314, %v6317
      %v6319 = vsel %vm5344, %v6309, %v6318
      %v6321 = vshrl.u32 %v4600, 16
      %v6323 = vrot.slane %v6321, 1
      %v6324 = vshll.u32 %v4600, 16
      %v6326 = vrot.slane %v6324, 2
      %v6327 = vor.u32 %v6323, %v6326
      %v6328 = vrot.slane %v4009, 1
      %v6329 = vrot.slane %v4005, 2
      %v6330 = vor.u32 %v6328, %v6329
      %v6331 = vsel %vm5344, %v6327, %v6330
      %v6332 = vrot.slane %v4017, 1
      %v6333 = vrot.slane %v4013, 2
      %v6334 = vor.u32 %v6332, %v6333
      %v6335 = vsel %vm5344, %v6330, %v6334
      %v6337 = vshrl.u32 %v5337, 16
      %v6339 = vrot.slane %v6337, 1
      %v6340 = vshll.u32 %v5337, 16
      %v6342 = vrot.slane %v6340, 2
      %v6343 = vor.u32 %v6339, %v6342
      %v6344 = vsel %vm5344, %v6334, %v6343
      %v6346 = vshrl.u32 %v4601, 16
      %v6348 = vrot.slane %v6346, 1
      %v6349 = vshll.u32 %v4601, 16
      %v6351 = vrot.slane %v6349, 2
      %v6352 = vor.u32 %v6348, %v6351
      %v6353 = vrot.slane %v4037, 1
      %v6354 = vrot.slane %v4033, 2
      %v6355 = vor.u32 %v6353, %v6354
      %v6356 = vsel %vm5344, %v6352, %v6355
      %v6357 = vrot.slane %v4045, 1
      %v6358 = vrot.slane %v4041, 2
      %v6359 = vor.u32 %v6357, %v6358
      %v6360 = vsel %vm5344, %v6355, %v6359
      %v6362 = vshrl.u32 %v5338, 16
      %v6364 = vrot.slane %v6362, 1
      %v6365 = vshll.u32 %v5338, 16
      %v6367 = vrot.slane %v6365, 2
      %v6368 = vor.u32 %v6364, %v6367
      %v6369 = vsel %vm5344, %v6359, %v6368
      %v6371 = vshrl.u32 %v4602, 16
      %v6373 = vrot.slane %v6371, 1
      %v6374 = vshll.u32 %v4602, 16
      %v6376 = vrot.slane %v6374, 2
      %v6377 = vor.u32 %v6373, %v6376
      %v6378 = vrot.slane %v4065, 1
      %v6379 = vrot.slane %v4061, 2
      %v6380 = vor.u32 %v6378, %v6379
      %v6381 = vsel %vm5344, %v6377, %v6380
      %v6382 = vrot.slane %v4073, 1
      %v6383 = vrot.slane %v4069, 2
      %v6384 = vor.u32 %v6382, %v6383
      %v6385 = vsel %vm5344, %v6380, %v6384
      %v6387 = vshrl.u32 %v5339, 16
      %v6389 = vrot.slane %v6387, 1
      %v6390 = vshll.u32 %v5339, 16
      %v6392 = vrot.slane %v6390, 2
      %v6393 = vor.u32 %v6389, %v6392
      %v6394 = vsel %vm5344, %v6384, %v6393
      %v6396 = vshrl.u32 %v4603, 16
      %v6398 = vrot.slane %v6396, 1
      %v6399 = vshll.u32 %v4603, 16
      %v6401 = vrot.slane %v6399, 2
      %v6402 = vor.u32 %v6398, %v6401
      %v6403 = vrot.slane %v4093, 1
      %v6404 = vrot.slane %v4089, 2
      %v6405 = vor.u32 %v6403, %v6404
      %v6406 = vsel %vm5344, %v6402, %v6405
      %v6407 = vrot.slane %v4101, 1
      %v6408 = vrot.slane %v4097, 2
      %v6409 = vor.u32 %v6407, %v6408
      %v6410 = vsel %vm5344, %v6405, %v6409
      %v6412 = vshrl.u32 %v5340, 16
      %v6414 = vrot.slane %v6412, 1
      %v6415 = vshll.u32 %v5340, 16
      %v6417 = vrot.slane %v6415, 2
      %v6418 = vor.u32 %v6414, %v6417
      %v6419 = vsel %vm5344, %v6409, %v6418
      %v6421 = vshrl.u32 %v4604, 16
      %v6423 = vrot.slane %v6421, 1
      %v6424 = vshll.u32 %v4604, 16
      %v6426 = vrot.slane %v6424, 2
      %v6427 = vor.u32 %v6423, %v6426
      %v6428 = vrot.slane %v4121, 1
      %v6429 = vrot.slane %v4117, 2
      %v6430 = vor.u32 %v6428, %v6429
      %v6431 = vsel %vm5344, %v6427, %v6430
      %v6432 = vrot.slane %v4129, 1
      %v6433 = vrot.slane %v4125, 2
      %v6434 = vor.u32 %v6432, %v6433
      %v6435 = vsel %vm5344, %v6430, %v6434
      %v6437 = vshrl.u32 %v5341, 16
      %v6439 = vrot.slane %v6437, 1
      %v6440 = vshll.u32 %v5341, 16
      %v6442 = vrot.slane %v6440, 2
      %v6443 = vor.u32 %v6439, %v6442
      %v6444 = vsel %vm5344, %v6434, %v6443
      %v6446 = vshrl.u32 %v4605, 16
      %v6448 = vrot.slane %v6446, 1
      %v6449 = vshll.u32 %v4605, 16
      %v6451 = vrot.slane %v6449, 2
      %v6452 = vor.u32 %v6448, %v6451
      %v6453 = vrot.slane %v4149, 1
      %v6454 = vrot.slane %v4145, 2
      %v6455 = vor.u32 %v6453, %v6454
      %v6456 = vsel %vm5344, %v6452, %v6455
      %v6457 = vrot.slane %v4157, 1
      %v6458 = vrot.slane %v4153, 2
      %v6459 = vor.u32 %v6457, %v6458
      %v6460 = vsel %vm5344, %v6455, %v6459
      %v6462 = vshrl.u32 %v5342, 16
      %v6464 = vrot.slane %v6462, 1
      %v6465 = vshll.u32 %v5342, 16
      %v6467 = vrot.slane %v6465, 2
      %v6468 = vor.u32 %v6464, %v6467
      %v6469 = vsel %vm5344, %v6459, %v6468
      %v6471 = vshrl.u32 %v4606, 16
      %v6473 = vrot.slane %v6471, 1
      %v6474 = vshll.u32 %v4606, 16
      %v6476 = vrot.slane %v6474, 2
      %v6477 = vor.u32 %v6473, %v6476
      %v6478 = vrot.slane %v4177, 1
      %v6479 = vrot.slane %v4173, 2
      %v6480 = vor.u32 %v6478, %v6479
      %v6481 = vsel %vm5344, %v6477, %v6480
      %v6482 = vrot.slane %v4185, 1
      %v6483 = vrot.slane %v4181, 2
      %v6484 = vor.u32 %v6482, %v6483
      %v6485 = vsel %vm5344, %v6480, %v6484
      %v6487 = vshrl.u32 %v5343, 16
      %v6489 = vrot.slane %v6487, 1
      %v6490 = vshll.u32 %v5343, 16
      %v6492 = vrot.slane %v6490, 2
      %v6493 = vor.u32 %v6489, %v6492
      %v6494 = vsel %vm5344, %v6484, %v6493
      %6495 = vrot.lane.b32.xlu0 %v5356, 96
      %v6496 = vpop.permute.xlu0 %6495
      %6497 = vrot.lane.b32.xlu0 %v5360, 96
      %v6498 = vpop.permute.xlu0 %6497
      %6499 = vrot.lane.b32.xlu0 %v5369, 96
      %v6500 = vpop.permute.xlu0 %6499
      %6501 = vrot.lane.b32.xlu0 %v5381, 96
      %v6502 = vpop.permute.xlu0 %6501
      %6503 = vrot.lane.b32.xlu0 %v5385, 96
      %v6504 = vpop.permute.xlu0 %6503
      %6505 = vrot.lane.b32.xlu0 %v5394, 96
      %v6506 = vpop.permute.xlu0 %6505
      %6507 = vrot.lane.b32.xlu0 %v5406, 96
      %v6508 = vpop.permute.xlu0 %6507
      %6509 = vrot.lane.b32.xlu0 %v5410, 96
      %v6510 = vpop.permute.xlu0 %6509
      %6511 = vrot.lane.b32.xlu0 %v5419, 96
      %v6512 = vpop.permute.xlu0 %6511
      %6513 = vrot.lane.b32.xlu0 %v5431, 96
      %v6514 = vpop.permute.xlu0 %6513
      %6515 = vrot.lane.b32.xlu0 %v5435, 96
      %v6516 = vpop.permute.xlu0 %6515
      %6517 = vrot.lane.b32.xlu0 %v5444, 96
      %v6518 = vpop.permute.xlu0 %6517
      %6519 = vrot.lane.b32.xlu0 %v5456, 96
      %v6520 = vpop.permute.xlu0 %6519
      %6521 = vrot.lane.b32.xlu0 %v5460, 96
      %v6522 = vpop.permute.xlu0 %6521
      %6523 = vrot.lane.b32.xlu0 %v5469, 96
      %v6524 = vpop.permute.xlu0 %6523
      %6525 = vrot.lane.b32.xlu0 %v5481, 96
      %v6526 = vpop.permute.xlu0 %6525
      %6527 = vrot.lane.b32.xlu0 %v5485, 96
      %v6528 = vpop.permute.xlu0 %6527
      %6529 = vrot.lane.b32.xlu0 %v5494, 96
      %v6530 = vpop.permute.xlu0 %6529
      %6531 = vrot.lane.b32.xlu0 %v5506, 96
      %v6532 = vpop.permute.xlu0 %6531
      %6533 = vrot.lane.b32.xlu0 %v5510, 96
      %v6534 = vpop.permute.xlu0 %6533
      %6535 = vrot.lane.b32.xlu0 %v5519, 96
      %v6536 = vpop.permute.xlu0 %6535
      %6537 = vrot.lane.b32.xlu0 %v5531, 96
      %v6538 = vpop.permute.xlu0 %6537
      %6539 = vrot.lane.b32.xlu0 %v5535, 96
      %v6540 = vpop.permute.xlu0 %6539
      %6541 = vrot.lane.b32.xlu0 %v5544, 96
      %v6542 = vpop.permute.xlu0 %6541
      %6543 = vrot.lane.b32.xlu0 %v5556, 96
      %v6544 = vpop.permute.xlu0 %6543
      %6545 = vrot.lane.b32.xlu0 %v5560, 96
      %v6546 = vpop.permute.xlu0 %6545
      %6547 = vrot.lane.b32.xlu0 %v5569, 96
      %v6548 = vpop.permute.xlu0 %6547
      %6549 = vrot.lane.b32.xlu0 %v5581, 96
      %v6550 = vpop.permute.xlu0 %6549
      %6551 = vrot.lane.b32.xlu0 %v5585, 96
      %v6552 = vpop.permute.xlu0 %6551
      %6553 = vrot.lane.b32.xlu0 %v5594, 96
      %v6554 = vpop.permute.xlu0 %6553
      %6555 = vrot.lane.b32.xlu0 %v5606, 96
      %v6556 = vpop.permute.xlu0 %6555
      %6557 = vrot.lane.b32.xlu0 %v5610, 96
      %v6558 = vpop.permute.xlu0 %6557
      %6559 = vrot.lane.b32.xlu0 %v5619, 96
      %v6560 = vpop.permute.xlu0 %6559
      %6561 = vrot.lane.b32.xlu0 %v5631, 96
      %v6562 = vpop.permute.xlu0 %6561
      %6563 = vrot.lane.b32.xlu0 %v5635, 96
      %v6564 = vpop.permute.xlu0 %6563
      %6565 = vrot.lane.b32.xlu0 %v5644, 96
      %v6566 = vpop.permute.xlu0 %6565
      %6567 = vrot.lane.b32.xlu0 %v5656, 96
      %v6568 = vpop.permute.xlu0 %6567
      %6569 = vrot.lane.b32.xlu0 %v5660, 96
      %v6570 = vpop.permute.xlu0 %6569
      %6571 = vrot.lane.b32.xlu0 %v5669, 96
      %v6572 = vpop.permute.xlu0 %6571
      %6573 = vrot.lane.b32.xlu0 %v5681, 96
      %v6574 = vpop.permute.xlu0 %6573
      %6575 = vrot.lane.b32.xlu0 %v5685, 96
      %v6576 = vpop.permute.xlu0 %6575
      %6577 = vrot.lane.b32.xlu0 %v5694, 96
      %v6578 = vpop.permute.xlu0 %6577
      %6579 = vrot.lane.b32.xlu0 %v5706, 96
      %v6580 = vpop.permute.xlu0 %6579
      %6581 = vrot.lane.b32.xlu0 %v5710, 96
      %v6582 = vpop.permute.xlu0 %6581
      %6583 = vrot.lane.b32.xlu0 %v5719, 96
      %v6584 = vpop.permute.xlu0 %6583
      %6585 = vrot.lane.b32.xlu0 %v5731, 96
      %v6586 = vpop.permute.xlu0 %6585
      %6587 = vrot.lane.b32.xlu0 %v5735, 96
      %v6588 = vpop.permute.xlu0 %6587
      %6589 = vrot.lane.b32.xlu0 %v5744, 96
      %v6590 = vpop.permute.xlu0 %6589
      %6591 = vrot.lane.b32.xlu0 %v5756, 96
      %v6592 = vpop.permute.xlu0 %6591
      %6593 = vrot.lane.b32.xlu0 %v5760, 96
      %v6594 = vpop.permute.xlu0 %6593
      %6595 = vrot.lane.b32.xlu0 %v5769, 96
      %v6596 = vpop.permute.xlu0 %6595
      %6597 = vrot.lane.b32.xlu0 %v5781, 96
      %v6598 = vpop.permute.xlu0 %6597
      %6599 = vrot.lane.b32.xlu0 %v5785, 96
      %v6600 = vpop.permute.xlu0 %6599
      %6601 = vrot.lane.b32.xlu0 %v5794, 96
      %v6602 = vpop.permute.xlu0 %6601
      %6603 = vrot.lane.b32.xlu0 %v5806, 96
      %v6604 = vpop.permute.xlu0 %6603
      %6605 = vrot.lane.b32.xlu0 %v5810, 96
      %v6606 = vpop.permute.xlu0 %6605
      %6607 = vrot.lane.b32.xlu0 %v5819, 96
      %v6608 = vpop.permute.xlu0 %6607
      %6609 = vrot.lane.b32.xlu0 %v5831, 96
      %v6610 = vpop.permute.xlu0 %6609
      %6611 = vrot.lane.b32.xlu0 %v5835, 96
      %v6612 = vpop.permute.xlu0 %6611
      %6613 = vrot.lane.b32.xlu0 %v5844, 96
      %v6614 = vpop.permute.xlu0 %6613
      %6615 = vrot.lane.b32.xlu0 %v5856, 96
      %v6616 = vpop.permute.xlu0 %6615
      %6617 = vrot.lane.b32.xlu0 %v5860, 96
      %v6618 = vpop.permute.xlu0 %6617
      %6619 = vrot.lane.b32.xlu0 %v5869, 96
      %v6620 = vpop.permute.xlu0 %6619
      %6621 = vrot.lane.b32.xlu0 %v5881, 96
      %v6622 = vpop.permute.xlu0 %6621
      %6623 = vrot.lane.b32.xlu0 %v5885, 96
      %v6624 = vpop.permute.xlu0 %6623
      %6625 = vrot.lane.b32.xlu0 %v5894, 96
      %v6626 = vpop.permute.xlu0 %6625
      %6627 = vrot.lane.b32.xlu0 %v5906, 96
      %v6628 = vpop.permute.xlu0 %6627
      %6629 = vrot.lane.b32.xlu0 %v5910, 96
      %v6630 = vpop.permute.xlu0 %6629
      %6631 = vrot.lane.b32.xlu0 %v5919, 96
      %v6632 = vpop.permute.xlu0 %6631
      %6633 = vrot.lane.b32.xlu0 %v5931, 96
      %v6634 = vpop.permute.xlu0 %6633
      %6635 = vrot.lane.b32.xlu0 %v5935, 96
      %v6636 = vpop.permute.xlu0 %6635
      %6637 = vrot.lane.b32.xlu0 %v5944, 96
      %v6638 = vpop.permute.xlu0 %6637
      %6639 = vrot.lane.b32.xlu0 %v5956, 96
      %v6640 = vpop.permute.xlu0 %6639
      %6641 = vrot.lane.b32.xlu0 %v5960, 96
      %v6642 = vpop.permute.xlu0 %6641
      %6643 = vrot.lane.b32.xlu0 %v5969, 96
      %v6644 = vpop.permute.xlu0 %6643
      %6645 = vrot.lane.b32.xlu0 %v5981, 96
      %v6646 = vpop.permute.xlu0 %6645
      %6647 = vrot.lane.b32.xlu0 %v5985, 96
      %v6648 = vpop.permute.xlu0 %6647
      %6649 = vrot.lane.b32.xlu0 %v5994, 96
      %v6650 = vpop.permute.xlu0 %6649
      %6651 = vrot.lane.b32.xlu0 %v6006, 96
      %v6652 = vpop.permute.xlu0 %6651
      %6653 = vrot.lane.b32.xlu0 %v6010, 96
      %v6654 = vpop.permute.xlu0 %6653
      %6655 = vrot.lane.b32.xlu0 %v6019, 96
      %v6656 = vpop.permute.xlu0 %6655
      %6657 = vrot.lane.b32.xlu0 %v6031, 96
      %v6658 = vpop.permute.xlu0 %6657
      %6659 = vrot.lane.b32.xlu0 %v6035, 96
      %v6660 = vpop.permute.xlu0 %6659
      %6661 = vrot.lane.b32.xlu0 %v6044, 96
      %v6662 = vpop.permute.xlu0 %6661
      %6663 = vrot.lane.b32.xlu0 %v6056, 96
      %v6664 = vpop.permute.xlu0 %6663
      %6665 = vrot.lane.b32.xlu0 %v6060, 96
      %v6666 = vpop.permute.xlu0 %6665
      %6667 = vrot.lane.b32.xlu0 %v6069, 96
      %v6668 = vpop.permute.xlu0 %6667
      %6669 = vrot.lane.b32.xlu0 %v6081, 96
      %v6670 = vpop.permute.xlu0 %6669
      %6671 = vrot.lane.b32.xlu0 %v6085, 96
      %v6672 = vpop.permute.xlu0 %6671
      %6673 = vrot.lane.b32.xlu0 %v6094, 96
      %v6674 = vpop.permute.xlu0 %6673
      %6675 = vrot.lane.b32.xlu0 %v6106, 96
      %v6676 = vpop.permute.xlu0 %6675
      %6677 = vrot.lane.b32.xlu0 %v6110, 96
      %v6678 = vpop.permute.xlu0 %6677
      %6679 = vrot.lane.b32.xlu0 %v6119, 96
      %v6680 = vpop.permute.xlu0 %6679
      %6681 = vrot.lane.b32.xlu0 %v6131, 96
      %v6682 = vpop.permute.xlu0 %6681
      %6683 = vrot.lane.b32.xlu0 %v6135, 96
      %v6684 = vpop.permute.xlu0 %6683
      %6685 = vrot.lane.b32.xlu0 %v6144, 96
      %v6686 = vpop.permute.xlu0 %6685
      %6687 = vrot.lane.b32.xlu0 %v6156, 96
      %v6688 = vpop.permute.xlu0 %6687
      %6689 = vrot.lane.b32.xlu0 %v6160, 96
      %v6690 = vpop.permute.xlu0 %6689
      %6691 = vrot.lane.b32.xlu0 %v6169, 96
      %v6692 = vpop.permute.xlu0 %6691
      %6693 = vrot.lane.b32.xlu0 %v6181, 96
      %v6694 = vpop.permute.xlu0 %6693
      %6695 = vrot.lane.b32.xlu0 %v6185, 96
      %v6696 = vpop.permute.xlu0 %6695
      %6697 = vrot.lane.b32.xlu0 %v6194, 96
      %v6698 = vpop.permute.xlu0 %6697
      %6699 = vrot.lane.b32.xlu0 %v6206, 96
      %v6700 = vpop.permute.xlu0 %6699
      %6701 = vrot.lane.b32.xlu0 %v6210, 96
      %v6702 = vpop.permute.xlu0 %6701
      %6703 = vrot.lane.b32.xlu0 %v6219, 96
      %v6704 = vpop.permute.xlu0 %6703
      %6705 = vrot.lane.b32.xlu0 %v6231, 96
      %v6706 = vpop.permute.xlu0 %6705
      %6707 = vrot.lane.b32.xlu0 %v6235, 96
      %v6708 = vpop.permute.xlu0 %6707
      %6709 = vrot.lane.b32.xlu0 %v6244, 96
      %v6710 = vpop.permute.xlu0 %6709
      %6711 = vrot.lane.b32.xlu0 %v6256, 96
      %v6712 = vpop.permute.xlu0 %6711
      %6713 = vrot.lane.b32.xlu0 %v6260, 96
      %v6714 = vpop.permute.xlu0 %6713
      %6715 = vrot.lane.b32.xlu0 %v6269, 96
      %v6716 = vpop.permute.xlu0 %6715
      %6717 = vrot.lane.b32.xlu0 %v6281, 96
      %v6718 = vpop.permute.xlu0 %6717
      %6719 = vrot.lane.b32.xlu0 %v6285, 96
      %v6720 = vpop.permute.xlu0 %6719
      %6721 = vrot.lane.b32.xlu0 %v6294, 96
      %v6722 = vpop.permute.xlu0 %6721
      %6723 = vrot.lane.b32.xlu0 %v6306, 96
      %v6724 = vpop.permute.xlu0 %6723
      %6725 = vrot.lane.b32.xlu0 %v6310, 96
      %v6726 = vpop.permute.xlu0 %6725
      %6727 = vrot.lane.b32.xlu0 %v6319, 96
      %v6728 = vpop.permute.xlu0 %6727
      %6729 = vrot.lane.b32.xlu0 %v6331, 96
      %v6730 = vpop.permute.xlu0 %6729
      %6731 = vrot.lane.b32.xlu0 %v6335, 96
      %v6732 = vpop.permute.xlu0 %6731
      %6733 = vrot.lane.b32.xlu0 %v6344, 96
      %v6734 = vpop.permute.xlu0 %6733
      %6735 = vrot.lane.b32.xlu0 %v6356, 96
      %v6736 = vpop.permute.xlu0 %6735
      %6737 = vrot.lane.b32.xlu0 %v6360, 96
      %v6738 = vpop.permute.xlu0 %6737
      %6739 = vrot.lane.b32.xlu0 %v6369, 96
      %v6740 = vpop.permute.xlu0 %6739
      %6741 = vrot.lane.b32.xlu0 %v6381, 96
      %v6742 = vpop.permute.xlu0 %6741
      %6743 = vrot.lane.b32.xlu0 %v6385, 96
      %v6744 = vpop.permute.xlu0 %6743
      %6745 = vrot.lane.b32.xlu0 %v6394, 96
      %v6746 = vpop.permute.xlu0 %6745
      %6747 = vrot.lane.b32.xlu0 %v6406, 96
      %v6748 = vpop.permute.xlu0 %6747
      %6749 = vrot.lane.b32.xlu0 %v6410, 96
      %v6750 = vpop.permute.xlu0 %6749
      %6751 = vrot.lane.b32.xlu0 %v6419, 96
      %v6752 = vpop.permute.xlu0 %6751
      %6753 = vrot.lane.b32.xlu0 %v6431, 96
      %v6754 = vpop.permute.xlu0 %6753
      %6755 = vrot.lane.b32.xlu0 %v6435, 96
      %v6756 = vpop.permute.xlu0 %6755
      %6757 = vrot.lane.b32.xlu0 %v6444, 96
      %v6758 = vpop.permute.xlu0 %6757
      %6759 = vrot.lane.b32.xlu0 %v6456, 96
      %v6760 = vpop.permute.xlu0 %6759
      %6761 = vrot.lane.b32.xlu0 %v6460, 96
      %v6762 = vpop.permute.xlu0 %6761
      %6763 = vrot.lane.b32.xlu0 %v6469, 96
      %v6764 = vpop.permute.xlu0 %6763
      %6765 = vrot.lane.b32.xlu0 %v6481, 96
      %v6766 = vpop.permute.xlu0 %6765
      %6767 = vrot.lane.b32.xlu0 %v6485, 96
      %v6768 = vpop.permute.xlu0 %6767
      %6769 = vrot.lane.b32.xlu0 %v6494, 96
      %v6770 = vpop.permute.xlu0 %6769
      %v6817 = vunpack.c.l.b16 %v2030
      %v6818 = vunpack.c.l.b16 %v2031
      %v6819 = vunpack.c.l.b16 %v2032
      %v6820 = vunpack.c.l.b16 %v2033
      %v6821 = vunpack.c.l.b16 %v2034
      %v6822 = vunpack.c.l.b16 %v2035
      %v6823 = vunpack.c.l.b16 %v2036
      %v6824 = vunpack.c.l.b16 %v2037
      %v6825 = vunpack.c.l.b16 %v2038
      %v6826 = vunpack.c.l.b16 %v2039
      %v6827 = vunpack.c.l.b16 %v2040
      %v6828 = vunpack.c.l.b16 %v2041
      %v6829 = vunpack.c.l.b16 %v2042
      %v6830 = vunpack.c.l.b16 %v2043
      %v6831 = vunpack.c.l.b16 %v2044
      %v6832 = vunpack.c.l.b16 %v2045
      %v6833 = vunpack.c.l.b16 %v2046
      %v6834 = vunpack.c.l.b16 %v2047
      %v6835 = vunpack.c.l.b16 %v2048
      %v6836 = vunpack.c.l.b16 %v2049
      %v6837 = vunpack.c.l.b16 %v2050
      %v6838 = vunpack.c.l.b16 %v2051
      %v6839 = vunpack.c.l.b16 %v2052
      %v6840 = vunpack.c.l.b16 %v2053
      %v6841 = vunpack.c.l.b16 %v2054
      %v6842 = vunpack.c.l.b16 %v2055
      %v6843 = vunpack.c.l.b16 %v2056
      %v6844 = vunpack.c.l.b16 %v2057
      %v6845 = vunpack.c.l.b16 %v2058
      %v6846 = vunpack.c.l.b16 %v2059
      %v6847 = vunpack.c.l.b16 %v2060
      %v6848 = vunpack.c.l.b16 %v2061
      %v6849 = vunpack.c.l.b16 %v2062
      %v6850 = vunpack.c.l.b16 %v2063
      %v6851 = vunpack.c.l.b16 %v2064
      %v6852 = vunpack.c.l.b16 %v2065
      %v6853 = vunpack.c.l.b16 %v2066
      %v6854 = vunpack.c.l.b16 %v2067
      %v6855 = vunpack.c.l.b16 %v2068
      %v6856 = vunpack.c.l.b16 %v2069
      %v6857 = vunpack.c.l.b16 %v2070
      %v6858 = vunpack.c.l.b16 %v2071
      %v6859 = vunpack.c.l.b16 %v2072
      %v6860 = vunpack.c.l.b16 %v2073
      %v6861 = vunpack.c.l.b16 %v2074
      %v6862 = vunpack.c.l.b16 %v2075
      %v6863 = vpack.c.b16 %v2353, %v6817
      %v6864 = vpack.c.b16 %v2359, %v6818
      %v6865 = vpack.c.b16 %v2365, %v6819
      %v6866 = vpack.c.b16 %v2371, %v6820
      %v6867 = vpack.c.b16 %v2377, %v6821
      %v6868 = vpack.c.b16 %v2383, %v6822
      %v6869 = vpack.c.b16 %v2389, %v6823
      %v6870 = vpack.c.b16 %v2395, %v6824
      %v6871 = vpack.c.b16 %v2401, %v6825
      %v6872 = vpack.c.b16 %v2407, %v6826
      %v6873 = vpack.c.b16 %v2413, %v6827
      %v6874 = vpack.c.b16 %v2419, %v6828
      %v6875 = vpack.c.b16 %v2425, %v6829
      %v6876 = vpack.c.b16 %v2431, %v6830
      %v6877 = vpack.c.b16 %v2437, %v6831
      %v6878 = vpack.c.b16 %v2443, %v6832
      %v6879 = vpack.c.b16 %v2449, %v6833
      %v6880 = vpack.c.b16 %v2455, %v6834
      %v6881 = vpack.c.b16 %v2461, %v6835
      %v6882 = vpack.c.b16 %v2467, %v6836
      %v6883 = vpack.c.b16 %v2473, %v6837
      %v6884 = vpack.c.b16 %v2479, %v6838
      %v6885 = vpack.c.b16 %v2485, %v6839
      %v6886 = vpack.c.b16 %v2491, %v6840
      %v6887 = vpack.c.b16 %v2497, %v6841
      %v6888 = vpack.c.b16 %v2503, %v6842
      %v6889 = vpack.c.b16 %v2509, %v6843
      %v6890 = vpack.c.b16 %v2515, %v6844
      %v6891 = vpack.c.b16 %v2521, %v6845
      %v6892 = vpack.c.b16 %v2527, %v6846
      %v6893 = vpack.c.b16 %v2533, %v6847
      %v6894 = vpack.c.b16 %v2539, %v6848
      %v6895 = vpack.c.b16 %v2545, %v6849
      %v6896 = vpack.c.b16 %v2551, %v6850
      %v6897 = vpack.c.b16 %v2557, %v6851
      %v6898 = vpack.c.b16 %v2563, %v6852
      %v6899 = vpack.c.b16 %v2569, %v6853
      %v6900 = vpack.c.b16 %v2575, %v6854
      %v6901 = vpack.c.b16 %v2581, %v6855
      %v6902 = vpack.c.b16 %v2587, %v6856
      %v6903 = vpack.c.b16 %v2593, %v6857
      %v6904 = vpack.c.b16 %v2599, %v6858
      %v6905 = vpack.c.b16 %v2605, %v6859
      %v6906 = vpack.c.b16 %v2611, %v6860
      %v6907 = vpack.c.b16 %v2617, %v6861
      %v6908 = vpack.c.b16 %v2623, %v6862
      %vm6909 = vcmask 1045504
      %v6910 = vrot.slane %v6863, 2
      %v6911 = vrot.slane %v2629, 2
      %v6912 = vsel %vm6909, %v6910, %v6911
      %v6913 = vrot.slane %v2630, 2
      %v6914 = vsel %vm6909, %v6911, %v6913
      %v6915 = vrot.slane %v5298, 2
      %v6916 = vsel %vm6909, %v6913, %v6915
      %v6917 = vrot.slane %v6864, 2
      %v6918 = vrot.slane %v2632, 2
      %v6919 = vsel %vm6909, %v6917, %v6918
      %v6920 = vrot.slane %v2633, 2
      %v6921 = vsel %vm6909, %v6918, %v6920
      %v6922 = vrot.slane %v5299, 2
      %v6923 = vsel %vm6909, %v6920, %v6922
      %v6924 = vrot.slane %v6865, 2
      %v6925 = vrot.slane %v2635, 2
      %v6926 = vsel %vm6909, %v6924, %v6925
      %v6927 = vrot.slane %v2636, 2
      %v6928 = vsel %vm6909, %v6925, %v6927
      %v6929 = vrot.slane %v5300, 2
      %v6930 = vsel %vm6909, %v6927, %v6929
      %v6931 = vrot.slane %v6866, 2
      %v6932 = vrot.slane %v2638, 2
      %v6933 = vsel %vm6909, %v6931, %v6932
      %v6934 = vrot.slane %v2639, 2
      %v6935 = vsel %vm6909, %v6932, %v6934
      %v6936 = vrot.slane %v5301, 2
      %v6937 = vsel %vm6909, %v6934, %v6936
      %v6938 = vrot.slane %v6867, 2
      %v6939 = vrot.slane %v2641, 2
      %v6940 = vsel %vm6909, %v6938, %v6939
      %v6941 = vrot.slane %v2642, 2
      %v6942 = vsel %vm6909, %v6939, %v6941
      %v6943 = vrot.slane %v5302, 2
      %v6944 = vsel %vm6909, %v6941, %v6943
      %v6945 = vrot.slane %v6868, 2
      %v6946 = vrot.slane %v2644, 2
      %v6947 = vsel %vm6909, %v6945, %v6946
      %v6948 = vrot.slane %v2645, 2
      %v6949 = vsel %vm6909, %v6946, %v6948
      %v6950 = vrot.slane %v5303, 2
      %v6951 = vsel %vm6909, %v6948, %v6950
      %v6952 = vrot.slane %v6869, 2
      %v6953 = vrot.slane %v2647, 2
      %v6954 = vsel %vm6909, %v6952, %v6953
      %v6955 = vrot.slane %v2648, 2
      %v6956 = vsel %vm6909, %v6953, %v6955
      %v6957 = vrot.slane %v5304, 2
      %v6958 = vsel %vm6909, %v6955, %v6957
      %v6959 = vrot.slane %v6870, 2
      %v6960 = vrot.slane %v2650, 2
      %v6961 = vsel %vm6909, %v6959, %v6960
      %v6962 = vrot.slane %v2651, 2
      %v6963 = vsel %vm6909, %v6960, %v6962
      %v6964 = vrot.slane %v5305, 2
      %v6965 = vsel %vm6909, %v6962, %v6964
      %v6966 = vrot.slane %v6871, 2
      %v6967 = vrot.slane %v2653, 2
      %v6968 = vsel %vm6909, %v6966, %v6967
      %v6969 = vrot.slane %v2654, 2
      %v6970 = vsel %vm6909, %v6967, %v6969
      %v6971 = vrot.slane %v5306, 2
      %v6972 = vsel %vm6909, %v6969, %v6971
      %v6973 = vrot.slane %v6872, 2
      %v6974 = vrot.slane %v2656, 2
      %v6975 = vsel %vm6909, %v6973, %v6974
      %v6976 = vrot.slane %v2657, 2
      %v6977 = vsel %vm6909, %v6974, %v6976
      %v6978 = vrot.slane %v5307, 2
      %v6979 = vsel %vm6909, %v6976, %v6978
      %v6980 = vrot.slane %v6873, 2
      %v6981 = vrot.slane %v2659, 2
      %v6982 = vsel %vm6909, %v6980, %v6981
      %v6983 = vrot.slane %v2660, 2
      %v6984 = vsel %vm6909, %v6981, %v6983
      %v6985 = vrot.slane %v5308, 2
      %v6986 = vsel %vm6909, %v6983, %v6985
      %v6987 = vrot.slane %v6874, 2
      %v6988 = vrot.slane %v2662, 2
      %v6989 = vsel %vm6909, %v6987, %v6988
      %v6990 = vrot.slane %v2663, 2
      %v6991 = vsel %vm6909, %v6988, %v6990
      %v6992 = vrot.slane %v5309, 2
      %v6993 = vsel %vm6909, %v6990, %v6992
      %v6994 = vrot.slane %v6875, 2
      %v6995 = vrot.slane %v2665, 2
      %v6996 = vsel %vm6909, %v6994, %v6995
      %v6997 = vrot.slane %v2666, 2
      %v6998 = vsel %vm6909, %v6995, %v6997
      %v6999 = vrot.slane %v5310, 2
      %v7000 = vsel %vm6909, %v6997, %v6999
      %v7001 = vrot.slane %v6876, 2
      %v7002 = vrot.slane %v2668, 2
      %v7003 = vsel %vm6909, %v7001, %v7002
      %v7004 = vrot.slane %v2669, 2
      %v7005 = vsel %vm6909, %v7002, %v7004
      %v7006 = vrot.slane %v5311, 2
      %v7007 = vsel %vm6909, %v7004, %v7006
      %v7008 = vrot.slane %v6877, 2
      %v7009 = vrot.slane %v2671, 2
      %v7010 = vsel %vm6909, %v7008, %v7009
      %v7011 = vrot.slane %v2672, 2
      %v7012 = vsel %vm6909, %v7009, %v7011
      %v7013 = vrot.slane %v5312, 2
      %v7014 = vsel %vm6909, %v7011, %v7013
      %v7015 = vrot.slane %v6878, 2
      %v7016 = vrot.slane %v2674, 2
      %v7017 = vsel %vm6909, %v7015, %v7016
      %v7018 = vrot.slane %v2675, 2
      %v7019 = vsel %vm6909, %v7016, %v7018
      %v7020 = vrot.slane %v5313, 2
      %v7021 = vsel %vm6909, %v7018, %v7020
      %v7022 = vrot.slane %v6879, 2
      %v7023 = vrot.slane %v2677, 2
      %v7024 = vsel %vm6909, %v7022, %v7023
      %v7025 = vrot.slane %v2678, 2
      %v7026 = vsel %vm6909, %v7023, %v7025
      %v7027 = vrot.slane %v5314, 2
      %v7028 = vsel %vm6909, %v7025, %v7027
      %v7029 = vrot.slane %v6880, 2
      %v7030 = vrot.slane %v2680, 2
      %v7031 = vsel %vm6909, %v7029, %v7030
      %v7032 = vrot.slane %v2681, 2
      %v7033 = vsel %vm6909, %v7030, %v7032
      %v7034 = vrot.slane %v5315, 2
      %v7035 = vsel %vm6909, %v7032, %v7034
      %v7036 = vrot.slane %v6881, 2
      %v7037 = vrot.slane %v2683, 2
      %v7038 = vsel %vm6909, %v7036, %v7037
      %v7039 = vrot.slane %v2684, 2
      %v7040 = vsel %vm6909, %v7037, %v7039
      %v7041 = vrot.slane %v5316, 2
      %v7042 = vsel %vm6909, %v7039, %v7041
      %v7043 = vrot.slane %v6882, 2
      %v7044 = vrot.slane %v2686, 2
      %v7045 = vsel %vm6909, %v7043, %v7044
      %v7046 = vrot.slane %v2687, 2
      %v7047 = vsel %vm6909, %v7044, %v7046
      %v7048 = vrot.slane %v5317, 2
      %v7049 = vsel %vm6909, %v7046, %v7048
      %v7050 = vrot.slane %v6883, 2
      %v7051 = vrot.slane %v2689, 2
      %v7052 = vsel %vm6909, %v7050, %v7051
      %v7053 = vrot.slane %v2690, 2
      %v7054 = vsel %vm6909, %v7051, %v7053
      %v7055 = vrot.slane %v5318, 2
      %v7056 = vsel %vm6909, %v7053, %v7055
      %v7057 = vrot.slane %v6884, 2
      %v7058 = vrot.slane %v2692, 2
      %v7059 = vsel %vm6909, %v7057, %v7058
      %v7060 = vrot.slane %v2693, 2
      %v7061 = vsel %vm6909, %v7058, %v7060
      %v7062 = vrot.slane %v5319, 2
      %v7063 = vsel %vm6909, %v7060, %v7062
      %v7064 = vrot.slane %v6885, 2
      %v7065 = vrot.slane %v2695, 2
      %v7066 = vsel %vm6909, %v7064, %v7065
      %v7067 = vrot.slane %v2696, 2
      %v7068 = vsel %vm6909, %v7065, %v7067
      %v7069 = vrot.slane %v5320, 2
      %v7070 = vsel %vm6909, %v7067, %v7069
      %v7071 = vrot.slane %v6886, 2
      %v7072 = vrot.slane %v2698, 2
      %v7073 = vsel %vm6909, %v7071, %v7072
      %v7074 = vrot.slane %v2699, 2
      %v7075 = vsel %vm6909, %v7072, %v7074
      %v7076 = vrot.slane %v5321, 2
      %v7077 = vsel %vm6909, %v7074, %v7076
      %v7078 = vrot.slane %v6887, 2
      %v7079 = vrot.slane %v2701, 2
      %v7080 = vsel %vm6909, %v7078, %v7079
      %v7081 = vrot.slane %v2702, 2
      %v7082 = vsel %vm6909, %v7079, %v7081
      %v7083 = vrot.slane %v5322, 2
      %v7084 = vsel %vm6909, %v7081, %v7083
      %v7085 = vrot.slane %v6888, 2
      %v7086 = vrot.slane %v2704, 2
      %v7087 = vsel %vm6909, %v7085, %v7086
      %v7088 = vrot.slane %v2705, 2
      %v7089 = vsel %vm6909, %v7086, %v7088
      %v7090 = vrot.slane %v5323, 2
      %v7091 = vsel %vm6909, %v7088, %v7090
      %v7092 = vrot.slane %v6889, 2
      %v7093 = vrot.slane %v2707, 2
      %v7094 = vsel %vm6909, %v7092, %v7093
      %v7095 = vrot.slane %v2708, 2
      %v7096 = vsel %vm6909, %v7093, %v7095
      %v7097 = vrot.slane %v5324, 2
      %v7098 = vsel %vm6909, %v7095, %v7097
      %v7099 = vrot.slane %v6890, 2
      %v7100 = vrot.slane %v2710, 2
      %v7101 = vsel %vm6909, %v7099, %v7100
      %v7102 = vrot.slane %v2711, 2
      %v7103 = vsel %vm6909, %v7100, %v7102
      %v7104 = vrot.slane %v5325, 2
      %v7105 = vsel %vm6909, %v7102, %v7104
      %v7106 = vrot.slane %v6891, 2
      %v7107 = vrot.slane %v2713, 2
      %v7108 = vsel %vm6909, %v7106, %v7107
      %v7109 = vrot.slane %v2714, 2
      %v7110 = vsel %vm6909, %v7107, %v7109
      %v7111 = vrot.slane %v5326, 2
      %v7112 = vsel %vm6909, %v7109, %v7111
      %v7113 = vrot.slane %v6892, 2
      %v7114 = vrot.slane %v2716, 2
      %v7115 = vsel %vm6909, %v7113, %v7114
      %v7116 = vrot.slane %v2717, 2
      %v7117 = vsel %vm6909, %v7114, %v7116
      %v7118 = vrot.slane %v5327, 2
      %v7119 = vsel %vm6909, %v7116, %v7118
      %v7120 = vrot.slane %v6893, 2
      %v7121 = vrot.slane %v2719, 2
      %v7122 = vsel %vm6909, %v7120, %v7121
      %v7123 = vrot.slane %v2720, 2
      %v7124 = vsel %vm6909, %v7121, %v7123
      %v7125 = vrot.slane %v5328, 2
      %v7126 = vsel %vm6909, %v7123, %v7125
      %v7127 = vrot.slane %v6894, 2
      %v7128 = vrot.slane %v2722, 2
      %v7129 = vsel %vm6909, %v7127, %v7128
      %v7130 = vrot.slane %v2723, 2
      %v7131 = vsel %vm6909, %v7128, %v7130
      %v7132 = vrot.slane %v5329, 2
      %v7133 = vsel %vm6909, %v7130, %v7132
      %v7134 = vrot.slane %v6895, 2
      %v7135 = vrot.slane %v2725, 2
      %v7136 = vsel %vm6909, %v7134, %v7135
      %v7137 = vrot.slane %v2726, 2
      %v7138 = vsel %vm6909, %v7135, %v7137
      %v7139 = vrot.slane %v5330, 2
      %v7140 = vsel %vm6909, %v7137, %v7139
      %v7141 = vrot.slane %v6896, 2
      %v7142 = vrot.slane %v2728, 2
      %v7143 = vsel %vm6909, %v7141, %v7142
      %v7144 = vrot.slane %v2729, 2
      %v7145 = vsel %vm6909, %v7142, %v7144
      %v7146 = vrot.slane %v5331, 2
      %v7147 = vsel %vm6909, %v7144, %v7146
      %v7148 = vrot.slane %v6897, 2
      %v7149 = vrot.slane %v2731, 2
      %v7150 = vsel %vm6909, %v7148, %v7149
      %v7151 = vrot.slane %v2732, 2
      %v7152 = vsel %vm6909, %v7149, %v7151
      %v7153 = vrot.slane %v5332, 2
      %v7154 = vsel %vm6909, %v7151, %v7153
      %v7155 = vrot.slane %v6898, 2
      %v7156 = vrot.slane %v2734, 2
      %v7157 = vsel %vm6909, %v7155, %v7156
      %v7158 = vrot.slane %v2735, 2
      %v7159 = vsel %vm6909, %v7156, %v7158
      %v7160 = vrot.slane %v5333, 2
      %v7161 = vsel %vm6909, %v7158, %v7160
      %v7162 = vrot.slane %v6899, 2
      %v7163 = vrot.slane %v2737, 2
      %v7164 = vsel %vm6909, %v7162, %v7163
      %v7165 = vrot.slane %v2738, 2
      %v7166 = vsel %vm6909, %v7163, %v7165
      %v7167 = vrot.slane %v5334, 2
      %v7168 = vsel %vm6909, %v7165, %v7167
      %v7169 = vrot.slane %v6900, 2
      %v7170 = vrot.slane %v2740, 2
      %v7171 = vsel %vm6909, %v7169, %v7170
      %v7172 = vrot.slane %v2741, 2
      %v7173 = vsel %vm6909, %v7170, %v7172
      %v7174 = vrot.slane %v5335, 2
      %v7175 = vsel %vm6909, %v7172, %v7174
      %v7176 = vrot.slane %v6901, 2
      %v7177 = vrot.slane %v2743, 2
      %v7178 = vsel %vm6909, %v7176, %v7177
      %v7179 = vrot.slane %v2744, 2
      %v7180 = vsel %vm6909, %v7177, %v7179
      %v7181 = vrot.slane %v5336, 2
      %v7182 = vsel %vm6909, %v7179, %v7181
      %v7183 = vrot.slane %v6902, 2
      %v7184 = vrot.slane %v2746, 2
      %v7185 = vsel %vm6909, %v7183, %v7184
      %v7186 = vrot.slane %v2747, 2
      %v7187 = vsel %vm6909, %v7184, %v7186
      %v7188 = vrot.slane %v5337, 2
      %v7189 = vsel %vm6909, %v7186, %v7188
      %v7190 = vrot.slane %v6903, 2
      %v7191 = vrot.slane %v2749, 2
      %v7192 = vsel %vm6909, %v7190, %v7191
      %v7193 = vrot.slane %v2750, 2
      %v7194 = vsel %vm6909, %v7191, %v7193
      %v7195 = vrot.slane %v5338, 2
      %v7196 = vsel %vm6909, %v7193, %v7195
      %v7197 = vrot.slane %v6904, 2
      %v7198 = vrot.slane %v2752, 2
      %v7199 = vsel %vm6909, %v7197, %v7198
      %v7200 = vrot.slane %v2753, 2
      %v7201 = vsel %vm6909, %v7198, %v7200
      %v7202 = vrot.slane %v5339, 2
      %v7203 = vsel %vm6909, %v7200, %v7202
      %v7204 = vrot.slane %v6905, 2
      %v7205 = vrot.slane %v2755, 2
      %v7206 = vsel %vm6909, %v7204, %v7205
      %v7207 = vrot.slane %v2756, 2
      %v7208 = vsel %vm6909, %v7205, %v7207
      %v7209 = vrot.slane %v5340, 2
      %v7210 = vsel %vm6909, %v7207, %v7209
      %v7211 = vrot.slane %v6906, 2
      %v7212 = vrot.slane %v2758, 2
      %v7213 = vsel %vm6909, %v7211, %v7212
      %v7214 = vrot.slane %v2759, 2
      %v7215 = vsel %vm6909, %v7212, %v7214
      %v7216 = vrot.slane %v5341, 2
      %v7217 = vsel %vm6909, %v7214, %v7216
      %v7218 = vrot.slane %v6907, 2
      %v7219 = vrot.slane %v2761, 2
      %v7220 = vsel %vm6909, %v7218, %v7219
      %v7221 = vrot.slane %v2762, 2
      %v7222 = vsel %vm6909, %v7219, %v7221
      %v7223 = vrot.slane %v5342, 2
      %v7224 = vsel %vm6909, %v7221, %v7223
      %v7225 = vrot.slane %v6908, 2
      %v7226 = vrot.slane %v2764, 2
      %v7227 = vsel %vm6909, %v7225, %v7226
      %v7228 = vrot.slane %v2765, 2
      %v7229 = vsel %vm6909, %v7226, %v7228
      %v7230 = vrot.slane %v5343, 2
      %v7231 = vsel %vm6909, %v7228, %v7230
      %vm7232 = vcmask 261120
      %v7234 = vsel %vm7232, %v2628, %v4194
      %v7236 = vsel %vm7232, %v2629, %v4196
      %v7238 = vsel %vm7232, %v2630, %v4198
      %v7240 = vsel %vm7232, %v2631, %v4200
      %v7242 = vsel %vm7232, %v2632, %v4202
      %v7244 = vsel %vm7232, %v2633, %v4204
      %v7246 = vsel %vm7232, %v2634, %v4206
      %v7248 = vsel %vm7232, %v2635, %v4208
      %v7250 = vsel %vm7232, %v2636, %v4210
      %v7252 = vsel %vm7232, %v2637, %v4212
      %v7254 = vsel %vm7232, %v2638, %v4214
      %v7256 = vsel %vm7232, %v2639, %v4216
      %v7258 = vsel %vm7232, %v2640, %v4218
      %v7260 = vsel %vm7232, %v2641, %v4220
      %v7262 = vsel %vm7232, %v2642, %v4222
      %v7264 = vsel %vm7232, %v2643, %v4224
      %v7266 = vsel %vm7232, %v2644, %v4226
      %v7268 = vsel %vm7232, %v2645, %v4228
      %v7270 = vsel %vm7232, %v2646, %v4230
      %v7272 = vsel %vm7232, %v2647, %v4232
      %v7274 = vsel %vm7232, %v2648, %v4234
      %v7276 = vsel %vm7232, %v2649, %v4236
      %v7278 = vsel %vm7232, %v2650, %v4238
      %v7280 = vsel %vm7232, %v2651, %v4240
      %v7282 = vsel %vm7232, %v2652, %v4242
      %v7284 = vsel %vm7232, %v2653, %v4244
      %v7286 = vsel %vm7232, %v2654, %v4246
      %v7288 = vsel %vm7232, %v2655, %v4248
      %v7290 = vsel %vm7232, %v2656, %v4250
      %v7292 = vsel %vm7232, %v2657, %v4252
      %v7294 = vsel %vm7232, %v2658, %v4254
      %v7296 = vsel %vm7232, %v2659, %v4256
      %v7298 = vsel %vm7232, %v2660, %v4258
      %v7300 = vsel %vm7232, %v2661, %v4260
      %v7302 = vsel %vm7232, %v2662, %v4262
      %v7304 = vsel %vm7232, %v2663, %v4264
      %v7306 = vsel %vm7232, %v2664, %v4266
      %v7308 = vsel %vm7232, %v2665, %v4268
      %v7310 = vsel %vm7232, %v2666, %v4270
      %v7312 = vsel %vm7232, %v2667, %v4272
      %v7314 = vsel %vm7232, %v2668, %v4274
      %v7316 = vsel %vm7232, %v2669, %v4276
      %v7318 = vsel %vm7232, %v2670, %v4278
      %v7320 = vsel %vm7232, %v2671, %v4280
      %v7322 = vsel %vm7232, %v2672, %v4282
      %v7324 = vsel %vm7232, %v2673, %v4284
      %v7326 = vsel %vm7232, %v2674, %v4286
      %v7328 = vsel %vm7232, %v2675, %v4288
      %v7330 = vsel %vm7232, %v2676, %v4290
      %v7332 = vsel %vm7232, %v2677, %v4292
      %v7334 = vsel %vm7232, %v2678, %v4294
      %v7336 = vsel %vm7232, %v2679, %v4296
      %v7338 = vsel %vm7232, %v2680, %v4298
      %v7340 = vsel %vm7232, %v2681, %v4300
      %v7342 = vsel %vm7232, %v2682, %v4302
      %v7344 = vsel %vm7232, %v2683, %v4304
      %v7346 = vsel %vm7232, %v2684, %v4306
      %v7348 = vsel %vm7232, %v2685, %v4308
      %v7350 = vsel %vm7232, %v2686, %v4310
      %v7352 = vsel %vm7232, %v2687, %v4312
      %v7354 = vsel %vm7232, %v2688, %v4314
      %v7356 = vsel %vm7232, %v2689, %v4316
      %v7358 = vsel %vm7232, %v2690, %v4318
      %v7360 = vsel %vm7232, %v2691, %v4320
      %v7362 = vsel %vm7232, %v2692, %v4322
      %v7364 = vsel %vm7232, %v2693, %v4324
      %v7366 = vsel %vm7232, %v2694, %v4326
      %v7368 = vsel %vm7232, %v2695, %v4328
      %v7370 = vsel %vm7232, %v2696, %v4330
      %v7372 = vsel %vm7232, %v2697, %v4332
      %v7374 = vsel %vm7232, %v2698, %v4334
      %v7376 = vsel %vm7232, %v2699, %v4336
      %v7378 = vsel %vm7232, %v2700, %v4338
      %v7380 = vsel %vm7232, %v2701, %v4340
      %v7382 = vsel %vm7232, %v2702, %v4342
      %v7384 = vsel %vm7232, %v2703, %v4344
      %v7386 = vsel %vm7232, %v2704, %v4346
      %v7388 = vsel %vm7232, %v2705, %v4348
      %v7390 = vsel %vm7232, %v2706, %v4350
      %v7392 = vsel %vm7232, %v2707, %v4352
      %v7394 = vsel %vm7232, %v2708, %v4354
      %v7396 = vsel %vm7232, %v2709, %v4356
      %v7398 = vsel %vm7232, %v2710, %v4358
      %v7400 = vsel %vm7232, %v2711, %v4360
      %v7402 = vsel %vm7232, %v2712, %v4362
      %v7404 = vsel %vm7232, %v2713, %v4364
      %v7406 = vsel %vm7232, %v2714, %v4366
      %v7408 = vsel %vm7232, %v2715, %v4368
      %v7410 = vsel %vm7232, %v2716, %v4370
      %v7412 = vsel %vm7232, %v2717, %v4372
      %v7414 = vsel %vm7232, %v2718, %v4374
      %v7416 = vsel %vm7232, %v2719, %v4376
      %v7418 = vsel %vm7232, %v2720, %v4378
      %v7420 = vsel %vm7232, %v2721, %v4380
      %v7422 = vsel %vm7232, %v2722, %v4382
      %v7424 = vsel %vm7232, %v2723, %v4384
      %v7426 = vsel %vm7232, %v2724, %v4386
      %v7428 = vsel %vm7232, %v2725, %v4388
      %v7430 = vsel %vm7232, %v2726, %v4390
      %v7432 = vsel %vm7232, %v2727, %v4392
      %v7434 = vsel %vm7232, %v2728, %v4394
      %v7436 = vsel %vm7232, %v2729, %v4396
      %v7438 = vsel %vm7232, %v2730, %v4398
      %v7440 = vsel %vm7232, %v2731, %v4400
      %v7442 = vsel %vm7232, %v2732, %v4402
      %v7444 = vsel %vm7232, %v2733, %v4404
      %v7446 = vsel %vm7232, %v2734, %v4406
      %v7448 = vsel %vm7232, %v2735, %v4408
      %v7450 = vsel %vm7232, %v2736, %v4410
      %v7452 = vsel %vm7232, %v2737, %v4412
      %v7454 = vsel %vm7232, %v2738, %v4414
      %v7456 = vsel %vm7232, %v2739, %v4416
      %v7458 = vsel %vm7232, %v2740, %v4418
      %v7460 = vsel %vm7232, %v2741, %v4420
      %v7462 = vsel %vm7232, %v2742, %v4422
      %v7464 = vsel %vm7232, %v2743, %v4424
      %v7466 = vsel %vm7232, %v2744, %v4426
      %v7468 = vsel %vm7232, %v2745, %v4428
      %v7470 = vsel %vm7232, %v2746, %v4430
      %v7472 = vsel %vm7232, %v2747, %v4432
      %v7474 = vsel %vm7232, %v2748, %v4434
      %v7476 = vsel %vm7232, %v2749, %v4436
      %v7478 = vsel %vm7232, %v2750, %v4438
      %v7480 = vsel %vm7232, %v2751, %v4440
      %v7482 = vsel %vm7232, %v2752, %v4442
      %v7484 = vsel %vm7232, %v2753, %v4444
      %v7486 = vsel %vm7232, %v2754, %v4446
      %v7488 = vsel %vm7232, %v2755, %v4448
      %v7490 = vsel %vm7232, %v2756, %v4450
      %v7492 = vsel %vm7232, %v2757, %v4452
      %v7494 = vsel %vm7232, %v2758, %v4454
      %v7496 = vsel %vm7232, %v2759, %v4456
      %v7498 = vsel %vm7232, %v2760, %v4458
      %v7500 = vsel %vm7232, %v2761, %v4460
      %v7502 = vsel %vm7232, %v2762, %v4462
      %v7504 = vsel %vm7232, %v2763, %v4464
      %v7506 = vsel %vm7232, %v2764, %v4466
      %v7508 = vsel %vm7232, %v2765, %v4468
      %vm7509 = vcmask 523264
      %v7511 = vsel %vm7509, %v7234, %v4931
      %v7513 = vsel %vm7509, %v7236, %v4933
      %v7515 = vsel %vm7509, %v7238, %v4935
      %v7517 = vsel %vm7509, %v7240, %v4937
      %v7519 = vsel %vm7509, %v7242, %v4939
      %v7521 = vsel %vm7509, %v7244, %v4941
      %v7523 = vsel %vm7509, %v7246, %v4943
      %v7525 = vsel %vm7509, %v7248, %v4945
      %v7527 = vsel %vm7509, %v7250, %v4947
      %v7529 = vsel %vm7509, %v7252, %v4949
      %v7531 = vsel %vm7509, %v7254, %v4951
      %v7533 = vsel %vm7509, %v7256, %v4953
      %v7535 = vsel %vm7509, %v7258, %v4955
      %v7537 = vsel %vm7509, %v7260, %v4957
      %v7539 = vsel %vm7509, %v7262, %v4959
      %v7541 = vsel %vm7509, %v7264, %v4961
      %v7543 = vsel %vm7509, %v7266, %v4963
      %v7545 = vsel %vm7509, %v7268, %v4965
      %v7547 = vsel %vm7509, %v7270, %v4967
      %v7549 = vsel %vm7509, %v7272, %v4969
      %v7551 = vsel %vm7509, %v7274, %v4971
      %v7553 = vsel %vm7509, %v7276, %v4973
      %v7555 = vsel %vm7509, %v7278, %v4975
      %v7557 = vsel %vm7509, %v7280, %v4977
      %v7559 = vsel %vm7509, %v7282, %v4979
      %v7561 = vsel %vm7509, %v7284, %v4981
      %v7563 = vsel %vm7509, %v7286, %v4983
      %v7565 = vsel %vm7509, %v7288, %v4985
      %v7567 = vsel %vm7509, %v7290, %v4987
      %v7569 = vsel %vm7509, %v7292, %v4989
      %v7571 = vsel %vm7509, %v7294, %v4991
      %v7573 = vsel %vm7509, %v7296, %v4993
      %v7575 = vsel %vm7509, %v7298, %v4995
      %v7577 = vsel %vm7509, %v7300, %v4997
      %v7579 = vsel %vm7509, %v7302, %v4999
      %v7581 = vsel %vm7509, %v7304, %v5001
      %v7583 = vsel %vm7509, %v7306, %v5003
      %v7585 = vsel %vm7509, %v7308, %v5005
      %v7587 = vsel %vm7509, %v7310, %v5007
      %v7589 = vsel %vm7509, %v7312, %v5009
      %v7591 = vsel %vm7509, %v7314, %v5011
      %v7593 = vsel %vm7509, %v7316, %v5013
      %v7595 = vsel %vm7509, %v7318, %v5015
      %v7597 = vsel %vm7509, %v7320, %v5017
      %v7599 = vsel %vm7509, %v7322, %v5019
      %v7601 = vsel %vm7509, %v7324, %v5021
      %v7603 = vsel %vm7509, %v7326, %v5023
      %v7605 = vsel %vm7509, %v7328, %v5025
      %v7607 = vsel %vm7509, %v7330, %v5027
      %v7609 = vsel %vm7509, %v7332, %v5029
      %v7611 = vsel %vm7509, %v7334, %v5031
      %v7613 = vsel %vm7509, %v7336, %v5033
      %v7615 = vsel %vm7509, %v7338, %v5035
      %v7617 = vsel %vm7509, %v7340, %v5037
      %v7619 = vsel %vm7509, %v7342, %v5039
      %v7621 = vsel %vm7509, %v7344, %v5041
      %v7623 = vsel %vm7509, %v7346, %v5043
      %v7625 = vsel %vm7509, %v7348, %v5045
      %v7627 = vsel %vm7509, %v7350, %v5047
      %v7629 = vsel %vm7509, %v7352, %v5049
      %v7631 = vsel %vm7509, %v7354, %v5051
      %v7633 = vsel %vm7509, %v7356, %v5053
      %v7635 = vsel %vm7509, %v7358, %v5055
      %v7637 = vsel %vm7509, %v7360, %v5057
      %v7639 = vsel %vm7509, %v7362, %v5059
      %v7641 = vsel %vm7509, %v7364, %v5061
      %v7643 = vsel %vm7509, %v7366, %v5063
      %v7645 = vsel %vm7509, %v7368, %v5065
      %v7647 = vsel %vm7509, %v7370, %v5067
      %v7649 = vsel %vm7509, %v7372, %v5069
      %v7651 = vsel %vm7509, %v7374, %v5071
      %v7653 = vsel %vm7509, %v7376, %v5073
      %v7655 = vsel %vm7509, %v7378, %v5075
      %v7657 = vsel %vm7509, %v7380, %v5077
      %v7659 = vsel %vm7509, %v7382, %v5079
      %v7661 = vsel %vm7509, %v7384, %v5081
      %v7663 = vsel %vm7509, %v7386, %v5083
      %v7665 = vsel %vm7509, %v7388, %v5085
      %v7667 = vsel %vm7509, %v7390, %v5087
      %v7669 = vsel %vm7509, %v7392, %v5089
      %v7671 = vsel %vm7509, %v7394, %v5091
      %v7673 = vsel %vm7509, %v7396, %v5093
      %v7675 = vsel %vm7509, %v7398, %v5095
      %v7677 = vsel %vm7509, %v7400, %v5097
      %v7679 = vsel %vm7509, %v7402, %v5099
      %v7681 = vsel %vm7509, %v7404, %v5101
      %v7683 = vsel %vm7509, %v7406, %v5103
      %v7685 = vsel %vm7509, %v7408, %v5105
      %v7687 = vsel %vm7509, %v7410, %v5107
      %v7689 = vsel %vm7509, %v7412, %v5109
      %v7691 = vsel %vm7509, %v7414, %v5111
      %v7693 = vsel %vm7509, %v7416, %v5113
      %v7695 = vsel %vm7509, %v7418, %v5115
      %v7697 = vsel %vm7509, %v7420, %v5117
      %v7699 = vsel %vm7509, %v7422, %v5119
      %v7701 = vsel %vm7509, %v7424, %v5121
      %v7703 = vsel %vm7509, %v7426, %v5123
      %v7705 = vsel %vm7509, %v7428, %v5125
      %v7707 = vsel %vm7509, %v7430, %v5127
      %v7709 = vsel %vm7509, %v7432, %v5129
      %v7711 = vsel %vm7509, %v7434, %v5131
      %v7713 = vsel %vm7509, %v7436, %v5133
      %v7715 = vsel %vm7509, %v7438, %v5135
      %v7717 = vsel %vm7509, %v7440, %v5137
      %v7719 = vsel %vm7509, %v7442, %v5139
      %v7721 = vsel %vm7509, %v7444, %v5141
      %v7723 = vsel %vm7509, %v7446, %v5143
      %v7725 = vsel %vm7509, %v7448, %v5145
      %v7727 = vsel %vm7509, %v7450, %v5147
      %v7729 = vsel %vm7509, %v7452, %v5149
      %v7731 = vsel %vm7509, %v7454, %v5151
      %v7733 = vsel %vm7509, %v7456, %v5153
      %v7735 = vsel %vm7509, %v7458, %v5155
      %v7737 = vsel %vm7509, %v7460, %v5157
      %v7739 = vsel %vm7509, %v7462, %v5159
      %v7741 = vsel %vm7509, %v7464, %v5161
      %v7743 = vsel %vm7509, %v7466, %v5163
      %v7745 = vsel %vm7509, %v7468, %v5165
      %v7747 = vsel %vm7509, %v7470, %v5167
      %v7749 = vsel %vm7509, %v7472, %v5169
      %v7751 = vsel %vm7509, %v7474, %v5171
      %v7753 = vsel %vm7509, %v7476, %v5173
      %v7755 = vsel %vm7509, %v7478, %v5175
      %v7757 = vsel %vm7509, %v7480, %v5177
      %v7759 = vsel %vm7509, %v7482, %v5179
      %v7761 = vsel %vm7509, %v7484, %v5181
      %v7763 = vsel %vm7509, %v7486, %v5183
      %v7765 = vsel %vm7509, %v7488, %v5185
      %v7767 = vsel %vm7509, %v7490, %v5187
      %v7769 = vsel %vm7509, %v7492, %v5189
      %v7771 = vsel %vm7509, %v7494, %v5191
      %v7773 = vsel %vm7509, %v7496, %v5193
      %v7775 = vsel %vm7509, %v7498, %v5195
      %v7777 = vsel %vm7509, %v7500, %v5197
      %v7779 = vsel %vm7509, %v7502, %v5199
      %v7781 = vsel %vm7509, %v7504, %v5201
      %v7783 = vsel %vm7509, %v7506, %v5203
      %v7785 = vsel %vm7509, %v7508, %v5205
      %vm7786 = vcmask 785408
      %v7788 = vsel %vm7786, %v7511, %v6496
      %v7790 = vsel %vm7786, %v7513, %v6498
      %v7792 = vsel %vm7786, %v7515, %v6500
      %v7794 = vsel %vm7786, %v7517, %v6502
      %v7796 = vsel %vm7786, %v7519, %v6504
      %v7798 = vsel %vm7786, %v7521, %v6506
      %v7800 = vsel %vm7786, %v7523, %v6508
      %v7802 = vsel %vm7786, %v7525, %v6510
      %v7804 = vsel %vm7786, %v7527, %v6512
      %v7806 = vsel %vm7786, %v7529, %v6514
      %v7808 = vsel %vm7786, %v7531, %v6516
      %v7810 = vsel %vm7786, %v7533, %v6518
      %v7812 = vsel %vm7786, %v7535, %v6520
      %v7814 = vsel %vm7786, %v7537, %v6522
      %v7816 = vsel %vm7786, %v7539, %v6524
      %v7818 = vsel %vm7786, %v7541, %v6526
      %v7820 = vsel %vm7786, %v7543, %v6528
      %v7822 = vsel %vm7786, %v7545, %v6530
      %v7824 = vsel %vm7786, %v7547, %v6532
      %v7826 = vsel %vm7786, %v7549, %v6534
      %v7828 = vsel %vm7786, %v7551, %v6536
      %v7830 = vsel %vm7786, %v7553, %v6538
      %v7832 = vsel %vm7786, %v7555, %v6540
      %v7834 = vsel %vm7786, %v7557, %v6542
      %v7836 = vsel %vm7786, %v7559, %v6544
      %v7838 = vsel %vm7786, %v7561, %v6546
      %v7840 = vsel %vm7786, %v7563, %v6548
      %v7842 = vsel %vm7786, %v7565, %v6550
      %v7844 = vsel %vm7786, %v7567, %v6552
      %v7846 = vsel %vm7786, %v7569, %v6554
      %v7848 = vsel %vm7786, %v7571, %v6556
      %v7850 = vsel %vm7786, %v7573, %v6558
      %v7852 = vsel %vm7786, %v7575, %v6560
      %v7854 = vsel %vm7786, %v7577, %v6562
      %v7856 = vsel %vm7786, %v7579, %v6564
      %v7858 = vsel %vm7786, %v7581, %v6566
      %v7860 = vsel %vm7786, %v7583, %v6568
      %v7862 = vsel %vm7786, %v7585, %v6570
      %v7864 = vsel %vm7786, %v7587, %v6572
      %v7866 = vsel %vm7786, %v7589, %v6574
      %v7868 = vsel %vm7786, %v7591, %v6576
      %v7870 = vsel %vm7786, %v7593, %v6578
      %v7872 = vsel %vm7786, %v7595, %v6580
      %v7874 = vsel %vm7786, %v7597, %v6582
      %v7876 = vsel %vm7786, %v7599, %v6584
      %v7878 = vsel %vm7786, %v7601, %v6586
      %v7880 = vsel %vm7786, %v7603, %v6588
      %v7882 = vsel %vm7786, %v7605, %v6590
      %v7884 = vsel %vm7786, %v7607, %v6592
      %v7886 = vsel %vm7786, %v7609, %v6594
      %v7888 = vsel %vm7786, %v7611, %v6596
      %v7890 = vsel %vm7786, %v7613, %v6598
      %v7892 = vsel %vm7786, %v7615, %v6600
      %v7894 = vsel %vm7786, %v7617, %v6602
      %v7896 = vsel %vm7786, %v7619, %v6604
      %v7898 = vsel %vm7786, %v7621, %v6606
      %v7900 = vsel %vm7786, %v7623, %v6608
      %v7902 = vsel %vm7786, %v7625, %v6610
      %v7904 = vsel %vm7786, %v7627, %v6612
      %v7906 = vsel %vm7786, %v7629, %v6614
      %v7908 = vsel %vm7786, %v7631, %v6616
      %v7910 = vsel %vm7786, %v7633, %v6618
      %v7912 = vsel %vm7786, %v7635, %v6620
      %v7914 = vsel %vm7786, %v7637, %v6622
      %v7916 = vsel %vm7786, %v7639, %v6624
      %v7918 = vsel %vm7786, %v7641, %v6626
      %v7920 = vsel %vm7786, %v7643, %v6628
      %v7922 = vsel %vm7786, %v7645, %v6630
      %v7924 = vsel %vm7786, %v7647, %v6632
      %v7926 = vsel %vm7786, %v7649, %v6634
      %v7928 = vsel %vm7786, %v7651, %v6636
      %v7930 = vsel %vm7786, %v7653, %v6638
      %v7932 = vsel %vm7786, %v7655, %v6640
      %v7934 = vsel %vm7786, %v7657, %v6642
      %v7936 = vsel %vm7786, %v7659, %v6644
      %v7938 = vsel %vm7786, %v7661, %v6646
      %v7940 = vsel %vm7786, %v7663, %v6648
      %v7942 = vsel %vm7786, %v7665, %v6650
      %v7944 = vsel %vm7786, %v7667, %v6652
      %v7946 = vsel %vm7786, %v7669, %v6654
      %v7948 = vsel %vm7786, %v7671, %v6656
      %v7950 = vsel %vm7786, %v7673, %v6658
      %v7952 = vsel %vm7786, %v7675, %v6660
      %v7954 = vsel %vm7786, %v7677, %v6662
      %v7956 = vsel %vm7786, %v7679, %v6664
      %v7958 = vsel %vm7786, %v7681, %v6666
      %v7960 = vsel %vm7786, %v7683, %v6668
      %v7962 = vsel %vm7786, %v7685, %v6670
      %v7964 = vsel %vm7786, %v7687, %v6672
      %v7966 = vsel %vm7786, %v7689, %v6674
      %v7968 = vsel %vm7786, %v7691, %v6676
      %v7970 = vsel %vm7786, %v7693, %v6678
      %v7972 = vsel %vm7786, %v7695, %v6680
      %v7974 = vsel %vm7786, %v7697, %v6682
      %v7976 = vsel %vm7786, %v7699, %v6684
      %v7978 = vsel %vm7786, %v7701, %v6686
      %v7980 = vsel %vm7786, %v7703, %v6688
      %v7982 = vsel %vm7786, %v7705, %v6690
      %v7984 = vsel %vm7786, %v7707, %v6692
      %v7986 = vsel %vm7786, %v7709, %v6694
      %v7988 = vsel %vm7786, %v7711, %v6696
      %v7990 = vsel %vm7786, %v7713, %v6698
      %v7992 = vsel %vm7786, %v7715, %v6700
      %v7994 = vsel %vm7786, %v7717, %v6702
      %v7996 = vsel %vm7786, %v7719, %v6704
      %v7998 = vsel %vm7786, %v7721, %v6706
      %v8000 = vsel %vm7786, %v7723, %v6708
      %v8002 = vsel %vm7786, %v7725, %v6710
      %v8004 = vsel %vm7786, %v7727, %v6712
      %v8006 = vsel %vm7786, %v7729, %v6714
      %v8008 = vsel %vm7786, %v7731, %v6716
      %v8010 = vsel %vm7786, %v7733, %v6718
      %v8012 = vsel %vm7786, %v7735, %v6720
      %v8014 = vsel %vm7786, %v7737, %v6722
      %v8016 = vsel %vm7786, %v7739, %v6724
      %v8018 = vsel %vm7786, %v7741, %v6726
      %v8020 = vsel %vm7786, %v7743, %v6728
      %v8022 = vsel %vm7786, %v7745, %v6730
      %v8024 = vsel %vm7786, %v7747, %v6732
      %v8026 = vsel %vm7786, %v7749, %v6734
      %v8028 = vsel %vm7786, %v7751, %v6736
      %v8030 = vsel %vm7786, %v7753, %v6738
      %v8032 = vsel %vm7786, %v7755, %v6740
      %v8034 = vsel %vm7786, %v7757, %v6742
      %v8036 = vsel %vm7786, %v7759, %v6744
      %v8038 = vsel %vm7786, %v7761, %v6746
      %v8040 = vsel %vm7786, %v7763, %v6748
      %v8042 = vsel %vm7786, %v7765, %v6750
      %v8044 = vsel %vm7786, %v7767, %v6752
      %v8046 = vsel %vm7786, %v7769, %v6754
      %v8048 = vsel %vm7786, %v7771, %v6756
      %v8050 = vsel %vm7786, %v7773, %v6758
      %v8052 = vsel %vm7786, %v7775, %v6760
      %v8054 = vsel %vm7786, %v7777, %v6762
      %v8056 = vsel %vm7786, %v7779, %v6764
      %v8058 = vsel %vm7786, %v7781, %v6766
      %v8060 = vsel %vm7786, %v7783, %v6768
      %v8062 = vsel %vm7786, %v7785, %v6770
      %v8201 = vunpack.c.l.b16 %v7788
      %v8202 = vunpack.c.l.b16 %v6912
      %v8203 = vunpack.c.h.b16 %v7788
      %v8204 = vunpack.c.h.b16 %v6912
      %v8205 = vunpack.c.l.b16 %v7790
      %v8206 = vunpack.c.l.b16 %v6914
      %v8207 = vunpack.c.h.b16 %v7790
      %v8208 = vunpack.c.h.b16 %v6914
      %v8209 = vunpack.c.l.b16 %v7792
      %v8210 = vunpack.c.l.b16 %v6916
      %v8211 = vunpack.c.h.b16 %v7792
      %v8212 = vunpack.c.h.b16 %v6916
      %v8213 = vunpack.c.l.b16 %v7794
      %v8214 = vunpack.c.l.b16 %v6919
      %v8215 = vunpack.c.h.b16 %v7794
      %v8216 = vunpack.c.h.b16 %v6919
      %v8217 = vunpack.c.l.b16 %v7796
      %v8218 = vunpack.c.l.b16 %v6921
      %v8219 = vunpack.c.h.b16 %v7796
      %v8220 = vunpack.c.h.b16 %v6921
      %v8221 = vunpack.c.l.b16 %v7798
      %v8222 = vunpack.c.l.b16 %v6923
      %v8223 = vunpack.c.h.b16 %v7798
      %v8224 = vunpack.c.h.b16 %v6923
      %v8225 = vunpack.c.l.b16 %v7800
      %v8226 = vunpack.c.l.b16 %v6926
      %v8227 = vunpack.c.h.b16 %v7800
      %v8228 = vunpack.c.h.b16 %v6926
      %v8229 = vunpack.c.l.b16 %v7802
      %v8230 = vunpack.c.l.b16 %v6928
      %v8231 = vunpack.c.h.b16 %v7802
      %v8232 = vunpack.c.h.b16 %v6928
      %v8233 = vunpack.c.l.b16 %v7804
      %v8234 = vunpack.c.l.b16 %v6930
      %v8235 = vunpack.c.h.b16 %v7804
      %v8236 = vunpack.c.h.b16 %v6930
      %v8237 = vunpack.c.l.b16 %v7806
      %v8238 = vunpack.c.l.b16 %v6933
      %v8239 = vunpack.c.h.b16 %v7806
      %v8240 = vunpack.c.h.b16 %v6933
      %v8241 = vunpack.c.l.b16 %v7808
      %v8242 = vunpack.c.l.b16 %v6935
      %v8243 = vunpack.c.h.b16 %v7808
      %v8244 = vunpack.c.h.b16 %v6935
      %v8245 = vunpack.c.l.b16 %v7810
      %v8246 = vunpack.c.l.b16 %v6937
      %v8247 = vunpack.c.h.b16 %v7810
      %v8248 = vunpack.c.h.b16 %v6937
      %v8249 = vunpack.c.l.b16 %v7812
      %v8250 = vunpack.c.l.b16 %v6940
      %v8251 = vunpack.c.h.b16 %v7812
      %v8252 = vunpack.c.h.b16 %v6940
      %v8253 = vunpack.c.l.b16 %v7814
      %v8254 = vunpack.c.l.b16 %v6942
      %v8255 = vunpack.c.h.b16 %v7814
      %v8256 = vunpack.c.h.b16 %v6942
      %v8257 = vunpack.c.l.b16 %v7816
      %v8258 = vunpack.c.l.b16 %v6944
      %v8259 = vunpack.c.h.b16 %v7816
      %v8260 = vunpack.c.h.b16 %v6944
      %v8261 = vunpack.c.l.b16 %v7818
      %v8262 = vunpack.c.l.b16 %v6947
      %v8263 = vunpack.c.h.b16 %v7818
      %v8264 = vunpack.c.h.b16 %v6947
      %v8265 = vunpack.c.l.b16 %v7820
      %v8266 = vunpack.c.l.b16 %v6949
      %v8267 = vunpack.c.h.b16 %v7820
      %v8268 = vunpack.c.h.b16 %v6949
      %v8269 = vunpack.c.l.b16 %v7822
      %v8270 = vunpack.c.l.b16 %v6951
      %v8271 = vunpack.c.h.b16 %v7822
      %v8272 = vunpack.c.h.b16 %v6951
      %v8273 = vunpack.c.l.b16 %v7824
      %v8274 = vunpack.c.l.b16 %v6954
      %v8275 = vunpack.c.h.b16 %v7824
      %v8276 = vunpack.c.h.b16 %v6954
      %v8277 = vunpack.c.l.b16 %v7826
      %v8278 = vunpack.c.l.b16 %v6956
      %v8279 = vunpack.c.h.b16 %v7826
      %v8280 = vunpack.c.h.b16 %v6956
      %v8281 = vunpack.c.l.b16 %v7828
      %v8282 = vunpack.c.l.b16 %v6958
      %v8283 = vunpack.c.h.b16 %v7828
      %v8284 = vunpack.c.h.b16 %v6958
      %v8285 = vunpack.c.l.b16 %v7830
      %v8286 = vunpack.c.l.b16 %v6961
      %v8287 = vunpack.c.h.b16 %v7830
      %v8288 = vunpack.c.h.b16 %v6961
      %v8289 = vunpack.c.l.b16 %v7832
      %v8290 = vunpack.c.l.b16 %v6963
      %v8291 = vunpack.c.h.b16 %v7832
      %v8292 = vunpack.c.h.b16 %v6963
      %v8293 = vunpack.c.l.b16 %v7834
      %v8294 = vunpack.c.l.b16 %v6965
      %v8295 = vunpack.c.h.b16 %v7834
      %v8296 = vunpack.c.h.b16 %v6965
      %v8297 = vunpack.c.l.b16 %v7836
      %v8298 = vunpack.c.l.b16 %v6968
      %v8299 = vunpack.c.h.b16 %v7836
      %v8300 = vunpack.c.h.b16 %v6968
      %v8301 = vunpack.c.l.b16 %v7838
      %v8302 = vunpack.c.l.b16 %v6970
      %v8303 = vunpack.c.h.b16 %v7838
      %v8304 = vunpack.c.h.b16 %v6970
      %v8305 = vunpack.c.l.b16 %v7840
      %v8306 = vunpack.c.l.b16 %v6972
      %v8307 = vunpack.c.h.b16 %v7840
      %v8308 = vunpack.c.h.b16 %v6972
      %v8309 = vunpack.c.l.b16 %v7842
      %v8310 = vunpack.c.l.b16 %v6975
      %v8311 = vunpack.c.h.b16 %v7842
      %v8312 = vunpack.c.h.b16 %v6975
      %v8313 = vunpack.c.l.b16 %v7844
      %v8314 = vunpack.c.l.b16 %v6977
      %v8315 = vunpack.c.h.b16 %v7844
      %v8316 = vunpack.c.h.b16 %v6977
      %v8317 = vunpack.c.l.b16 %v7846
      %v8318 = vunpack.c.l.b16 %v6979
      %v8319 = vunpack.c.h.b16 %v7846
      %v8320 = vunpack.c.h.b16 %v6979
      %v8321 = vunpack.c.l.b16 %v7848
      %v8322 = vunpack.c.l.b16 %v6982
      %v8323 = vunpack.c.h.b16 %v7848
      %v8324 = vunpack.c.h.b16 %v6982
      %v8325 = vunpack.c.l.b16 %v7850
      %v8326 = vunpack.c.l.b16 %v6984
      %v8327 = vunpack.c.h.b16 %v7850
      %v8328 = vunpack.c.h.b16 %v6984
      %v8329 = vunpack.c.l.b16 %v7852
      %v8330 = vunpack.c.l.b16 %v6986
      %v8331 = vunpack.c.h.b16 %v7852
      %v8332 = vunpack.c.h.b16 %v6986
      %v8333 = vunpack.c.l.b16 %v7854
      %v8334 = vunpack.c.l.b16 %v6989
      %v8335 = vunpack.c.h.b16 %v7854
      %v8336 = vunpack.c.h.b16 %v6989
      %v8337 = vunpack.c.l.b16 %v7856
      %v8338 = vunpack.c.l.b16 %v6991
      %v8339 = vunpack.c.h.b16 %v7856
      %v8340 = vunpack.c.h.b16 %v6991
      %v8341 = vunpack.c.l.b16 %v7858
      %v8342 = vunpack.c.l.b16 %v6993
      %v8343 = vunpack.c.h.b16 %v7858
      %v8344 = vunpack.c.h.b16 %v6993
      %v8345 = vunpack.c.l.b16 %v7860
      %v8346 = vunpack.c.l.b16 %v6996
      %v8347 = vunpack.c.h.b16 %v7860
      %v8348 = vunpack.c.h.b16 %v6996
      %v8349 = vunpack.c.l.b16 %v7862
      %v8350 = vunpack.c.l.b16 %v6998
      %v8351 = vunpack.c.h.b16 %v7862
      %v8352 = vunpack.c.h.b16 %v6998
      %v8353 = vunpack.c.l.b16 %v7864
      %v8354 = vunpack.c.l.b16 %v7000
      %v8355 = vunpack.c.h.b16 %v7864
      %v8356 = vunpack.c.h.b16 %v7000
      %v8357 = vunpack.c.l.b16 %v7866
      %v8358 = vunpack.c.l.b16 %v7003
      %v8359 = vunpack.c.h.b16 %v7866
      %v8360 = vunpack.c.h.b16 %v7003
      %v8361 = vunpack.c.l.b16 %v7868
      %v8362 = vunpack.c.l.b16 %v7005
      %v8363 = vunpack.c.h.b16 %v7868
      %v8364 = vunpack.c.h.b16 %v7005
      %v8365 = vunpack.c.l.b16 %v7870
      %v8366 = vunpack.c.l.b16 %v7007
      %v8367 = vunpack.c.h.b16 %v7870
      %v8368 = vunpack.c.h.b16 %v7007
      %v8369 = vunpack.c.l.b16 %v7872
      %v8370 = vunpack.c.l.b16 %v7010
      %v8371 = vunpack.c.h.b16 %v7872
      %v8372 = vunpack.c.h.b16 %v7010
      %v8373 = vunpack.c.l.b16 %v7874
      %v8374 = vunpack.c.l.b16 %v7012
      %v8375 = vunpack.c.h.b16 %v7874
      %v8376 = vunpack.c.h.b16 %v7012
      %v8377 = vunpack.c.l.b16 %v7876
      %v8378 = vunpack.c.l.b16 %v7014
      %v8379 = vunpack.c.h.b16 %v7876
      %v8380 = vunpack.c.h.b16 %v7014
      %v8381 = vunpack.c.l.b16 %v7878
      %v8382 = vunpack.c.l.b16 %v7017
      %v8383 = vunpack.c.h.b16 %v7878
      %v8384 = vunpack.c.h.b16 %v7017
      %v8385 = vunpack.c.l.b16 %v7880
      %v8386 = vunpack.c.l.b16 %v7019
      %v8387 = vunpack.c.h.b16 %v7880
      %v8388 = vunpack.c.h.b16 %v7019
      %v8389 = vunpack.c.l.b16 %v7882
      %v8390 = vunpack.c.l.b16 %v7021
      %v8391 = vunpack.c.h.b16 %v7882
      %v8392 = vunpack.c.h.b16 %v7021
      %v8393 = vunpack.c.l.b16 %v7884
      %v8394 = vunpack.c.l.b16 %v7024
      %v8395 = vunpack.c.h.b16 %v7884
      %v8396 = vunpack.c.h.b16 %v7024
      %v8397 = vunpack.c.l.b16 %v7886
      %v8398 = vunpack.c.l.b16 %v7026
      %v8399 = vunpack.c.h.b16 %v7886
      %v8400 = vunpack.c.h.b16 %v7026
      %v8401 = vunpack.c.l.b16 %v7888
      %v8402 = vunpack.c.l.b16 %v7028
      %v8403 = vunpack.c.h.b16 %v7888
      %v8404 = vunpack.c.h.b16 %v7028
      %v8405 = vunpack.c.l.b16 %v7890
      %v8406 = vunpack.c.l.b16 %v7031
      %v8407 = vunpack.c.h.b16 %v7890
      %v8408 = vunpack.c.h.b16 %v7031
      %v8409 = vunpack.c.l.b16 %v7892
      %v8410 = vunpack.c.l.b16 %v7033
      %v8411 = vunpack.c.h.b16 %v7892
      %v8412 = vunpack.c.h.b16 %v7033
      %v8413 = vunpack.c.l.b16 %v7894
      %v8414 = vunpack.c.l.b16 %v7035
      %v8415 = vunpack.c.h.b16 %v7894
      %v8416 = vunpack.c.h.b16 %v7035
      %v8417 = vunpack.c.l.b16 %v7896
      %v8418 = vunpack.c.l.b16 %v7038
      %v8419 = vunpack.c.h.b16 %v7896
      %v8420 = vunpack.c.h.b16 %v7038
      %v8421 = vunpack.c.l.b16 %v7898
      %v8422 = vunpack.c.l.b16 %v7040
      %v8423 = vunpack.c.h.b16 %v7898
      %v8424 = vunpack.c.h.b16 %v7040
      %v8425 = vunpack.c.l.b16 %v7900
      %v8426 = vunpack.c.l.b16 %v7042
      %v8427 = vunpack.c.h.b16 %v7900
      %v8428 = vunpack.c.h.b16 %v7042
      %v8429 = vunpack.c.l.b16 %v7902
      %v8430 = vunpack.c.l.b16 %v7045
      %v8431 = vunpack.c.h.b16 %v7902
      %v8432 = vunpack.c.h.b16 %v7045
      %v8433 = vunpack.c.l.b16 %v7904
      %v8434 = vunpack.c.l.b16 %v7047
      %v8435 = vunpack.c.h.b16 %v7904
      %v8436 = vunpack.c.h.b16 %v7047
      %v8437 = vunpack.c.l.b16 %v7906
      %v8438 = vunpack.c.l.b16 %v7049
      %v8439 = vunpack.c.h.b16 %v7906
      %v8440 = vunpack.c.h.b16 %v7049
      %v8441 = vunpack.c.l.b16 %v7908
      %v8442 = vunpack.c.l.b16 %v7052
      %v8443 = vunpack.c.h.b16 %v7908
      %v8444 = vunpack.c.h.b16 %v7052
      %v8445 = vunpack.c.l.b16 %v7910
      %v8446 = vunpack.c.l.b16 %v7054
      %v8447 = vunpack.c.h.b16 %v7910
      %v8448 = vunpack.c.h.b16 %v7054
      %v8449 = vunpack.c.l.b16 %v7912
      %v8450 = vunpack.c.l.b16 %v7056
      %v8451 = vunpack.c.h.b16 %v7912
      %v8452 = vunpack.c.h.b16 %v7056
      %v8453 = vunpack.c.l.b16 %v7914
      %v8454 = vunpack.c.l.b16 %v7059
      %v8455 = vunpack.c.h.b16 %v7914
      %v8456 = vunpack.c.h.b16 %v7059
      %v8457 = vunpack.c.l.b16 %v7916
      %v8458 = vunpack.c.l.b16 %v7061
      %v8459 = vunpack.c.h.b16 %v7916
      %v8460 = vunpack.c.h.b16 %v7061
      %v8461 = vunpack.c.l.b16 %v7918
      %v8462 = vunpack.c.l.b16 %v7063
      %v8463 = vunpack.c.h.b16 %v7918
      %v8464 = vunpack.c.h.b16 %v7063
      %v8465 = vunpack.c.l.b16 %v7920
      %v8466 = vunpack.c.l.b16 %v7066
      %v8467 = vunpack.c.h.b16 %v7920
      %v8468 = vunpack.c.h.b16 %v7066
      %v8469 = vunpack.c.l.b16 %v7922
      %v8470 = vunpack.c.l.b16 %v7068
      %v8471 = vunpack.c.h.b16 %v7922
      %v8472 = vunpack.c.h.b16 %v7068
      %v8473 = vunpack.c.l.b16 %v7924
      %v8474 = vunpack.c.l.b16 %v7070
      %v8475 = vunpack.c.h.b16 %v7924
      %v8476 = vunpack.c.h.b16 %v7070
      %v8477 = vunpack.c.l.b16 %v7926
      %v8478 = vunpack.c.l.b16 %v7073
      %v8479 = vunpack.c.h.b16 %v7926
      %v8480 = vunpack.c.h.b16 %v7073
      %v8481 = vunpack.c.l.b16 %v7928
      %v8482 = vunpack.c.l.b16 %v7075
      %v8483 = vunpack.c.h.b16 %v7928
      %v8484 = vunpack.c.h.b16 %v7075
      %v8485 = vunpack.c.l.b16 %v7930
      %v8486 = vunpack.c.l.b16 %v7077
      %v8487 = vunpack.c.h.b16 %v7930
      %v8488 = vunpack.c.h.b16 %v7077
      %v8489 = vunpack.c.l.b16 %v7932
      %v8490 = vunpack.c.l.b16 %v7080
      %v8491 = vunpack.c.h.b16 %v7932
      %v8492 = vunpack.c.h.b16 %v7080
      %v8493 = vunpack.c.l.b16 %v7934
      %v8494 = vunpack.c.l.b16 %v7082
      %v8495 = vunpack.c.h.b16 %v7934
      %v8496 = vunpack.c.h.b16 %v7082
      %v8497 = vunpack.c.l.b16 %v7936
      %v8498 = vunpack.c.l.b16 %v7084
      %v8499 = vunpack.c.h.b16 %v7936
      %v8500 = vunpack.c.h.b16 %v7084
      %v8501 = vunpack.c.l.b16 %v7938
      %v8502 = vunpack.c.l.b16 %v7087
      %v8503 = vunpack.c.h.b16 %v7938
      %v8504 = vunpack.c.h.b16 %v7087
      %v8505 = vunpack.c.l.b16 %v7940
      %v8506 = vunpack.c.l.b16 %v7089
      %v8507 = vunpack.c.h.b16 %v7940
      %v8508 = vunpack.c.h.b16 %v7089
      %v8509 = vunpack.c.l.b16 %v7942
      %v8510 = vunpack.c.l.b16 %v7091
      %v8511 = vunpack.c.h.b16 %v7942
      %v8512 = vunpack.c.h.b16 %v7091
      %v8513 = vunpack.c.l.b16 %v7944
      %v8514 = vunpack.c.l.b16 %v7094
      %v8515 = vunpack.c.h.b16 %v7944
      %v8516 = vunpack.c.h.b16 %v7094
      %v8517 = vunpack.c.l.b16 %v7946
      %v8518 = vunpack.c.l.b16 %v7096
      %v8519 = vunpack.c.h.b16 %v7946
      %v8520 = vunpack.c.h.b16 %v7096
      %v8521 = vunpack.c.l.b16 %v7948
      %v8522 = vunpack.c.l.b16 %v7098
      %v8523 = vunpack.c.h.b16 %v7948
      %v8524 = vunpack.c.h.b16 %v7098
      %v8525 = vunpack.c.l.b16 %v7950
      %v8526 = vunpack.c.l.b16 %v7101
      %v8527 = vunpack.c.h.b16 %v7950
      %v8528 = vunpack.c.h.b16 %v7101
      %v8529 = vunpack.c.l.b16 %v7952
      %v8530 = vunpack.c.l.b16 %v7103
      %v8531 = vunpack.c.h.b16 %v7952
      %v8532 = vunpack.c.h.b16 %v7103
      %v8533 = vunpack.c.l.b16 %v7954
      %v8534 = vunpack.c.l.b16 %v7105
      %v8535 = vunpack.c.h.b16 %v7954
      %v8536 = vunpack.c.h.b16 %v7105
      %v8537 = vunpack.c.l.b16 %v7956
      %v8538 = vunpack.c.l.b16 %v7108
      %v8539 = vunpack.c.h.b16 %v7956
      %v8540 = vunpack.c.h.b16 %v7108
      %v8541 = vunpack.c.l.b16 %v7958
      %v8542 = vunpack.c.l.b16 %v7110
      %v8543 = vunpack.c.h.b16 %v7958
      %v8544 = vunpack.c.h.b16 %v7110
      %v8545 = vunpack.c.l.b16 %v7960
      %v8546 = vunpack.c.l.b16 %v7112
      %v8547 = vunpack.c.h.b16 %v7960
      %v8548 = vunpack.c.h.b16 %v7112
      %v8549 = vunpack.c.l.b16 %v7962
      %v8550 = vunpack.c.l.b16 %v7115
      %v8551 = vunpack.c.h.b16 %v7962
      %v8552 = vunpack.c.h.b16 %v7115
      %v8553 = vunpack.c.l.b16 %v7964
      %v8554 = vunpack.c.l.b16 %v7117
      %v8555 = vunpack.c.h.b16 %v7964
      %v8556 = vunpack.c.h.b16 %v7117
      %v8557 = vunpack.c.l.b16 %v7966
      %v8558 = vunpack.c.l.b16 %v7119
      %v8559 = vunpack.c.h.b16 %v7966
      %v8560 = vunpack.c.h.b16 %v7119
      %v8561 = vunpack.c.l.b16 %v7968
      %v8562 = vunpack.c.l.b16 %v7122
      %v8563 = vunpack.c.h.b16 %v7968
      %v8564 = vunpack.c.h.b16 %v7122
      %v8565 = vunpack.c.l.b16 %v7970
      %v8566 = vunpack.c.l.b16 %v7124
      %v8567 = vunpack.c.h.b16 %v7970
      %v8568 = vunpack.c.h.b16 %v7124
      %v8569 = vunpack.c.l.b16 %v7972
      %v8570 = vunpack.c.l.b16 %v7126
      %v8571 = vunpack.c.h.b16 %v7972
      %v8572 = vunpack.c.h.b16 %v7126
      %v8573 = vunpack.c.l.b16 %v7974
      %v8574 = vunpack.c.l.b16 %v7129
      %v8575 = vunpack.c.h.b16 %v7974
      %v8576 = vunpack.c.h.b16 %v7129
      %v8577 = vunpack.c.l.b16 %v7976
      %v8578 = vunpack.c.l.b16 %v7131
      %v8579 = vunpack.c.h.b16 %v7976
      %v8580 = vunpack.c.h.b16 %v7131
      %v8581 = vunpack.c.l.b16 %v7978
      %v8582 = vunpack.c.l.b16 %v7133
      %v8583 = vunpack.c.h.b16 %v7978
      %v8584 = vunpack.c.h.b16 %v7133
      %v8585 = vunpack.c.l.b16 %v7980
      %v8586 = vunpack.c.l.b16 %v7136
      %v8587 = vunpack.c.h.b16 %v7980
      %v8588 = vunpack.c.h.b16 %v7136
      %v8589 = vunpack.c.l.b16 %v7982
      %v8590 = vunpack.c.l.b16 %v7138
      %v8591 = vunpack.c.h.b16 %v7982
      %v8592 = vunpack.c.h.b16 %v7138
      %v8593 = vunpack.c.l.b16 %v7984
      %v8594 = vunpack.c.l.b16 %v7140
      %v8595 = vunpack.c.h.b16 %v7984
      %v8596 = vunpack.c.h.b16 %v7140
      %v8597 = vunpack.c.l.b16 %v7986
      %v8598 = vunpack.c.l.b16 %v7143
      %v8599 = vunpack.c.h.b16 %v7986
      %v8600 = vunpack.c.h.b16 %v7143
      %v8601 = vunpack.c.l.b16 %v7988
      %v8602 = vunpack.c.l.b16 %v7145
      %v8603 = vunpack.c.h.b16 %v7988
      %v8604 = vunpack.c.h.b16 %v7145
      %v8605 = vunpack.c.l.b16 %v7990
      %v8606 = vunpack.c.l.b16 %v7147
      %v8607 = vunpack.c.h.b16 %v7990
      %v8608 = vunpack.c.h.b16 %v7147
      %v8609 = vunpack.c.l.b16 %v7992
      %v8610 = vunpack.c.l.b16 %v7150
      %v8611 = vunpack.c.h.b16 %v7992
      %v8612 = vunpack.c.h.b16 %v7150
      %v8613 = vunpack.c.l.b16 %v7994
      %v8614 = vunpack.c.l.b16 %v7152
      %v8615 = vunpack.c.h.b16 %v7994
      %v8616 = vunpack.c.h.b16 %v7152
      %v8617 = vunpack.c.l.b16 %v7996
      %v8618 = vunpack.c.l.b16 %v7154
      %v8619 = vunpack.c.h.b16 %v7996
      %v8620 = vunpack.c.h.b16 %v7154
      %v8621 = vunpack.c.l.b16 %v7998
      %v8622 = vunpack.c.l.b16 %v7157
      %v8623 = vunpack.c.h.b16 %v7998
      %v8624 = vunpack.c.h.b16 %v7157
      %v8625 = vunpack.c.l.b16 %v8000
      %v8626 = vunpack.c.l.b16 %v7159
      %v8627 = vunpack.c.h.b16 %v8000
      %v8628 = vunpack.c.h.b16 %v7159
      %v8629 = vunpack.c.l.b16 %v8002
      %v8630 = vunpack.c.l.b16 %v7161
      %v8631 = vunpack.c.h.b16 %v8002
      %v8632 = vunpack.c.h.b16 %v7161
      %v8633 = vunpack.c.l.b16 %v8004
      %v8634 = vunpack.c.l.b16 %v7164
      %v8635 = vunpack.c.h.b16 %v8004
      %v8636 = vunpack.c.h.b16 %v7164
      %v8637 = vunpack.c.l.b16 %v8006
      %v8638 = vunpack.c.l.b16 %v7166
      %v8639 = vunpack.c.h.b16 %v8006
      %v8640 = vunpack.c.h.b16 %v7166
      %v8641 = vunpack.c.l.b16 %v8008
      %v8642 = vunpack.c.l.b16 %v7168
      %v8643 = vunpack.c.h.b16 %v8008
      %v8644 = vunpack.c.h.b16 %v7168
      %v8645 = vunpack.c.l.b16 %v8010
      %v8646 = vunpack.c.l.b16 %v7171
      %v8647 = vunpack.c.h.b16 %v8010
      %v8648 = vunpack.c.h.b16 %v7171
      %v8649 = vunpack.c.l.b16 %v8012
      %v8650 = vunpack.c.l.b16 %v7173
      %v8651 = vunpack.c.h.b16 %v8012
      %v8652 = vunpack.c.h.b16 %v7173
      %v8653 = vunpack.c.l.b16 %v8014
      %v8654 = vunpack.c.l.b16 %v7175
      %v8655 = vunpack.c.h.b16 %v8014
      %v8656 = vunpack.c.h.b16 %v7175
      %v8657 = vunpack.c.l.b16 %v8016
      %v8658 = vunpack.c.l.b16 %v7178
      %v8659 = vunpack.c.h.b16 %v8016
      %v8660 = vunpack.c.h.b16 %v7178
      %v8661 = vunpack.c.l.b16 %v8018
      %v8662 = vunpack.c.l.b16 %v7180
      %v8663 = vunpack.c.h.b16 %v8018
      %v8664 = vunpack.c.h.b16 %v7180
      %v8665 = vunpack.c.l.b16 %v8020
      %v8666 = vunpack.c.l.b16 %v7182
      %v8667 = vunpack.c.h.b16 %v8020
      %v8668 = vunpack.c.h.b16 %v7182
      %v8669 = vunpack.c.l.b16 %v8022
      %v8670 = vunpack.c.l.b16 %v7185
      %v8671 = vunpack.c.h.b16 %v8022
      %v8672 = vunpack.c.h.b16 %v7185
      %v8673 = vunpack.c.l.b16 %v8024
      %v8674 = vunpack.c.l.b16 %v7187
      %v8675 = vunpack.c.h.b16 %v8024
      %v8676 = vunpack.c.h.b16 %v7187
      %v8677 = vunpack.c.l.b16 %v8026
      %v8678 = vunpack.c.l.b16 %v7189
      %v8679 = vunpack.c.h.b16 %v8026
      %v8680 = vunpack.c.h.b16 %v7189
      %v8681 = vunpack.c.l.b16 %v8028
      %v8682 = vunpack.c.l.b16 %v7192
      %v8683 = vunpack.c.h.b16 %v8028
      %v8684 = vunpack.c.h.b16 %v7192
      %v8685 = vunpack.c.l.b16 %v8030
      %v8686 = vunpack.c.l.b16 %v7194
      %v8687 = vunpack.c.h.b16 %v8030
      %v8688 = vunpack.c.h.b16 %v7194
      %v8689 = vunpack.c.l.b16 %v8032
      %v8690 = vunpack.c.l.b16 %v7196
      %v8691 = vunpack.c.h.b16 %v8032
      %v8692 = vunpack.c.h.b16 %v7196
      %v8693 = vunpack.c.l.b16 %v8034
      %v8694 = vunpack.c.l.b16 %v7199
      %v8695 = vunpack.c.h.b16 %v8034
      %v8696 = vunpack.c.h.b16 %v7199
      %v8697 = vunpack.c.l.b16 %v8036
      %v8698 = vunpack.c.l.b16 %v7201
      %v8699 = vunpack.c.h.b16 %v8036
      %v8700 = vunpack.c.h.b16 %v7201
      %v8701 = vunpack.c.l.b16 %v8038
      %v8702 = vunpack.c.l.b16 %v7203
      %v8703 = vunpack.c.h.b16 %v8038
      %v8704 = vunpack.c.h.b16 %v7203
      %v8705 = vunpack.c.l.b16 %v8040
      %v8706 = vunpack.c.l.b16 %v7206
      %v8707 = vunpack.c.h.b16 %v8040
      %v8708 = vunpack.c.h.b16 %v7206
      %v8709 = vunpack.c.l.b16 %v8042
      %v8710 = vunpack.c.l.b16 %v7208
      %v8711 = vunpack.c.h.b16 %v8042
      %v8712 = vunpack.c.h.b16 %v7208
      %v8713 = vunpack.c.l.b16 %v8044
      %v8714 = vunpack.c.l.b16 %v7210
      %v8715 = vunpack.c.h.b16 %v8044
      %v8716 = vunpack.c.h.b16 %v7210
      %v8717 = vunpack.c.l.b16 %v8046
      %v8718 = vunpack.c.l.b16 %v7213
      %v8719 = vunpack.c.h.b16 %v8046
      %v8720 = vunpack.c.h.b16 %v7213
      %v8721 = vunpack.c.l.b16 %v8048
      %v8722 = vunpack.c.l.b16 %v7215
      %v8723 = vunpack.c.h.b16 %v8048
      %v8724 = vunpack.c.h.b16 %v7215
      %v8725 = vunpack.c.l.b16 %v8050
      %v8726 = vunpack.c.l.b16 %v7217
      %v8727 = vunpack.c.h.b16 %v8050
      %v8728 = vunpack.c.h.b16 %v7217
      %v8729 = vunpack.c.l.b16 %v8052
      %v8730 = vunpack.c.l.b16 %v7220
      %v8731 = vunpack.c.h.b16 %v8052
      %v8732 = vunpack.c.h.b16 %v7220
      %v8733 = vunpack.c.l.b16 %v8054
      %v8734 = vunpack.c.l.b16 %v7222
      %v8735 = vunpack.c.h.b16 %v8054
      %v8736 = vunpack.c.h.b16 %v7222
      %v8737 = vunpack.c.l.b16 %v8056
      %v8738 = vunpack.c.l.b16 %v7224
      %v8739 = vunpack.c.h.b16 %v8056
      %v8740 = vunpack.c.h.b16 %v7224
      %v8741 = vunpack.c.l.b16 %v8058
      %v8742 = vunpack.c.l.b16 %v7227
      %v8743 = vunpack.c.h.b16 %v8058
      %v8744 = vunpack.c.h.b16 %v7227
      %v8745 = vunpack.c.l.b16 %v8060
      %v8746 = vunpack.c.l.b16 %v7229
      %v8747 = vunpack.c.h.b16 %v8060
      %v8748 = vunpack.c.h.b16 %v7229
      %v8749 = vunpack.c.l.b16 %v8062
      %v8750 = vunpack.c.l.b16 %v7231
      %v8751 = vunpack.c.h.b16 %v8062
      %v8752 = vunpack.c.h.b16 %v7231
      %v8753 = vpack.c.b16 %v8202, %v8201
      %v8754 = vpack.c.b16 %v8204, %v8203
      %v8755 = vpack.c.b16 %v8206, %v8205
      %v8756 = vpack.c.b16 %v8208, %v8207
      %v8757 = vpack.c.b16 %v8210, %v8209
      %v8758 = vpack.c.b16 %v8212, %v8211
      %v8759 = vpack.c.b16 %v8214, %v8213
      %v8760 = vpack.c.b16 %v8216, %v8215
      %v8761 = vpack.c.b16 %v8218, %v8217
      %v8762 = vpack.c.b16 %v8220, %v8219
      %v8763 = vpack.c.b16 %v8222, %v8221
      %v8764 = vpack.c.b16 %v8224, %v8223
      %v8765 = vpack.c.b16 %v8226, %v8225
      %v8766 = vpack.c.b16 %v8228, %v8227
      %v8767 = vpack.c.b16 %v8230, %v8229
      %v8768 = vpack.c.b16 %v8232, %v8231
      %v8769 = vpack.c.b16 %v8234, %v8233
      %v8770 = vpack.c.b16 %v8236, %v8235
      %v8771 = vpack.c.b16 %v8238, %v8237
      %v8772 = vpack.c.b16 %v8240, %v8239
      %v8773 = vpack.c.b16 %v8242, %v8241
      %v8774 = vpack.c.b16 %v8244, %v8243
      %v8775 = vpack.c.b16 %v8246, %v8245
      %v8776 = vpack.c.b16 %v8248, %v8247
      %v8777 = vpack.c.b16 %v8250, %v8249
      %v8778 = vpack.c.b16 %v8252, %v8251
      %v8779 = vpack.c.b16 %v8254, %v8253
      %v8780 = vpack.c.b16 %v8256, %v8255
      %v8781 = vpack.c.b16 %v8258, %v8257
      %v8782 = vpack.c.b16 %v8260, %v8259
      %v8783 = vpack.c.b16 %v8262, %v8261
      %v8784 = vpack.c.b16 %v8264, %v8263
      %v8785 = vpack.c.b16 %v8266, %v8265
      %v8786 = vpack.c.b16 %v8268, %v8267
      %v8787 = vpack.c.b16 %v8270, %v8269
      %v8788 = vpack.c.b16 %v8272, %v8271
      %v8789 = vpack.c.b16 %v8274, %v8273
      %v8790 = vpack.c.b16 %v8276, %v8275
      %v8791 = vpack.c.b16 %v8278, %v8277
      %v8792 = vpack.c.b16 %v8280, %v8279
      %v8793 = vpack.c.b16 %v8282, %v8281
      %v8794 = vpack.c.b16 %v8284, %v8283
      %v8795 = vpack.c.b16 %v8286, %v8285
      %v8796 = vpack.c.b16 %v8288, %v8287
      %v8797 = vpack.c.b16 %v8290, %v8289
      %v8798 = vpack.c.b16 %v8292, %v8291
      %v8799 = vpack.c.b16 %v8294, %v8293
      %v8800 = vpack.c.b16 %v8296, %v8295
      %v8801 = vpack.c.b16 %v8298, %v8297
      %v8802 = vpack.c.b16 %v8300, %v8299
      %v8803 = vpack.c.b16 %v8302, %v8301
      %v8804 = vpack.c.b16 %v8304, %v8303
      %v8805 = vpack.c.b16 %v8306, %v8305
      %v8806 = vpack.c.b16 %v8308, %v8307
      %v8807 = vpack.c.b16 %v8310, %v8309
      %v8808 = vpack.c.b16 %v8312, %v8311
      %v8809 = vpack.c.b16 %v8314, %v8313
      %v8810 = vpack.c.b16 %v8316, %v8315
      %v8811 = vpack.c.b16 %v8318, %v8317
      %v8812 = vpack.c.b16 %v8320, %v8319
      %v8813 = vpack.c.b16 %v8322, %v8321
      %v8814 = vpack.c.b16 %v8324, %v8323
      %v8815 = vpack.c.b16 %v8326, %v8325
      %v8816 = vpack.c.b16 %v8328, %v8327
      %v8817 = vpack.c.b16 %v8330, %v8329
      %v8818 = vpack.c.b16 %v8332, %v8331
      %v8819 = vpack.c.b16 %v8334, %v8333
      %v8820 = vpack.c.b16 %v8336, %v8335
      %v8821 = vpack.c.b16 %v8338, %v8337
      %v8822 = vpack.c.b16 %v8340, %v8339
      %v8823 = vpack.c.b16 %v8342, %v8341
      %v8824 = vpack.c.b16 %v8344, %v8343
      %v8825 = vpack.c.b16 %v8346, %v8345
      %v8826 = vpack.c.b16 %v8348, %v8347
      %v8827 = vpack.c.b16 %v8350, %v8349
      %v8828 = vpack.c.b16 %v8352, %v8351
      %v8829 = vpack.c.b16 %v8354, %v8353
      %v8830 = vpack.c.b16 %v8356, %v8355
      %v8831 = vpack.c.b16 %v8358, %v8357
      %v8832 = vpack.c.b16 %v8360, %v8359
      %v8833 = vpack.c.b16 %v8362, %v8361
      %v8834 = vpack.c.b16 %v8364, %v8363
      %v8835 = vpack.c.b16 %v8366, %v8365
      %v8836 = vpack.c.b16 %v8368, %v8367
      %v8837 = vpack.c.b16 %v8370, %v8369
      %v8838 = vpack.c.b16 %v8372, %v8371
      %v8839 = vpack.c.b16 %v8374, %v8373
      %v8840 = vpack.c.b16 %v8376, %v8375
      %v8841 = vpack.c.b16 %v8378, %v8377
      %v8842 = vpack.c.b16 %v8380, %v8379
      %v8843 = vpack.c.b16 %v8382, %v8381
      %v8844 = vpack.c.b16 %v8384, %v8383
      %v8845 = vpack.c.b16 %v8386, %v8385
      %v8846 = vpack.c.b16 %v8388, %v8387
      %v8847 = vpack.c.b16 %v8390, %v8389
      %v8848 = vpack.c.b16 %v8392, %v8391
      %v8849 = vpack.c.b16 %v8394, %v8393
      %v8850 = vpack.c.b16 %v8396, %v8395
      %v8851 = vpack.c.b16 %v8398, %v8397
      %v8852 = vpack.c.b16 %v8400, %v8399
      %v8853 = vpack.c.b16 %v8402, %v8401
      %v8854 = vpack.c.b16 %v8404, %v8403
      %v8855 = vpack.c.b16 %v8406, %v8405
      %v8856 = vpack.c.b16 %v8408, %v8407
      %v8857 = vpack.c.b16 %v8410, %v8409
      %v8858 = vpack.c.b16 %v8412, %v8411
      %v8859 = vpack.c.b16 %v8414, %v8413
      %v8860 = vpack.c.b16 %v8416, %v8415
      %v8861 = vpack.c.b16 %v8418, %v8417
      %v8862 = vpack.c.b16 %v8420, %v8419
      %v8863 = vpack.c.b16 %v8422, %v8421
      %v8864 = vpack.c.b16 %v8424, %v8423
      %v8865 = vpack.c.b16 %v8426, %v8425
      %v8866 = vpack.c.b16 %v8428, %v8427
      %v8867 = vpack.c.b16 %v8430, %v8429
      %v8868 = vpack.c.b16 %v8432, %v8431
      %v8869 = vpack.c.b16 %v8434, %v8433
      %v8870 = vpack.c.b16 %v8436, %v8435
      %v8871 = vpack.c.b16 %v8438, %v8437
      %v8872 = vpack.c.b16 %v8440, %v8439
      %v8873 = vpack.c.b16 %v8442, %v8441
      %v8874 = vpack.c.b16 %v8444, %v8443
      %v8875 = vpack.c.b16 %v8446, %v8445
      %v8876 = vpack.c.b16 %v8448, %v8447
      %v8877 = vpack.c.b16 %v8450, %v8449
      %v8878 = vpack.c.b16 %v8452, %v8451
      %v8879 = vpack.c.b16 %v8454, %v8453
      %v8880 = vpack.c.b16 %v8456, %v8455
      %v8881 = vpack.c.b16 %v8458, %v8457
      %v8882 = vpack.c.b16 %v8460, %v8459
      %v8883 = vpack.c.b16 %v8462, %v8461
      %v8884 = vpack.c.b16 %v8464, %v8463
      %v8885 = vpack.c.b16 %v8466, %v8465
      %v8886 = vpack.c.b16 %v8468, %v8467
      %v8887 = vpack.c.b16 %v8470, %v8469
      %v8888 = vpack.c.b16 %v8472, %v8471
      %v8889 = vpack.c.b16 %v8474, %v8473
      %v8890 = vpack.c.b16 %v8476, %v8475
      %v8891 = vpack.c.b16 %v8478, %v8477
      %v8892 = vpack.c.b16 %v8480, %v8479
      %v8893 = vpack.c.b16 %v8482, %v8481
      %v8894 = vpack.c.b16 %v8484, %v8483
      %v8895 = vpack.c.b16 %v8486, %v8485
      %v8896 = vpack.c.b16 %v8488, %v8487
      %v8897 = vpack.c.b16 %v8490, %v8489
      %v8898 = vpack.c.b16 %v8492, %v8491
      %v8899 = vpack.c.b16 %v8494, %v8493
      %v8900 = vpack.c.b16 %v8496, %v8495
      %v8901 = vpack.c.b16 %v8498, %v8497
      %v8902 = vpack.c.b16 %v8500, %v8499
      %v8903 = vpack.c.b16 %v8502, %v8501
      %v8904 = vpack.c.b16 %v8504, %v8503
      %v8905 = vpack.c.b16 %v8506, %v8505
      %v8906 = vpack.c.b16 %v8508, %v8507
      %v8907 = vpack.c.b16 %v8510, %v8509
      %v8908 = vpack.c.b16 %v8512, %v8511
      %v8909 = vpack.c.b16 %v8514, %v8513
      %v8910 = vpack.c.b16 %v8516, %v8515
      %v8911 = vpack.c.b16 %v8518, %v8517
      %v8912 = vpack.c.b16 %v8520, %v8519
      %v8913 = vpack.c.b16 %v8522, %v8521
      %v8914 = vpack.c.b16 %v8524, %v8523
      %v8915 = vpack.c.b16 %v8526, %v8525
      %v8916 = vpack.c.b16 %v8528, %v8527
      %v8917 = vpack.c.b16 %v8530, %v8529
      %v8918 = vpack.c.b16 %v8532, %v8531
      %v8919 = vpack.c.b16 %v8534, %v8533
      %v8920 = vpack.c.b16 %v8536, %v8535
      %v8921 = vpack.c.b16 %v8538, %v8537
      %v8922 = vpack.c.b16 %v8540, %v8539
      %v8923 = vpack.c.b16 %v8542, %v8541
      %v8924 = vpack.c.b16 %v8544, %v8543
      %v8925 = vpack.c.b16 %v8546, %v8545
      %v8926 = vpack.c.b16 %v8548, %v8547
      %v8927 = vpack.c.b16 %v8550, %v8549
      %v8928 = vpack.c.b16 %v8552, %v8551
      %v8929 = vpack.c.b16 %v8554, %v8553
      %v8930 = vpack.c.b16 %v8556, %v8555
      %v8931 = vpack.c.b16 %v8558, %v8557
      %v8932 = vpack.c.b16 %v8560, %v8559
      %v8933 = vpack.c.b16 %v8562, %v8561
      %v8934 = vpack.c.b16 %v8564, %v8563
      %v8935 = vpack.c.b16 %v8566, %v8565
      %v8936 = vpack.c.b16 %v8568, %v8567
      %v8937 = vpack.c.b16 %v8570, %v8569
      %v8938 = vpack.c.b16 %v8572, %v8571
      %v8939 = vpack.c.b16 %v8574, %v8573
      %v8940 = vpack.c.b16 %v8576, %v8575
      %v8941 = vpack.c.b16 %v8578, %v8577
      %v8942 = vpack.c.b16 %v8580, %v8579
      %v8943 = vpack.c.b16 %v8582, %v8581
      %v8944 = vpack.c.b16 %v8584, %v8583
      %v8945 = vpack.c.b16 %v8586, %v8585
      %v8946 = vpack.c.b16 %v8588, %v8587
      %v8947 = vpack.c.b16 %v8590, %v8589
      %v8948 = vpack.c.b16 %v8592, %v8591
      %v8949 = vpack.c.b16 %v8594, %v8593
      %v8950 = vpack.c.b16 %v8596, %v8595
      %v8951 = vpack.c.b16 %v8598, %v8597
      %v8952 = vpack.c.b16 %v8600, %v8599
      %v8953 = vpack.c.b16 %v8602, %v8601
      %v8954 = vpack.c.b16 %v8604, %v8603
      %v8955 = vpack.c.b16 %v8606, %v8605
      %v8956 = vpack.c.b16 %v8608, %v8607
      %v8957 = vpack.c.b16 %v8610, %v8609
      %v8958 = vpack.c.b16 %v8612, %v8611
      %v8959 = vpack.c.b16 %v8614, %v8613
      %v8960 = vpack.c.b16 %v8616, %v8615
      %v8961 = vpack.c.b16 %v8618, %v8617
      %v8962 = vpack.c.b16 %v8620, %v8619
      %v8963 = vpack.c.b16 %v8622, %v8621
      %v8964 = vpack.c.b16 %v8624, %v8623
      %v8965 = vpack.c.b16 %v8626, %v8625
      %v8966 = vpack.c.b16 %v8628, %v8627
      %v8967 = vpack.c.b16 %v8630, %v8629
      %v8968 = vpack.c.b16 %v8632, %v8631
      %v8969 = vpack.c.b16 %v8634, %v8633
      %v8970 = vpack.c.b16 %v8636, %v8635
      %v8971 = vpack.c.b16 %v8638, %v8637
      %v8972 = vpack.c.b16 %v8640, %v8639
      %v8973 = vpack.c.b16 %v8642, %v8641
      %v8974 = vpack.c.b16 %v8644, %v8643
      %v8975 = vpack.c.b16 %v8646, %v8645
      %v8976 = vpack.c.b16 %v8648, %v8647
      %v8977 = vpack.c.b16 %v8650, %v8649
      %v8978 = vpack.c.b16 %v8652, %v8651
      %v8979 = vpack.c.b16 %v8654, %v8653
      %v8980 = vpack.c.b16 %v8656, %v8655
      %v8981 = vpack.c.b16 %v8658, %v8657
      %v8982 = vpack.c.b16 %v8660, %v8659
      %v8983 = vpack.c.b16 %v8662, %v8661
      %v8984 = vpack.c.b16 %v8664, %v8663
      %v8985 = vpack.c.b16 %v8666, %v8665
      %v8986 = vpack.c.b16 %v8668, %v8667
      %v8987 = vpack.c.b16 %v8670, %v8669
      %v8988 = vpack.c.b16 %v8672, %v8671
      %v8989 = vpack.c.b16 %v8674, %v8673
      %v8990 = vpack.c.b16 %v8676, %v8675
      %v8991 = vpack.c.b16 %v8678, %v8677
      %v8992 = vpack.c.b16 %v8680, %v8679
      %v8993 = vpack.c.b16 %v8682, %v8681
      %v8994 = vpack.c.b16 %v8684, %v8683
      %v8995 = vpack.c.b16 %v8686, %v8685
      %v8996 = vpack.c.b16 %v8688, %v8687
      %v8997 = vpack.c.b16 %v8690, %v8689
      %v8998 = vpack.c.b16 %v8692, %v8691
      %v8999 = vpack.c.b16 %v8694, %v8693
      %v9000 = vpack.c.b16 %v8696, %v8695
      %v9001 = vpack.c.b16 %v8698, %v8697
      %v9002 = vpack.c.b16 %v8700, %v8699
      %v9003 = vpack.c.b16 %v8702, %v8701
      %v9004 = vpack.c.b16 %v8704, %v8703
      %v9005 = vpack.c.b16 %v8706, %v8705
      %v9006 = vpack.c.b16 %v8708, %v8707
      %v9007 = vpack.c.b16 %v8710, %v8709
      %v9008 = vpack.c.b16 %v8712, %v8711
      %v9009 = vpack.c.b16 %v8714, %v8713
      %v9010 = vpack.c.b16 %v8716, %v8715
      %v9011 = vpack.c.b16 %v8718, %v8717
      %v9012 = vpack.c.b16 %v8720, %v8719
      %v9013 = vpack.c.b16 %v8722, %v8721
      %v9014 = vpack.c.b16 %v8724, %v8723
      %v9015 = vpack.c.b16 %v8726, %v8725
      %v9016 = vpack.c.b16 %v8728, %v8727
      %v9017 = vpack.c.b16 %v8730, %v8729
      %v9018 = vpack.c.b16 %v8732, %v8731
      %v9019 = vpack.c.b16 %v8734, %v8733
      %v9020 = vpack.c.b16 %v8736, %v8735
      %v9021 = vpack.c.b16 %v8738, %v8737
      %v9022 = vpack.c.b16 %v8740, %v8739
      %v9023 = vpack.c.b16 %v8742, %v8741
      %v9024 = vpack.c.b16 %v8744, %v8743
      %v9025 = vpack.c.b16 %v8746, %v8745
      %v9026 = vpack.c.b16 %v8748, %v8747
      %v9027 = vpack.c.b16 %v8750, %v8749
      %v9028 = vpack.c.b16 %v8752, %v8751
      %vm9305 = vcmask 1043456
      %vm9306 = vcmask 261124
      %vm9307 = vmor %vm9306, %vm9305
      %9308 = vst.msk [vmem:[#allocation3] sm:$0xff] %vm9307, %v8753
      %9309 = vst.msk [vmem:[#allocation3 + $0x8] sm:$0xff] %vm9307, %v8754
      %9310 = vst.msk [vmem:[#allocation3 + $0x10] sm:$0xff] %vm9307, %v8755
      %9311 = vst.msk [vmem:[#allocation3 + $0x18] sm:$0xff] %vm9307, %v8756
      %9312 = vst.msk [vmem:[#allocation3 + $0x20] sm:$0xff] %vm9307, %v8757
      %9313 = vst.msk [vmem:[#allocation3 + $0x28] sm:$0xff] %vm9307, %v8758
      %9314 = vst.msk [vmem:[#allocation3 + $0x30] sm:$0xff] %vm9307, %v8759
      %9315 = vst.msk [vmem:[#allocation3 + $0x38] sm:$0xff] %vm9307, %v8760
      %9316 = vst.msk [vmem:[#allocation3 + $0x40] sm:$0xff] %vm9307, %v8761
      %9317 = vst.msk [vmem:[#allocation3 + $0x48] sm:$0xff] %vm9307, %v8762
      %9318 = vst.msk [vmem:[#allocation3 + $0x50] sm:$0xff] %vm9307, %v8763
      %9319 = vst.msk [vmem:[#allocation3 + $0x58] sm:$0xff] %vm9307, %v8764
      %9320 = vst.msk [vmem:[#allocation3 + $0x60] sm:$0xff] %vm9307, %v8765
      %9321 = vst.msk [vmem:[#allocation3 + $0x68] sm:$0xff] %vm9307, %v8766
      %9322 = vst.msk [vmem:[#allocation3 + $0x70] sm:$0xff] %vm9307, %v8767
      %9323 = vst.msk [vmem:[#allocation3 + $0x78] sm:$0xff] %vm9307, %v8768
      %9324 = vst.msk [vmem:[#allocation3 + $0x80] sm:$0xff] %vm9307, %v8769
      %9325 = vst.msk [vmem:[#allocation3 + $0x88] sm:$0xff] %vm9307, %v8770
      %9326 = vst.msk [vmem:[#allocation3 + $0x90] sm:$0xff] %vm9307, %v8771
      %9327 = vst.msk [vmem:[#allocation3 + $0x98] sm:$0xff] %vm9307, %v8772
      %9328 = vst.msk [vmem:[#allocation3 + $0xa0] sm:$0xff] %vm9307, %v8773
      %9329 = vst.msk [vmem:[#allocation3 + $0xa8] sm:$0xff] %vm9307, %v8774
      %9330 = vst.msk [vmem:[#allocation3 + $0xb0] sm:$0xff] %vm9307, %v8775
      %9331 = vst.msk [vmem:[#allocation3 + $0xb8] sm:$0xff] %vm9307, %v8776
      %9332 = vst.msk [vmem:[#allocation3 + $0xc0] sm:$0xff] %vm9307, %v8777
      %9333 = vst.msk [vmem:[#allocation3 + $0xc8] sm:$0xff] %vm9307, %v8778
      %9334 = vst.msk [vmem:[#allocation3 + $0xd0] sm:$0xff] %vm9307, %v8779
      %9335 = vst.msk [vmem:[#allocation3 + $0xd8] sm:$0xff] %vm9307, %v8780
      %9336 = vst.msk [vmem:[#allocation3 + $0xe0] sm:$0xff] %vm9307, %v8781
      %9337 = vst.msk [vmem:[#allocation3 + $0xe8] sm:$0xff] %vm9307, %v8782
      %9338 = vst.msk [vmem:[#allocation3 + $0xf0] sm:$0xff] %vm9307, %v8783
      %9339 = vst.msk [vmem:[#allocation3 + $0xf8] sm:$0xff] %vm9307, %v8784
      %9340 = vst.msk [vmem:[#allocation3 + $0x100] sm:$0xff] %vm9307, %v8785
      %9341 = vst.msk [vmem:[#allocation3 + $0x108] sm:$0xff] %vm9307, %v8786
      %9342 = vst.msk [vmem:[#allocation3 + $0x110] sm:$0xff] %vm9307, %v8787
      %9343 = vst.msk [vmem:[#allocation3 + $0x118] sm:$0xff] %vm9307, %v8788
      %9344 = vst.msk [vmem:[#allocation3 + $0x120] sm:$0xff] %vm9307, %v8789
      %9345 = vst.msk [vmem:[#allocation3 + $0x128] sm:$0xff] %vm9307, %v8790
      %9346 = vst.msk [vmem:[#allocation3 + $0x130] sm:$0xff] %vm9307, %v8791
      %9347 = vst.msk [vmem:[#allocation3 + $0x138] sm:$0xff] %vm9307, %v8792
      %9348 = vst.msk [vmem:[#allocation3 + $0x140] sm:$0xff] %vm9307, %v8793
      %9349 = vst.msk [vmem:[#allocation3 + $0x148] sm:$0xff] %vm9307, %v8794
      %9350 = vst.msk [vmem:[#allocation3 + $0x150] sm:$0xff] %vm9307, %v8795
      %9351 = vst.msk [vmem:[#allocation3 + $0x158] sm:$0xff] %vm9307, %v8796
      %9352 = vst.msk [vmem:[#allocation3 + $0x160] sm:$0xff] %vm9307, %v8797
      %9353 = vst.msk [vmem:[#allocation3 + $0x168] sm:$0xff] %vm9307, %v8798
      %9354 = vst.msk [vmem:[#allocation3 + $0x170] sm:$0xff] %vm9307, %v8799
      %9355 = vst.msk [vmem:[#allocation3 + $0x178] sm:$0xff] %vm9307, %v8800
      %9356 = vst.msk [vmem:[#allocation3 + $0x180] sm:$0xff] %vm9307, %v8801
      %9357 = vst.msk [vmem:[#allocation3 + $0x188] sm:$0xff] %vm9307, %v8802
      %9358 = vst.msk [vmem:[#allocation3 + $0x190] sm:$0xff] %vm9307, %v8803
      %9359 = vst.msk [vmem:[#allocation3 + $0x198] sm:$0xff] %vm9307, %v8804
      %9360 = vst.msk [vmem:[#allocation3 + $0x1a0] sm:$0xff] %vm9307, %v8805
      %9361 = vst.msk [vmem:[#allocation3 + $0x1a8] sm:$0xff] %vm9307, %v8806
      %9362 = vst.msk [vmem:[#allocation3 + $0x1b0] sm:$0xff] %vm9307, %v8807
      %9363 = vst.msk [vmem:[#allocation3 + $0x1b8] sm:$0xff] %vm9307, %v8808
      %9364 = vst.msk [vmem:[#allocation3 + $0x1c0] sm:$0xff] %vm9307, %v8809
      %9365 = vst.msk [vmem:[#allocation3 + $0x1c8] sm:$0xff] %vm9307, %v8810
      %9366 = vst.msk [vmem:[#allocation3 + $0x1d0] sm:$0xff] %vm9307, %v8811
      %9367 = vst.msk [vmem:[#allocation3 + $0x1d8] sm:$0xff] %vm9307, %v8812
      %9368 = vst.msk [vmem:[#allocation3 + $0x1e0] sm:$0xff] %vm9307, %v8813
      %9369 = vst.msk [vmem:[#allocation3 + $0x1e8] sm:$0xff] %vm9307, %v8814
      %9370 = vst.msk [vmem:[#allocation3 + $0x1f0] sm:$0xff] %vm9307, %v8815
      %9371 = vst.msk [vmem:[#allocation3 + $0x1f8] sm:$0xff] %vm9307, %v8816
      %9372 = vst.msk [vmem:[#allocation3 + $0x200] sm:$0xff] %vm9307, %v8817
      %9373 = vst.msk [vmem:[#allocation3 + $0x208] sm:$0xff] %vm9307, %v8818
      %9374 = vst.msk [vmem:[#allocation3 + $0x210] sm:$0xff] %vm9307, %v8819
      %9375 = vst.msk [vmem:[#allocation3 + $0x218] sm:$0xff] %vm9307, %v8820
      %9376 = vst.msk [vmem:[#allocation3 + $0x220] sm:$0xff] %vm9307, %v8821
      %9377 = vst.msk [vmem:[#allocation3 + $0x228] sm:$0xff] %vm9307, %v8822
      %9378 = vst.msk [vmem:[#allocation3 + $0x230] sm:$0xff] %vm9307, %v8823
      %9379 = vst.msk [vmem:[#allocation3 + $0x238] sm:$0xff] %vm9307, %v8824
      %9380 = vst.msk [vmem:[#allocation3 + $0x240] sm:$0xff] %vm9307, %v8825
      %9381 = vst.msk [vmem:[#allocation3 + $0x248] sm:$0xff] %vm9307, %v8826
      %9382 = vst.msk [vmem:[#allocation3 + $0x250] sm:$0xff] %vm9307, %v8827
      %9383 = vst.msk [vmem:[#allocation3 + $0x258] sm:$0xff] %vm9307, %v8828
      %9384 = vst.msk [vmem:[#allocation3 + $0x260] sm:$0xff] %vm9307, %v8829
      %9385 = vst.msk [vmem:[#allocation3 + $0x268] sm:$0xff] %vm9307, %v8830
      %9386 = vst.msk [vmem:[#allocation3 + $0x270] sm:$0xff] %vm9307, %v8831
      %9387 = vst.msk [vmem:[#allocation3 + $0x278] sm:$0xff] %vm9307, %v8832
      %9388 = vst.msk [vmem:[#allocation3 + $0x280] sm:$0xff] %vm9307, %v8833
      %9389 = vst.msk [vmem:[#allocation3 + $0x288] sm:$0xff] %vm9307, %v8834
      %9390 = vst.msk [vmem:[#allocation3 + $0x290] sm:$0xff] %vm9307, %v8835
      %9391 = vst.msk [vmem:[#allocation3 + $0x298] sm:$0xff] %vm9307, %v8836
      %9392 = vst.msk [vmem:[#allocation3 + $0x2a0] sm:$0xff] %vm9307, %v8837
      %9393 = vst.msk [vmem:[#allocation3 + $0x2a8] sm:$0xff] %vm9307, %v8838
      %9394 = vst.msk [vmem:[#allocation3 + $0x2b0] sm:$0xff] %vm9307, %v8839
      %9395 = vst.msk [vmem:[#allocation3 + $0x2b8] sm:$0xff] %vm9307, %v8840
      %9396 = vst.msk [vmem:[#allocation3 + $0x2c0] sm:$0xff] %vm9307, %v8841
      %9397 = vst.msk [vmem:[#allocation3 + $0x2c8] sm:$0xff] %vm9307, %v8842
      %9398 = vst.msk [vmem:[#allocation3 + $0x2d0] sm:$0xff] %vm9307, %v8843
      %9399 = vst.msk [vmem:[#allocation3 + $0x2d8] sm:$0xff] %vm9307, %v8844
      %9400 = vst.msk [vmem:[#allocation3 + $0x2e0] sm:$0xff] %vm9307, %v8845
      %9401 = vst.msk [vmem:[#allocation3 + $0x2e8] sm:$0xff] %vm9307, %v8846
      %9402 = vst.msk [vmem:[#allocation3 + $0x2f0] sm:$0xff] %vm9307, %v8847
      %9403 = vst.msk [vmem:[#allocation3 + $0x2f8] sm:$0xff] %vm9307, %v8848
      %9404 = vst.msk [vmem:[#allocation3 + $0x300] sm:$0xff] %vm9307, %v8849
      %9405 = vst.msk [vmem:[#allocation3 + $0x308] sm:$0xff] %vm9307, %v8850
      %9406 = vst.msk [vmem:[#allocation3 + $0x310] sm:$0xff] %vm9307, %v8851
      %9407 = vst.msk [vmem:[#allocation3 + $0x318] sm:$0xff] %vm9307, %v8852
      %9408 = vst.msk [vmem:[#allocation3 + $0x320] sm:$0xff] %vm9307, %v8853
      %9409 = vst.msk [vmem:[#allocation3 + $0x328] sm:$0xff] %vm9307, %v8854
      %9410 = vst.msk [vmem:[#allocation3 + $0x330] sm:$0xff] %vm9307, %v8855
      %9411 = vst.msk [vmem:[#allocation3 + $0x338] sm:$0xff] %vm9307, %v8856
      %9412 = vst.msk [vmem:[#allocation3 + $0x340] sm:$0xff] %vm9307, %v8857
      %9413 = vst.msk [vmem:[#allocation3 + $0x348] sm:$0xff] %vm9307, %v8858
      %9414 = vst.msk [vmem:[#allocation3 + $0x350] sm:$0xff] %vm9307, %v8859
      %9415 = vst.msk [vmem:[#allocation3 + $0x358] sm:$0xff] %vm9307, %v8860
      %9416 = vst.msk [vmem:[#allocation3 + $0x360] sm:$0xff] %vm9307, %v8861
      %9417 = vst.msk [vmem:[#allocation3 + $0x368] sm:$0xff] %vm9307, %v8862
      %9418 = vst.msk [vmem:[#allocation3 + $0x370] sm:$0xff] %vm9307, %v8863
      %9419 = vst.msk [vmem:[#allocation3 + $0x378] sm:$0xff] %vm9307, %v8864
      %9420 = vst.msk [vmem:[#allocation3 + $0x380] sm:$0xff] %vm9307, %v8865
      %9421 = vst.msk [vmem:[#allocation3 + $0x388] sm:$0xff] %vm9307, %v8866
      %9422 = vst.msk [vmem:[#allocation3 + $0x390] sm:$0xff] %vm9307, %v8867
      %9423 = vst.msk [vmem:[#allocation3 + $0x398] sm:$0xff] %vm9307, %v8868
      %9424 = vst.msk [vmem:[#allocation3 + $0x3a0] sm:$0xff] %vm9307, %v8869
      %9425 = vst.msk [vmem:[#allocation3 + $0x3a8] sm:$0xff] %vm9307, %v8870
      %9426 = vst.msk [vmem:[#allocation3 + $0x3b0] sm:$0xff] %vm9307, %v8871
      %9427 = vst.msk [vmem:[#allocation3 + $0x3b8] sm:$0xff] %vm9307, %v8872
      %9428 = vst.msk [vmem:[#allocation3 + $0x3c0] sm:$0xff] %vm9307, %v8873
      %9429 = vst.msk [vmem:[#allocation3 + $0x3c8] sm:$0xff] %vm9307, %v8874
      %9430 = vst.msk [vmem:[#allocation3 + $0x3d0] sm:$0xff] %vm9307, %v8875
      %9431 = vst.msk [vmem:[#allocation3 + $0x3d8] sm:$0xff] %vm9307, %v8876
      %9432 = vst.msk [vmem:[#allocation3 + $0x3e0] sm:$0xff] %vm9307, %v8877
      %9433 = vst.msk [vmem:[#allocation3 + $0x3e8] sm:$0xff] %vm9307, %v8878
      %9434 = vst.msk [vmem:[#allocation3 + $0x3f0] sm:$0xff] %vm9307, %v8879
      %9435 = vst.msk [vmem:[#allocation3 + $0x3f8] sm:$0xff] %vm9307, %v8880
      %9436 = vst.msk [vmem:[#allocation3 + $0x400] sm:$0xff] %vm9307, %v8881
      %9437 = vst.msk [vmem:[#allocation3 + $0x408] sm:$0xff] %vm9307, %v8882
      %9438 = vst.msk [vmem:[#allocation3 + $0x410] sm:$0xff] %vm9307, %v8883
      %9439 = vst.msk [vmem:[#allocation3 + $0x418] sm:$0xff] %vm9307, %v8884
      %9440 = vst.msk [vmem:[#allocation3 + $0x420] sm:$0xff] %vm9307, %v8885
      %9441 = vst.msk [vmem:[#allocation3 + $0x428] sm:$0xff] %vm9307, %v8886
      %9442 = vst.msk [vmem:[#allocation3 + $0x430] sm:$0xff] %vm9307, %v8887
      %9443 = vst.msk [vmem:[#allocation3 + $0x438] sm:$0xff] %vm9307, %v8888
      %9444 = vst.msk [vmem:[#allocation3 + $0x440] sm:$0xff] %vm9307, %v8889
      %9445 = vst.msk [vmem:[#allocation3 + $0x448] sm:$0xff] %vm9307, %v8890
      %9446 = vst.msk [vmem:[#allocation3 + $0x450] sm:$0xff] %vm9307, %v8891
      %9447 = vst.msk [vmem:[#allocation3 + $0x458] sm:$0xff] %vm9307, %v8892
      %9448 = vst.msk [vmem:[#allocation3 + $0x460] sm:$0xff] %vm9307, %v8893
      %9449 = vst.msk [vmem:[#allocation3 + $0x468] sm:$0xff] %vm9307, %v8894
      %9450 = vst.msk [vmem:[#allocation3 + $0x470] sm:$0xff] %vm9307, %v8895
      %9451 = vst.msk [vmem:[#allocation3 + $0x478] sm:$0xff] %vm9307, %v8896
      %9452 = vst.msk [vmem:[#allocation3 + $0x480] sm:$0xff] %vm9307, %v8897
      %9453 = vst.msk [vmem:[#allocation3 + $0x488] sm:$0xff] %vm9307, %v8898
      %9454 = vst.msk [vmem:[#allocation3 + $0x490] sm:$0xff] %vm9307, %v8899
      %9455 = vst.msk [vmem:[#allocation3 + $0x498] sm:$0xff] %vm9307, %v8900
      %9456 = vst.msk [vmem:[#allocation3 + $0x4a0] sm:$0xff] %vm9307, %v8901
      %9457 = vst.msk [vmem:[#allocation3 + $0x4a8] sm:$0xff] %vm9307, %v8902
      %9458 = vst.msk [vmem:[#allocation3 + $0x4b0] sm:$0xff] %vm9307, %v8903
      %9459 = vst.msk [vmem:[#allocation3 + $0x4b8] sm:$0xff] %vm9307, %v8904
      %9460 = vst.msk [vmem:[#allocation3 + $0x4c0] sm:$0xff] %vm9307, %v8905
      %9461 = vst.msk [vmem:[#allocation3 + $0x4c8] sm:$0xff] %vm9307, %v8906
      %9462 = vst.msk [vmem:[#allocation3 + $0x4d0] sm:$0xff] %vm9307, %v8907
      %9463 = vst.msk [vmem:[#allocation3 + $0x4d8] sm:$0xff] %vm9307, %v8908
      %9464 = vst.msk [vmem:[#allocation3 + $0x4e0] sm:$0xff] %vm9307, %v8909
      %9465 = vst.msk [vmem:[#allocation3 + $0x4e8] sm:$0xff] %vm9307, %v8910
      %9466 = vst.msk [vmem:[#allocation3 + $0x4f0] sm:$0xff] %vm9307, %v8911
      %9467 = vst.msk [vmem:[#allocation3 + $0x4f8] sm:$0xff] %vm9307, %v8912
      %9468 = vst.msk [vmem:[#allocation3 + $0x500] sm:$0xff] %vm9307, %v8913
      %9469 = vst.msk [vmem:[#allocation3 + $0x508] sm:$0xff] %vm9307, %v8914
      %9470 = vst.msk [vmem:[#allocation3 + $0x510] sm:$0xff] %vm9307, %v8915
      %9471 = vst.msk [vmem:[#allocation3 + $0x518] sm:$0xff] %vm9307, %v8916
      %9472 = vst.msk [vmem:[#allocation3 + $0x520] sm:$0xff] %vm9307, %v8917
      %9473 = vst.msk [vmem:[#allocation3 + $0x528] sm:$0xff] %vm9307, %v8918
      %9474 = vst.msk [vmem:[#allocation3 + $0x530] sm:$0xff] %vm9307, %v8919
      %9475 = vst.msk [vmem:[#allocation3 + $0x538] sm:$0xff] %vm9307, %v8920
      %9476 = vst.msk [vmem:[#allocation3 + $0x540] sm:$0xff] %vm9307, %v8921
      %9477 = vst.msk [vmem:[#allocation3 + $0x548] sm:$0xff] %vm9307, %v8922
      %9478 = vst.msk [vmem:[#allocation3 + $0x550] sm:$0xff] %vm9307, %v8923
      %9479 = vst.msk [vmem:[#allocation3 + $0x558] sm:$0xff] %vm9307, %v8924
      %9480 = vst.msk [vmem:[#allocation3 + $0x560] sm:$0xff] %vm9307, %v8925
      %9481 = vst.msk [vmem:[#allocation3 + $0x568] sm:$0xff] %vm9307, %v8926
      %9482 = vst.msk [vmem:[#allocation3 + $0x570] sm:$0xff] %vm9307, %v8927
      %9483 = vst.msk [vmem:[#allocation3 + $0x578] sm:$0xff] %vm9307, %v8928
      %9484 = vst.msk [vmem:[#allocation3 + $0x580] sm:$0xff] %vm9307, %v8929
      %9485 = vst.msk [vmem:[#allocation3 + $0x588] sm:$0xff] %vm9307, %v8930
      %9486 = vst.msk [vmem:[#allocation3 + $0x590] sm:$0xff] %vm9307, %v8931
      %9487 = vst.msk [vmem:[#allocation3 + $0x598] sm:$0xff] %vm9307, %v8932
      %9488 = vst.msk [vmem:[#allocation3 + $0x5a0] sm:$0xff] %vm9307, %v8933
      %9489 = vst.msk [vmem:[#allocation3 + $0x5a8] sm:$0xff] %vm9307, %v8934
      %9490 = vst.msk [vmem:[#allocation3 + $0x5b0] sm:$0xff] %vm9307, %v8935
      %9491 = vst.msk [vmem:[#allocation3 + $0x5b8] sm:$0xff] %vm9307, %v8936
      %9492 = vst.msk [vmem:[#allocation3 + $0x5c0] sm:$0xff] %vm9307, %v8937
      %9493 = vst.msk [vmem:[#allocation3 + $0x5c8] sm:$0xff] %vm9307, %v8938
      %9494 = vst.msk [vmem:[#allocation3 + $0x5d0] sm:$0xff] %vm9307, %v8939
      %9495 = vst.msk [vmem:[#allocation3 + $0x5d8] sm:$0xff] %vm9307, %v8940
      %9496 = vst.msk [vmem:[#allocation3 + $0x5e0] sm:$0xff] %vm9307, %v8941
      %9497 = vst.msk [vmem:[#allocation3 + $0x5e8] sm:$0xff] %vm9307, %v8942
      %9498 = vst.msk [vmem:[#allocation3 + $0x5f0] sm:$0xff] %vm9307, %v8943
      %9499 = vst.msk [vmem:[#allocation3 + $0x5f8] sm:$0xff] %vm9307, %v8944
      %9500 = vst.msk [vmem:[#allocation3 + $0x600] sm:$0xff] %vm9307, %v8945
      %9501 = vst.msk [vmem:[#allocation3 + $0x608] sm:$0xff] %vm9307, %v8946
      %9502 = vst.msk [vmem:[#allocation3 + $0x610] sm:$0xff] %vm9307, %v8947
      %9503 = vst.msk [vmem:[#allocation3 + $0x618] sm:$0xff] %vm9307, %v8948
      %9504 = vst.msk [vmem:[#allocation3 + $0x620] sm:$0xff] %vm9307, %v8949
      %9505 = vst.msk [vmem:[#allocation3 + $0x628] sm:$0xff] %vm9307, %v8950
      %9506 = vst.msk [vmem:[#allocation3 + $0x630] sm:$0xff] %vm9307, %v8951
      %9507 = vst.msk [vmem:[#allocation3 + $0x638] sm:$0xff] %vm9307, %v8952
      %9508 = vst.msk [vmem:[#allocation3 + $0x640] sm:$0xff] %vm9307, %v8953
      %9509 = vst.msk [vmem:[#allocation3 + $0x648] sm:$0xff] %vm9307, %v8954
      %9510 = vst.msk [vmem:[#allocation3 + $0x650] sm:$0xff] %vm9307, %v8955
      %9511 = vst.msk [vmem:[#allocation3 + $0x658] sm:$0xff] %vm9307, %v8956
      %9512 = vst.msk [vmem:[#allocation3 + $0x660] sm:$0xff] %vm9307, %v8957
      %9513 = vst.msk [vmem:[#allocation3 + $0x668] sm:$0xff] %vm9307, %v8958
      %9514 = vst.msk [vmem:[#allocation3 + $0x670] sm:$0xff] %vm9307, %v8959
      %9515 = vst.msk [vmem:[#allocation3 + $0x678] sm:$0xff] %vm9307, %v8960
      %9516 = vst.msk [vmem:[#allocation3 + $0x680] sm:$0xff] %vm9307, %v8961
      %9517 = vst.msk [vmem:[#allocation3 + $0x688] sm:$0xff] %vm9307, %v8962
      %9518 = vst.msk [vmem:[#allocation3 + $0x690] sm:$0xff] %vm9307, %v8963
      %9519 = vst.msk [vmem:[#allocation3 + $0x698] sm:$0xff] %vm9307, %v8964
      %9520 = vst.msk [vmem:[#allocation3 + $0x6a0] sm:$0xff] %vm9307, %v8965
      %9521 = vst.msk [vmem:[#allocation3 + $0x6a8] sm:$0xff] %vm9307, %v8966
      %9522 = vst.msk [vmem:[#allocation3 + $0x6b0] sm:$0xff] %vm9307, %v8967
      %9523 = vst.msk [vmem:[#allocation3 + $0x6b8] sm:$0xff] %vm9307, %v8968
      %9524 = vst.msk [vmem:[#allocation3 + $0x6c0] sm:$0xff] %vm9307, %v8969
      %9525 = vst.msk [vmem:[#allocation3 + $0x6c8] sm:$0xff] %vm9307, %v8970
      %9526 = vst.msk [vmem:[#allocation3 + $0x6d0] sm:$0xff] %vm9307, %v8971
      %9527 = vst.msk [vmem:[#allocation3 + $0x6d8] sm:$0xff] %vm9307, %v8972
      %9528 = vst.msk [vmem:[#allocation3 + $0x6e0] sm:$0xff] %vm9307, %v8973
      %9529 = vst.msk [vmem:[#allocation3 + $0x6e8] sm:$0xff] %vm9307, %v8974
      %9530 = vst.msk [vmem:[#allocation3 + $0x6f0] sm:$0xff] %vm9307, %v8975
      %9531 = vst.msk [vmem:[#allocation3 + $0x6f8] sm:$0xff] %vm9307, %v8976
      %9532 = vst.msk [vmem:[#allocation3 + $0x700] sm:$0xff] %vm9307, %v8977
      %9533 = vst.msk [vmem:[#allocation3 + $0x708] sm:$0xff] %vm9307, %v8978
      %9534 = vst.msk [vmem:[#allocation3 + $0x710] sm:$0xff] %vm9307, %v8979
      %9535 = vst.msk [vmem:[#allocation3 + $0x718] sm:$0xff] %vm9307, %v8980
      %9536 = vst.msk [vmem:[#allocation3 + $0x720] sm:$0xff] %vm9307, %v8981
      %9537 = vst.msk [vmem:[#allocation3 + $0x728] sm:$0xff] %vm9307, %v8982
      %9538 = vst.msk [vmem:[#allocation3 + $0x730] sm:$0xff] %vm9307, %v8983
      %9539 = vst.msk [vmem:[#allocation3 + $0x738] sm:$0xff] %vm9307, %v8984
      %9540 = vst.msk [vmem:[#allocation3 + $0x740] sm:$0xff] %vm9307, %v8985
      %9541 = vst.msk [vmem:[#allocation3 + $0x748] sm:$0xff] %vm9307, %v8986
      %9542 = vst.msk [vmem:[#allocation3 + $0x750] sm:$0xff] %vm9307, %v8987
      %9543 = vst.msk [vmem:[#allocation3 + $0x758] sm:$0xff] %vm9307, %v8988
      %9544 = vst.msk [vmem:[#allocation3 + $0x760] sm:$0xff] %vm9307, %v8989
      %9545 = vst.msk [vmem:[#allocation3 + $0x768] sm:$0xff] %vm9307, %v8990
      %9546 = vst.msk [vmem:[#allocation3 + $0x770] sm:$0xff] %vm9307, %v8991
      %9547 = vst.msk [vmem:[#allocation3 + $0x778] sm:$0xff] %vm9307, %v8992
      %9548 = vst.msk [vmem:[#allocation3 + $0x780] sm:$0xff] %vm9307, %v8993
      %9549 = vst.msk [vmem:[#allocation3 + $0x788] sm:$0xff] %vm9307, %v8994
      %9550 = vst.msk [vmem:[#allocation3 + $0x790] sm:$0xff] %vm9307, %v8995
      %9551 = vst.msk [vmem:[#allocation3 + $0x798] sm:$0xff] %vm9307, %v8996
      %9552 = vst.msk [vmem:[#allocation3 + $0x7a0] sm:$0xff] %vm9307, %v8997
      %9553 = vst.msk [vmem:[#allocation3 + $0x7a8] sm:$0xff] %vm9307, %v8998
      %9554 = vst.msk [vmem:[#allocation3 + $0x7b0] sm:$0xff] %vm9307, %v8999
      %9555 = vst.msk [vmem:[#allocation3 + $0x7b8] sm:$0xff] %vm9307, %v9000
      %9556 = vst.msk [vmem:[#allocation3 + $0x7c0] sm:$0xff] %vm9307, %v9001
      %9557 = vst.msk [vmem:[#allocation3 + $0x7c8] sm:$0xff] %vm9307, %v9002
      %9558 = vst.msk [vmem:[#allocation3 + $0x7d0] sm:$0xff] %vm9307, %v9003
      %9559 = vst.msk [vmem:[#allocation3 + $0x7d8] sm:$0xff] %vm9307, %v9004
      %9560 = vst.msk [vmem:[#allocation3 + $0x7e0] sm:$0xff] %vm9307, %v9005
      %9561 = vst.msk [vmem:[#allocation3 + $0x7e8] sm:$0xff] %vm9307, %v9006
      %9562 = vst.msk [vmem:[#allocation3 + $0x7f0] sm:$0xff] %vm9307, %v9007
      %9563 = vst.msk [vmem:[#allocation3 + $0x7f8] sm:$0xff] %vm9307, %v9008
      %9564 = vst.msk [vmem:[#allocation3 + $0x800] sm:$0xff] %vm9307, %v9009
      %9565 = vst.msk [vmem:[#allocation3 + $0x808] sm:$0xff] %vm9307, %v9010
      %9566 = vst.msk [vmem:[#allocation3 + $0x810] sm:$0xff] %vm9307, %v9011
      %9567 = vst.msk [vmem:[#allocation3 + $0x818] sm:$0xff] %vm9307, %v9012
      %9568 = vst.msk [vmem:[#allocation3 + $0x820] sm:$0xff] %vm9307, %v9013
      %9569 = vst.msk [vmem:[#allocation3 + $0x828] sm:$0xff] %vm9307, %v9014
      %9570 = vst.msk [vmem:[#allocation3 + $0x830] sm:$0xff] %vm9307, %v9015
      %9571 = vst.msk [vmem:[#allocation3 + $0x838] sm:$0xff] %vm9307, %v9016
      %9572 = vst.msk [vmem:[#allocation3 + $0x840] sm:$0xff] %vm9307, %v9017
      %9573 = vst.msk [vmem:[#allocation3 + $0x848] sm:$0xff] %vm9307, %v9018
      %9574 = vst.msk [vmem:[#allocation3 + $0x850] sm:$0xff] %vm9307, %v9019
      %9575 = vst.msk [vmem:[#allocation3 + $0x858] sm:$0xff] %vm9307, %v9020
      %9576 = vst.msk [vmem:[#allocation3 + $0x860] sm:$0xff] %vm9307, %v9021
      %9577 = vst.msk [vmem:[#allocation3 + $0x868] sm:$0xff] %vm9307, %v9022
      %9578 = vst.msk [vmem:[#allocation3 + $0x870] sm:$0xff] %vm9307, %v9023
      %9579 = vst.msk [vmem:[#allocation3 + $0x878] sm:$0xff] %vm9307, %v9024
      %9580 = vst.msk [vmem:[#allocation3 + $0x880] sm:$0xff] %vm9307, %v9025
      %9581 = vst.msk [vmem:[#allocation3 + $0x888] sm:$0xff] %vm9307, %v9026
      %9582 = vst.msk [vmem:[#allocation3 + $0x890] sm:$0xff] %vm9307, %v9027
      %9583 = vst.msk [vmem:[#allocation3 + $0x898] sm:$0xff] %vm9307, %v9028
      %v9584 = vld [vmem:[%s4] sm:$0x1]
      loop: start=0, step=1, limit=21
      $region48: #{net_forward.3} parent=39 // loop_pre_header
        _
      $region49: #{net_forward.3} parent=39 // loop_header
        %s9586 = sphi 0, %s9590
        %p9587 = scmp.ge.s32.totalorder %s9586, 21
      $region50: #{net_forward.3} parent=39 // loop_header_branch
        %9589 = sbr.rel (%p9587) target = $region54
      $region51: #{net_forward.3} parent=39 // loop_body
        %s9591 = smul.u32 %s9586, 2
        loop: start=0, step=1, limit=5
        $region55: #{net_forward.3} parent=51 // loop_pre_header
          _
        $region56: #{net_forward.3} parent=51 // loop_header
          %s9593 = sphi 0, %s9597
          %p9594 = scmp.ge.s32.totalorder %s9593, 5
          %v9598 = vphi 0.0, %v9862
          %v9599 = vphi 0.0, %v9863
          %v9600 = vphi 0.0, %v9864
          %v9601 = vphi 0.0, %v9865
          %v9602 = vphi 0.0, %v9866
          %v9603 = vphi 0.0, %v9867
          %v9604 = vphi 0.0, %v9868
          %v9605 = vphi 0.0, %v9869
          %v9606 = vphi 0.0, %v9870
          %v9607 = vphi 0.0, %v9871
          %v9608 = vphi 0.0, %v9872
          %v9609 = vphi 0.0, %v9873
        $region57: #{net_forward.3} parent=51 // loop_header_branch
          %9596 = sbr.rel (%p9594) target = $region61
        $region58: #{net_forward.3} parent=51 // loop_body
          %s9610 = sadd.s32 %s9591, %s9593
          %s9611 = smul.u32 %s9610, 12
          %s9612 = smul.addr %s9611, 4
          %s9613 = scalar_lea.vmem [#allocation3], %s9612
          %v9614 = vld [vmem:[%s9613] sm:$0xff]
          %v9615 = vld [vmem:[%s9613 + $0x8] sm:$0xff]
          %v9616 = vld [vmem:[%s9613 + $0x10] sm:$0xff]
          %v9617 = vld [vmem:[%s9613 + $0x18] sm:$0xff]
          %v9618 = vld [vmem:[%s9613 + $0x20] sm:$0xff]
          %v9619 = vld [vmem:[%s9613 + $0x28] sm:$0xff]
          %v9620 = vld [vmem:[%s9613 + $0x30] sm:$0xff]
          %v9621 = vld [vmem:[%s9613 + $0x38] sm:$0xff]
          %v9622 = vld [vmem:[%s9613 + $0x40] sm:$0xff]
          %v9623 = vld [vmem:[%s9613 + $0x48] sm:$0xff]
          %v9624 = vld [vmem:[%s9613 + $0x50] sm:$0xff]
          %v9625 = vld [vmem:[%s9613 + $0x58] sm:$0xff]
          %s9626 = smul.u32 %s9593, 20
          %s9627 = smul.addr %s9626, 4
          %s9628 = scalar_lea.vmem %s3, %s9627
          %v9629 = vld [vmem:[%s9628] sm:$0xf]
          %v9630 = vld [vmem:[%s9628 + $0x4] sm:$0xf]
          %v9631 = vld [vmem:[%s9628 + $0x8] sm:$0xf]
          %v9632 = vld [vmem:[%s9628 + $0xc] sm:$0xf]
          %v9633 = vld [vmem:[%s9628 + $0x10] sm:$0xf]
          %v9634 = vld [vmem:[%s9628 + $0x14] sm:$0xf]
          %v9635 = vld [vmem:[%s9628 + $0x18] sm:$0xf]
          %v9636 = vld [vmem:[%s9628 + $0x1c] sm:$0xf]
          %v9637 = vld [vmem:[%s9628 + $0x20] sm:$0xf]
          %v9638 = vld [vmem:[%s9628 + $0x24] sm:$0xf]
          %v9639 = vld [vmem:[%s9628 + $0x28] sm:$0xf]
          %v9640 = vld [vmem:[%s9628 + $0x2c] sm:$0xf]
          %v9641 = vld [vmem:[%s9628 + $0x30] sm:$0xf]
          %v9642 = vld [vmem:[%s9628 + $0x34] sm:$0xf]
          %v9643 = vld [vmem:[%s9628 + $0x38] sm:$0xf]
          %v9644 = vld [vmem:[%s9628 + $0x3c] sm:$0xf]
          %v9645 = vld [vmem:[%s9628 + $0x40] sm:$0xf]
          %v9646 = vld [vmem:[%s9628 + $0x44] sm:$0xf]
          %v9647 = vld [vmem:[%s9628 + $0x48] sm:$0xf]
          %v9648 = vld [vmem:[%s9628 + $0x4c] sm:$0xf]
          %v9661 = vunpack.c.l.b16 %v9614
          %v9662 = vunpack.c.h.b16 %v9614
          %v9663 = vunpack.c.l.b16 %v9615
          %v9664 = vunpack.c.h.b16 %v9615
          %v9665 = vunpack.c.l.b16 %v9616
          %v9666 = vunpack.c.h.b16 %v9616
          %v9667 = vunpack.c.l.b16 %v9617
          %v9668 = vunpack.c.h.b16 %v9617
          %v9669 = vunpack.c.l.b16 %v9618
          %v9670 = vunpack.c.h.b16 %v9618
          %v9671 = vunpack.c.l.b16 %v9619
          %v9672 = vunpack.c.h.b16 %v9619
          %v9673 = vunpack.c.l.b16 %v9620
          %v9674 = vunpack.c.h.b16 %v9620
          %v9675 = vunpack.c.l.b16 %v9621
          %v9676 = vunpack.c.h.b16 %v9621
          %v9677 = vunpack.c.l.b16 %v9622
          %v9678 = vunpack.c.h.b16 %v9622
          %v9679 = vunpack.c.l.b16 %v9623
          %v9680 = vunpack.c.h.b16 %v9623
          %v9681 = vunpack.c.l.b16 %v9624
          %v9682 = vunpack.c.h.b16 %v9624
          %v9683 = vunpack.c.l.b16 %v9625
          %v9684 = vunpack.c.h.b16 %v9625
          %v9685 = vpack.c.b16 %v9663, %v9661
          %v9686 = vpack.c.b16 %v9664, %v9662
          %v9687 = vpack.c.b16 %v9667, %v9665
          %v9688 = vpack.c.b16 %v9668, %v9666
          %v9689 = vpack.c.b16 %v9671, %v9669
          %v9690 = vpack.c.b16 %v9672, %v9670
          %v9691 = vpack.c.b16 %v9675, %v9673
          %v9692 = vpack.c.b16 %v9676, %v9674
          %v9693 = vpack.c.b16 %v9679, %v9677
          %v9694 = vpack.c.b16 %v9680, %v9678
          %v9695 = vpack.c.b16 %v9683, %v9681
          %v9696 = vpack.c.b16 %v9684, %v9682
          %v9723 = vunpack.c.l.b16 %v9629
          %v9724 = vunpack.c.l.b16 %v9630
          %v9725 = vunpack.c.l.b16 %v9631
          %v9726 = vunpack.c.l.b16 %v9632
          %v9727 = vunpack.c.l.b16 %v9633
          %v9728 = vunpack.c.l.b16 %v9634
          %v9729 = vunpack.c.l.b16 %v9635
          %v9730 = vunpack.c.l.b16 %v9636
          %v9731 = vunpack.c.l.b16 %v9637
          %v9732 = vunpack.c.l.b16 %v9638
          %v9733 = vunpack.c.l.b16 %v9639
          %v9734 = vunpack.c.l.b16 %v9640
          %v9735 = vunpack.c.l.b16 %v9641
          %v9736 = vunpack.c.l.b16 %v9642
          %v9737 = vunpack.c.l.b16 %v9643
          %v9738 = vunpack.c.l.b16 %v9644
          %v9739 = vunpack.c.l.b16 %v9645
          %v9740 = vunpack.c.l.b16 %v9646
          %v9741 = vunpack.c.l.b16 %v9647
          %v9742 = vunpack.c.l.b16 %v9648
          %v9743 = vpack.c.b16 %v9724, %v9723
          %v9744 = vpack.c.b16 %v9726, %v9725
          %v9745 = vpack.c.b16 %v9728, %v9727
          %v9746 = vpack.c.b16 %v9730, %v9729
          %v9747 = vpack.c.b16 %v9732, %v9731
          %v9748 = vpack.c.b16 %v9734, %v9733
          %v9749 = vpack.c.b16 %v9736, %v9735
          %v9750 = vpack.c.b16 %v9738, %v9737
          %v9751 = vpack.c.b16 %v9740, %v9739
          %v9752 = vpack.c.b16 %v9742, %v9741
          %v9764 = vsel %vm7232, %v9686, 0
          %v9767 = vsel %vm7232, %v9688, 0
          %v9770 = vsel %vm7232, %v9690, 0
          %v9773 = vsel %vm7232, %v9692, 0
          %v9776 = vsel %vm7232, %v9694, 0
          %v9779 = vsel %vm7232, %v9696, 0
          %9781 = vmatprep.subr.bf16.mxu0 0
          %9782 = vmatpush1.bf16.msra.mxu0 %v9750
          %9783 = vmatprep.subr.bf16.mxu0 0
          %9784 = vmatpush1.bf16.msra.mxu0 %v9749
          %9785 = vmatprep.subr.bf16.mxu0 0
          %9786 = vmatpush1.bf16.msra.mxu0 %v9748
          %9787 = vmatprep.subr.bf16.mxu0 0
          %9788 = vmatpush1.bf16.msra.mxu0 %v9747
          %9789 = vmatprep.subr.bf16.mxu0 0
          %9790 = vmatpush1.bf16.msra.mxu0 %v9746
          %9791 = vmatprep.subr.bf16.mxu0 0
          %9792 = vmatpush1.bf16.msra.mxu0 %v9745
          %9793 = vmatprep.subr.bf16.mxu0 0
          %9794 = vmatpush1.bf16.msra.mxu0 %v9744
          %9795 = vmatprep.subr.bf16.mxu0 0
          %9796 = vmatpush1.bf16.msra.mxu0 %v9743
          %9797 = vmatprep.subr.bf16.mxu0 0
          %9798 = vmatpush2.bf16.msra.mxu0 0
          %9799 = vmatprep.subr.bf16.mxu0 0
          %9800 = vmatpush2.bf16.msra.mxu0 0
          %9801 = vmatprep.subr.bf16.mxu0 0
          %9802 = vmatpush2.bf16.msra.mxu0 0
          %9803 = vmatprep.subr.bf16.mxu0 0
          %9804 = vmatpush2.bf16.msra.mxu0 0
          %9805 = vmatprep.subr.bf16.mxu0 0
          %9806 = vmatpush2.bf16.msra.mxu0 0
          %9807 = vmatprep.subr.bf16.mxu0 0
          %9808 = vmatpush2.bf16.msra.mxu0 0
          %9809 = vmatprep.subr.bf16.mxu0 0
          %9810 = vmatpush2.bf16.msra.mxu0 %v9752
          %9811 = vmatprep.subr.bf16.mxu0 0
          %9812 = vmatpush2.bf16.msra.mxu0 %v9751
          %9813 = vmatprep.mubr.bf16.mxu0 %v9764
          %9814 = vmatmul.mubr.bf16.gmra.mxu0 %v9685
          %v9815 = vpop.f32.mrf.mxu0
          %v9816 = vadd.f32 0.0, %v9815
          %v9817 = vpop.f32.mrf.mxu0
          %v9818 = vpop.f32.mrf.mxu0
          %v9819 = vadd.f32 0.0, %v9818
          %v9820 = vpop.f32.mrf.mxu0
          %9821 = vmatprep.mubr.bf16.mxu0 %v9767
          %9822 = vmatmul.mubr.bf16.gmra.mxu0 %v9687
          %v9823 = vpop.f32.mrf.mxu0
          %v9824 = vadd.f32 0.0, %v9823
          %v9825 = vpop.f32.mrf.mxu0
          %v9826 = vpop.f32.mrf.mxu0
          %v9827 = vadd.f32 0.0, %v9826
          %v9828 = vpop.f32.mrf.mxu0
          %9829 = vmatprep.mubr.bf16.mxu0 %v9770
          %9830 = vmatmul.mubr.bf16.gmra.mxu0 %v9689
          %v9831 = vpop.f32.mrf.mxu0
          %v9832 = vadd.f32 0.0, %v9831
          %v9833 = vpop.f32.mrf.mxu0
          %v9834 = vpop.f32.mrf.mxu0
          %v9835 = vadd.f32 0.0, %v9834
          %v9836 = vpop.f32.mrf.mxu0
          %9837 = vmatprep.mubr.bf16.mxu0 %v9773
          %9838 = vmatmul.mubr.bf16.gmra.mxu0 %v9691
          %v9839 = vpop.f32.mrf.mxu0
          %v9840 = vadd.f32 0.0, %v9839
          %v9841 = vpop.f32.mrf.mxu0
          %v9842 = vpop.f32.mrf.mxu0
          %v9843 = vadd.f32 0.0, %v9842
          %v9844 = vpop.f32.mrf.mxu0
          %9845 = vmatprep.mubr.bf16.mxu0 %v9776
          %9846 = vmatmul.mubr.bf16.gmra.mxu0 %v9693
          %v9847 = vpop.f32.mrf.mxu0
          %v9848 = vadd.f32 0.0, %v9847
          %v9849 = vpop.f32.mrf.mxu0
          %v9850 = vpop.f32.mrf.mxu0
          %v9851 = vadd.f32 0.0, %v9850
          %v9852 = vpop.f32.mrf.mxu0
          %9853 = vmatprep.mubr.bf16.mxu0 %v9779
          %9854 = vmatmul.mubr.bf16.gmra.mxu0 %v9695
          %v9855 = vpop.f32.mrf.mxu0
          %v9856 = vadd.f32 0.0, %v9855
          %v9857 = vpop.f32.mrf.mxu0
          %v9858 = vpop.f32.mrf.mxu0
          %v9859 = vadd.f32 0.0, %v9858
          %v9860 = vpop.f32.mrf.mxu0
          %9861 = vdwg.mxu0
          %v9862 = vadd.f32 %v9598, %v9816
          %v9863 = vadd.f32 %v9599, %v9819
          %v9864 = vadd.f32 %v9600, %v9824
          %v9865 = vadd.f32 %v9601, %v9827
          %v9866 = vadd.f32 %v9602, %v9832
          %v9867 = vadd.f32 %v9603, %v9835
          %v9868 = vadd.f32 %v9604, %v9840
          %v9869 = vadd.f32 %v9605, %v9843
          %v9870 = vadd.f32 %v9606, %v9848
          %v9871 = vadd.f32 %v9607, %v9851
          %v9872 = vadd.f32 %v9608, %v9856
          %v9873 = vadd.f32 %v9609, %v9859
        $region59: #{net_forward.3} parent=51 // loop_footer
          %s9597 = sadd.s32 1, %s9593
        $region60: #{net_forward.3} parent=51 // loop_footer_branch
          %9592 = sbr.rel target = $region56
        $region61: #{net_forward.3} parent=51 // loop_exit
          _
        %v9875 = vlaneseq
        %v9876 = vshrl.u32 %v9875, 7
        %v9877 = vsub.s32 0, %v9876
        %v9878 = vrot.slane %v9584, %v9877
        %v9880 = vadd.f32 %v9598, %v9878
        %v9881 = vadd.f32 %v9599, %v9878
        %v9882 = vadd.f32 %v9600, %v9878
        %v9883 = vadd.f32 %v9601, %v9878
        %v9884 = vadd.f32 %v9602, %v9878
        %v9885 = vadd.f32 %v9603, %v9878
        %v9886 = vadd.f32 %v9604, %v9878
        %v9887 = vadd.f32 %v9605, %v9878
        %v9888 = vadd.f32 %v9606, %v9878
        %v9889 = vadd.f32 %v9607, %v9878
        %v9890 = vadd.f32 %v9608, %v9878
        %v9891 = vadd.f32 %v9609, %v9878
        %v9892 = vmax.f32 %v9880, 0.0
        %v9893 = vmax.f32 %v9881, 0.0
        %v9894 = vmax.f32 %v9882, 0.0
        %v9895 = vmax.f32 %v9883, 0.0
        %v9896 = vmax.f32 %v9884, 0.0
        %v9897 = vmax.f32 %v9885, 0.0
        %v9898 = vmax.f32 %v9886, 0.0
        %v9899 = vmax.f32 %v9887, 0.0
        %v9900 = vmax.f32 %v9888, 0.0
        %v9901 = vmax.f32 %v9889, 0.0
        %v9902 = vmax.f32 %v9890, 0.0
        %v9903 = vmax.f32 %v9891, 0.0
        %v9904 = vmax.f32 %v9892, %v9898
        %v9905 = vmax.f32 %v9893, %v9899
        %v9906 = vmax.f32 %v9894, %v9900
        %v9907 = vmax.f32 %v9895, %v9901
        %v9908 = vmax.f32 %v9896, %v9902
        %v9909 = vmax.f32 %v9897, %v9903
        %v9916 = vcombine.high %v9904, %v9904
        %v9918 = vunpack.c.l.s4 1983009808
        %v9919 = vunpack.c.0.s8 %v9918
        %v9920 = vlaneseq
        %v9921 = vshrl.u32 %v9920, 7
        %v9922 = vsub.s32 %v9919, %v9921
        %v9923 = vrot.slane %v9904, %v9922
        %v9925 = vunpack.c.l.s4 1983009808
        %v9926 = vunpack.c.0.s8 %v9925
        %v9927 = vlaneseq
        %v9928 = vshrl.u32 %v9927, 7
        %v9929 = vsub.s32 %v9926, %v9928
        %v9930 = vrot.slane %v9916, %v9929
        %v9931 = vcombine.high %v9923, %v9923
        %v9932 = vcombine.high %v9930, %v9930
        %v9933 = vcombine.high %v9905, %v9905
        %v9935 = vunpack.c.l.s4 1983009808
        %v9936 = vunpack.c.0.s8 %v9935
        %v9937 = vlaneseq
        %v9938 = vshrl.u32 %v9937, 7
        %v9939 = vsub.s32 %v9936, %v9938
        %v9940 = vrot.slane %v9905, %v9939
        %v9942 = vunpack.c.l.s4 1983009808
        %v9943 = vunpack.c.0.s8 %v9942
        %v9944 = vlaneseq
        %v9945 = vshrl.u32 %v9944, 7
        %v9946 = vsub.s32 %v9943, %v9945
        %v9947 = vrot.slane %v9933, %v9946
        %v9948 = vcombine.high %v9940, %v9940
        %v9949 = vcombine.high %v9947, %v9947
        %v9950 = vcombine.high %v9906, %v9906
        %v9952 = vunpack.c.l.s4 1983009808
        %v9953 = vunpack.c.0.s8 %v9952
        %v9954 = vlaneseq
        %v9955 = vshrl.u32 %v9954, 7
        %v9956 = vsub.s32 %v9953, %v9955
        %v9957 = vrot.slane %v9906, %v9956
        %v9959 = vunpack.c.l.s4 1983009808
        %v9960 = vunpack.c.0.s8 %v9959
        %v9961 = vlaneseq
        %v9962 = vshrl.u32 %v9961, 7
        %v9963 = vsub.s32 %v9960, %v9962
        %v9964 = vrot.slane %v9950, %v9963
        %v9965 = vcombine.high %v9957, %v9957
        %v9966 = vcombine.high %v9964, %v9964
        %v9967 = vcombine.high %v9907, %v9907
        %v9969 = vunpack.c.l.s4 1983009808
        %v9970 = vunpack.c.0.s8 %v9969
        %v9971 = vlaneseq
        %v9972 = vshrl.u32 %v9971, 7
        %v9973 = vsub.s32 %v9970, %v9972
        %v9974 = vrot.slane %v9907, %v9973
        %v9976 = vunpack.c.l.s4 1983009808
        %v9977 = vunpack.c.0.s8 %v9976
        %v9978 = vlaneseq
        %v9979 = vshrl.u32 %v9978, 7
        %v9980 = vsub.s32 %v9977, %v9979
        %v9981 = vrot.slane %v9967, %v9980
        %v9982 = vcombine.high %v9974, %v9974
        %v9983 = vcombine.high %v9981, %v9981
        %v9984 = vcombine.high %v9908, %v9908
        %v9986 = vunpack.c.l.s4 1983009808
        %v9987 = vunpack.c.0.s8 %v9986
        %v9988 = vlaneseq
        %v9989 = vshrl.u32 %v9988, 7
        %v9990 = vsub.s32 %v9987, %v9989
        %v9991 = vrot.slane %v9908, %v9990
        %v9993 = vunpack.c.l.s4 1983009808
        %v9994 = vunpack.c.0.s8 %v9993
        %v9995 = vlaneseq
        %v9996 = vshrl.u32 %v9995, 7
        %v9997 = vsub.s32 %v9994, %v9996
        %v9998 = vrot.slane %v9984, %v9997
        %v9999 = vcombine.high %v9991, %v9991
        %v10000 = vcombine.high %v9998, %v9998
        %v10002 = vunpack.c.l.s4 1983009808
        %v10003 = vunpack.c.0.s8 %v10002
        %v10004 = vlaneseq
        %v10005 = vshrl.u32 %v10004, 7
        %v10006 = vsub.s32 %v10003, %v10005
        %v10007 = vrot.slane %v9909, %v10006
        %v10029 = vrot.slane %v9923, 7
        %v10030 = vrot.slane %v10029, 2
        %v10031 = vrot.slane %v9931, 7
        %v10032 = vrot.slane %v10031, 2
        %v10033 = vrot.slane %v9930, 7
        %v10034 = vrot.slane %v10033, 2
        %v10035 = vrot.slane %v9932, 7
        %v10036 = vrot.slane %v10035, 2
        %v10037 = vrot.slane %v9940, 7
        %v10038 = vrot.slane %v10037, 2
        %v10039 = vrot.slane %v9948, 7
        %v10040 = vrot.slane %v10039, 2
        %v10041 = vrot.slane %v9947, 7
        %v10042 = vrot.slane %v10041, 2
        %v10043 = vrot.slane %v9949, 7
        %v10044 = vrot.slane %v10043, 2
        %v10045 = vrot.slane %v9957, 7
        %v10046 = vrot.slane %v10045, 2
        %v10047 = vrot.slane %v9965, 7
        %v10048 = vrot.slane %v10047, 2
        %v10049 = vrot.slane %v9964, 7
        %v10050 = vrot.slane %v10049, 2
        %v10051 = vrot.slane %v9966, 7
        %v10052 = vrot.slane %v10051, 2
        %v10053 = vrot.slane %v9974, 7
        %v10054 = vrot.slane %v10053, 2
        %v10055 = vrot.slane %v9982, 7
        %v10056 = vrot.slane %v10055, 2
        %v10057 = vrot.slane %v9981, 7
        %v10058 = vrot.slane %v10057, 2
        %v10059 = vrot.slane %v9983, 7
        %v10060 = vrot.slane %v10059, 2
        %v10061 = vrot.slane %v9991, 7
        %v10062 = vrot.slane %v10061, 2
        %v10063 = vrot.slane %v9999, 7
        %v10064 = vrot.slane %v10063, 2
        %v10065 = vrot.slane %v9998, 7
        %v10066 = vrot.slane %v10065, 2
        %v10067 = vrot.slane %v10000, 7
        %v10068 = vrot.slane %v10067, 2
        %v10069 = vrot.slane %v10007, 7
        %v10070 = vrot.slane %v10069, 2
        %v10092 = vmax.f32 %v9923, %v10030
        %v10093 = vmax.f32 %v9931, %v10032
        %v10094 = vmax.f32 %v9930, %v10034
        %v10095 = vmax.f32 %v9932, %v10036
        %v10096 = vmax.f32 %v9940, %v10038
        %v10097 = vmax.f32 %v9948, %v10040
        %v10098 = vmax.f32 %v9947, %v10042
        %v10099 = vmax.f32 %v9949, %v10044
        %v10100 = vmax.f32 %v9957, %v10046
        %v10101 = vmax.f32 %v9965, %v10048
        %v10102 = vmax.f32 %v9964, %v10050
        %v10103 = vmax.f32 %v9966, %v10052
        %v10104 = vmax.f32 %v9974, %v10054
        %v10105 = vmax.f32 %v9982, %v10056
        %v10106 = vmax.f32 %v9981, %v10058
        %v10107 = vmax.f32 %v9983, %v10060
        %v10108 = vmax.f32 %v9991, %v10062
        %v10109 = vmax.f32 %v9999, %v10064
        %v10110 = vmax.f32 %v9998, %v10066
        %v10111 = vmax.f32 %v10000, %v10068
        %v10112 = vmax.f32 %v10007, %v10070
        %v10113 = vpack.c.bf16 %v10092, %v10092
        %v10114 = vpack.c.bf16 %v10093, %v10093
        %v10115 = vpack.c.bf16 %v10094, %v10094
        %v10116 = vpack.c.bf16 %v10095, %v10095
        %v10117 = vpack.c.bf16 %v10096, %v10096
        %v10118 = vpack.c.bf16 %v10097, %v10097
        %v10119 = vpack.c.bf16 %v10098, %v10098
        %v10120 = vpack.c.bf16 %v10099, %v10099
        %v10121 = vpack.c.bf16 %v10100, %v10100
        %v10122 = vpack.c.bf16 %v10101, %v10101
        %v10123 = vpack.c.bf16 %v10102, %v10102
        %v10124 = vpack.c.bf16 %v10103, %v10103
        %v10125 = vpack.c.bf16 %v10104, %v10104
        %v10126 = vpack.c.bf16 %v10105, %v10105
        %v10127 = vpack.c.bf16 %v10106, %v10106
        %v10128 = vpack.c.bf16 %v10107, %v10107
        %v10129 = vpack.c.bf16 %v10108, %v10108
        %v10130 = vpack.c.bf16 %v10109, %v10109
        %v10131 = vpack.c.bf16 %v10110, %v10110
        %v10132 = vpack.c.bf16 %v10111, %v10111
        %v10133 = vpack.c.bf16 %v10112, %v10112
        %v10155 = vunpack.c.l.b16 %v10113
        %v10156 = vunpack.c.l.b16 %v10114
        %v10157 = vunpack.c.l.b16 %v10115
        %v10158 = vunpack.c.l.b16 %v10116
        %v10159 = vunpack.c.l.b16 %v10117
        %v10160 = vunpack.c.l.b16 %v10118
        %v10161 = vunpack.c.l.b16 %v10119
        %v10162 = vunpack.c.l.b16 %v10120
        %v10163 = vunpack.c.l.b16 %v10121
        %v10164 = vunpack.c.l.b16 %v10122
        %v10165 = vunpack.c.l.b16 %v10123
        %v10166 = vunpack.c.l.b16 %v10124
        %v10167 = vunpack.c.l.b16 %v10125
        %v10168 = vunpack.c.l.b16 %v10126
        %v10169 = vunpack.c.l.b16 %v10127
        %v10170 = vunpack.c.l.b16 %v10128
        %v10171 = vunpack.c.l.b16 %v10129
        %v10172 = vunpack.c.l.b16 %v10130
        %v10173 = vunpack.c.l.b16 %v10131
        %v10174 = vunpack.c.l.b16 %v10132
        %v10175 = vunpack.c.l.b16 %v10133
        %v10176 = vpack.c.b16 %v10155, %v10155
        %v10177 = vpack.c.b16 %v10156, %v10156
        %v10178 = vpack.c.b16 %v10157, %v10157
        %v10179 = vpack.c.b16 %v10158, %v10158
        %v10180 = vpack.c.b16 %v10159, %v10159
        %v10181 = vpack.c.b16 %v10160, %v10160
        %v10182 = vpack.c.b16 %v10161, %v10161
        %v10183 = vpack.c.b16 %v10162, %v10162
        %v10184 = vpack.c.b16 %v10163, %v10163
        %v10185 = vpack.c.b16 %v10164, %v10164
        %v10186 = vpack.c.b16 %v10165, %v10165
        %v10187 = vpack.c.b16 %v10166, %v10166
        %v10188 = vpack.c.b16 %v10167, %v10167
        %v10189 = vpack.c.b16 %v10168, %v10168
        %v10190 = vpack.c.b16 %v10169, %v10169
        %v10191 = vpack.c.b16 %v10170, %v10170
        %v10192 = vpack.c.b16 %v10171, %v10171
        %v10193 = vpack.c.b16 %v10172, %v10172
        %v10194 = vpack.c.b16 %v10173, %v10173
        %v10195 = vpack.c.b16 %v10174, %v10174
        %v10196 = vpack.c.b16 %v10175, %v10175
        %v10197 = vunpack.c.l.b16 %v10176
        %v10198 = vunpack.c.l.b16 %v10177
        %v10199 = vunpack.c.l.b16 %v10178
        %v10200 = vunpack.c.l.b16 %v10179
        %v10201 = vunpack.c.l.b16 %v10180
        %v10202 = vunpack.c.l.b16 %v10181
        %v10203 = vunpack.c.l.b16 %v10182
        %v10204 = vunpack.c.l.b16 %v10183
        %v10205 = vunpack.c.l.b16 %v10184
        %v10206 = vunpack.c.l.b16 %v10185
        %v10207 = vunpack.c.l.b16 %v10186
        %v10208 = vunpack.c.l.b16 %v10187
        %v10209 = vunpack.c.l.b16 %v10188
        %v10210 = vunpack.c.l.b16 %v10189
        %v10211 = vunpack.c.l.b16 %v10190
        %v10212 = vunpack.c.l.b16 %v10191
        %v10213 = vunpack.c.l.b16 %v10192
        %v10214 = vunpack.c.l.b16 %v10193
        %v10215 = vunpack.c.l.b16 %v10194
        %v10216 = vunpack.c.l.b16 %v10195
        %v10217 = vunpack.c.l.b16 %v10196
        %v10218 = vrot.slane %v10198, 7
        %vm10219 = vcmask 1041409
        %v10220 = vsel %vm10219, %v10218, %v10197
        %v10221 = vrot.slane %v10199, 6
        %vm10222 = vcmask 1042434
        %v10223 = vsel %vm10222, %v10221, %v10220
        %v10224 = vrot.slane %v10200, 5
        %vm10225 = vcmask 1043459
        %v10226 = vsel %vm10225, %v10224, %v10223
        %v10227 = vrot.slane %v10201, 4
        %vm10228 = vcmask 1044484
        %v10229 = vsel %vm10228, %v10227, %v10226
        %v10230 = vrot.slane %v10202, 3
        %vm10231 = vcmask 1045509
        %v10232 = vsel %vm10231, %v10230, %v10229
        %v10233 = vrot.slane %v10203, 2
        %vm10234 = vcmask 1046534
        %v10235 = vsel %vm10234, %v10233, %v10232
        %v10236 = vrot.slane %v10204, 1
        %vm10237 = vcmask 1047559
        %v10238 = vsel %vm10237, %v10236, %v10235
        %v10239 = vrot.slane %v10206, 7
        %v10240 = vsel %vm10219, %v10239, %v10205
        %v10241 = vrot.slane %v10207, 6
        %v10242 = vsel %vm10222, %v10241, %v10240
        %v10243 = vrot.slane %v10208, 5
        %v10244 = vsel %vm10225, %v10243, %v10242
        %v10245 = vrot.slane %v10209, 4
        %v10246 = vsel %vm10228, %v10245, %v10244
        %v10247 = vrot.slane %v10210, 3
        %v10248 = vsel %vm10231, %v10247, %v10246
        %v10249 = vrot.slane %v10211, 2
        %v10250 = vsel %vm10234, %v10249, %v10248
        %v10251 = vrot.slane %v10212, 1
        %v10252 = vsel %vm10237, %v10251, %v10250
        %v10253 = vrot.slane %v10214, 7
        %v10254 = vsel %vm10219, %v10253, %v10213
        %v10255 = vrot.slane %v10215, 6
        %v10256 = vsel %vm10222, %v10255, %v10254
        %v10257 = vrot.slane %v10216, 5
        %v10258 = vsel %vm10225, %v10257, %v10256
        %v10259 = vrot.slane %v10217, 4
        %v10260 = vsel %vm10228, %v10259, %v10258
        %v10261 = vpack.c.b16 %v10238, %v10238
        %v10262 = vpack.c.b16 %v10252, %v10252
        %v10263 = vpack.c.b16 %v10260, %v10260
        %s10267 = smul.u32 %s9586, 3
        %s10268 = smul.addr %s10267, 4
        %s10269 = scalar_lea.vmem %s224, %s10268
        %vm10270 = vcmask 519168
        %10271 = vst.msk [vmem:[%s10269] sm:$0xf] %vm10270, %v10261
        %10272 = vst.msk [vmem:[%s10269 + $0x4] sm:$0xf] %vm10270, %v10262
        %vm10273 = vcmask 518144
        %vm10274 = vsmask.f32 2304
        %vm10275 = vmand %vm10273, %vm10274
        %v10276 = vld [vmem:[%s10269 + $0x8] sm:$0x7]
        %v10277 = vsel %vm10275, %v10263, %v10276
        %10278 = vst [vmem:[%s10269 + $0x8] sm:$0x7] %v10277
      $region52: #{net_forward.3} parent=39 // loop_footer
        %s9590 = sadd.s32 1, %s9586
      $region53: #{net_forward.3} parent=39 // loop_footer_branch
        %9585 = sbr.rel target = $region49
      $region54: #{net_forward.3} parent=39 // loop_exit
        _
      %p10279 = scmp.lt.s32.totalorder %s16, 1
      %s10280 = scalar_select %p10279, %s16, 1
      %s10281 = smul.addr %s10280, 63
      %s10282 = smul.addr %s10281, 4
      %s10283 = scalar_lea.vmem %s5, %s10282
      // Predicated region
      $region62: #{net_forward.3} parent=39 // pred_check
        %p10284 = pneg %p144
      $region63: #{net_forward.3} parent=39 // pred_check_branch
        %10286 = sbr.rel (%p10284) target = $region65
      $region64: #{net_forward.3} parent=39 // pred_region
        _
      $region65: #{net_forward.3} parent=39 // pred_fallthru
        _
    $region40: #{net_forward.3} parent=5 // pred_fallthru
      _
    %p10287 = scmp.le.s32.totalorder 2, %s11
    // Predicated region
    $region66: #{net_forward.3} parent=5 // pred_check
      %p10288 = pneg %p10287
    $region67: #{net_forward.3} parent=5 // pred_check_branch
      %10290 = sbr.rel (%p10288) target = $region69
    $region68: #{net_forward.3} parent=5 // pred_region
      %s10291 = ssub.s32 %s11, 2
      // Predicated region
      $region70: #{net_forward.3} parent=68 // pred_check
        %p10292 = pneg %p150
      $region71: #{net_forward.3} parent=68 // pred_check_branch
        %10294 = sbr.rel (%p10292) target = $region73
      $region72: #{net_forward.3} parent=68 // pred_region
        %p10295 = scmp.lt.s32.totalorder %s17, 1
        %s10296 = scalar_select %p10295, %s17, 1
        %s10297 = smul.addr %s10296, 63
        %s10298 = smul.addr %s10297, 4
        %s10299 = scalar_lea.vmem %s5, %s10298
      $region73: #{net_forward.3} parent=68 // pred_fallthru
        _
    $region69: #{net_forward.3} parent=5 // pred_fallthru
      _
  $region6: #{net_forward.3} parent=0 // loop_footer
    %s15 = sadd.s32 1, %s11
  $region7: #{net_forward.3} parent=0 // loop_footer_branch
    %10 = sbr.rel target = $region3
  $region8: #{net_forward.3} parent=0 // loop_exit
    _

</llo_original>
